<compile_context>
chip_gen: v5e
topology: v5e:2x2
jax: 0.10.0
libtpu: 0.0.40
codegen_flags: <defaults>
</compile_context>

<pallas_src>
import math

import jax
import jax.numpy as jnp
from jax import lax
from jax.experimental import pallas as pl
from jax.experimental.pallas import tpu as pltpu


_SQRT1_2 = 1.0 / math.sqrt(2.0)
_ROW_ALIGN = 16                    # bf16 sublane packing: row tiles % 16 == 0
_VMEM_LIMIT = 32 * 1024 * 1024     # >= default scoped VMEM on v5e/v6e/v7x


# ----------------------------------------------------------------------------
# In-kernel helpers
# ----------------------------------------------------------------------------
def _gelu_exact(x):
    """Exact (erf-based) GELU matching torch.nn.GELU() default.

    erf via Abramowitz & Stegun 7.1.26 rational approx (|err| < 1.5e-7),
    using only ops guaranteed to lower on Mosaic (abs/exp/where/arith).
    """
    z = x * _SQRT1_2
    az = jnp.abs(z)
    t = 1.0 / (1.0 + 0.3275911 * az)
    poly = t * (0.254829592
                + t * (-0.284496736
                       + t * (1.421413741
                              + t * (-1.453152027 + t * 1.061405429))))
    erf_abs = 1.0 - poly * jnp.exp(-az * az)
    erf = jnp.where(z >= 0, erf_abs, -erf_abs)
    return 0.5 * x * (1.0 + erf)


# ----------------------------------------------------------------------------
# Kernels
# ----------------------------------------------------------------------------
def _conv_gelu_pool_kernel(p_ref, w_ref, b_ref, o_ref):
    """Fused conv + bias + GELU + 2x2/2 maxpool for one tile of pooled pixels.

    p_ref: (4, T, K)  bf16 im2col patches (one slab per pooling phase)
    w_ref: (K, OC)    bf16 conv weight, rows ordered (kh, kw, cin)
    b_ref: (1, OC)    f32
    o_ref: (T, OC)    bf16 pooled activations
    """
    _, t, k = p_ref.shape
    # Merge the 4 phase slabs along M (layout-free: t % 16 == 0) so the MXU
    # sees one long matmul instead of 4 short ones.
    p = p_ref[...].reshape(4 * t, k)
    y = jnp.dot(p, w_ref[...], preferred_element_type=jnp.float32) + b_ref[...]
    y = _gelu_exact(y)
    # Fused maxpool: elementwise max over the 4 sublane-aligned row groups.
    pooled = jnp.maximum(jnp.maximum(y[0:t], y[t:2 * t]),
                         jnp.maximum(y[2 * t:3 * t], y[3 * t:4 * t]))
    o_ref[...] = pooled.astype(o_ref.dtype)


def _conv_pool_fc_kernel(p_ref, w_ref, b_ref, wf_ref, bf_ref, o_ref):
    """Second conv block fused with flatten + Linear head, one batch tile.

    p_ref : (4, P, TB, K)  bf16 patches (phase, position, batch, K)
    w_ref : (K, CH)        bf16 conv2 weight
    b_ref : (1, CH)        f32
    wf_ref: (P*CH, NC)     f32 FC weight, row = position*CH + channel
                           (PyTorch NCHW-flatten order pre-folded)
    bf_ref: (1, NC)        f32
    o_ref : (TB, NC)       f32 logits for this batch tile
    """
    _, n_pos, tb, k = p_ref.shape
    ch = w_ref.shape[1]
    # Single long-M matmul over all phases/positions/batch rows
    # (layout-free merge: tb % 16 == 0 for bf16).
    p = p_ref[...].reshape(4 * n_pos * tb, k)
    y = jnp.dot(p, w_ref[...], preferred_element_type=jnp.float32) + b_ref[...]
    y = _gelu_exact(y)
    g = n_pos * tb
    acc = jnp.maximum(jnp.maximum(y[0:g], y[g:2 * g]),
                      jnp.maximum(y[2 * g:3 * g], y[3 * g:4 * g]))
    # acc rows are (position, batch); FC = sum over positions of
    # (TB, CH) @ (CH, NC).  All slices static and sublane-aligned.
    logits = None
    for pos in range(n_pos):                         # static unroll, small
        feat = acc[pos * tb:(pos + 1) * tb, :]       # (TB, CH)
        wf_p = wf_ref[pos * ch:(pos + 1) * ch, :]    # (CH, NC)
        c = jnp.dot(feat, wf_p, preferred_element_type=jnp.float32)
        logits = c if logits is None else logits + c
    o_ref[...] = logits + bf_ref[...]


# ----------------------------------------------------------------------------
# Wrapper-side layout glue
# ----------------------------------------------------------------------------
def _round_up(x, m):
    return (x + m - 1) // m * m


def _balanced_tile(n, want, align):
    """Largest tile <= want (rounded to align) that splits n evenly-ish."""
    want = max(align, _round_up(want, align))
    n_tiles = max(1, -(-n // want))
    return _round_up(-(-n // n_tiles), align)


def _pool_phase_patches(x_hwbc, ksize, pad):
    """im2col patches for conv(k, stride 1, padding=pad) followed by a 2x2/2
    max-pool, split into the 4 pooling phases.  Plain-JAX layout glue
    (data movement only).  Input/rows are position-major (HWBC) so the stage
    outputs chain into the next stage's im2col with no transposes.

    Returns (patches, (PH, PW)):
      patches: (4, PH*PW, B, ksize*ksize*C), columns ordered (kh, kw, cin).
    """
    H, W, B, C = x_hwbc.shape
    OH = H + 2 * pad - ksize + 1
    OW = W + 2 * pad - ksize + 1
    PH, PW = OH // 2, OW // 2
    xp = jnp.pad(x_hwbc, ((pad, pad), (pad, pad), (0, 0), (0, 0)))
    phases = []
    for dh in range(2):
        for dw in range(2):
            cols = []
            for kh in range(ksize):
                for kw in range(ksize):
                    h0 = dh + kh
                    w0 = dw + kw
                    win = xp[h0:h0 + 2 * PH:2, w0:w0 + 2 * PW:2, :, :]
                    cols.append(win.reshape(PH * PW, B, C))
            phases.append(jnp.concatenate(cols, axis=-1))
    return jnp.stack(phases, axis=0), (PH, PW)


# ----------------------------------------------------------------------------
# pallas_call wrappers
# ----------------------------------------------------------------------------
def _conv_gelu_pool(patches, w_mat, b_row, *, tile_rows):
    """Tiled/pipelined conv+GELU+maxpool stage (grid over pooled pixels)."""
    _, n_rows, k = patches.shape
    oc = w_mat.shape[1]
    # Balanced row tiles (multiples of 16), capped so the double-buffered
    # bf16 patch slab stays well inside the scoped VMEM budget on every gen.
    tr = _balanced_tile(n_rows, tile_rows, _ROW_ALIGN)
    cap = max(_ROW_ALIGN,
              ((8 * 1024 * 1024) // (2 * 4 * k * 2)) // _ROW_ALIGN * _ROW_ALIGN)
    tr = min(tr, cap)
    n_pad = _round_up(n_rows, tr)
    if n_pad != n_rows:
        patches = jnp.pad(patches, ((0, 0), (0, n_pad - n_rows), (0, 0)))
    grid = (n_pad // tr,)
    out = pl.pallas_call(
        _conv_gelu_pool_kernel,
        out_shape=jax.ShapeDtypeStruct((n_pad, oc), jnp.bfloat16),
        grid_spec=pltpu.PrefetchScalarGridSpec(
            num_scalar_prefetch=0,
            grid=grid,
            in_specs=[
                pl.BlockSpec((4, tr, k), lambda i: (0, i, 0)),
                pl.BlockSpec((k, oc), lambda i: (0, 0)),
                pl.BlockSpec((1, oc), lambda i: (0, 0)),
            ],
            out_specs=pl.BlockSpec((tr, oc), lambda i: (i, 0)),
        ),
        compiler_params=pltpu.CompilerParams(
            dimension_semantics=("parallel",),
            vmem_limit_bytes=_VMEM_LIMIT),
    )(patches, w_mat, b_row)
    return out[:n_rows]


def _conv_pool_fc(patches, w_mat, b_row, wf_mat, bf_row, *, batch_tile):
    """Fused conv2 + GELU + maxpool + flatten + Linear (grid over batch)."""
    _, n_pos, bp, k = patches.shape
    oc = w_mat.shape[1]
    nc = wf_mat.shape[1]
    tb = _balanced_tile(bp, batch_tile, _ROW_ALIGN)
    bp_pad = _round_up(bp, tb)
    if bp_pad != bp:
        patches = jnp.pad(patches, ((0, 0), (0, 0), (0, bp_pad - bp), (0, 0)))
    grid = (bp_pad // tb,)
    out = pl.pallas_call(
        _conv_pool_fc_kernel,
        out_shape=jax.ShapeDtypeStruct((bp_pad, nc), jnp.float32),
        grid_spec=pltpu.PrefetchScalarGridSpec(
            num_scalar_prefetch=0,
            grid=grid,
            in_specs=[
                pl.BlockSpec((4, n_pos, tb, k), lambda i: (0, 0, i, 0)),
                pl.BlockSpec((k, oc), lambda i: (0, 0)),
                pl.BlockSpec((1, oc), lambda i: (0, 0)),
                pl.BlockSpec(wf_mat.shape, lambda i: (0, 0)),
                pl.BlockSpec((1, nc), lambda i: (0, 0)),
            ],
            out_specs=pl.BlockSpec((tb, nc), lambda i: (i, 0)),
        ),
        compiler_params=pltpu.CompilerParams(
            dimension_semantics=("parallel",),
            vmem_limit_bytes=_VMEM_LIMIT),
    )(patches, w_mat, b_row, wf_mat, bf_row)
    return out[:bp]


def basic_cnn_forward(x, params, *, tile_rows=256, batch_tile=64):
    """Forward pass of BasicCNNClassifier.

    x: (B, C_in, H, W) float32 (NCHW, like the torch module).
    params: torch-layout weights:
      w1 (16, C_in, 7, 7), b1 (16,), w2 (32, 16, 5, 5), b2 (32,),
      wf (num_classes, 32*PH2*PW2), bf (num_classes,).
    """
    w1, b1 = params["w1"], params["b1"]
    w2, b2 = params["w2"], params["b2"]
    wf, bf = params["wf"], params["bf"]

    B, cin, H, W = x.shape
    oc1 = w1.shape[0]
    oc2 = w2.shape[0]
    nc = wf.shape[0]

    # NCHW -> HWBC once; pad batch to the bf16 sublane multiple so every
    # kernel row tile is layout-aligned end-to-end.
    bp = _round_up(B, _ROW_ALIGN)
    x_hwbc = jnp.transpose(x, (2, 3, 0, 1)).astype(jnp.bfloat16)
    if bp != B:
        x_hwbc = jnp.pad(x_hwbc, ((0, 0), (0, 0), (0, bp - B), (0, 0)))

    # ---- stage 1: conv1(7x7, pad 2) + GELU + maxpool(2) ----
    k1 = 7 * 7 * cin
    patches1, (ph1, pw1) = _pool_phase_patches(x_hwbc, 7, 2)
    patches1 = patches1.reshape(4, ph1 * pw1 * bp, k1)
    w1_mat = jnp.transpose(w1, (2, 3, 1, 0)).reshape(k1, oc1).astype(jnp.bfloat16)
    b1_row = b1.reshape(1, oc1).astype(jnp.float32)
    pool1 = _conv_gelu_pool(patches1, w1_mat, b1_row, tile_rows=tile_rows)
    # Rows are (ph1, pw1, b): already the HWBC layout stage 2's im2col needs.
    pool1_hwbc = pool1.reshape(ph1, pw1, bp, oc1)

    # ---- stage 2: conv2(5x5, pad 2) + GELU + maxpool(2) + flatten + fc ----
    k2 = 5 * 5 * oc1
    patches2, (ph2, pw2) = _pool_phase_patches(pool1_hwbc, 5, 2)
    n_pos = ph2 * pw2
    w2_mat = jnp.transpose(w2, (2, 3, 1, 0)).reshape(k2, oc2).astype(jnp.bfloat16)
    b2_row = b2.reshape(1, oc2).astype(jnp.float32)
    # Torch flattens (B, oc2, ph2, pw2) in (C, H, W) order; re-order the FC
    # weight so rows are (position, channel) matching the kernel's slices.
    wf_mat = jnp.transpose(wf.reshape(nc, oc2, n_pos), (2, 1, 0)).reshape(
        n_pos * oc2, nc).astype(jnp.float32)
    bf_row = bf.reshape(1, nc).astype(jnp.float32)
    logits = _conv_pool_fc(patches2, w2_mat, b2_row, wf_mat, bf_row,
                           batch_tile=batch_tile)
    return logits[:B]


# ----------------------------------------------------------------------------
# Pure-JAX reference (mirrors the torch module exactly, f32 HIGHEST)
# ----------------------------------------------------------------------------
def _maxpool2_nchw(y):
    B, C, H, W = y.shape
    ph, pw = H // 2, W // 2
    y = y[:, :, :2 * ph, :2 * pw].reshape(B, C, ph, 2, pw, 2)
    return jnp.max(y, axis=(3, 5))


def _reference_forward(x, params):
    w1, b1 = params["w1"], params["b1"]
    w2, b2 = params["w2"], params["b2"]
    wf, bf = params["wf"], params["bf"]
    dn = ("NCHW", "OIHW", "NCHW")
    y = lax.conv_general_dilated(x, w1, (1, 1), [(2, 2), (2, 2)],
                                 dimension_numbers=dn,
                                 precision=lax.Precision.HIGHEST)
    y = jax.nn.gelu(y + b1[None, :, None, None], approximate=False)
    y = _maxpool2_nchw(y)
    y = lax.conv_general_dilated(y, w2, (1, 1), [(2, 2), (2, 2)],
                                 dimension_numbers=dn,
                                 precision=lax.Precision.HIGHEST)
    y = jax.nn.gelu(y + b2[None, :, None, None], approximate=False)
    y = _maxpool2_nchw(y)
    flat = y.reshape(y.shape[0], -1)                     # NCHW flatten order
    return jnp.dot(flat, wf.T, precision=lax.Precision.HIGHEST) + bf


# ----------------------------------------------------------------------------
# Demo
# ----------------------------------------------------------------------------
if __name__ == "__main__":
    B, CIN, H, W = 2, 4, 16, 16
    NUM_CLASSES = 2
    PH_OUT, PW_OUT = 3, 3        # spatial size after the two conv+pool stages

    key = jax.random.PRNGKey(0)
    ks = jax.random.split(key, 7)
    x = jax.random.normal(ks[0], (B, CIN, H, W), dtype=jnp.float32)

    def uniform_init(k, shape, fan_in):
        bound = 1.0 / math.sqrt(fan_in)
        return jax.random.uniform(k, shape, jnp.float32, -bound, bound)

    params = {
        "w1": uniform_init(ks[1], (16, CIN, 7, 7), CIN * 7 * 7),
        "b1": uniform_init(ks[2], (16,), CIN * 7 * 7),
        "w2": uniform_init(ks[3], (32, 16, 5, 5), 16 * 5 * 5),
        "b2": uniform_init(ks[4], (32,), 16 * 5 * 5),
        "wf": uniform_init(ks[5], (NUM_CLASSES, 32 * PH_OUT * PW_OUT),
                           32 * PH_OUT * PW_OUT),
        "bf": uniform_init(ks[6], (NUM_CLASSES,), 32 * PH_OUT * PW_OUT),
    }

    logits = jax.jit(basic_cnn_forward)(x, params)
    jax.block_until_ready(logits)

    # bf16 inputs/weights with f32 accumulation: well inside the 2e-2 band
    # vs the f32 HIGHEST reference at these shapes.
    ref = _reference_forward(x, params)
    assert logits.shape == (B, NUM_CLASSES)
    assert jnp.allclose(logits, ref, atol=2e-2, rtol=2e-2), (
        f"mismatch vs reference, max abs diff "
        f"{jnp.max(jnp.abs(logits - ref)):.3e}")

    print("KERNEL_OK")
</pallas_src>

<mosaic_0001>
module attributes {stable_mosaic.version = 11 : i64} {
  func.func @_conv_gelu_pool_kernel(%arg0: i32, %arg1: memref<4x208x196xbf16, #tpu.memory_space<vmem>>, %arg2: memref<196x16xbf16, #tpu.memory_space<vmem>>, %arg3: memref<1x16xf32, #tpu.memory_space<vmem>>, %arg4: memref<208x16xbf16, #tpu.memory_space<vmem>>) attributes {dimension_semantics = [#tpu.dimension_semantics<parallel>], iteration_bounds = array<i64: 4>, scalar_prefetch = 0 : i64, scratch_operands = 0 : i64, tpu.core_type = #tpu.core_type<tc>, window_params = [{transform_indices = @transform_0, window_bounds = array<i64: 4, 208, 196>}, {pipeline_mode = #tpu.pipeline_mode<synchronous>, transform_indices = @transform_1, window_bounds = array<i64: 196, 16>}, {pipeline_mode = #tpu.pipeline_mode<synchronous>, transform_indices = @transform_2, window_bounds = array<i64: 1, 16>}, {transform_indices = @transform_3, window_bounds = array<i64: 208, 16>}]} {
    %c0 = arith.constant 0 : index
    %c0_0 = arith.constant 0 : index
    %c0_1 = arith.constant 0 : index
    %0 = vector.load %arg1[%c0, %c0_0, %c0_1] : memref<4x208x196xbf16, #tpu.memory_space<vmem>>, vector<4x208x196xbf16>
    %1 = vector.shape_cast %0 : vector<4x208x196xbf16> to vector<832x196xbf16>
    %c0_2 = arith.constant 0 : index
    %c0_3 = arith.constant 0 : index
    %2 = vector.load %arg2[%c0_2, %c0_3] : memref<196x16xbf16, #tpu.memory_space<vmem>>, vector<196x16xbf16>
    %cst = arith.constant dense<0.000000e+00> : vector<832x16xf32>
    %3 = tpu.matmul %1, %2, %cst {dimension_numbers = #tpu.dot_dimension_numbers<[1], [0], [0], [1], [0, 0, 1, 1], [], []>} : vector<832x196xbf16>, vector<196x16xbf16>, vector<832x16xf32> -> vector<832x16xf32>
    %c0_4 = arith.constant 0 : index
    %c0_5 = arith.constant 0 : index
    %4 = vector.load %arg3[%c0_4, %c0_5] : memref<1x16xf32, #tpu.memory_space<vmem>>, vector<1x16xf32>
    %5 = vector.broadcast %4 : vector<1x16xf32> to vector<832x16xf32>
    %6 = arith.addf %3, %5 : vector<832x16xf32>
    %cst_6 = arith.constant 0.707106769 : f32
    %7 = vector.broadcast %cst_6 : f32 to vector<832x16xf32>
    %8 = arith.mulf %6, %7 : vector<832x16xf32>
    %9 = math.absf %8 : vector<832x16xf32>
    %cst_7 = arith.constant 0.327591091 : f32
    %10 = vector.broadcast %cst_7 : f32 to vector<832x16xf32>
    %11 = arith.mulf %10, %9 : vector<832x16xf32>
    %cst_8 = arith.constant 1.000000e+00 : f32
    %12 = vector.broadcast %cst_8 : f32 to vector<832x16xf32>
    %13 = arith.addf %12, %11 : vector<832x16xf32>
    %cst_9 = arith.constant 1.000000e+00 : f32
    %14 = vector.broadcast %cst_9 : f32 to vector<832x16xf32>
    %15 = arith.divf %14, %13 : vector<832x16xf32>
    %cst_10 = arith.constant 1.06140542 : f32
    %16 = vector.broadcast %cst_10 : f32 to vector<832x16xf32>
    %17 = arith.mulf %15, %16 : vector<832x16xf32>
    %cst_11 = arith.constant -1.45315206 : f32
    %18 = vector.broadcast %cst_11 : f32 to vector<832x16xf32>
    %19 = arith.addf %18, %17 : vector<832x16xf32>
    %20 = arith.mulf %15, %19 : vector<832x16xf32>
    %cst_12 = arith.constant 1.42141378 : f32
    %21 = vector.broadcast %cst_12 : f32 to vector<832x16xf32>
    %22 = arith.addf %21, %20 : vector<832x16xf32>
    %23 = arith.mulf %15, %22 : vector<832x16xf32>
    %cst_13 = arith.constant -0.284496725 : f32
    %24 = vector.broadcast %cst_13 : f32 to vector<832x16xf32>
    %25 = arith.addf %24, %23 : vector<832x16xf32>
    %26 = arith.mulf %15, %25 : vector<832x16xf32>
    %cst_14 = arith.constant 0.254829586 : f32
    %27 = vector.broadcast %cst_14 : f32 to vector<832x16xf32>
    %28 = arith.addf %27, %26 : vector<832x16xf32>
    %29 = arith.mulf %15, %28 : vector<832x16xf32>
    %cst_15 = arith.constant 0.000000e+00 : f32
    %30 = vector.broadcast %cst_15 : f32 to vector<832x16xf32>
    %31 = arith.subf %30, %9 : vector<832x16xf32>
    %32 = arith.mulf %31, %9 : vector<832x16xf32>
    %33 = math.exp %32 : vector<832x16xf32>
    %34 = arith.mulf %29, %33 : vector<832x16xf32>
    %cst_16 = arith.constant 1.000000e+00 : f32
    %35 = vector.broadcast %cst_16 : f32 to vector<832x16xf32>
    %36 = arith.subf %35, %34 : vector<832x16xf32>
    %cst_17 = arith.constant 0.000000e+00 : f32
    %37 = vector.broadcast %cst_17 : f32 to vector<832x16xf32>
    %38 = arith.cmpf oge, %8, %37 : vector<832x16xf32>
    %cst_18 = arith.constant 0.000000e+00 : f32
    %39 = vector.broadcast %cst_18 : f32 to vector<832x16xf32>
    %40 = arith.subf %39, %36 : vector<832x16xf32>
    %41 = arith.select %38, %36, %40 : vector<832x16xi1>, vector<832x16xf32>
    %cst_19 = arith.constant 5.000000e-01 : f32
    %42 = vector.broadcast %cst_19 : f32 to vector<832x16xf32>
    %43 = arith.mulf %42, %6 : vector<832x16xf32>
    %cst_20 = arith.constant 1.000000e+00 : f32
    %44 = vector.broadcast %cst_20 : f32 to vector<832x16xf32>
    %45 = arith.addf %44, %41 : vector<832x16xf32>
    %46 = arith.mulf %43, %45 : vector<832x16xf32>
    %47 = vector.extract_strided_slice %46 {offsets = [0, 0], sizes = [208, 16], strides = [1, 1]} : vector<832x16xf32> to vector<208x16xf32>
    %48 = vector.extract_strided_slice %46 {offsets = [208, 0], sizes = [208, 16], strides = [1, 1]} : vector<832x16xf32> to vector<208x16xf32>
    %49 = arith.maximumf %47, %48 : vector<208x16xf32>
    %50 = vector.extract_strided_slice %46 {offsets = [416, 0], sizes = [208, 16], strides = [1, 1]} : vector<832x16xf32> to vector<208x16xf32>
    %51 = vector.extract_strided_slice %46 {offsets = [624, 0], sizes = [208, 16], strides = [1, 1]} : vector<832x16xf32> to vector<208x16xf32>
    %52 = arith.maximumf %50, %51 : vector<208x16xf32>
    %53 = arith.maximumf %49, %52 : vector<208x16xf32>
    %54 = arith.truncf %53 : vector<208x16xf32> to vector<208x16xbf16>
    %c0_21 = arith.constant 0 : index
    %c0_22 = arith.constant 0 : index
    %55 = vector.load %arg4[%c0_21, %c0_22] : memref<208x16xbf16, #tpu.memory_space<vmem>>, vector<208x16xbf16>
    tpu.vector_store %arg4[%c0_21, %c0_22], %54 {strides = array<i32>} : memref<208x16xbf16, #tpu.memory_space<vmem>>, vector<208x16xbf16>,
    return
  }
  func.func @transform_0(%arg0: i32) -> (i32, i32, i32) {
    %c0_i32 = arith.constant 0 : i32
    %c0_i32_0 = arith.constant 0 : i32
    %c0_i32_1 = arith.constant 0 : i32
    return %c0_i32, %arg0, %c0_i32_0 : i32, i32, i32
  }
  func.func @transform_1(%arg0: i32) -> (i32, i32) {
    %c0_i32 = arith.constant 0 : i32
    %c0_i32_0 = arith.constant 0 : i32
    %c0_i32_1 = arith.constant 0 : i32
    return %c0_i32, %c0_i32_0 : i32, i32
  }
  func.func @transform_2(%arg0: i32) -> (i32, i32) {
    %c0_i32 = arith.constant 0 : i32
    %c0_i32_0 = arith.constant 0 : i32
    %c0_i32_1 = arith.constant 0 : i32
    return %c0_i32, %c0_i32_0 : i32, i32
  }
  func.func @transform_3(%arg0: i32) -> (i32, i32) {
    %c0_i32 = arith.constant 0 : i32
    %c0_i32_0 = arith.constant 0 : i32
    return %arg0, %c0_i32 : i32, i32
  }
}

module attributes {stable_mosaic.version = 11 : i64} {
  func.func @_conv_pool_fc_kernel(%arg0: i32, %arg1: memref<4x9x16x400xbf16, #tpu.memory_space<vmem>>, %arg2: memref<400x32xbf16, #tpu.memory_space<vmem>>, %arg3: memref<1x32xf32, #tpu.memory_space<vmem>>, %arg4: memref<288x2xf32, #tpu.memory_space<vmem>>, %arg5: memref<1x2xf32, #tpu.memory_space<vmem>>, %arg6: memref<16x2xf32, #tpu.memory_space<vmem>>) attributes {dimension_semantics = [#tpu.dimension_semantics<parallel>], iteration_bounds = array<i64: 1>, scalar_prefetch = 0 : i64, scratch_operands = 0 : i64, tpu.core_type = #tpu.core_type<tc>, window_params = [{transform_indices = @transform_0, window_bounds = array<i64: 4, 9, 16, 400>}, {pipeline_mode = #tpu.pipeline_mode<synchronous>, transform_indices = @transform_1, window_bounds = array<i64: 400, 32>}, {pipeline_mode = #tpu.pipeline_mode<synchronous>, transform_indices = @transform_2, window_bounds = array<i64: 1, 32>}, {pipeline_mode = #tpu.pipeline_mode<synchronous>, transform_indices = @transform_3, window_bounds = array<i64: 288, 2>}, {pipeline_mode = #tpu.pipeline_mode<synchronous>, transform_indices = @transform_4, window_bounds = array<i64: 1, 2>}, {transform_indices = @transform_5, window_bounds = array<i64: 16, 2>}]} {
    %c0 = arith.constant 0 : index
    %c0_0 = arith.constant 0 : index
    %c0_1 = arith.constant 0 : index
    %c0_2 = arith.constant 0 : index
    %0 = vector.load %arg1[%c0, %c0_0, %c0_1, %c0_2] : memref<4x9x16x400xbf16, #tpu.memory_space<vmem>>, vector<4x9x16x400xbf16>
    %1 = vector.shape_cast %0 : vector<4x9x16x400xbf16> to vector<576x400xbf16>
    %c0_3 = arith.constant 0 : index
    %c0_4 = arith.constant 0 : index
    %2 = vector.load %arg2[%c0_3, %c0_4] : memref<400x32xbf16, #tpu.memory_space<vmem>>, vector<400x32xbf16>
    %cst = arith.constant dense<0.000000e+00> : vector<576x32xf32>
    %3 = tpu.matmul %1, %2, %cst {dimension_numbers = #tpu.dot_dimension_numbers<[1], [0], [0], [1], [0, 0, 1, 1], [], []>} : vector<576x400xbf16>, vector<400x32xbf16>, vector<576x32xf32> -> vector<576x32xf32>
    %c0_5 = arith.constant 0 : index
    %c0_6 = arith.constant 0 : index
    %4 = vector.load %arg3[%c0_5, %c0_6] : memref<1x32xf32, #tpu.memory_space<vmem>>, vector<1x32xf32>
    %5 = vector.broadcast %4 : vector<1x32xf32> to vector<576x32xf32>
    %6 = arith.addf %3, %5 : vector<576x32xf32>
    %cst_7 = arith.constant 0.707106769 : f32
    %7 = vector.broadcast %cst_7 : f32 to vector<576x32xf32>
    %8 = arith.mulf %6, %7 : vector<576x32xf32>
    %9 = math.absf %8 : vector<576x32xf32>
    %cst_8 = arith.constant 0.327591091 : f32
    %10 = vector.broadcast %cst_8 : f32 to vector<576x32xf32>
    %11 = arith.mulf %10, %9 : vector<576x32xf32>
    %cst_9 = arith.constant 1.000000e+00 : f32
    %12 = vector.broadcast %cst_9 : f32 to vector<576x32xf32>
    %13 = arith.addf %12, %11 : vector<576x32xf32>
    %cst_10 = arith.constant 1.000000e+00 : f32
    %14 = vector.broadcast %cst_10 : f32 to vector<576x32xf32>
    %15 = arith.divf %14, %13 : vector<576x32xf32>
    %cst_11 = arith.constant 1.06140542 : f32
    %16 = vector.broadcast %cst_11 : f32 to vector<576x32xf32>
    %17 = arith.mulf %15, %16 : vector<576x32xf32>
    %cst_12 = arith.constant -1.45315206 : f32
    %18 = vector.broadcast %cst_12 : f32 to vector<576x32xf32>
    %19 = arith.addf %18, %17 : vector<576x32xf32>
    %20 = arith.mulf %15, %19 : vector<576x32xf32>
    %cst_13 = arith.constant 1.42141378 : f32
    %21 = vector.broadcast %cst_13 : f32 to vector<576x32xf32>
    %22 = arith.addf %21, %20 : vector<576x32xf32>
    %23 = arith.mulf %15, %22 : vector<576x32xf32>
    %cst_14 = arith.constant -0.284496725 : f32
    %24 = vector.broadcast %cst_14 : f32 to vector<576x32xf32>
    %25 = arith.addf %24, %23 : vector<576x32xf32>
    %26 = arith.mulf %15, %25 : vector<576x32xf32>
    %cst_15 = arith.constant 0.254829586 : f32
    %27 = vector.broadcast %cst_15 : f32 to vector<576x32xf32>
    %28 = arith.addf %27, %26 : vector<576x32xf32>
    %29 = arith.mulf %15, %28 : vector<576x32xf32>
    %cst_16 = arith.constant 0.000000e+00 : f32
    %30 = vector.broadcast %cst_16 : f32 to vector<576x32xf32>
    %31 = arith.subf %30, %9 : vector<576x32xf32>
    %32 = arith.mulf %31, %9 : vector<576x32xf32>
    %33 = math.exp %32 : vector<576x32xf32>
    %34 = arith.mulf %29, %33 : vector<576x32xf32>
    %cst_17 = arith.constant 1.000000e+00 : f32
    %35 = vector.broadcast %cst_17 : f32 to vector<576x32xf32>
    %36 = arith.subf %35, %34 : vector<576x32xf32>
    %cst_18 = arith.constant 0.000000e+00 : f32
    %37 = vector.broadcast %cst_18 : f32 to vector<576x32xf32>
    %38 = arith.cmpf oge, %8, %37 : vector<576x32xf32>
    %cst_19 = arith.constant 0.000000e+00 : f32
    %39 = vector.broadcast %cst_19 : f32 to vector<576x32xf32>
    %40 = arith.subf %39, %36 : vector<576x32xf32>
    %41 = arith.select %38, %36, %40 : vector<576x32xi1>, vector<576x32xf32>
    %cst_20 = arith.constant 5.000000e-01 : f32
    %42 = vector.broadcast %cst_20 : f32 to vector<576x32xf32>
    %43 = arith.mulf %42, %6 : vector<576x32xf32>
    %cst_21 = arith.constant 1.000000e+00 : f32
    %44 = vector.broadcast %cst_21 : f32 to vector<576x32xf32>
    %45 = arith.addf %44, %41 : vector<576x32xf32>
    %46 = arith.mulf %43, %45 : vector<576x32xf32>
    %47 = vector.extract_strided_slice %46 {offsets = [0, 0], sizes = [144, 32], strides = [1, 1]} : vector<576x32xf32> to vector<144x32xf32>
    %48 = vector.extract_strided_slice %46 {offsets = [144, 0], sizes = [144, 32], strides = [1, 1]} : vector<576x32xf32> to vector<144x32xf32>
    %49 = arith.maximumf %47, %48 : vector<144x32xf32>
    %50 = vector.extract_strided_slice %46 {offsets = [288, 0], sizes = [144, 32], strides = [1, 1]} : vector<576x32xf32> to vector<144x32xf32>
    %51 = vector.extract_strided_slice %46 {offsets = [432, 0], sizes = [144, 32], strides = [1, 1]} : vector<576x32xf32> to vector<144x32xf32>
    %52 = arith.maximumf %50, %51 : vector<144x32xf32>
    %53 = arith.maximumf %49, %52 : vector<144x32xf32>
    %54 = vector.extract_strided_slice %53 {offsets = [0, 0], sizes = [16, 32], strides = [1, 1]} : vector<144x32xf32> to vector<16x32xf32>
    %c0_22 = arith.constant 0 : index
    %c0_23 = arith.constant 0 : index
    %55 = vector.load %arg4[%c0_22, %c0_23] : memref<288x2xf32, #tpu.memory_space<vmem>>, vector<32x2xf32>
    %cst_24 = arith.constant dense<0.000000e+00> : vector<16x2xf32>
    %56 = tpu.matmul %54, %55, %cst_24 {dimension_numbers = #tpu.dot_dimension_numbers<[1], [0], [0], [1], [0, 0, 1, 1], [], []>} : vector<16x32xf32>, vector<32x2xf32>, vector<16x2xf32> -> vector<16x2xf32>
    %57 = vector.extract_strided_slice %53 {offsets = [16, 0], sizes = [16, 32], strides = [1, 1]} : vector<144x32xf32> to vector<16x32xf32>
    %c32 = arith.constant 32 : index
    %c0_25 = arith.constant 0 : index
    %58 = vector.load %arg4[%c32, %c0_25] : memref<288x2xf32, #tpu.memory_space<vmem>>, vector<32x2xf32>
    %cst_26 = arith.constant dense<0.000000e+00> : vector<16x2xf32>
    %59 = tpu.matmul %57, %58, %cst_26 {dimension_numbers = #tpu.dot_dimension_numbers<[1], [0], [0], [1], [0, 0, 1, 1], [], []>} : vector<16x32xf32>, vector<32x2xf32>, vector<16x2xf32> -> vector<16x2xf32>
    %60 = arith.addf %56, %59 : vector<16x2xf32>
    %61 = vector.extract_strided_slice %53 {offsets = [32, 0], sizes = [16, 32], strides = [1, 1]} : vector<144x32xf32> to vector<16x32xf32>
    %c64 = arith.constant 64 : index
    %c0_27 = arith.constant 0 : index
    %62 = vector.load %arg4[%c64, %c0_27] : memref<288x2xf32, #tpu.memory_space<vmem>>, vector<32x2xf32>
    %cst_28 = arith.constant dense<0.000000e+00> : vector<16x2xf32>
    %63 = tpu.matmul %61, %62, %cst_28 {dimension_numbers = #tpu.dot_dimension_numbers<[1], [0], [0], [1], [0, 0, 1, 1], [], []>} : vector<16x32xf32>, vector<32x2xf32>, vector<16x2xf32> -> vector<16x2xf32>
    %64 = arith.addf %60, %63 : vector<16x2xf32>
    %65 = vector.extract_strided_slice %53 {offsets = [48, 0], sizes = [16, 32], strides = [1, 1]} : vector<144x32xf32> to vector<16x32xf32>
    %c96 = arith.constant 96 : index
    %c0_29 = arith.constant 0 : index
    %66 = vector.load %arg4[%c96, %c0_29] : memref<288x2xf32, #tpu.memory_space<vmem>>, vector<32x2xf32>
    %cst_30 = arith.constant dense<0.000000e+00> : vector<16x2xf32>
    %67 = tpu.matmul %65, %66, %cst_30 {dimension_numbers = #tpu.dot_dimension_numbers<[1], [0], [0], [1], [0, 0, 1, 1], [], []>} : vector<16x32xf32>, vector<32x2xf32>, vector<16x2xf32> -> vector<16x2xf32>
    %68 = arith.addf %64, %67 : vector<16x2xf32>
    %69 = vector.extract_strided_slice %53 {offsets = [64, 0], sizes = [16, 32], strides = [1, 1]} : vector<144x32xf32> to vector<16x32xf32>
    %c128 = arith.constant 128 : index
    %c0_31 = arith.constant 0 : index
    %70 = vector.load %arg4[%c128, %c0_31] : memref<288x2xf32, #tpu.memory_space<vmem>>, vector<32x2xf32>
    %cst_32 = arith.constant dense<0.000000e+00> : vector<16x2xf32>
    %71 = tpu.matmul %69, %70, %cst_32 {dimension_numbers = #tpu.dot_dimension_numbers<[1], [0], [0], [1], [0, 0, 1, 1], [], []>} : vector<16x32xf32>, vector<32x2xf32>, vector<16x2xf32> -> vector<16x2xf32>
    %72 = arith.addf %68, %71 : vector<16x2xf32>
    %73 = vector.extract_strided_slice %53 {offsets = [80, 0], sizes = [16, 32], strides = [1, 1]} : vector<144x32xf32> to vector<16x32xf32>
    %c160 = arith.constant 160 : index
    %c0_33 = arith.constant 0 : index
    %74 = vector.load %arg4[%c160, %c0_33] : memref<288x2xf32, #tpu.memory_space<vmem>>, vector<32x2xf32>
    %cst_34 = arith.constant dense<0.000000e+00> : vector<16x2xf32>
    %75 = tpu.matmul %73, %74, %cst_34 {dimension_numbers = #tpu.dot_dimension_numbers<[1], [0], [0], [1], [0, 0, 1, 1], [], []>} : vector<16x32xf32>, vector<32x2xf32>, vector<16x2xf32> -> vector<16x2xf32>
    %76 = arith.addf %72, %75 : vector<16x2xf32>
    %77 = vector.extract_strided_slice %53 {offsets = [96, 0], sizes = [16, 32], strides = [1, 1]} : vector<144x32xf32> to vector<16x32xf32>
    %c192 = arith.constant 192 : index
    %c0_35 = arith.constant 0 : index
    %78 = vector.load %arg4[%c192, %c0_35] : memref<288x2xf32, #tpu.memory_space<vmem>>, vector<32x2xf32>
    %cst_36 = arith.constant dense<0.000000e+00> : vector<16x2xf32>
    %79 = tpu.matmul %77, %78, %cst_36 {dimension_numbers = #tpu.dot_dimension_numbers<[1], [0], [0], [1], [0, 0, 1, 1], [], []>} : vector<16x32xf32>, vector<32x2xf32>, vector<16x2xf32> -> vector<16x2xf32>
    %80 = arith.addf %76, %79 : vector<16x2xf32>
    %81 = vector.extract_strided_slice %53 {offsets = [112, 0], sizes = [16, 32], strides = [1, 1]} : vector<144x32xf32> to vector<16x32xf32>
    %c224 = arith.constant 224 : index
    %c0_37 = arith.constant 0 : index
    %82 = vector.load %arg4[%c224, %c0_37] : memref<288x2xf32, #tpu.memory_space<vmem>>, vector<32x2xf32>
    %cst_38 = arith.constant dense<0.000000e+00> : vector<16x2xf32>
    %83 = tpu.matmul %81, %82, %cst_38 {dimension_numbers = #tpu.dot_dimension_numbers<[1], [0], [0], [1], [0, 0, 1, 1], [], []>} : vector<16x32xf32>, vector<32x2xf32>, vector<16x2xf32> -> vector<16x2xf32>
    %84 = arith.addf %80, %83 : vector<16x2xf32>
    %85 = vector.extract_strided_slice %53 {offsets = [128, 0], sizes = [16, 32], strides = [1, 1]} : vector<144x32xf32> to vector<16x32xf32>
    %c256 = arith.constant 256 : index
    %c0_39 = arith.constant 0 : index
    %86 = vector.load %arg4[%c256, %c0_39] : memref<288x2xf32, #tpu.memory_space<vmem>>, vector<32x2xf32>
    %cst_40 = arith.constant dense<0.000000e+00> : vector<16x2xf32>
    %87 = tpu.matmul %85, %86, %cst_40 {dimension_numbers = #tpu.dot_dimension_numbers<[1], [0], [0], [1], [0, 0, 1, 1], [], []>} : vector<16x32xf32>, vector<32x2xf32>, vector<16x2xf32> -> vector<16x2xf32>
    %88 = arith.addf %84, %87 : vector<16x2xf32>
    %c0_41 = arith.constant 0 : index
    %c0_42 = arith.constant 0 : index
    %89 = vector.load %arg5[%c0_41, %c0_42] : memref<1x2xf32, #tpu.memory_space<vmem>>, vector<1x2xf32>
    %90 = vector.broadcast %89 : vector<1x2xf32> to vector<16x2xf32>
    %91 = arith.addf %88, %90 : vector<16x2xf32>
    %c0_43 = arith.constant 0 : index
    %c0_44 = arith.constant 0 : index
    %92 = vector.load %arg6[%c0_43, %c0_44] : memref<16x2xf32, #tpu.memory_space<vmem>>, vector<16x2xf32>
    tpu.vector_store %arg6[%c0_43, %c0_44], %91 {strides = array<i32>} : memref<16x2xf32, #tpu.memory_space<vmem>>, vector<16x2xf32>,
    return
  }
  func.func @transform_0(%arg0: i32) -> (i32, i32, i32, i32) {
    %c0_i32 = arith.constant 0 : i32
    %c0_i32_0 = arith.constant 0 : i32
    %c0_i32_1 = arith.constant 0 : i32
    %c0_i32_2 = arith.constant 0 : i32
    return %c0_i32, %c0_i32_0, %arg0, %c0_i32_1 : i32, i32, i32, i32
  }
  func.func @transform_1(%arg0: i32) -> (i32, i32) {
    %c0_i32 = arith.constant 0 : i32
    %c0_i32_0 = arith.constant 0 : i32
    %c0_i32_1 = arith.constant 0 : i32
    return %c0_i32, %c0_i32_0 : i32, i32
  }
  func.func @transform_2(%arg0: i32) -> (i32, i32) {
    %c0_i32 = arith.constant 0 : i32
    %c0_i32_0 = arith.constant 0 : i32
    %c0_i32_1 = arith.constant 0 : i32
    return %c0_i32, %c0_i32_0 : i32, i32
  }
  func.func @transform_3(%arg0: i32) -> (i32, i32) {
    %c0_i32 = arith.constant 0 : i32
    %c0_i32_0 = arith.constant 0 : i32
    %c0_i32_1 = arith.constant 0 : i32
    return %c0_i32, %c0_i32_0 : i32, i32
  }
  func.func @transform_4(%arg0: i32) -> (i32, i32) {
    %c0_i32 = arith.constant 0 : i32
    %c0_i32_0 = arith.constant 0 : i32
    %c0_i32_1 = arith.constant 0 : i32
    return %c0_i32, %c0_i32_0 : i32, i32
  }
  func.func @transform_5(%arg0: i32) -> (i32, i32) {
    %c0_i32 = arith.constant 0 : i32
    %c0_i32_0 = arith.constant 0 : i32
    return %arg0, %c0_i32 : i32, i32
  }
}

</mosaic_0001>

<llo_original>
// kernel: basic_cnn_forward.2
$region0: #{basic_cnn_forward.2}
  #allocation0 [shape = 'u32[]', space=smem, size = 0x4, offset = 0x4, fixed_abs, tag = 'smem constant byte address 0x4 - core index']
  #allocation1 [shape = 'u32[72,128]{1,0:T(1,128)}', space=vmem, size = 0x9000, scoped, tag = 'internal scratch']
  %s0 = inlined_call_operand.vmem [shape: bf16[4,832,196], index: 0, kind: input, shape index: {}]
  %s1 = inlined_call_operand.vmem [shape: bf16[196,16], index: 1, kind: input, shape index: {}]
  %s2 = inlined_call_operand.vmem [shape: f32[1,16], index: 2, kind: input, shape index: {}]
  %s3 = inlined_call_operand.vmem [shape: bf16[832,16], index: 3, kind: output, shape index: {}]
  %s4 = sld [smem:[#allocation0]]
  $region83: #{basic_cnn_forward.2} parent=0
    _
  %s6 = ssub.s32 1, %s4
  %s7 = scalar_select 0, %s6, %s4
  $region1: #{basic_cnn_forward.2} parent=0
    #allocation2 [shape = 'u8[851968]{0}', space=vmem, size = 0xd0000, scoped, tag = 'input window, operand 0']
    loop: start=0, step=1, limit=6
    $region2: #{basic_cnn_forward.2} parent=1 // loop_pre_header
      _
    $region3: #{basic_cnn_forward.2} parent=1 // loop_header
      %s9 = sphi 0, %s13
      %p10 = scmp.ge.s32.totalorder %s9, 6
      %s19 = sphi 0, %s21
      %s22 = sphi 0, %s19
      %s23 = sphi 0, %s22
      %s39 = sphi 0, %s23
      %s43 = sphi 0, %s43
      %s45 = sphi 0, %s43
      %s46 = sphi 0, %s45
      %s60 = sphi 0, %s46
      %s64 = sphi 0, %s64
      %s66 = sphi 0, %s64
      %s67 = sphi 0, %s66
      %s81 = sphi 0, %s67
      %s87 = sphi 0, %s89
      %s90 = sphi 0, %s87
      %s91 = sphi 0, %s90
      %s107 = sphi 0, %s91
    $region4: #{basic_cnn_forward.2} parent=1 // loop_header_branch
      %12 = sbr.rel (%p10) target = $region8
    $region5: #{basic_cnn_forward.2} parent=1 // loop_body
      %s14 = ssub.s32 %s9, 1
      %s15 = ssub.s32 %s9, 2
      %s16 = sadd.s32 %s9, 1
      %s17 = ssub.s32 %s9, %s16
      %p18 = scmp.eq.s32.totalorder %s17, 0
      %s20 = sadd.s32 %s19, 1
      %s21 = scalar_select %p18, %s19, %s20
      %p24 = pneg %p18
      %p25 = scmp.eq.s32.totalorder %s9, 3
      %p26 = por %p24, %p25
      %p27 = scmp.ne.s32.totalorder %s19, %s22
      %p28 = scmp.eq.s32.totalorder %s9, 0
      %p29 = por %p27, %p28
      %p30 = scmp.ne.s32.totalorder %s19, %s22
      %p31 = scmp.eq.s32.totalorder %s14, 3
      %p32 = por %p30, %p31
      %p33 = scmp.ne.s32.totalorder %s22, %s23
      %p34 = scmp.eq.s32.totalorder %s14, 0
      %p35 = por %p33, %p34
      %p36 = scmp.ne.s32.totalorder %s22, %s23
      %p37 = scmp.eq.s32.totalorder %s15, 3
      %p38 = por %p36, %p37
      %p40 = scmp.ne.s32.totalorder %s23, %s39
      %p41 = scmp.eq.s32.totalorder %s15, 0
      %p42 = por %p40, %p41
      %s44 = sadd.s32 %s43, 1
      %p47 = scmp.eq.s32.totalorder %s9, 3
      %p48 = scmp.ne.s32.totalorder %s43, %s45
      %p49 = scmp.eq.s32.totalorder %s9, 0
      %p50 = por %p48, %p49
      %p51 = scmp.ne.s32.totalorder %s43, %s45
      %p52 = scmp.eq.s32.totalorder %s14, 3
      %p53 = por %p51, %p52
      %p54 = scmp.ne.s32.totalorder %s45, %s46
      %p55 = scmp.eq.s32.totalorder %s14, 0
      %p56 = por %p54, %p55
      %p57 = scmp.ne.s32.totalorder %s45, %s46
      %p58 = scmp.eq.s32.totalorder %s15, 3
      %p59 = por %p57, %p58
      %p61 = scmp.ne.s32.totalorder %s46, %s60
      %p62 = scmp.eq.s32.totalorder %s15, 0
      %p63 = por %p61, %p62
      %s65 = sadd.s32 %s64, 1
      %p68 = scmp.eq.s32.totalorder %s9, 3
      %p69 = scmp.ne.s32.totalorder %s64, %s66
      %p70 = scmp.eq.s32.totalorder %s9, 0
      %p71 = por %p69, %p70
      %p72 = scmp.ne.s32.totalorder %s64, %s66
      %p73 = scmp.eq.s32.totalorder %s14, 3
      %p74 = por %p72, %p73
      %p75 = scmp.ne.s32.totalorder %s66, %s67
      %p76 = scmp.eq.s32.totalorder %s14, 0
      %p77 = por %p75, %p76
      %p78 = scmp.ne.s32.totalorder %s66, %s67
      %p79 = scmp.eq.s32.totalorder %s15, 3
      %p80 = por %p78, %p79
      %p82 = scmp.ne.s32.totalorder %s67, %s81
      %p83 = scmp.eq.s32.totalorder %s15, 0
      %p84 = por %p82, %p83
      %s85 = ssub.s32 %s9, %s16
      %p86 = scmp.eq.s32.totalorder %s85, 0
      %s88 = sadd.s32 %s87, 1
      %s89 = scalar_select %p86, %s87, %s88
      %p92 = pneg %p86
      %p93 = scmp.eq.s32.totalorder %s9, 3
      %p94 = por %p92, %p93
      %p95 = scmp.ne.s32.totalorder %s87, %s90
      %p96 = scmp.eq.s32.totalorder %s9, 0
      %p97 = por %p95, %p96
      %p98 = scmp.ne.s32.totalorder %s87, %s90
      %p99 = scmp.eq.s32.totalorder %s14, 3
      %p100 = por %p98, %p99
      %p101 = scmp.ne.s32.totalorder %s90, %s91
      %p102 = scmp.eq.s32.totalorder %s14, 0
      %p103 = por %p101, %p102
      %p104 = scmp.ne.s32.totalorder %s90, %s91
      %p105 = scmp.eq.s32.totalorder %s15, 3
      %p106 = por %p104, %p105
      %p108 = scmp.ne.s32.totalorder %s91, %s107
      %p109 = scmp.eq.s32.totalorder %s15, 0
      %p110 = por %p108, %p109
      %p111 = scmp.le.s32.totalorder 1, %s9
      %p112 = scmp.lt.s32.totalorder %s9, 5
      %p113 = pnand %p111, %p112
      %p114 = pneg %p113
      // Predicated region
      $region9: #{basic_cnn_forward.2} parent=5 // pred_check
        _
      $region10: #{basic_cnn_forward.2} parent=5 // pred_check_branch
        %116 = sbr.rel (%p113) target = $region12
      $region11: #{basic_cnn_forward.2} parent=5 // pred_region
        %s117 = ssub.s32 %s9, 1
        // Predicated region
        $region13: #{basic_cnn_forward.2} parent=11 // pred_check
          %p118 = pneg %p56
        $region14: #{basic_cnn_forward.2} parent=11 // pred_check_branch
          %120 = sbr.rel (%p118) target = $region16
        $region15: #{basic_cnn_forward.2} parent=11 // pred_region
          _
        $region16: #{basic_cnn_forward.2} parent=11 // pred_fallthru
          _
        // Predicated region
        $region17: #{basic_cnn_forward.2} parent=11 // pred_check
          %p121 = pneg %p77
        $region18: #{basic_cnn_forward.2} parent=11 // pred_check_branch
          %123 = sbr.rel (%p121) target = $region20
        $region19: #{basic_cnn_forward.2} parent=11 // pred_region
          _
        $region20: #{basic_cnn_forward.2} parent=11 // pred_fallthru
          _
      $region12: #{basic_cnn_forward.2} parent=5 // pred_fallthru
        _
      %p124 = scmp.lt.s32.totalorder %s9, 4
      // Predicated region
      $region21: #{basic_cnn_forward.2} parent=5 // pred_check
        %p125 = pneg %p124
      $region22: #{basic_cnn_forward.2} parent=5 // pred_check_branch
        %127 = sbr.rel (%p125) target = $region24
      $region23: #{basic_cnn_forward.2} parent=5 // pred_region
        // Predicated region
        $region25: #{basic_cnn_forward.2} parent=23 // pred_check
          %p128 = pneg %p29
        $region26: #{basic_cnn_forward.2} parent=23 // pred_check_branch
          %130 = sbr.rel (%p128) target = $region28
        $region27: #{basic_cnn_forward.2} parent=23 // pred_region
          %s131 = sand.u32 %s19, 1
          %s132 = sand.u32 %s19, 1
          %s133 = smul.addr %s132, 832
          %s134 = scalar_lea.vmem [#allocation2], %s133
          %s135 = smul.u32 26, %s9
          %s136 = smul.addr %s135, 2
          %s137 = smul.addr %s136, 4
          %s138 = scalar_lea.vmem %s0, %s137
          // Predicated region
          $region29: #{basic_cnn_forward.2} parent=27 // pred_check
            _
          $region30: #{basic_cnn_forward.2} parent=27 // pred_check_branch
            %140 = sbr.rel (0) target = $region32
          $region31: #{basic_cnn_forward.2} parent=27 // pred_region
            // Predicated region
            $region33: #{basic_cnn_forward.2} parent=31 // pred_check
              _
            $region34: #{basic_cnn_forward.2} parent=31 // pred_check_branch
              %142 = sbr.rel (0) target = $region36
            $region35: #{basic_cnn_forward.2} parent=31 // pred_region
              // Predicated region
              $region48: #{basic_cnn_forward.2} parent=35 // pred_check
                _
              $region49: #{basic_cnn_forward.2} parent=35 // pred_check_branch
                %364 = sbr.rel (0) target = $region51
              $region50: #{basic_cnn_forward.2} parent=35 // pred_region
                loop: start=0, step=1, limit=1
                $region52: #{basic_cnn_forward.2} parent=50 // loop_pre_header
                  _
                $region53: #{basic_cnn_forward.2} parent=50 // loop_header
                  %s366 = sphi 0, %s370
                  %p367 = scmp.ge.s32.totalorder %s366, 1
                  %s371 = sphi %s138, %s138
                  %s372 = sphi %s134, %s134
                $region54: #{basic_cnn_forward.2} parent=50 // loop_header_branch
                  %369 = sbr.rel (%p367) target = $region58
                $region55: #{basic_cnn_forward.2} parent=50 // loop_body
                  %v373 = vld [vmem:[%s371] sm:$0xff]
                  %374 = vst [vmem:[%s372] sm:$0xff] %v373
                  %v375 = vld [vmem:[%s371 + $0x8] sm:$0xff]
                  %376 = vst [vmem:[%s372 + $0x8] sm:$0xff] %v375
                  %v377 = vld [vmem:[%s371 + $0x10] sm:$0xff]
                  %378 = vst [vmem:[%s372 + $0x10] sm:$0xff] %v377
                  %v379 = vld [vmem:[%s371 + $0x18] sm:$0xff]
                  %380 = vst [vmem:[%s372 + $0x18] sm:$0xff] %v379
                  %v381 = vld [vmem:[%s371 + $0x20] sm:$0xff]
                  %382 = vst [vmem:[%s372 + $0x20] sm:$0xff] %v381
                  %v383 = vld [vmem:[%s371 + $0x28] sm:$0xff]
                  %384 = vst [vmem:[%s372 + $0x28] sm:$0xff] %v383
                  %v385 = vld [vmem:[%s371 + $0x30] sm:$0xff]
                  %386 = vst [vmem:[%s372 + $0x30] sm:$0xff] %v385
                  %v387 = vld [vmem:[%s371 + $0x38] sm:$0xff]
                  %388 = vst [vmem:[%s372 + $0x38] sm:$0xff] %v387
                  %v389 = vld [vmem:[%s371 + $0x40] sm:$0xff]
                  %390 = vst [vmem:[%s372 + $0x40] sm:$0xff] %v389
                  %v391 = vld [vmem:[%s371 + $0x48] sm:$0xff]
                  %392 = vst [vmem:[%s372 + $0x48] sm:$0xff] %v391
                  %v393 = vld [vmem:[%s371 + $0x50] sm:$0xff]
                  %394 = vst [vmem:[%s372 + $0x50] sm:$0xff] %v393
                  %v395 = vld [vmem:[%s371 + $0x58] sm:$0xff]
                  %396 = vst [vmem:[%s372 + $0x58] sm:$0xff] %v395
                  %v397 = vld [vmem:[%s371 + $0x60] sm:$0xff]
                  %398 = vst [vmem:[%s372 + $0x60] sm:$0xff] %v397
                  %v399 = vld [vmem:[%s371 + $0x68] sm:$0xff]
                  %400 = vst [vmem:[%s372 + $0x68] sm:$0xff] %v399
                  %v401 = vld [vmem:[%s371 + $0x70] sm:$0xff]
                  %402 = vst [vmem:[%s372 + $0x70] sm:$0xff] %v401
                  %v403 = vld [vmem:[%s371 + $0x78] sm:$0xff]
                  %404 = vst [vmem:[%s372 + $0x78] sm:$0xff] %v403
                  %v405 = vld [vmem:[%s371 + $0x80] sm:$0xff]
                  %406 = vst [vmem:[%s372 + $0x80] sm:$0xff] %v405
                  %v407 = vld [vmem:[%s371 + $0x88] sm:$0xff]
                  %408 = vst [vmem:[%s372 + $0x88] sm:$0xff] %v407
                  %v409 = vld [vmem:[%s371 + $0x90] sm:$0xff]
                  %410 = vst [vmem:[%s372 + $0x90] sm:$0xff] %v409
                  %v411 = vld [vmem:[%s371 + $0x98] sm:$0xff]
                  %412 = vst [vmem:[%s372 + $0x98] sm:$0xff] %v411
                  %v413 = vld [vmem:[%s371 + $0xa0] sm:$0xff]
                  %414 = vst [vmem:[%s372 + $0xa0] sm:$0xff] %v413
                  %v415 = vld [vmem:[%s371 + $0xa8] sm:$0xff]
                  %416 = vst [vmem:[%s372 + $0xa8] sm:$0xff] %v415
                  %v417 = vld [vmem:[%s371 + $0xb0] sm:$0xff]
                  %418 = vst [vmem:[%s372 + $0xb0] sm:$0xff] %v417
                  %v419 = vld [vmem:[%s371 + $0xb8] sm:$0xff]
                  %420 = vst [vmem:[%s372 + $0xb8] sm:$0xff] %v419
                  %v421 = vld [vmem:[%s371 + $0xc0] sm:$0xff]
                  %422 = vst [vmem:[%s372 + $0xc0] sm:$0xff] %v421
                  %v423 = vld [vmem:[%s371 + $0xc8] sm:$0xff]
                  %424 = vst [vmem:[%s372 + $0xc8] sm:$0xff] %v423
                  %v425 = vld [vmem:[%s371 + $0x340] sm:$0xff]
                  %426 = vst [vmem:[%s372 + $0xd0] sm:$0xff] %v425
                  %v427 = vld [vmem:[%s371 + $0x348] sm:$0xff]
                  %428 = vst [vmem:[%s372 + $0xd8] sm:$0xff] %v427
                  %v429 = vld [vmem:[%s371 + $0x350] sm:$0xff]
                  %430 = vst [vmem:[%s372 + $0xe0] sm:$0xff] %v429
                  %v431 = vld [vmem:[%s371 + $0x358] sm:$0xff]
                  %432 = vst [vmem:[%s372 + $0xe8] sm:$0xff] %v431
                  %v433 = vld [vmem:[%s371 + $0x360] sm:$0xff]
                  %434 = vst [vmem:[%s372 + $0xf0] sm:$0xff] %v433
                  %v435 = vld [vmem:[%s371 + $0x368] sm:$0xff]
                  %436 = vst [vmem:[%s372 + $0xf8] sm:$0xff] %v435
                  %v437 = vld [vmem:[%s371 + $0x370] sm:$0xff]
                  %438 = vst [vmem:[%s372 + $0x100] sm:$0xff] %v437
                  %v439 = vld [vmem:[%s371 + $0x378] sm:$0xff]
                  %440 = vst [vmem:[%s372 + $0x108] sm:$0xff] %v439
                  %v441 = vld [vmem:[%s371 + $0x380] sm:$0xff]
                  %442 = vst [vmem:[%s372 + $0x110] sm:$0xff] %v441
                  %v443 = vld [vmem:[%s371 + $0x388] sm:$0xff]
                  %444 = vst [vmem:[%s372 + $0x118] sm:$0xff] %v443
                  %v445 = vld [vmem:[%s371 + $0x390] sm:$0xff]
                  %446 = vst [vmem:[%s372 + $0x120] sm:$0xff] %v445
                  %v447 = vld [vmem:[%s371 + $0x398] sm:$0xff]
                  %448 = vst [vmem:[%s372 + $0x128] sm:$0xff] %v447
                  %v449 = vld [vmem:[%s371 + $0x3a0] sm:$0xff]
                  %450 = vst [vmem:[%s372 + $0x130] sm:$0xff] %v449
                  %v451 = vld [vmem:[%s371 + $0x3a8] sm:$0xff]
                  %452 = vst [vmem:[%s372 + $0x138] sm:$0xff] %v451
                  %v453 = vld [vmem:[%s371 + $0x3b0] sm:$0xff]
                  %454 = vst [vmem:[%s372 + $0x140] sm:$0xff] %v453
                  %v455 = vld [vmem:[%s371 + $0x3b8] sm:$0xff]
                  %456 = vst [vmem:[%s372 + $0x148] sm:$0xff] %v455
                  %v457 = vld [vmem:[%s371 + $0x3c0] sm:$0xff]
                  %458 = vst [vmem:[%s372 + $0x150] sm:$0xff] %v457
                  %v459 = vld [vmem:[%s371 + $0x3c8] sm:$0xff]
                  %460 = vst [vmem:[%s372 + $0x158] sm:$0xff] %v459
                  %v461 = vld [vmem:[%s371 + $0x3d0] sm:$0xff]
                  %462 = vst [vmem:[%s372 + $0x160] sm:$0xff] %v461
                  %v463 = vld [vmem:[%s371 + $0x3d8] sm:$0xff]
                  %464 = vst [vmem:[%s372 + $0x168] sm:$0xff] %v463
                  %v465 = vld [vmem:[%s371 + $0x3e0] sm:$0xff]
                  %466 = vst [vmem:[%s372 + $0x170] sm:$0xff] %v465
                  %v467 = vld [vmem:[%s371 + $0x3e8] sm:$0xff]
                  %468 = vst [vmem:[%s372 + $0x178] sm:$0xff] %v467
                  %v469 = vld [vmem:[%s371 + $0x3f0] sm:$0xff]
                  %470 = vst [vmem:[%s372 + $0x180] sm:$0xff] %v469
                  %v471 = vld [vmem:[%s371 + $0x3f8] sm:$0xff]
                  %472 = vst [vmem:[%s372 + $0x188] sm:$0xff] %v471
                  %v473 = vld [vmem:[%s371 + $0x400] sm:$0xff]
                  %474 = vst [vmem:[%s372 + $0x190] sm:$0xff] %v473
                  %v475 = vld [vmem:[%s371 + $0x408] sm:$0xff]
                  %476 = vst [vmem:[%s372 + $0x198] sm:$0xff] %v475
                  %v477 = vld [vmem:[%s371 + $0x680] sm:$0xff]
                  %478 = vst [vmem:[%s372 + $0x1a0] sm:$0xff] %v477
                  %v479 = vld [vmem:[%s371 + $0x688] sm:$0xff]
                  %480 = vst [vmem:[%s372 + $0x1a8] sm:$0xff] %v479
                  %v481 = vld [vmem:[%s371 + $0x690] sm:$0xff]
                  %482 = vst [vmem:[%s372 + $0x1b0] sm:$0xff] %v481
                  %v483 = vld [vmem:[%s371 + $0x698] sm:$0xff]
                  %484 = vst [vmem:[%s372 + $0x1b8] sm:$0xff] %v483
                  %v485 = vld [vmem:[%s371 + $0x6a0] sm:$0xff]
                  %486 = vst [vmem:[%s372 + $0x1c0] sm:$0xff] %v485
                  %v487 = vld [vmem:[%s371 + $0x6a8] sm:$0xff]
                  %488 = vst [vmem:[%s372 + $0x1c8] sm:$0xff] %v487
                  %v489 = vld [vmem:[%s371 + $0x6b0] sm:$0xff]
                  %490 = vst [vmem:[%s372 + $0x1d0] sm:$0xff] %v489
                  %v491 = vld [vmem:[%s371 + $0x6b8] sm:$0xff]
                  %492 = vst [vmem:[%s372 + $0x1d8] sm:$0xff] %v491
                  %v493 = vld [vmem:[%s371 + $0x6c0] sm:$0xff]
                  %494 = vst [vmem:[%s372 + $0x1e0] sm:$0xff] %v493
                  %v495 = vld [vmem:[%s371 + $0x6c8] sm:$0xff]
                  %496 = vst [vmem:[%s372 + $0x1e8] sm:$0xff] %v495
                  %v497 = vld [vmem:[%s371 + $0x6d0] sm:$0xff]
                  %498 = vst [vmem:[%s372 + $0x1f0] sm:$0xff] %v497
                  %v499 = vld [vmem:[%s371 + $0x6d8] sm:$0xff]
                  %500 = vst [vmem:[%s372 + $0x1f8] sm:$0xff] %v499
                  %v501 = vld [vmem:[%s371 + $0x6e0] sm:$0xff]
                  %502 = vst [vmem:[%s372 + $0x200] sm:$0xff] %v501
                  %v503 = vld [vmem:[%s371 + $0x6e8] sm:$0xff]
                  %504 = vst [vmem:[%s372 + $0x208] sm:$0xff] %v503
                  %v505 = vld [vmem:[%s371 + $0x6f0] sm:$0xff]
                  %506 = vst [vmem:[%s372 + $0x210] sm:$0xff] %v505
                  %v507 = vld [vmem:[%s371 + $0x6f8] sm:$0xff]
                  %508 = vst [vmem:[%s372 + $0x218] sm:$0xff] %v507
                  %v509 = vld [vmem:[%s371 + $0x700] sm:$0xff]
                  %510 = vst [vmem:[%s372 + $0x220] sm:$0xff] %v509
                  %v511 = vld [vmem:[%s371 + $0x708] sm:$0xff]
                  %512 = vst [vmem:[%s372 + $0x228] sm:$0xff] %v511
                  %v513 = vld [vmem:[%s371 + $0x710] sm:$0xff]
                  %514 = vst [vmem:[%s372 + $0x230] sm:$0xff] %v513
                  %v515 = vld [vmem:[%s371 + $0x718] sm:$0xff]
                  %516 = vst [vmem:[%s372 + $0x238] sm:$0xff] %v515
                  %v517 = vld [vmem:[%s371 + $0x720] sm:$0xff]
                  %518 = vst [vmem:[%s372 + $0x240] sm:$0xff] %v517
                  %v519 = vld [vmem:[%s371 + $0x728] sm:$0xff]
                  %520 = vst [vmem:[%s372 + $0x248] sm:$0xff] %v519
                  %v521 = vld [vmem:[%s371 + $0x730] sm:$0xff]
                  %522 = vst [vmem:[%s372 + $0x250] sm:$0xff] %v521
                  %v523 = vld [vmem:[%s371 + $0x738] sm:$0xff]
                  %524 = vst [vmem:[%s372 + $0x258] sm:$0xff] %v523
                  %v525 = vld [vmem:[%s371 + $0x740] sm:$0xff]
                  %526 = vst [vmem:[%s372 + $0x260] sm:$0xff] %v525
                  %v527 = vld [vmem:[%s371 + $0x748] sm:$0xff]
                  %528 = vst [vmem:[%s372 + $0x268] sm:$0xff] %v527
                  %v529 = vld [vmem:[%s371 + $0x9c0] sm:$0xff]
                  %530 = vst [vmem:[%s372 + $0x270] sm:$0xff] %v529
                  %v531 = vld [vmem:[%s371 + $0x9c8] sm:$0xff]
                  %532 = vst [vmem:[%s372 + $0x278] sm:$0xff] %v531
                  %v533 = vld [vmem:[%s371 + $0x9d0] sm:$0xff]
                  %534 = vst [vmem:[%s372 + $0x280] sm:$0xff] %v533
                  %v535 = vld [vmem:[%s371 + $0x9d8] sm:$0xff]
                  %536 = vst [vmem:[%s372 + $0x288] sm:$0xff] %v535
                  %v537 = vld [vmem:[%s371 + $0x9e0] sm:$0xff]
                  %538 = vst [vmem:[%s372 + $0x290] sm:$0xff] %v537
                  %v539 = vld [vmem:[%s371 + $0x9e8] sm:$0xff]
                  %540 = vst [vmem:[%s372 + $0x298] sm:$0xff] %v539
                  %v541 = vld [vmem:[%s371 + $0x9f0] sm:$0xff]
                  %542 = vst [vmem:[%s372 + $0x2a0] sm:$0xff] %v541
                  %v543 = vld [vmem:[%s371 + $0x9f8] sm:$0xff]
                  %544 = vst [vmem:[%s372 + $0x2a8] sm:$0xff] %v543
                  %v545 = vld [vmem:[%s371 + $0xa00] sm:$0xff]
                  %546 = vst [vmem:[%s372 + $0x2b0] sm:$0xff] %v545
                  %v547 = vld [vmem:[%s371 + $0xa08] sm:$0xff]
                  %548 = vst [vmem:[%s372 + $0x2b8] sm:$0xff] %v547
                  %v549 = vld [vmem:[%s371 + $0xa10] sm:$0xff]
                  %550 = vst [vmem:[%s372 + $0x2c0] sm:$0xff] %v549
                  %v551 = vld [vmem:[%s371 + $0xa18] sm:$0xff]
                  %552 = vst [vmem:[%s372 + $0x2c8] sm:$0xff] %v551
                  %v553 = vld [vmem:[%s371 + $0xa20] sm:$0xff]
                  %554 = vst [vmem:[%s372 + $0x2d0] sm:$0xff] %v553
                  %v555 = vld [vmem:[%s371 + $0xa28] sm:$0xff]
                  %556 = vst [vmem:[%s372 + $0x2d8] sm:$0xff] %v555
                  %v557 = vld [vmem:[%s371 + $0xa30] sm:$0xff]
                  %558 = vst [vmem:[%s372 + $0x2e0] sm:$0xff] %v557
                  %v559 = vld [vmem:[%s371 + $0xa38] sm:$0xff]
                  %560 = vst [vmem:[%s372 + $0x2e8] sm:$0xff] %v559
                  %v561 = vld [vmem:[%s371 + $0xa40] sm:$0xff]
                  %562 = vst [vmem:[%s372 + $0x2f0] sm:$0xff] %v561
                  %v563 = vld [vmem:[%s371 + $0xa48] sm:$0xff]
                  %564 = vst [vmem:[%s372 + $0x2f8] sm:$0xff] %v563
                  %v565 = vld [vmem:[%s371 + $0xa50] sm:$0xff]
                  %566 = vst [vmem:[%s372 + $0x300] sm:$0xff] %v565
                  %v567 = vld [vmem:[%s371 + $0xa58] sm:$0xff]
                  %568 = vst [vmem:[%s372 + $0x308] sm:$0xff] %v567
                  %v569 = vld [vmem:[%s371 + $0xa60] sm:$0xff]
                  %570 = vst [vmem:[%s372 + $0x310] sm:$0xff] %v569
                  %v571 = vld [vmem:[%s371 + $0xa68] sm:$0xff]
                  %572 = vst [vmem:[%s372 + $0x318] sm:$0xff] %v571
                  %v573 = vld [vmem:[%s371 + $0xa70] sm:$0xff]
                  %574 = vst [vmem:[%s372 + $0x320] sm:$0xff] %v573
                  %v575 = vld [vmem:[%s371 + $0xa78] sm:$0xff]
                  %576 = vst [vmem:[%s372 + $0x328] sm:$0xff] %v575
                  %v577 = vld [vmem:[%s371 + $0xa80] sm:$0xff]
                  %578 = vst [vmem:[%s372 + $0x330] sm:$0xff] %v577
                  %v579 = vld [vmem:[%s371 + $0xa88] sm:$0xff]
                  %580 = vst [vmem:[%s372 + $0x338] sm:$0xff] %v579
                $region56: #{basic_cnn_forward.2} parent=50 // loop_footer
                  %s370 = sadd.s32 1, %s366
                $region57: #{basic_cnn_forward.2} parent=50 // loop_footer_branch
                  %365 = sbr.rel target = $region53
                $region58: #{basic_cnn_forward.2} parent=50 // loop_exit
                  _
              $region51: #{basic_cnn_forward.2} parent=35 // pred_fallthru
                _
              // Predicated region
              $region59: #{basic_cnn_forward.2} parent=35 // pred_check
                _
              $region60: #{basic_cnn_forward.2} parent=35 // pred_check_branch
                %582 = sbr.rel target = $region62
              $region61: #{basic_cnn_forward.2} parent=35 // pred_region
                _
              $region62: #{basic_cnn_forward.2} parent=35 // pred_fallthru
                _
            $region36: #{basic_cnn_forward.2} parent=31 // pred_fallthru
              _
            // Predicated region
            $region37: #{basic_cnn_forward.2} parent=31 // pred_check
              _
            $region38: #{basic_cnn_forward.2} parent=31 // pred_check_branch
              %144 = sbr.rel target = $region40
            $region39: #{basic_cnn_forward.2} parent=31 // pred_region
              %s146 = ssub.s32 256, 1
              loop: start=0, step=1, limit=1
              $region41: #{basic_cnn_forward.2} parent=39 // loop_pre_header
                _
              $region42: #{basic_cnn_forward.2} parent=39 // loop_header
                %s148 = sphi 0, %s152
                %p149 = scmp.ge.s32.totalorder %s148, 1
                %s153 = sphi %s138, %s138
                %s154 = sphi %s134, %s134
              $region43: #{basic_cnn_forward.2} parent=39 // loop_header_branch
                %151 = sbr.rel (%p149) target = $region47
              $region44: #{basic_cnn_forward.2} parent=39 // loop_body
                %v155 = vld [vmem:[%s153] sm:%s146]
                %156 = vst [vmem:[%s154] sm:%s146] %v155
                %v157 = vld [vmem:[%s153 + $0x8] sm:%s146]
                %158 = vst [vmem:[%s154 + $0x8] sm:%s146] %v157
                %v159 = vld [vmem:[%s153 + $0x10] sm:%s146]
                %160 = vst [vmem:[%s154 + $0x10] sm:%s146] %v159
                %v161 = vld [vmem:[%s153 + $0x18] sm:%s146]
                %162 = vst [vmem:[%s154 + $0x18] sm:%s146] %v161
                %v163 = vld [vmem:[%s153 + $0x20] sm:%s146]
                %164 = vst [vmem:[%s154 + $0x20] sm:%s146] %v163
                %v165 = vld [vmem:[%s153 + $0x28] sm:%s146]
                %166 = vst [vmem:[%s154 + $0x28] sm:%s146] %v165
                %v167 = vld [vmem:[%s153 + $0x30] sm:%s146]
                %168 = vst [vmem:[%s154 + $0x30] sm:%s146] %v167
                %v169 = vld [vmem:[%s153 + $0x38] sm:%s146]
                %170 = vst [vmem:[%s154 + $0x38] sm:%s146] %v169
                %v171 = vld [vmem:[%s153 + $0x40] sm:%s146]
                %172 = vst [vmem:[%s154 + $0x40] sm:%s146] %v171
                %v173 = vld [vmem:[%s153 + $0x48] sm:%s146]
                %174 = vst [vmem:[%s154 + $0x48] sm:%s146] %v173
                %v175 = vld [vmem:[%s153 + $0x50] sm:%s146]
                %176 = vst [vmem:[%s154 + $0x50] sm:%s146] %v175
                %v177 = vld [vmem:[%s153 + $0x58] sm:%s146]
                %178 = vst [vmem:[%s154 + $0x58] sm:%s146] %v177
                %v179 = vld [vmem:[%s153 + $0x60] sm:%s146]
                %180 = vst [vmem:[%s154 + $0x60] sm:%s146] %v179
                %v181 = vld [vmem:[%s153 + $0x68] sm:%s146]
                %182 = vst [vmem:[%s154 + $0x68] sm:%s146] %v181
                %v183 = vld [vmem:[%s153 + $0x70] sm:%s146]
                %184 = vst [vmem:[%s154 + $0x70] sm:%s146] %v183
                %v185 = vld [vmem:[%s153 + $0x78] sm:%s146]
                %186 = vst [vmem:[%s154 + $0x78] sm:%s146] %v185
                %v187 = vld [vmem:[%s153 + $0x80] sm:%s146]
                %188 = vst [vmem:[%s154 + $0x80] sm:%s146] %v187
                %v189 = vld [vmem:[%s153 + $0x88] sm:%s146]
                %190 = vst [vmem:[%s154 + $0x88] sm:%s146] %v189
                %v191 = vld [vmem:[%s153 + $0x90] sm:%s146]
                %192 = vst [vmem:[%s154 + $0x90] sm:%s146] %v191
                %v193 = vld [vmem:[%s153 + $0x98] sm:%s146]
                %194 = vst [vmem:[%s154 + $0x98] sm:%s146] %v193
                %v195 = vld [vmem:[%s153 + $0xa0] sm:%s146]
                %196 = vst [vmem:[%s154 + $0xa0] sm:%s146] %v195
                %v197 = vld [vmem:[%s153 + $0xa8] sm:%s146]
                %198 = vst [vmem:[%s154 + $0xa8] sm:%s146] %v197
                %v199 = vld [vmem:[%s153 + $0xb0] sm:%s146]
                %200 = vst [vmem:[%s154 + $0xb0] sm:%s146] %v199
                %v201 = vld [vmem:[%s153 + $0xb8] sm:%s146]
                %202 = vst [vmem:[%s154 + $0xb8] sm:%s146] %v201
                %v203 = vld [vmem:[%s153 + $0xc0] sm:%s146]
                %204 = vst [vmem:[%s154 + $0xc0] sm:%s146] %v203
                %v205 = vld [vmem:[%s153 + $0xc8] sm:%s146]
                %206 = vst [vmem:[%s154 + $0xc8] sm:%s146] %v205
                %v207 = vld [vmem:[%s153 + $0x340] sm:%s146]
                %208 = vst [vmem:[%s154 + $0xd0] sm:%s146] %v207
                %v209 = vld [vmem:[%s153 + $0x348] sm:%s146]
                %210 = vst [vmem:[%s154 + $0xd8] sm:%s146] %v209
                %v211 = vld [vmem:[%s153 + $0x350] sm:%s146]
                %212 = vst [vmem:[%s154 + $0xe0] sm:%s146] %v211
                %v213 = vld [vmem:[%s153 + $0x358] sm:%s146]
                %214 = vst [vmem:[%s154 + $0xe8] sm:%s146] %v213
                %v215 = vld [vmem:[%s153 + $0x360] sm:%s146]
                %216 = vst [vmem:[%s154 + $0xf0] sm:%s146] %v215
                %v217 = vld [vmem:[%s153 + $0x368] sm:%s146]
                %218 = vst [vmem:[%s154 + $0xf8] sm:%s146] %v217
                %v219 = vld [vmem:[%s153 + $0x370] sm:%s146]
                %220 = vst [vmem:[%s154 + $0x100] sm:%s146] %v219
                %v221 = vld [vmem:[%s153 + $0x378] sm:%s146]
                %222 = vst [vmem:[%s154 + $0x108] sm:%s146] %v221
                %v223 = vld [vmem:[%s153 + $0x380] sm:%s146]
                %224 = vst [vmem:[%s154 + $0x110] sm:%s146] %v223
                %v225 = vld [vmem:[%s153 + $0x388] sm:%s146]
                %226 = vst [vmem:[%s154 + $0x118] sm:%s146] %v225
                %v227 = vld [vmem:[%s153 + $0x390] sm:%s146]
                %228 = vst [vmem:[%s154 + $0x120] sm:%s146] %v227
                %v229 = vld [vmem:[%s153 + $0x398] sm:%s146]
                %230 = vst [vmem:[%s154 + $0x128] sm:%s146] %v229
                %v231 = vld [vmem:[%s153 + $0x3a0] sm:%s146]
                %232 = vst [vmem:[%s154 + $0x130] sm:%s146] %v231
                %v233 = vld [vmem:[%s153 + $0x3a8] sm:%s146]
                %234 = vst [vmem:[%s154 + $0x138] sm:%s146] %v233
                %v235 = vld [vmem:[%s153 + $0x3b0] sm:%s146]
                %236 = vst [vmem:[%s154 + $0x140] sm:%s146] %v235
                %v237 = vld [vmem:[%s153 + $0x3b8] sm:%s146]
                %238 = vst [vmem:[%s154 + $0x148] sm:%s146] %v237
                %v239 = vld [vmem:[%s153 + $0x3c0] sm:%s146]
                %240 = vst [vmem:[%s154 + $0x150] sm:%s146] %v239
                %v241 = vld [vmem:[%s153 + $0x3c8] sm:%s146]
                %242 = vst [vmem:[%s154 + $0x158] sm:%s146] %v241
                %v243 = vld [vmem:[%s153 + $0x3d0] sm:%s146]
                %244 = vst [vmem:[%s154 + $0x160] sm:%s146] %v243
                %v245 = vld [vmem:[%s153 + $0x3d8] sm:%s146]
                %246 = vst [vmem:[%s154 + $0x168] sm:%s146] %v245
                %v247 = vld [vmem:[%s153 + $0x3e0] sm:%s146]
                %248 = vst [vmem:[%s154 + $0x170] sm:%s146] %v247
                %v249 = vld [vmem:[%s153 + $0x3e8] sm:%s146]
                %250 = vst [vmem:[%s154 + $0x178] sm:%s146] %v249
                %v251 = vld [vmem:[%s153 + $0x3f0] sm:%s146]
                %252 = vst [vmem:[%s154 + $0x180] sm:%s146] %v251
                %v253 = vld [vmem:[%s153 + $0x3f8] sm:%s146]
                %254 = vst [vmem:[%s154 + $0x188] sm:%s146] %v253
                %v255 = vld [vmem:[%s153 + $0x400] sm:%s146]
                %256 = vst [vmem:[%s154 + $0x190] sm:%s146] %v255
                %v257 = vld [vmem:[%s153 + $0x408] sm:%s146]
                %258 = vst [vmem:[%s154 + $0x198] sm:%s146] %v257
                %v259 = vld [vmem:[%s153 + $0x680] sm:%s146]
                %260 = vst [vmem:[%s154 + $0x1a0] sm:%s146] %v259
                %v261 = vld [vmem:[%s153 + $0x688] sm:%s146]
                %262 = vst [vmem:[%s154 + $0x1a8] sm:%s146] %v261
                %v263 = vld [vmem:[%s153 + $0x690] sm:%s146]
                %264 = vst [vmem:[%s154 + $0x1b0] sm:%s146] %v263
                %v265 = vld [vmem:[%s153 + $0x698] sm:%s146]
                %266 = vst [vmem:[%s154 + $0x1b8] sm:%s146] %v265
                %v267 = vld [vmem:[%s153 + $0x6a0] sm:%s146]
                %268 = vst [vmem:[%s154 + $0x1c0] sm:%s146] %v267
                %v269 = vld [vmem:[%s153 + $0x6a8] sm:%s146]
                %270 = vst [vmem:[%s154 + $0x1c8] sm:%s146] %v269
                %v271 = vld [vmem:[%s153 + $0x6b0] sm:%s146]
                %272 = vst [vmem:[%s154 + $0x1d0] sm:%s146] %v271
                %v273 = vld [vmem:[%s153 + $0x6b8] sm:%s146]
                %274 = vst [vmem:[%s154 + $0x1d8] sm:%s146] %v273
                %v275 = vld [vmem:[%s153 + $0x6c0] sm:%s146]
                %276 = vst [vmem:[%s154 + $0x1e0] sm:%s146] %v275
                %v277 = vld [vmem:[%s153 + $0x6c8] sm:%s146]
                %278 = vst [vmem:[%s154 + $0x1e8] sm:%s146] %v277
                %v279 = vld [vmem:[%s153 + $0x6d0] sm:%s146]
                %280 = vst [vmem:[%s154 + $0x1f0] sm:%s146] %v279
                %v281 = vld [vmem:[%s153 + $0x6d8] sm:%s146]
                %282 = vst [vmem:[%s154 + $0x1f8] sm:%s146] %v281
                %v283 = vld [vmem:[%s153 + $0x6e0] sm:%s146]
                %284 = vst [vmem:[%s154 + $0x200] sm:%s146] %v283
                %v285 = vld [vmem:[%s153 + $0x6e8] sm:%s146]
                %286 = vst [vmem:[%s154 + $0x208] sm:%s146] %v285
                %v287 = vld [vmem:[%s153 + $0x6f0] sm:%s146]
                %288 = vst [vmem:[%s154 + $0x210] sm:%s146] %v287
                %v289 = vld [vmem:[%s153 + $0x6f8] sm:%s146]
                %290 = vst [vmem:[%s154 + $0x218] sm:%s146] %v289
                %v291 = vld [vmem:[%s153 + $0x700] sm:%s146]
                %292 = vst [vmem:[%s154 + $0x220] sm:%s146] %v291
                %v293 = vld [vmem:[%s153 + $0x708] sm:%s146]
                %294 = vst [vmem:[%s154 + $0x228] sm:%s146] %v293
                %v295 = vld [vmem:[%s153 + $0x710] sm:%s146]
                %296 = vst [vmem:[%s154 + $0x230] sm:%s146] %v295
                %v297 = vld [vmem:[%s153 + $0x718] sm:%s146]
                %298 = vst [vmem:[%s154 + $0x238] sm:%s146] %v297
                %v299 = vld [vmem:[%s153 + $0x720] sm:%s146]
                %300 = vst [vmem:[%s154 + $0x240] sm:%s146] %v299
                %v301 = vld [vmem:[%s153 + $0x728] sm:%s146]
                %302 = vst [vmem:[%s154 + $0x248] sm:%s146] %v301
                %v303 = vld [vmem:[%s153 + $0x730] sm:%s146]
                %304 = vst [vmem:[%s154 + $0x250] sm:%s146] %v303
                %v305 = vld [vmem:[%s153 + $0x738] sm:%s146]
                %306 = vst [vmem:[%s154 + $0x258] sm:%s146] %v305
                %v307 = vld [vmem:[%s153 + $0x740] sm:%s146]
                %308 = vst [vmem:[%s154 + $0x260] sm:%s146] %v307
                %v309 = vld [vmem:[%s153 + $0x748] sm:%s146]
                %310 = vst [vmem:[%s154 + $0x268] sm:%s146] %v309
                %v311 = vld [vmem:[%s153 + $0x9c0] sm:%s146]
                %312 = vst [vmem:[%s154 + $0x270] sm:%s146] %v311
                %v313 = vld [vmem:[%s153 + $0x9c8] sm:%s146]
                %314 = vst [vmem:[%s154 + $0x278] sm:%s146] %v313
                %v315 = vld [vmem:[%s153 + $0x9d0] sm:%s146]
                %316 = vst [vmem:[%s154 + $0x280] sm:%s146] %v315
                %v317 = vld [vmem:[%s153 + $0x9d8] sm:%s146]
                %318 = vst [vmem:[%s154 + $0x288] sm:%s146] %v317
                %v319 = vld [vmem:[%s153 + $0x9e0] sm:%s146]
                %320 = vst [vmem:[%s154 + $0x290] sm:%s146] %v319
                %v321 = vld [vmem:[%s153 + $0x9e8] sm:%s146]
                %322 = vst [vmem:[%s154 + $0x298] sm:%s146] %v321
                %v323 = vld [vmem:[%s153 + $0x9f0] sm:%s146]
                %324 = vst [vmem:[%s154 + $0x2a0] sm:%s146] %v323
                %v325 = vld [vmem:[%s153 + $0x9f8] sm:%s146]
                %326 = vst [vmem:[%s154 + $0x2a8] sm:%s146] %v325
                %v327 = vld [vmem:[%s153 + $0xa00] sm:%s146]
                %328 = vst [vmem:[%s154 + $0x2b0] sm:%s146] %v327
                %v329 = vld [vmem:[%s153 + $0xa08] sm:%s146]
                %330 = vst [vmem:[%s154 + $0x2b8] sm:%s146] %v329
                %v331 = vld [vmem:[%s153 + $0xa10] sm:%s146]
                %332 = vst [vmem:[%s154 + $0x2c0] sm:%s146] %v331
                %v333 = vld [vmem:[%s153 + $0xa18] sm:%s146]
                %334 = vst [vmem:[%s154 + $0x2c8] sm:%s146] %v333
                %v335 = vld [vmem:[%s153 + $0xa20] sm:%s146]
                %336 = vst [vmem:[%s154 + $0x2d0] sm:%s146] %v335
                %v337 = vld [vmem:[%s153 + $0xa28] sm:%s146]
                %338 = vst [vmem:[%s154 + $0x2d8] sm:%s146] %v337
                %v339 = vld [vmem:[%s153 + $0xa30] sm:%s146]
                %340 = vst [vmem:[%s154 + $0x2e0] sm:%s146] %v339
                %v341 = vld [vmem:[%s153 + $0xa38] sm:%s146]
                %342 = vst [vmem:[%s154 + $0x2e8] sm:%s146] %v341
                %v343 = vld [vmem:[%s153 + $0xa40] sm:%s146]
                %344 = vst [vmem:[%s154 + $0x2f0] sm:%s146] %v343
                %v345 = vld [vmem:[%s153 + $0xa48] sm:%s146]
                %346 = vst [vmem:[%s154 + $0x2f8] sm:%s146] %v345
                %v347 = vld [vmem:[%s153 + $0xa50] sm:%s146]
                %348 = vst [vmem:[%s154 + $0x300] sm:%s146] %v347
                %v349 = vld [vmem:[%s153 + $0xa58] sm:%s146]
                %350 = vst [vmem:[%s154 + $0x308] sm:%s146] %v349
                %v351 = vld [vmem:[%s153 + $0xa60] sm:%s146]
                %352 = vst [vmem:[%s154 + $0x310] sm:%s146] %v351
                %v353 = vld [vmem:[%s153 + $0xa68] sm:%s146]
                %354 = vst [vmem:[%s154 + $0x318] sm:%s146] %v353
                %v355 = vld [vmem:[%s153 + $0xa70] sm:%s146]
                %356 = vst [vmem:[%s154 + $0x320] sm:%s146] %v355
                %v357 = vld [vmem:[%s153 + $0xa78] sm:%s146]
                %358 = vst [vmem:[%s154 + $0x328] sm:%s146] %v357
                %v359 = vld [vmem:[%s153 + $0xa80] sm:%s146]
                %360 = vst [vmem:[%s154 + $0x330] sm:%s146] %v359
                %v361 = vld [vmem:[%s153 + $0xa88] sm:%s146]
                %362 = vst [vmem:[%s154 + $0x338] sm:%s146] %v361
              $region45: #{basic_cnn_forward.2} parent=39 // loop_footer
                %s152 = sadd.s32 1, %s148
              $region46: #{basic_cnn_forward.2} parent=39 // loop_footer_branch
                %147 = sbr.rel target = $region42
              $region47: #{basic_cnn_forward.2} parent=39 // loop_exit
                _
            $region40: #{basic_cnn_forward.2} parent=31 // pred_fallthru
              _
          $region32: #{basic_cnn_forward.2} parent=27 // pred_fallthru
            _
          %583 = vnop
        $region28: #{basic_cnn_forward.2} parent=23 // pred_fallthru
          _
      $region24: #{basic_cnn_forward.2} parent=5 // pred_fallthru
        _
      %p584 = scmp.le.s32.totalorder 1, %s9
      %p585 = scmp.lt.s32.totalorder %s9, 5
      %p586 = pnand %p584, %p585
      %p587 = pneg %p586
      // Predicated region
      $region63: #{basic_cnn_forward.2} parent=5 // pred_check
        _
      $region64: #{basic_cnn_forward.2} parent=5 // pred_check_branch
        %589 = sbr.rel (%p586) target = $region66
      $region65: #{basic_cnn_forward.2} parent=5 // pred_region
        %s590 = ssub.s32 %s9, 1
        %s591 = sand.u32 %s22, 1
        %s592 = sand.u32 %s22, 1
        %s593 = smul.addr %s592, 832
        %s594 = scalar_lea.vmem [#allocation2], %s593
        // Predicated region
        $region67: #{basic_cnn_forward.2} parent=65 // pred_check
          %p595 = pneg %p35
        $region68: #{basic_cnn_forward.2} parent=65 // pred_check_branch
          %597 = sbr.rel (%p595) target = $region70
        $region69: #{basic_cnn_forward.2} parent=65 // pred_region
          _
        $region70: #{basic_cnn_forward.2} parent=65 // pred_fallthru
          _
        %s598 = sand.u32 %s22, 1
        %s599 = sand.u32 %s22, 1
        %s600 = smul.addr %s599, 832
        %s601 = scalar_lea.vmem [#allocation2], %s600
        %p602 = pneg %p35
        %p603 = pneg %p32
        %p604 = pneg %p56
        %p605 = pneg %p53
        %p606 = pneg %p77
        %p607 = pneg %p74
        %p608 = pneg %p103
        %p609 = pneg %p100
        %s610 = smul.u32 26, %s14
        %p611 = scmp.lt.s32.totalorder %s610, 103
        %s612 = scalar_select %p611, %s610, 103
        %s613 = smul.addr %s612, 4
        %s614 = scalar_lea.vmem %s3, %s613
        %s615 = smul.u32 26, %s14
        %s616 = smul.u32 26, %s14
        %p617 = scmp.lt.s32.totalorder %s616, 103
        %s618 = scalar_select %p617, %s616, 103
        %s619 = smul.addr %s618, 4
        %s620 = scalar_lea.vmem %s3, %s619
        %s621 = smul.u32 26, %s14
        %v623 = vld [vmem:[%s594] sm:$0xff]
        %v624 = vld [vmem:[%s594 + $0x8] sm:$0xff]
        %v625 = vld [vmem:[%s594 + $0x10] sm:$0xff]
        %v626 = vld [vmem:[%s594 + $0x18] sm:$0xff]
        %v627 = vld [vmem:[%s594 + $0x20] sm:$0xff]
        %v628 = vld [vmem:[%s594 + $0x28] sm:$0xff]
        %v629 = vld [vmem:[%s594 + $0x30] sm:$0xff]
        %v630 = vld [vmem:[%s594 + $0x38] sm:$0xff]
        %v631 = vld [vmem:[%s594 + $0x40] sm:$0xff]
        %v632 = vld [vmem:[%s594 + $0x48] sm:$0xff]
        %v633 = vld [vmem:[%s594 + $0x50] sm:$0xff]
        %v634 = vld [vmem:[%s594 + $0x58] sm:$0xff]
        %v635 = vld [vmem:[%s594 + $0x60] sm:$0xff]
        %v636 = vld [vmem:[%s594 + $0x68] sm:$0xff]
        %v637 = vld [vmem:[%s594 + $0x70] sm:$0xff]
        %v638 = vld [vmem:[%s594 + $0x78] sm:$0xff]
        %v639 = vld [vmem:[%s594 + $0x80] sm:$0xff]
        %v640 = vld [vmem:[%s594 + $0x88] sm:$0xff]
        %v641 = vld [vmem:[%s594 + $0x90] sm:$0xff]
        %v642 = vld [vmem:[%s594 + $0x98] sm:$0xff]
        %v643 = vld [vmem:[%s594 + $0xa0] sm:$0xff]
        %v644 = vld [vmem:[%s594 + $0xa8] sm:$0xff]
        %v645 = vld [vmem:[%s594 + $0xb0] sm:$0xff]
        %v646 = vld [vmem:[%s594 + $0xb8] sm:$0xff]
        %v647 = vld [vmem:[%s594 + $0xc0] sm:$0xff]
        %v648 = vld [vmem:[%s594 + $0xc8] sm:$0xff]
        %v649 = vld [vmem:[%s594 + $0xd0] sm:$0xff]
        %v650 = vld [vmem:[%s594 + $0xd8] sm:$0xff]
        %v651 = vld [vmem:[%s594 + $0xe0] sm:$0xff]
        %v652 = vld [vmem:[%s594 + $0xe8] sm:$0xff]
        %v653 = vld [vmem:[%s594 + $0xf0] sm:$0xff]
        %v654 = vld [vmem:[%s594 + $0xf8] sm:$0xff]
        %v655 = vld [vmem:[%s594 + $0x100] sm:$0xff]
        %v656 = vld [vmem:[%s594 + $0x108] sm:$0xff]
        %v657 = vld [vmem:[%s594 + $0x110] sm:$0xff]
        %v658 = vld [vmem:[%s594 + $0x118] sm:$0xff]
        %v659 = vld [vmem:[%s594 + $0x120] sm:$0xff]
        %v660 = vld [vmem:[%s594 + $0x128] sm:$0xff]
        %v661 = vld [vmem:[%s594 + $0x130] sm:$0xff]
        %v662 = vld [vmem:[%s594 + $0x138] sm:$0xff]
        %v663 = vld [vmem:[%s594 + $0x140] sm:$0xff]
        %v664 = vld [vmem:[%s594 + $0x148] sm:$0xff]
        %v665 = vld [vmem:[%s594 + $0x150] sm:$0xff]
        %v666 = vld [vmem:[%s594 + $0x158] sm:$0xff]
        %v667 = vld [vmem:[%s594 + $0x160] sm:$0xff]
        %v668 = vld [vmem:[%s594 + $0x168] sm:$0xff]
        %v669 = vld [vmem:[%s594 + $0x170] sm:$0xff]
        %v670 = vld [vmem:[%s594 + $0x178] sm:$0xff]
        %v671 = vld [vmem:[%s594 + $0x180] sm:$0xff]
        %v672 = vld [vmem:[%s594 + $0x188] sm:$0xff]
        %v673 = vld [vmem:[%s594 + $0x190] sm:$0xff]
        %v674 = vld [vmem:[%s594 + $0x198] sm:$0xff]
        %v675 = vld [vmem:[%s594 + $0x1a0] sm:$0xff]
        %v676 = vld [vmem:[%s594 + $0x1a8] sm:$0xff]
        %v677 = vld [vmem:[%s594 + $0x1b0] sm:$0xff]
        %v678 = vld [vmem:[%s594 + $0x1b8] sm:$0xff]
        %v679 = vld [vmem:[%s594 + $0x1c0] sm:$0xff]
        %v680 = vld [vmem:[%s594 + $0x1c8] sm:$0xff]
        %v681 = vld [vmem:[%s594 + $0x1d0] sm:$0xff]
        %v682 = vld [vmem:[%s594 + $0x1d8] sm:$0xff]
        %v683 = vld [vmem:[%s594 + $0x1e0] sm:$0xff]
        %v684 = vld [vmem:[%s594 + $0x1e8] sm:$0xff]
        %v685 = vld [vmem:[%s594 + $0x1f0] sm:$0xff]
        %v686 = vld [vmem:[%s594 + $0x1f8] sm:$0xff]
        %v687 = vld [vmem:[%s594 + $0x200] sm:$0xff]
        %v688 = vld [vmem:[%s594 + $0x208] sm:$0xff]
        %v689 = vld [vmem:[%s594 + $0x210] sm:$0xff]
        %v690 = vld [vmem:[%s594 + $0x218] sm:$0xff]
        %v691 = vld [vmem:[%s594 + $0x220] sm:$0xff]
        %v692 = vld [vmem:[%s594 + $0x228] sm:$0xff]
        %v693 = vld [vmem:[%s594 + $0x230] sm:$0xff]
        %v694 = vld [vmem:[%s594 + $0x238] sm:$0xff]
        %v695 = vld [vmem:[%s594 + $0x240] sm:$0xff]
        %v696 = vld [vmem:[%s594 + $0x248] sm:$0xff]
        %v697 = vld [vmem:[%s594 + $0x250] sm:$0xff]
        %v698 = vld [vmem:[%s594 + $0x258] sm:$0xff]
        %v699 = vld [vmem:[%s594 + $0x260] sm:$0xff]
        %v700 = vld [vmem:[%s594 + $0x268] sm:$0xff]
        %v701 = vld [vmem:[%s594 + $0x270] sm:$0xff]
        %v702 = vld [vmem:[%s594 + $0x278] sm:$0xff]
        %v703 = vld [vmem:[%s594 + $0x280] sm:$0xff]
        %v704 = vld [vmem:[%s594 + $0x288] sm:$0xff]
        %v705 = vld [vmem:[%s594 + $0x290] sm:$0xff]
        %v706 = vld [vmem:[%s594 + $0x298] sm:$0xff]
        %v707 = vld [vmem:[%s594 + $0x2a0] sm:$0xff]
        %v708 = vld [vmem:[%s594 + $0x2a8] sm:$0xff]
        %v709 = vld [vmem:[%s594 + $0x2b0] sm:$0xff]
        %v710 = vld [vmem:[%s594 + $0x2b8] sm:$0xff]
        %v711 = vld [vmem:[%s594 + $0x2c0] sm:$0xff]
        %v712 = vld [vmem:[%s594 + $0x2c8] sm:$0xff]
        %v713 = vld [vmem:[%s594 + $0x2d0] sm:$0xff]
        %v714 = vld [vmem:[%s594 + $0x2d8] sm:$0xff]
        %v715 = vld [vmem:[%s594 + $0x2e0] sm:$0xff]
        %v716 = vld [vmem:[%s594 + $0x2e8] sm:$0xff]
        %v717 = vld [vmem:[%s594 + $0x2f0] sm:$0xff]
        %v718 = vld [vmem:[%s594 + $0x2f8] sm:$0xff]
        %v719 = vld [vmem:[%s594 + $0x300] sm:$0xff]
        %v720 = vld [vmem:[%s594 + $0x308] sm:$0xff]
        %v721 = vld [vmem:[%s594 + $0x310] sm:$0xff]
        %v722 = vld [vmem:[%s594 + $0x318] sm:$0xff]
        %v723 = vld [vmem:[%s594 + $0x320] sm:$0xff]
        %v724 = vld [vmem:[%s594 + $0x328] sm:$0xff]
        %v725 = vld [vmem:[%s594 + $0x330] sm:$0xff]
        %v726 = vld [vmem:[%s594 + $0x338] sm:$0xff]
        %v727 = vld [vmem:[%s1] sm:$0xf]
        %v728 = vld [vmem:[%s1 + $0x4] sm:$0xf]
        %v729 = vld [vmem:[%s1 + $0x8] sm:$0xf]
        %v730 = vld [vmem:[%s1 + $0xc] sm:$0xf]
        %v731 = vld [vmem:[%s1 + $0x10] sm:$0xf]
        %v732 = vld [vmem:[%s1 + $0x14] sm:$0xf]
        %v733 = vld [vmem:[%s1 + $0x18] sm:$0xf]
        %v734 = vld [vmem:[%s1 + $0x1c] sm:$0xf]
        %v735 = vld [vmem:[%s1 + $0x20] sm:$0xf]
        %v736 = vld [vmem:[%s1 + $0x24] sm:$0xf]
        %v737 = vld [vmem:[%s1 + $0x28] sm:$0xf]
        %v738 = vld [vmem:[%s1 + $0x2c] sm:$0xf]
        %v739 = vld [vmem:[%s1 + $0x30] sm:$0xf]
        %v740 = vld [vmem:[%s1 + $0x34] sm:$0xf]
        %v741 = vld [vmem:[%s1 + $0x38] sm:$0xf]
        %v742 = vld [vmem:[%s1 + $0x3c] sm:$0xf]
        %v743 = vld [vmem:[%s1 + $0x40] sm:$0xf]
        %v744 = vld [vmem:[%s1 + $0x44] sm:$0xf]
        %v745 = vld [vmem:[%s1 + $0x48] sm:$0xf]
        %v746 = vld [vmem:[%s1 + $0x4c] sm:$0xf]
        %v747 = vld [vmem:[%s1 + $0x50] sm:$0xf]
        %v748 = vld [vmem:[%s1 + $0x54] sm:$0xf]
        %v749 = vld [vmem:[%s1 + $0x58] sm:$0xf]
        %v750 = vld [vmem:[%s1 + $0x5c] sm:$0xf]
        %v751 = vld [vmem:[%s1 + $0x60] sm:$0x3]
        %v752 = vld [vmem:[%s2] sm:$0x1]
        %v754 = vperm.slane %v752, 0
        %v860 = vunpack.c.l.b16 %v623
        %v861 = vunpack.c.h.b16 %v623
        %v862 = vunpack.c.l.b16 %v624
        %v863 = vunpack.c.h.b16 %v624
        %v864 = vunpack.c.l.b16 %v625
        %v865 = vunpack.c.h.b16 %v625
        %v866 = vunpack.c.l.b16 %v626
        %v867 = vunpack.c.h.b16 %v626
        %v868 = vunpack.c.l.b16 %v627
        %v869 = vunpack.c.h.b16 %v627
        %v870 = vunpack.c.l.b16 %v628
        %v871 = vunpack.c.h.b16 %v628
        %v872 = vunpack.c.l.b16 %v629
        %v873 = vunpack.c.h.b16 %v629
        %v874 = vunpack.c.l.b16 %v630
        %v875 = vunpack.c.h.b16 %v630
        %v876 = vunpack.c.l.b16 %v631
        %v877 = vunpack.c.h.b16 %v631
        %v878 = vunpack.c.l.b16 %v632
        %v879 = vunpack.c.h.b16 %v632
        %v880 = vunpack.c.l.b16 %v633
        %v881 = vunpack.c.h.b16 %v633
        %v882 = vunpack.c.l.b16 %v634
        %v883 = vunpack.c.h.b16 %v634
        %v884 = vunpack.c.l.b16 %v635
        %v885 = vunpack.c.h.b16 %v635
        %v886 = vunpack.c.l.b16 %v636
        %v887 = vunpack.c.h.b16 %v636
        %v888 = vunpack.c.l.b16 %v637
        %v889 = vunpack.c.h.b16 %v637
        %v890 = vunpack.c.l.b16 %v638
        %v891 = vunpack.c.h.b16 %v638
        %v892 = vunpack.c.l.b16 %v639
        %v893 = vunpack.c.h.b16 %v639
        %v894 = vunpack.c.l.b16 %v640
        %v895 = vunpack.c.h.b16 %v640
        %v896 = vunpack.c.l.b16 %v641
        %v897 = vunpack.c.h.b16 %v641
        %v898 = vunpack.c.l.b16 %v642
        %v899 = vunpack.c.h.b16 %v642
        %v900 = vunpack.c.l.b16 %v643
        %v901 = vunpack.c.h.b16 %v643
        %v902 = vunpack.c.l.b16 %v644
        %v903 = vunpack.c.h.b16 %v644
        %v904 = vunpack.c.l.b16 %v645
        %v905 = vunpack.c.h.b16 %v645
        %v906 = vunpack.c.l.b16 %v646
        %v907 = vunpack.c.h.b16 %v646
        %v908 = vunpack.c.l.b16 %v647
        %v909 = vunpack.c.h.b16 %v647
        %v910 = vunpack.c.l.b16 %v648
        %v911 = vunpack.c.h.b16 %v648
        %v912 = vunpack.c.l.b16 %v649
        %v913 = vunpack.c.h.b16 %v649
        %v914 = vunpack.c.l.b16 %v650
        %v915 = vunpack.c.h.b16 %v650
        %v916 = vunpack.c.l.b16 %v651
        %v917 = vunpack.c.h.b16 %v651
        %v918 = vunpack.c.l.b16 %v652
        %v919 = vunpack.c.h.b16 %v652
        %v920 = vunpack.c.l.b16 %v653
        %v921 = vunpack.c.h.b16 %v653
        %v922 = vunpack.c.l.b16 %v654
        %v923 = vunpack.c.h.b16 %v654
        %v924 = vunpack.c.l.b16 %v655
        %v925 = vunpack.c.h.b16 %v655
        %v926 = vunpack.c.l.b16 %v656
        %v927 = vunpack.c.h.b16 %v656
        %v928 = vunpack.c.l.b16 %v657
        %v929 = vunpack.c.h.b16 %v657
        %v930 = vunpack.c.l.b16 %v658
        %v931 = vunpack.c.h.b16 %v658
        %v932 = vunpack.c.l.b16 %v659
        %v933 = vunpack.c.h.b16 %v659
        %v934 = vunpack.c.l.b16 %v660
        %v935 = vunpack.c.h.b16 %v660
        %v936 = vunpack.c.l.b16 %v661
        %v937 = vunpack.c.h.b16 %v661
        %v938 = vunpack.c.l.b16 %v662
        %v939 = vunpack.c.h.b16 %v662
        %v940 = vunpack.c.l.b16 %v663
        %v941 = vunpack.c.h.b16 %v663
        %v942 = vunpack.c.l.b16 %v664
        %v943 = vunpack.c.h.b16 %v664
        %v944 = vunpack.c.l.b16 %v665
        %v945 = vunpack.c.h.b16 %v665
        %v946 = vunpack.c.l.b16 %v666
        %v947 = vunpack.c.h.b16 %v666
        %v948 = vunpack.c.l.b16 %v667
        %v949 = vunpack.c.h.b16 %v667
        %v950 = vunpack.c.l.b16 %v668
        %v951 = vunpack.c.h.b16 %v668
        %v952 = vunpack.c.l.b16 %v669
        %v953 = vunpack.c.h.b16 %v669
        %v954 = vunpack.c.l.b16 %v670
        %v955 = vunpack.c.h.b16 %v670
        %v956 = vunpack.c.l.b16 %v671
        %v957 = vunpack.c.h.b16 %v671
        %v958 = vunpack.c.l.b16 %v672
        %v959 = vunpack.c.h.b16 %v672
        %v960 = vunpack.c.l.b16 %v673
        %v961 = vunpack.c.h.b16 %v673
        %v962 = vunpack.c.l.b16 %v674
        %v963 = vunpack.c.h.b16 %v674
        %v964 = vunpack.c.l.b16 %v675
        %v965 = vunpack.c.h.b16 %v675
        %v966 = vunpack.c.l.b16 %v676
        %v967 = vunpack.c.h.b16 %v676
        %v968 = vunpack.c.l.b16 %v677
        %v969 = vunpack.c.h.b16 %v677
        %v970 = vunpack.c.l.b16 %v678
        %v971 = vunpack.c.h.b16 %v678
        %v972 = vunpack.c.l.b16 %v679
        %v973 = vunpack.c.h.b16 %v679
        %v974 = vunpack.c.l.b16 %v680
        %v975 = vunpack.c.h.b16 %v680
        %v976 = vunpack.c.l.b16 %v681
        %v977 = vunpack.c.h.b16 %v681
        %v978 = vunpack.c.l.b16 %v682
        %v979 = vunpack.c.h.b16 %v682
        %v980 = vunpack.c.l.b16 %v683
        %v981 = vunpack.c.h.b16 %v683
        %v982 = vunpack.c.l.b16 %v684
        %v983 = vunpack.c.h.b16 %v684
        %v984 = vunpack.c.l.b16 %v685
        %v985 = vunpack.c.h.b16 %v685
        %v986 = vunpack.c.l.b16 %v686
        %v987 = vunpack.c.h.b16 %v686
        %v988 = vunpack.c.l.b16 %v687
        %v989 = vunpack.c.h.b16 %v687
        %v990 = vunpack.c.l.b16 %v688
        %v991 = vunpack.c.h.b16 %v688
        %v992 = vunpack.c.l.b16 %v689
        %v993 = vunpack.c.h.b16 %v689
        %v994 = vunpack.c.l.b16 %v690
        %v995 = vunpack.c.h.b16 %v690
        %v996 = vunpack.c.l.b16 %v691
        %v997 = vunpack.c.h.b16 %v691
        %v998 = vunpack.c.l.b16 %v692
        %v999 = vunpack.c.h.b16 %v692
        %v1000 = vunpack.c.l.b16 %v693
        %v1001 = vunpack.c.h.b16 %v693
        %v1002 = vunpack.c.l.b16 %v694
        %v1003 = vunpack.c.h.b16 %v694
        %v1004 = vunpack.c.l.b16 %v695
        %v1005 = vunpack.c.h.b16 %v695
        %v1006 = vunpack.c.l.b16 %v696
        %v1007 = vunpack.c.h.b16 %v696
        %v1008 = vunpack.c.l.b16 %v697
        %v1009 = vunpack.c.h.b16 %v697
        %v1010 = vunpack.c.l.b16 %v698
        %v1011 = vunpack.c.h.b16 %v698
        %v1012 = vunpack.c.l.b16 %v699
        %v1013 = vunpack.c.h.b16 %v699
        %v1014 = vunpack.c.l.b16 %v700
        %v1015 = vunpack.c.h.b16 %v700
        %v1016 = vunpack.c.l.b16 %v701
        %v1017 = vunpack.c.h.b16 %v701
        %v1018 = vunpack.c.l.b16 %v702
        %v1019 = vunpack.c.h.b16 %v702
        %v1020 = vunpack.c.l.b16 %v703
        %v1021 = vunpack.c.h.b16 %v703
        %v1022 = vunpack.c.l.b16 %v704
        %v1023 = vunpack.c.h.b16 %v704
        %v1024 = vunpack.c.l.b16 %v705
        %v1025 = vunpack.c.h.b16 %v705
        %v1026 = vunpack.c.l.b16 %v706
        %v1027 = vunpack.c.h.b16 %v706
        %v1028 = vunpack.c.l.b16 %v707
        %v1029 = vunpack.c.h.b16 %v707
        %v1030 = vunpack.c.l.b16 %v708
        %v1031 = vunpack.c.h.b16 %v708
        %v1032 = vunpack.c.l.b16 %v709
        %v1033 = vunpack.c.h.b16 %v709
        %v1034 = vunpack.c.l.b16 %v710
        %v1035 = vunpack.c.h.b16 %v710
        %v1036 = vunpack.c.l.b16 %v711
        %v1037 = vunpack.c.h.b16 %v711
        %v1038 = vunpack.c.l.b16 %v712
        %v1039 = vunpack.c.h.b16 %v712
        %v1040 = vunpack.c.l.b16 %v713
        %v1041 = vunpack.c.h.b16 %v713
        %v1042 = vunpack.c.l.b16 %v714
        %v1043 = vunpack.c.h.b16 %v714
        %v1044 = vunpack.c.l.b16 %v715
        %v1045 = vunpack.c.h.b16 %v715
        %v1046 = vunpack.c.l.b16 %v716
        %v1047 = vunpack.c.h.b16 %v716
        %v1048 = vunpack.c.l.b16 %v717
        %v1049 = vunpack.c.h.b16 %v717
        %v1050 = vunpack.c.l.b16 %v718
        %v1051 = vunpack.c.h.b16 %v718
        %v1052 = vunpack.c.l.b16 %v719
        %v1053 = vunpack.c.h.b16 %v719
        %v1054 = vunpack.c.l.b16 %v720
        %v1055 = vunpack.c.h.b16 %v720
        %v1056 = vunpack.c.l.b16 %v721
        %v1057 = vunpack.c.h.b16 %v721
        %v1058 = vunpack.c.l.b16 %v722
        %v1059 = vunpack.c.h.b16 %v722
        %v1060 = vunpack.c.l.b16 %v723
        %v1061 = vunpack.c.h.b16 %v723
        %v1062 = vunpack.c.l.b16 %v724
        %v1063 = vunpack.c.h.b16 %v724
        %v1064 = vunpack.c.l.b16 %v725
        %v1065 = vunpack.c.h.b16 %v725
        %v1066 = vunpack.c.l.b16 %v726
        %v1067 = vunpack.c.h.b16 %v726
        %v1068 = vpack.c.b16 %v862, %v860
        %v1069 = vpack.c.b16 %v863, %v861
        %v1070 = vpack.c.b16 %v866, %v864
        %v1071 = vpack.c.b16 %v867, %v865
        %v1072 = vpack.c.b16 %v870, %v868
        %v1073 = vpack.c.b16 %v871, %v869
        %v1074 = vpack.c.b16 %v874, %v872
        %v1075 = vpack.c.b16 %v875, %v873
        %v1076 = vpack.c.b16 %v878, %v876
        %v1077 = vpack.c.b16 %v879, %v877
        %v1078 = vpack.c.b16 %v882, %v880
        %v1079 = vpack.c.b16 %v883, %v881
        %v1080 = vpack.c.b16 %v886, %v884
        %v1081 = vpack.c.b16 %v887, %v885
        %v1082 = vpack.c.b16 %v890, %v888
        %v1083 = vpack.c.b16 %v891, %v889
        %v1084 = vpack.c.b16 %v894, %v892
        %v1085 = vpack.c.b16 %v895, %v893
        %v1086 = vpack.c.b16 %v898, %v896
        %v1087 = vpack.c.b16 %v899, %v897
        %v1088 = vpack.c.b16 %v902, %v900
        %v1089 = vpack.c.b16 %v903, %v901
        %v1090 = vpack.c.b16 %v906, %v904
        %v1091 = vpack.c.b16 %v907, %v905
        %v1092 = vpack.c.b16 %v910, %v908
        %v1093 = vpack.c.b16 %v911, %v909
        %v1094 = vpack.c.b16 %v914, %v912
        %v1095 = vpack.c.b16 %v915, %v913
        %v1096 = vpack.c.b16 %v918, %v916
        %v1097 = vpack.c.b16 %v919, %v917
        %v1098 = vpack.c.b16 %v922, %v920
        %v1099 = vpack.c.b16 %v923, %v921
        %v1100 = vpack.c.b16 %v926, %v924
        %v1101 = vpack.c.b16 %v927, %v925
        %v1102 = vpack.c.b16 %v930, %v928
        %v1103 = vpack.c.b16 %v931, %v929
        %v1104 = vpack.c.b16 %v934, %v932
        %v1105 = vpack.c.b16 %v935, %v933
        %v1106 = vpack.c.b16 %v938, %v936
        %v1107 = vpack.c.b16 %v939, %v937
        %v1108 = vpack.c.b16 %v942, %v940
        %v1109 = vpack.c.b16 %v943, %v941
        %v1110 = vpack.c.b16 %v946, %v944
        %v1111 = vpack.c.b16 %v947, %v945
        %v1112 = vpack.c.b16 %v950, %v948
        %v1113 = vpack.c.b16 %v951, %v949
        %v1114 = vpack.c.b16 %v954, %v952
        %v1115 = vpack.c.b16 %v955, %v953
        %v1116 = vpack.c.b16 %v958, %v956
        %v1117 = vpack.c.b16 %v959, %v957
        %v1118 = vpack.c.b16 %v962, %v960
        %v1119 = vpack.c.b16 %v963, %v961
        %v1120 = vpack.c.b16 %v966, %v964
        %v1121 = vpack.c.b16 %v967, %v965
        %v1122 = vpack.c.b16 %v970, %v968
        %v1123 = vpack.c.b16 %v971, %v969
        %v1124 = vpack.c.b16 %v974, %v972
        %v1125 = vpack.c.b16 %v975, %v973
        %v1126 = vpack.c.b16 %v978, %v976
        %v1127 = vpack.c.b16 %v979, %v977
        %v1128 = vpack.c.b16 %v982, %v980
        %v1129 = vpack.c.b16 %v983, %v981
        %v1130 = vpack.c.b16 %v986, %v984
        %v1131 = vpack.c.b16 %v987, %v985
        %v1132 = vpack.c.b16 %v990, %v988
        %v1133 = vpack.c.b16 %v991, %v989
        %v1134 = vpack.c.b16 %v994, %v992
        %v1135 = vpack.c.b16 %v995, %v993
        %v1136 = vpack.c.b16 %v998, %v996
        %v1137 = vpack.c.b16 %v999, %v997
        %v1138 = vpack.c.b16 %v1002, %v1000
        %v1139 = vpack.c.b16 %v1003, %v1001
        %v1140 = vpack.c.b16 %v1006, %v1004
        %v1141 = vpack.c.b16 %v1007, %v1005
        %v1142 = vpack.c.b16 %v1010, %v1008
        %v1143 = vpack.c.b16 %v1011, %v1009
        %v1144 = vpack.c.b16 %v1014, %v1012
        %v1145 = vpack.c.b16 %v1015, %v1013
        %v1146 = vpack.c.b16 %v1018, %v1016
        %v1147 = vpack.c.b16 %v1019, %v1017
        %v1148 = vpack.c.b16 %v1022, %v1020
        %v1149 = vpack.c.b16 %v1023, %v1021
        %v1150 = vpack.c.b16 %v1026, %v1024
        %v1151 = vpack.c.b16 %v1027, %v1025
        %v1152 = vpack.c.b16 %v1030, %v1028
        %v1153 = vpack.c.b16 %v1031, %v1029
        %v1154 = vpack.c.b16 %v1034, %v1032
        %v1155 = vpack.c.b16 %v1035, %v1033
        %v1156 = vpack.c.b16 %v1038, %v1036
        %v1157 = vpack.c.b16 %v1039, %v1037
        %v1158 = vpack.c.b16 %v1042, %v1040
        %v1159 = vpack.c.b16 %v1043, %v1041
        %v1160 = vpack.c.b16 %v1046, %v1044
        %v1161 = vpack.c.b16 %v1047, %v1045
        %v1162 = vpack.c.b16 %v1050, %v1048
        %v1163 = vpack.c.b16 %v1051, %v1049
        %v1164 = vpack.c.b16 %v1054, %v1052
        %v1165 = vpack.c.b16 %v1055, %v1053
        %v1166 = vpack.c.b16 %v1058, %v1056
        %v1167 = vpack.c.b16 %v1059, %v1057
        %v1168 = vpack.c.b16 %v1062, %v1060
        %v1169 = vpack.c.b16 %v1063, %v1061
        %v1170 = vpack.c.b16 %v1066, %v1064
        %v1171 = vpack.c.b16 %v1067, %v1065
        %v1249 = vunpack.c.l.b16 %v727
        %v1250 = vunpack.c.l.b16 %v728
        %v1251 = vunpack.c.l.b16 %v729
        %v1252 = vunpack.c.l.b16 %v730
        %v1253 = vunpack.c.l.b16 %v731
        %v1254 = vunpack.c.l.b16 %v732
        %v1255 = vunpack.c.l.b16 %v733
        %v1256 = vunpack.c.l.b16 %v734
        %v1257 = vunpack.c.l.b16 %v735
        %v1258 = vunpack.c.l.b16 %v736
        %v1259 = vunpack.c.l.b16 %v737
        %v1260 = vunpack.c.l.b16 %v738
        %v1261 = vunpack.c.l.b16 %v739
        %v1262 = vunpack.c.l.b16 %v740
        %v1263 = vunpack.c.l.b16 %v741
        %v1264 = vunpack.c.l.b16 %v742
        %v1265 = vunpack.c.l.b16 %v743
        %v1266 = vunpack.c.l.b16 %v744
        %v1267 = vunpack.c.l.b16 %v745
        %v1268 = vunpack.c.l.b16 %v746
        %v1269 = vunpack.c.l.b16 %v747
        %v1270 = vunpack.c.l.b16 %v748
        %v1271 = vunpack.c.l.b16 %v749
        %v1272 = vunpack.c.l.b16 %v750
        %v1273 = vunpack.c.l.b16 %v751
        %v1274 = vpack.c.b16 %v1250, %v1249
        %v1275 = vpack.c.b16 %v1252, %v1251
        %v1276 = vpack.c.b16 %v1254, %v1253
        %v1277 = vpack.c.b16 %v1256, %v1255
        %v1278 = vpack.c.b16 %v1258, %v1257
        %v1279 = vpack.c.b16 %v1260, %v1259
        %v1280 = vpack.c.b16 %v1262, %v1261
        %v1281 = vpack.c.b16 %v1264, %v1263
        %v1282 = vpack.c.b16 %v1266, %v1265
        %v1283 = vpack.c.b16 %v1268, %v1267
        %v1284 = vpack.c.b16 %v1270, %v1269
        %v1285 = vpack.c.b16 %v1272, %v1271
        %v1286 = vpack.c.b16 %v1273, %v1273
        %vm1299 = vcmask 556032
        %v1301 = vsel %vm1299, %v1069, 0
        %v1304 = vsel %vm1299, %v1071, 0
        %v1307 = vsel %vm1299, %v1073, 0
        %v1310 = vsel %vm1299, %v1075, 0
        %v1313 = vsel %vm1299, %v1077, 0
        %v1316 = vsel %vm1299, %v1079, 0
        %v1319 = vsel %vm1299, %v1081, 0
        %v1322 = vsel %vm1299, %v1083, 0
        %v1325 = vsel %vm1299, %v1085, 0
        %v1328 = vsel %vm1299, %v1087, 0
        %v1331 = vsel %vm1299, %v1089, 0
        %v1334 = vsel %vm1299, %v1091, 0
        %v1337 = vsel %vm1299, %v1093, 0
        %v1340 = vsel %vm1299, %v1095, 0
        %v1343 = vsel %vm1299, %v1097, 0
        %v1346 = vsel %vm1299, %v1099, 0
        %v1349 = vsel %vm1299, %v1101, 0
        %v1352 = vsel %vm1299, %v1103, 0
        %v1355 = vsel %vm1299, %v1105, 0
        %v1358 = vsel %vm1299, %v1107, 0
        %v1361 = vsel %vm1299, %v1109, 0
        %v1364 = vsel %vm1299, %v1111, 0
        %v1367 = vsel %vm1299, %v1113, 0
        %v1370 = vsel %vm1299, %v1115, 0
        %v1373 = vsel %vm1299, %v1117, 0
        %v1376 = vsel %vm1299, %v1119, 0
        %v1379 = vsel %vm1299, %v1121, 0
        %v1382 = vsel %vm1299, %v1123, 0
        %v1385 = vsel %vm1299, %v1125, 0
        %v1388 = vsel %vm1299, %v1127, 0
        %v1391 = vsel %vm1299, %v1129, 0
        %v1394 = vsel %vm1299, %v1131, 0
        %v1397 = vsel %vm1299, %v1133, 0
        %v1400 = vsel %vm1299, %v1135, 0
        %v1403 = vsel %vm1299, %v1137, 0
        %v1406 = vsel %vm1299, %v1139, 0
        %v1409 = vsel %vm1299, %v1141, 0
        %v1412 = vsel %vm1299, %v1143, 0
        %v1415 = vsel %vm1299, %v1145, 0
        %v1418 = vsel %vm1299, %v1147, 0
        %v1421 = vsel %vm1299, %v1149, 0
        %v1424 = vsel %vm1299, %v1151, 0
        %v1427 = vsel %vm1299, %v1153, 0
        %v1430 = vsel %vm1299, %v1155, 0
        %v1433 = vsel %vm1299, %v1157, 0
        %v1436 = vsel %vm1299, %v1159, 0
        %v1439 = vsel %vm1299, %v1161, 0
        %v1442 = vsel %vm1299, %v1163, 0
        %v1445 = vsel %vm1299, %v1165, 0
        %v1448 = vsel %vm1299, %v1167, 0
        %v1451 = vsel %vm1299, %v1169, 0
        %v1454 = vsel %vm1299, %v1171, 0
        %vm1456 = vcmask 1041408
        %v1458 = vsel %vm1456, %v1286, 0
        %1460 = vmatpush.bf16.msra.mxu0 %v1281
        %1461 = vmatpush.bf16.msra.mxu0 %v1280
        %1462 = vmatpush.bf16.msra.mxu0 %v1279
        %1463 = vmatpush.bf16.msra.mxu0 %v1278
        %1464 = vmatpush.bf16.msra.mxu0 %v1277
        %1465 = vmatpush.bf16.msra.mxu0 %v1276
        %1466 = vmatpush.bf16.msra.mxu0 %v1275
        %1467 = vmatpush.bf16.msra.mxu0 %v1274
        %1468 = vmatmul.bf16.gmra.mxu0 %v1068
        %v1469 = vpop.f32.mrf.mxu0
        %v1470 = vadd.f32 %v754, %v1469
        %v1471 = vpop.f32.mrf.mxu0
        %v1472 = vadd.f32 %v754, %v1471
        %1473 = vmatmul.bf16.gmra.mxu0 %v1070
        %v1474 = vpop.f32.mrf.mxu0
        %v1475 = vadd.f32 %v754, %v1474
        %v1476 = vpop.f32.mrf.mxu0
        %v1477 = vadd.f32 %v754, %v1476
        %1478 = vmatmul.bf16.gmra.mxu0 %v1072
        %v1479 = vpop.f32.mrf.mxu0
        %v1480 = vadd.f32 %v754, %v1479
        %v1481 = vpop.f32.mrf.mxu0
        %v1482 = vadd.f32 %v754, %v1481
        %1483 = vmatmul.bf16.gmra.mxu0 %v1074
        %v1484 = vpop.f32.mrf.mxu0
        %v1485 = vadd.f32 %v754, %v1484
        %v1486 = vpop.f32.mrf.mxu0
        %v1487 = vadd.f32 %v754, %v1486
        %1488 = vmatmul.bf16.gmra.mxu0 %v1076
        %v1489 = vpop.f32.mrf.mxu0
        %v1490 = vadd.f32 %v754, %v1489
        %v1491 = vpop.f32.mrf.mxu0
        %v1492 = vadd.f32 %v754, %v1491
        %1493 = vmatmul.bf16.gmra.mxu0 %v1078
        %v1494 = vpop.f32.mrf.mxu0
        %v1495 = vadd.f32 %v754, %v1494
        %v1496 = vpop.f32.mrf.mxu0
        %v1497 = vadd.f32 %v754, %v1496
        %1498 = vmatmul.bf16.gmra.mxu0 %v1080
        %v1499 = vpop.f32.mrf.mxu0
        %v1500 = vadd.f32 %v754, %v1499
        %v1501 = vpop.f32.mrf.mxu0
        %v1502 = vadd.f32 %v754, %v1501
        %1503 = vmatmul.bf16.gmra.mxu0 %v1082
        %v1504 = vpop.f32.mrf.mxu0
        %v1505 = vadd.f32 %v754, %v1504
        %v1506 = vpop.f32.mrf.mxu0
        %v1507 = vadd.f32 %v754, %v1506
        %1508 = vmatmul.bf16.gmra.mxu0 %v1084
        %v1509 = vpop.f32.mrf.mxu0
        %v1510 = vadd.f32 %v754, %v1509
        %v1511 = vpop.f32.mrf.mxu0
        %v1512 = vadd.f32 %v754, %v1511
        %1513 = vmatmul.bf16.gmra.mxu0 %v1086
        %v1514 = vpop.f32.mrf.mxu0
        %v1515 = vadd.f32 %v754, %v1514
        %v1516 = vpop.f32.mrf.mxu0
        %v1517 = vadd.f32 %v754, %v1516
        %1518 = vmatmul.bf16.gmra.mxu0 %v1088
        %v1519 = vpop.f32.mrf.mxu0
        %v1520 = vadd.f32 %v754, %v1519
        %v1521 = vpop.f32.mrf.mxu0
        %v1522 = vadd.f32 %v754, %v1521
        %1523 = vmatmul.bf16.gmra.mxu0 %v1090
        %v1524 = vpop.f32.mrf.mxu0
        %v1525 = vadd.f32 %v754, %v1524
        %v1526 = vpop.f32.mrf.mxu0
        %v1527 = vadd.f32 %v754, %v1526
        %1528 = vmatmul.bf16.gmra.mxu0 %v1092
        %v1529 = vpop.f32.mrf.mxu0
        %v1530 = vadd.f32 %v754, %v1529
        %v1531 = vpop.f32.mrf.mxu0
        %v1532 = vadd.f32 %v754, %v1531
        %1533 = vmatmul.bf16.gmra.mxu0 %v1094
        %v1534 = vpop.f32.mrf.mxu0
        %v1535 = vadd.f32 %v754, %v1534
        %v1536 = vpop.f32.mrf.mxu0
        %v1537 = vadd.f32 %v754, %v1536
        %1538 = vmatmul.bf16.gmra.mxu0 %v1096
        %v1539 = vpop.f32.mrf.mxu0
        %v1540 = vadd.f32 %v754, %v1539
        %v1541 = vpop.f32.mrf.mxu0
        %v1542 = vadd.f32 %v754, %v1541
        %1543 = vmatmul.bf16.gmra.mxu0 %v1098
        %v1544 = vpop.f32.mrf.mxu0
        %v1545 = vadd.f32 %v754, %v1544
        %v1546 = vpop.f32.mrf.mxu0
        %v1547 = vadd.f32 %v754, %v1546
        %1548 = vmatmul.bf16.gmra.mxu0 %v1100
        %v1549 = vpop.f32.mrf.mxu0
        %v1550 = vadd.f32 %v754, %v1549
        %v1551 = vpop.f32.mrf.mxu0
        %v1552 = vadd.f32 %v754, %v1551
        %1553 = vmatmul.bf16.gmra.mxu0 %v1102
        %v1554 = vpop.f32.mrf.mxu0
        %v1555 = vadd.f32 %v754, %v1554
        %v1556 = vpop.f32.mrf.mxu0
        %v1557 = vadd.f32 %v754, %v1556
        %1558 = vmatmul.bf16.gmra.mxu0 %v1104
        %v1559 = vpop.f32.mrf.mxu0
        %v1560 = vadd.f32 %v754, %v1559
        %v1561 = vpop.f32.mrf.mxu0
        %v1562 = vadd.f32 %v754, %v1561
        %1563 = vmatmul.bf16.gmra.mxu0 %v1106
        %v1564 = vpop.f32.mrf.mxu0
        %v1565 = vadd.f32 %v754, %v1564
        %v1566 = vpop.f32.mrf.mxu0
        %v1567 = vadd.f32 %v754, %v1566
        %1568 = vmatmul.bf16.gmra.mxu0 %v1108
        %v1569 = vpop.f32.mrf.mxu0
        %v1570 = vadd.f32 %v754, %v1569
        %v1571 = vpop.f32.mrf.mxu0
        %v1572 = vadd.f32 %v754, %v1571
        %1573 = vmatmul.bf16.gmra.mxu0 %v1110
        %v1574 = vpop.f32.mrf.mxu0
        %v1575 = vadd.f32 %v754, %v1574
        %v1576 = vpop.f32.mrf.mxu0
        %v1577 = vadd.f32 %v754, %v1576
        %1578 = vmatmul.bf16.gmra.mxu0 %v1112
        %v1579 = vpop.f32.mrf.mxu0
        %v1580 = vadd.f32 %v754, %v1579
        %v1581 = vpop.f32.mrf.mxu0
        %v1582 = vadd.f32 %v754, %v1581
        %1583 = vmatmul.bf16.gmra.mxu0 %v1114
        %v1584 = vpop.f32.mrf.mxu0
        %v1585 = vadd.f32 %v754, %v1584
        %v1586 = vpop.f32.mrf.mxu0
        %v1587 = vadd.f32 %v754, %v1586
        %1588 = vmatmul.bf16.gmra.mxu0 %v1116
        %v1589 = vpop.f32.mrf.mxu0
        %v1590 = vadd.f32 %v754, %v1589
        %v1591 = vpop.f32.mrf.mxu0
        %v1592 = vadd.f32 %v754, %v1591
        %1593 = vmatmul.bf16.gmra.mxu0 %v1118
        %v1594 = vpop.f32.mrf.mxu0
        %v1595 = vadd.f32 %v754, %v1594
        %v1596 = vpop.f32.mrf.mxu0
        %v1597 = vadd.f32 %v754, %v1596
        %1598 = vmatmul.bf16.gmra.mxu0 %v1120
        %v1599 = vpop.f32.mrf.mxu0
        %v1600 = vadd.f32 %v754, %v1599
        %v1601 = vpop.f32.mrf.mxu0
        %v1602 = vadd.f32 %v754, %v1601
        %1603 = vmatmul.bf16.gmra.mxu0 %v1122
        %v1604 = vpop.f32.mrf.mxu0
        %v1605 = vadd.f32 %v754, %v1604
        %v1606 = vpop.f32.mrf.mxu0
        %v1607 = vadd.f32 %v754, %v1606
        %1608 = vmatmul.bf16.gmra.mxu0 %v1124
        %v1609 = vpop.f32.mrf.mxu0
        %v1610 = vadd.f32 %v754, %v1609
        %v1611 = vpop.f32.mrf.mxu0
        %v1612 = vadd.f32 %v754, %v1611
        %1613 = vmatmul.bf16.gmra.mxu0 %v1126
        %v1614 = vpop.f32.mrf.mxu0
        %v1615 = vadd.f32 %v754, %v1614
        %v1616 = vpop.f32.mrf.mxu0
        %v1617 = vadd.f32 %v754, %v1616
        %1618 = vmatmul.bf16.gmra.mxu0 %v1128
        %v1619 = vpop.f32.mrf.mxu0
        %v1620 = vadd.f32 %v754, %v1619
        %v1621 = vpop.f32.mrf.mxu0
        %v1622 = vadd.f32 %v754, %v1621
        %1623 = vmatmul.bf16.gmra.mxu0 %v1130
        %v1624 = vpop.f32.mrf.mxu0
        %v1625 = vadd.f32 %v754, %v1624
        %v1626 = vpop.f32.mrf.mxu0
        %v1627 = vadd.f32 %v754, %v1626
        %1628 = vmatmul.bf16.gmra.mxu0 %v1132
        %v1629 = vpop.f32.mrf.mxu0
        %v1630 = vadd.f32 %v754, %v1629
        %v1631 = vpop.f32.mrf.mxu0
        %v1632 = vadd.f32 %v754, %v1631
        %1633 = vmatmul.bf16.gmra.mxu0 %v1134
        %v1634 = vpop.f32.mrf.mxu0
        %v1635 = vadd.f32 %v754, %v1634
        %v1636 = vpop.f32.mrf.mxu0
        %v1637 = vadd.f32 %v754, %v1636
        %1638 = vmatmul.bf16.gmra.mxu0 %v1136
        %v1639 = vpop.f32.mrf.mxu0
        %v1640 = vadd.f32 %v754, %v1639
        %v1641 = vpop.f32.mrf.mxu0
        %v1642 = vadd.f32 %v754, %v1641
        %1643 = vmatmul.bf16.gmra.mxu0 %v1138
        %v1644 = vpop.f32.mrf.mxu0
        %v1645 = vadd.f32 %v754, %v1644
        %v1646 = vpop.f32.mrf.mxu0
        %v1647 = vadd.f32 %v754, %v1646
        %1648 = vmatmul.bf16.gmra.mxu0 %v1140
        %v1649 = vpop.f32.mrf.mxu0
        %v1650 = vadd.f32 %v754, %v1649
        %v1651 = vpop.f32.mrf.mxu0
        %v1652 = vadd.f32 %v754, %v1651
        %1653 = vmatmul.bf16.gmra.mxu0 %v1142
        %v1654 = vpop.f32.mrf.mxu0
        %v1655 = vadd.f32 %v754, %v1654
        %v1656 = vpop.f32.mrf.mxu0
        %v1657 = vadd.f32 %v754, %v1656
        %1658 = vmatmul.bf16.gmra.mxu0 %v1144
        %v1659 = vpop.f32.mrf.mxu0
        %v1660 = vadd.f32 %v754, %v1659
        %v1661 = vpop.f32.mrf.mxu0
        %v1662 = vadd.f32 %v754, %v1661
        %1663 = vmatmul.bf16.gmra.mxu0 %v1146
        %v1664 = vpop.f32.mrf.mxu0
        %v1665 = vadd.f32 %v754, %v1664
        %v1666 = vpop.f32.mrf.mxu0
        %v1667 = vadd.f32 %v754, %v1666
        %1668 = vmatmul.bf16.gmra.mxu0 %v1148
        %v1669 = vpop.f32.mrf.mxu0
        %v1670 = vadd.f32 %v754, %v1669
        %v1671 = vpop.f32.mrf.mxu0
        %v1672 = vadd.f32 %v754, %v1671
        %1673 = vmatmul.bf16.gmra.mxu0 %v1150
        %v1674 = vpop.f32.mrf.mxu0
        %v1675 = vadd.f32 %v754, %v1674
        %v1676 = vpop.f32.mrf.mxu0
        %v1677 = vadd.f32 %v754, %v1676
        %1678 = vmatmul.bf16.gmra.mxu0 %v1152
        %v1679 = vpop.f32.mrf.mxu0
        %v1680 = vadd.f32 %v754, %v1679
        %v1681 = vpop.f32.mrf.mxu0
        %v1682 = vadd.f32 %v754, %v1681
        %1683 = vmatmul.bf16.gmra.mxu0 %v1154
        %v1684 = vpop.f32.mrf.mxu0
        %v1685 = vadd.f32 %v754, %v1684
        %v1686 = vpop.f32.mrf.mxu0
        %v1687 = vadd.f32 %v754, %v1686
        %1688 = vmatmul.bf16.gmra.mxu0 %v1156
        %v1689 = vpop.f32.mrf.mxu0
        %v1690 = vadd.f32 %v754, %v1689
        %v1691 = vpop.f32.mrf.mxu0
        %v1692 = vadd.f32 %v754, %v1691
        %1693 = vmatmul.bf16.gmra.mxu0 %v1158
        %v1694 = vpop.f32.mrf.mxu0
        %v1695 = vadd.f32 %v754, %v1694
        %v1696 = vpop.f32.mrf.mxu0
        %v1697 = vadd.f32 %v754, %v1696
        %1698 = vmatmul.bf16.gmra.mxu0 %v1160
        %v1699 = vpop.f32.mrf.mxu0
        %v1700 = vadd.f32 %v754, %v1699
        %v1701 = vpop.f32.mrf.mxu0
        %v1702 = vadd.f32 %v754, %v1701
        %1703 = vmatmul.bf16.gmra.mxu0 %v1162
        %v1704 = vpop.f32.mrf.mxu0
        %v1705 = vadd.f32 %v754, %v1704
        %v1706 = vpop.f32.mrf.mxu0
        %v1707 = vadd.f32 %v754, %v1706
        %1708 = vmatmul.bf16.gmra.mxu0 %v1164
        %v1709 = vpop.f32.mrf.mxu0
        %v1710 = vadd.f32 %v754, %v1709
        %v1711 = vpop.f32.mrf.mxu0
        %v1712 = vadd.f32 %v754, %v1711
        %1713 = vmatmul.bf16.gmra.mxu0 %v1166
        %v1714 = vpop.f32.mrf.mxu0
        %v1715 = vadd.f32 %v754, %v1714
        %v1716 = vpop.f32.mrf.mxu0
        %v1717 = vadd.f32 %v754, %v1716
        %1718 = vmatmul.bf16.gmra.mxu0 %v1168
        %v1719 = vpop.f32.mrf.mxu0
        %v1720 = vadd.f32 %v754, %v1719
        %v1721 = vpop.f32.mrf.mxu0
        %v1722 = vadd.f32 %v754, %v1721
        %1723 = vmatmul.bf16.gmra.mxu0 %v1170
        %v1724 = vpop.f32.mrf.mxu0
        %v1725 = vadd.f32 %v754, %v1724
        %v1726 = vpop.f32.mrf.mxu0
        %v1727 = vadd.f32 %v754, %v1726
        %1728 = vdwg.mxu0
        %1729 = vmatpush.bf16.msra.mxu0 0
        %1730 = vmatpush.bf16.msra.mxu0 0
        %1731 = vmatpush.bf16.msra.mxu0 0
        %1732 = vmatpush.bf16.msra.mxu0 %v1458
        %1733 = vmatpush.bf16.msra.mxu0 %v1285
        %1734 = vmatpush.bf16.msra.mxu0 %v1284
        %1735 = vmatpush.bf16.msra.mxu0 %v1283
        %1736 = vmatpush.bf16.msra.mxu0 %v1282
        %1737 = vmatmul.bf16.gmra.mxu0 %v1301
        %v1738 = vpop.f32.mrf.mxu0
        %v1739 = vadd.f32 %v1470, %v1738
        %v1740 = vpop.f32.mrf.mxu0
        %v1741 = vadd.f32 %v1472, %v1740
        %1742 = vmatmul.bf16.gmra.mxu0 %v1304
        %v1743 = vpop.f32.mrf.mxu0
        %v1744 = vadd.f32 %v1475, %v1743
        %v1745 = vpop.f32.mrf.mxu0
        %v1746 = vadd.f32 %v1477, %v1745
        %1747 = vmatmul.bf16.gmra.mxu0 %v1307
        %v1748 = vpop.f32.mrf.mxu0
        %v1749 = vadd.f32 %v1480, %v1748
        %v1750 = vpop.f32.mrf.mxu0
        %v1751 = vadd.f32 %v1482, %v1750
        %1752 = vmatmul.bf16.gmra.mxu0 %v1310
        %v1753 = vpop.f32.mrf.mxu0
        %v1754 = vadd.f32 %v1485, %v1753
        %v1755 = vpop.f32.mrf.mxu0
        %v1756 = vadd.f32 %v1487, %v1755
        %1757 = vmatmul.bf16.gmra.mxu0 %v1313
        %v1758 = vpop.f32.mrf.mxu0
        %v1759 = vadd.f32 %v1490, %v1758
        %v1760 = vpop.f32.mrf.mxu0
        %v1761 = vadd.f32 %v1492, %v1760
        %1762 = vmatmul.bf16.gmra.mxu0 %v1316
        %v1763 = vpop.f32.mrf.mxu0
        %v1764 = vadd.f32 %v1495, %v1763
        %v1765 = vpop.f32.mrf.mxu0
        %v1766 = vadd.f32 %v1497, %v1765
        %1767 = vmatmul.bf16.gmra.mxu0 %v1319
        %v1768 = vpop.f32.mrf.mxu0
        %v1769 = vadd.f32 %v1500, %v1768
        %v1770 = vpop.f32.mrf.mxu0
        %v1771 = vadd.f32 %v1502, %v1770
        %1772 = vmatmul.bf16.gmra.mxu0 %v1322
        %v1773 = vpop.f32.mrf.mxu0
        %v1774 = vadd.f32 %v1505, %v1773
        %v1775 = vpop.f32.mrf.mxu0
        %v1776 = vadd.f32 %v1507, %v1775
        %1777 = vmatmul.bf16.gmra.mxu0 %v1325
        %v1778 = vpop.f32.mrf.mxu0
        %v1779 = vadd.f32 %v1510, %v1778
        %v1780 = vpop.f32.mrf.mxu0
        %v1781 = vadd.f32 %v1512, %v1780
        %1782 = vmatmul.bf16.gmra.mxu0 %v1328
        %v1783 = vpop.f32.mrf.mxu0
        %v1784 = vadd.f32 %v1515, %v1783
        %v1785 = vpop.f32.mrf.mxu0
        %v1786 = vadd.f32 %v1517, %v1785
        %1787 = vmatmul.bf16.gmra.mxu0 %v1331
        %v1788 = vpop.f32.mrf.mxu0
        %v1789 = vadd.f32 %v1520, %v1788
        %v1790 = vpop.f32.mrf.mxu0
        %v1791 = vadd.f32 %v1522, %v1790
        %1792 = vmatmul.bf16.gmra.mxu0 %v1334
        %v1793 = vpop.f32.mrf.mxu0
        %v1794 = vadd.f32 %v1525, %v1793
        %v1795 = vpop.f32.mrf.mxu0
        %v1796 = vadd.f32 %v1527, %v1795
        %1797 = vmatmul.bf16.gmra.mxu0 %v1337
        %v1798 = vpop.f32.mrf.mxu0
        %v1799 = vadd.f32 %v1530, %v1798
        %v1800 = vpop.f32.mrf.mxu0
        %v1801 = vadd.f32 %v1532, %v1800
        %1802 = vmatmul.bf16.gmra.mxu0 %v1340
        %v1803 = vpop.f32.mrf.mxu0
        %v1804 = vadd.f32 %v1535, %v1803
        %v1805 = vpop.f32.mrf.mxu0
        %v1806 = vadd.f32 %v1537, %v1805
        %1807 = vmatmul.bf16.gmra.mxu0 %v1343
        %v1808 = vpop.f32.mrf.mxu0
        %v1809 = vadd.f32 %v1540, %v1808
        %v1810 = vpop.f32.mrf.mxu0
        %v1811 = vadd.f32 %v1542, %v1810
        %1812 = vmatmul.bf16.gmra.mxu0 %v1346
        %v1813 = vpop.f32.mrf.mxu0
        %v1814 = vadd.f32 %v1545, %v1813
        %v1815 = vpop.f32.mrf.mxu0
        %v1816 = vadd.f32 %v1547, %v1815
        %1817 = vmatmul.bf16.gmra.mxu0 %v1349
        %v1818 = vpop.f32.mrf.mxu0
        %v1819 = vadd.f32 %v1550, %v1818
        %v1820 = vpop.f32.mrf.mxu0
        %v1821 = vadd.f32 %v1552, %v1820
        %1822 = vmatmul.bf16.gmra.mxu0 %v1352
        %v1823 = vpop.f32.mrf.mxu0
        %v1824 = vadd.f32 %v1555, %v1823
        %v1825 = vpop.f32.mrf.mxu0
        %v1826 = vadd.f32 %v1557, %v1825
        %1827 = vmatmul.bf16.gmra.mxu0 %v1355
        %v1828 = vpop.f32.mrf.mxu0
        %v1829 = vadd.f32 %v1560, %v1828
        %v1830 = vpop.f32.mrf.mxu0
        %v1831 = vadd.f32 %v1562, %v1830
        %1832 = vmatmul.bf16.gmra.mxu0 %v1358
        %v1833 = vpop.f32.mrf.mxu0
        %v1834 = vadd.f32 %v1565, %v1833
        %v1835 = vpop.f32.mrf.mxu0
        %v1836 = vadd.f32 %v1567, %v1835
        %1837 = vmatmul.bf16.gmra.mxu0 %v1361
        %v1838 = vpop.f32.mrf.mxu0
        %v1839 = vadd.f32 %v1570, %v1838
        %v1840 = vpop.f32.mrf.mxu0
        %v1841 = vadd.f32 %v1572, %v1840
        %1842 = vmatmul.bf16.gmra.mxu0 %v1364
        %v1843 = vpop.f32.mrf.mxu0
        %v1844 = vadd.f32 %v1575, %v1843
        %v1845 = vpop.f32.mrf.mxu0
        %v1846 = vadd.f32 %v1577, %v1845
        %1847 = vmatmul.bf16.gmra.mxu0 %v1367
        %v1848 = vpop.f32.mrf.mxu0
        %v1849 = vadd.f32 %v1580, %v1848
        %v1850 = vpop.f32.mrf.mxu0
        %v1851 = vadd.f32 %v1582, %v1850
        %1852 = vmatmul.bf16.gmra.mxu0 %v1370
        %v1853 = vpop.f32.mrf.mxu0
        %v1854 = vadd.f32 %v1585, %v1853
        %v1855 = vpop.f32.mrf.mxu0
        %v1856 = vadd.f32 %v1587, %v1855
        %1857 = vmatmul.bf16.gmra.mxu0 %v1373
        %v1858 = vpop.f32.mrf.mxu0
        %v1859 = vadd.f32 %v1590, %v1858
        %v1860 = vpop.f32.mrf.mxu0
        %v1861 = vadd.f32 %v1592, %v1860
        %1862 = vmatmul.bf16.gmra.mxu0 %v1376
        %v1863 = vpop.f32.mrf.mxu0
        %v1864 = vadd.f32 %v1595, %v1863
        %v1865 = vpop.f32.mrf.mxu0
        %v1866 = vadd.f32 %v1597, %v1865
        %1867 = vmatmul.bf16.gmra.mxu0 %v1379
        %v1868 = vpop.f32.mrf.mxu0
        %v1869 = vadd.f32 %v1600, %v1868
        %v1870 = vpop.f32.mrf.mxu0
        %v1871 = vadd.f32 %v1602, %v1870
        %1872 = vmatmul.bf16.gmra.mxu0 %v1382
        %v1873 = vpop.f32.mrf.mxu0
        %v1874 = vadd.f32 %v1605, %v1873
        %v1875 = vpop.f32.mrf.mxu0
        %v1876 = vadd.f32 %v1607, %v1875
        %1877 = vmatmul.bf16.gmra.mxu0 %v1385
        %v1878 = vpop.f32.mrf.mxu0
        %v1879 = vadd.f32 %v1610, %v1878
        %v1880 = vpop.f32.mrf.mxu0
        %v1881 = vadd.f32 %v1612, %v1880
        %1882 = vmatmul.bf16.gmra.mxu0 %v1388
        %v1883 = vpop.f32.mrf.mxu0
        %v1884 = vadd.f32 %v1615, %v1883
        %v1885 = vpop.f32.mrf.mxu0
        %v1886 = vadd.f32 %v1617, %v1885
        %1887 = vmatmul.bf16.gmra.mxu0 %v1391
        %v1888 = vpop.f32.mrf.mxu0
        %v1889 = vadd.f32 %v1620, %v1888
        %v1890 = vpop.f32.mrf.mxu0
        %v1891 = vadd.f32 %v1622, %v1890
        %1892 = vmatmul.bf16.gmra.mxu0 %v1394
        %v1893 = vpop.f32.mrf.mxu0
        %v1894 = vadd.f32 %v1625, %v1893
        %v1895 = vpop.f32.mrf.mxu0
        %v1896 = vadd.f32 %v1627, %v1895
        %1897 = vmatmul.bf16.gmra.mxu0 %v1397
        %v1898 = vpop.f32.mrf.mxu0
        %v1899 = vadd.f32 %v1630, %v1898
        %v1900 = vpop.f32.mrf.mxu0
        %v1901 = vadd.f32 %v1632, %v1900
        %1902 = vmatmul.bf16.gmra.mxu0 %v1400
        %v1903 = vpop.f32.mrf.mxu0
        %v1904 = vadd.f32 %v1635, %v1903
        %v1905 = vpop.f32.mrf.mxu0
        %v1906 = vadd.f32 %v1637, %v1905
        %1907 = vmatmul.bf16.gmra.mxu0 %v1403
        %v1908 = vpop.f32.mrf.mxu0
        %v1909 = vadd.f32 %v1640, %v1908
        %v1910 = vpop.f32.mrf.mxu0
        %v1911 = vadd.f32 %v1642, %v1910
        %1912 = vmatmul.bf16.gmra.mxu0 %v1406
        %v1913 = vpop.f32.mrf.mxu0
        %v1914 = vadd.f32 %v1645, %v1913
        %v1915 = vpop.f32.mrf.mxu0
        %v1916 = vadd.f32 %v1647, %v1915
        %1917 = vmatmul.bf16.gmra.mxu0 %v1409
        %v1918 = vpop.f32.mrf.mxu0
        %v1919 = vadd.f32 %v1650, %v1918
        %v1920 = vpop.f32.mrf.mxu0
        %v1921 = vadd.f32 %v1652, %v1920
        %1922 = vmatmul.bf16.gmra.mxu0 %v1412
        %v1923 = vpop.f32.mrf.mxu0
        %v1924 = vadd.f32 %v1655, %v1923
        %v1925 = vpop.f32.mrf.mxu0
        %v1926 = vadd.f32 %v1657, %v1925
        %1927 = vmatmul.bf16.gmra.mxu0 %v1415
        %v1928 = vpop.f32.mrf.mxu0
        %v1929 = vadd.f32 %v1660, %v1928
        %v1930 = vpop.f32.mrf.mxu0
        %v1931 = vadd.f32 %v1662, %v1930
        %1932 = vmatmul.bf16.gmra.mxu0 %v1418
        %v1933 = vpop.f32.mrf.mxu0
        %v1934 = vadd.f32 %v1665, %v1933
        %v1935 = vpop.f32.mrf.mxu0
        %v1936 = vadd.f32 %v1667, %v1935
        %1937 = vmatmul.bf16.gmra.mxu0 %v1421
        %v1938 = vpop.f32.mrf.mxu0
        %v1939 = vadd.f32 %v1670, %v1938
        %v1940 = vpop.f32.mrf.mxu0
        %v1941 = vadd.f32 %v1672, %v1940
        %1942 = vmatmul.bf16.gmra.mxu0 %v1424
        %v1943 = vpop.f32.mrf.mxu0
        %v1944 = vadd.f32 %v1675, %v1943
        %v1945 = vpop.f32.mrf.mxu0
        %v1946 = vadd.f32 %v1677, %v1945
        %1947 = vmatmul.bf16.gmra.mxu0 %v1427
        %v1948 = vpop.f32.mrf.mxu0
        %v1949 = vadd.f32 %v1680, %v1948
        %v1950 = vpop.f32.mrf.mxu0
        %v1951 = vadd.f32 %v1682, %v1950
        %1952 = vmatmul.bf16.gmra.mxu0 %v1430
        %v1953 = vpop.f32.mrf.mxu0
        %v1954 = vadd.f32 %v1685, %v1953
        %v1955 = vpop.f32.mrf.mxu0
        %v1956 = vadd.f32 %v1687, %v1955
        %1957 = vmatmul.bf16.gmra.mxu0 %v1433
        %v1958 = vpop.f32.mrf.mxu0
        %v1959 = vadd.f32 %v1690, %v1958
        %v1960 = vpop.f32.mrf.mxu0
        %v1961 = vadd.f32 %v1692, %v1960
        %1962 = vmatmul.bf16.gmra.mxu0 %v1436
        %v1963 = vpop.f32.mrf.mxu0
        %v1964 = vadd.f32 %v1695, %v1963
        %v1965 = vpop.f32.mrf.mxu0
        %v1966 = vadd.f32 %v1697, %v1965
        %1967 = vmatmul.bf16.gmra.mxu0 %v1439
        %v1968 = vpop.f32.mrf.mxu0
        %v1969 = vadd.f32 %v1700, %v1968
        %v1970 = vpop.f32.mrf.mxu0
        %v1971 = vadd.f32 %v1702, %v1970
        %1972 = vmatmul.bf16.gmra.mxu0 %v1442
        %v1973 = vpop.f32.mrf.mxu0
        %v1974 = vadd.f32 %v1705, %v1973
        %v1975 = vpop.f32.mrf.mxu0
        %v1976 = vadd.f32 %v1707, %v1975
        %1977 = vmatmul.bf16.gmra.mxu0 %v1445
        %v1978 = vpop.f32.mrf.mxu0
        %v1979 = vadd.f32 %v1710, %v1978
        %v1980 = vpop.f32.mrf.mxu0
        %v1981 = vadd.f32 %v1712, %v1980
        %1982 = vmatmul.bf16.gmra.mxu0 %v1448
        %v1983 = vpop.f32.mrf.mxu0
        %v1984 = vadd.f32 %v1715, %v1983
        %v1985 = vpop.f32.mrf.mxu0
        %v1986 = vadd.f32 %v1717, %v1985
        %1987 = vmatmul.bf16.gmra.mxu0 %v1451
        %v1988 = vpop.f32.mrf.mxu0
        %v1989 = vadd.f32 %v1720, %v1988
        %v1990 = vpop.f32.mrf.mxu0
        %v1991 = vadd.f32 %v1722, %v1990
        %1992 = vmatmul.bf16.gmra.mxu0 %v1454
        %v1993 = vpop.f32.mrf.mxu0
        %v1994 = vadd.f32 %v1725, %v1993
        %v1995 = vpop.f32.mrf.mxu0
        %v1996 = vadd.f32 %v1727, %v1995
        %1997 = vdwg.mxu0
        %v1998 = vmul.f32 %v1739, 0.70710677
        %v1999 = vmul.f32 %v1741, 0.70710677
        %v2000 = vmul.f32 %v1744, 0.70710677
        %v2001 = vmul.f32 %v1746, 0.70710677
        %v2002 = vmul.f32 %v1749, 0.70710677
        %v2003 = vmul.f32 %v1751, 0.70710677
        %v2004 = vmul.f32 %v1754, 0.70710677
        %v2005 = vmul.f32 %v1756, 0.70710677
        %v2006 = vmul.f32 %v1759, 0.70710677
        %v2007 = vmul.f32 %v1761, 0.70710677
        %v2008 = vmul.f32 %v1764, 0.70710677
        %v2009 = vmul.f32 %v1766, 0.70710677
        %v2010 = vmul.f32 %v1769, 0.70710677
        %v2011 = vmul.f32 %v1771, 0.70710677
        %v2012 = vmul.f32 %v1774, 0.70710677
        %v2013 = vmul.f32 %v1776, 0.70710677
        %v2014 = vmul.f32 %v1779, 0.70710677
        %v2015 = vmul.f32 %v1781, 0.70710677
        %v2016 = vmul.f32 %v1784, 0.70710677
        %v2017 = vmul.f32 %v1786, 0.70710677
        %v2018 = vmul.f32 %v1789, 0.70710677
        %v2019 = vmul.f32 %v1791, 0.70710677
        %v2020 = vmul.f32 %v1794, 0.70710677
        %v2021 = vmul.f32 %v1796, 0.70710677
        %v2022 = vmul.f32 %v1799, 0.70710677
        %v2023 = vmul.f32 %v1801, 0.70710677
        %v2024 = vmul.f32 %v1804, 0.70710677
        %v2025 = vmul.f32 %v1806, 0.70710677
        %v2026 = vmul.f32 %v1809, 0.70710677
        %v2027 = vmul.f32 %v1811, 0.70710677
        %v2028 = vmul.f32 %v1814, 0.70710677
        %v2029 = vmul.f32 %v1816, 0.70710677
        %v2030 = vmul.f32 %v1819, 0.70710677
        %v2031 = vmul.f32 %v1821, 0.70710677
        %v2032 = vmul.f32 %v1824, 0.70710677
        %v2033 = vmul.f32 %v1826, 0.70710677
        %v2034 = vmul.f32 %v1829, 0.70710677
        %v2035 = vmul.f32 %v1831, 0.70710677
        %v2036 = vmul.f32 %v1834, 0.70710677
        %v2037 = vmul.f32 %v1836, 0.70710677
        %v2038 = vmul.f32 %v1839, 0.70710677
        %v2039 = vmul.f32 %v1841, 0.70710677
        %v2040 = vmul.f32 %v1844, 0.70710677
        %v2041 = vmul.f32 %v1846, 0.70710677
        %v2042 = vmul.f32 %v1849, 0.70710677
        %v2043 = vmul.f32 %v1851, 0.70710677
        %v2044 = vmul.f32 %v1854, 0.70710677
        %v2045 = vmul.f32 %v1856, 0.70710677
        %v2046 = vmul.f32 %v1859, 0.70710677
        %v2047 = vmul.f32 %v1861, 0.70710677
        %v2048 = vmul.f32 %v1864, 0.70710677
        %v2049 = vmul.f32 %v1866, 0.70710677
        %v2050 = vmul.f32 %v1869, 0.70710677
        %v2051 = vmul.f32 %v1871, 0.70710677
        %v2052 = vmul.f32 %v1874, 0.70710677
        %v2053 = vmul.f32 %v1876, 0.70710677
        %v2054 = vmul.f32 %v1879, 0.70710677
        %v2055 = vmul.f32 %v1881, 0.70710677
        %v2056 = vmul.f32 %v1884, 0.70710677
        %v2057 = vmul.f32 %v1886, 0.70710677
        %v2058 = vmul.f32 %v1889, 0.70710677
        %v2059 = vmul.f32 %v1891, 0.70710677
        %v2060 = vmul.f32 %v1894, 0.70710677
        %v2061 = vmul.f32 %v1896, 0.70710677
        %v2062 = vmul.f32 %v1899, 0.70710677
        %v2063 = vmul.f32 %v1901, 0.70710677
        %v2064 = vmul.f32 %v1904, 0.70710677
        %v2065 = vmul.f32 %v1906, 0.70710677
        %v2066 = vmul.f32 %v1909, 0.70710677
        %v2067 = vmul.f32 %v1911, 0.70710677
        %v2068 = vmul.f32 %v1914, 0.70710677
        %v2069 = vmul.f32 %v1916, 0.70710677
        %v2070 = vmul.f32 %v1919, 0.70710677
        %v2071 = vmul.f32 %v1921, 0.70710677
        %v2072 = vmul.f32 %v1924, 0.70710677
        %v2073 = vmul.f32 %v1926, 0.70710677
        %v2074 = vmul.f32 %v1929, 0.70710677
        %v2075 = vmul.f32 %v1931, 0.70710677
        %v2076 = vmul.f32 %v1934, 0.70710677
        %v2077 = vmul.f32 %v1936, 0.70710677
        %v2078 = vmul.f32 %v1939, 0.70710677
        %v2079 = vmul.f32 %v1941, 0.70710677
        %v2080 = vmul.f32 %v1944, 0.70710677
        %v2081 = vmul.f32 %v1946, 0.70710677
        %v2082 = vmul.f32 %v1949, 0.70710677
        %v2083 = vmul.f32 %v1951, 0.70710677
        %v2084 = vmul.f32 %v1954, 0.70710677
        %v2085 = vmul.f32 %v1956, 0.70710677
        %v2086 = vmul.f32 %v1959, 0.70710677
        %v2087 = vmul.f32 %v1961, 0.70710677
        %v2088 = vmul.f32 %v1964, 0.70710677
        %v2089 = vmul.f32 %v1966, 0.70710677
        %v2090 = vmul.f32 %v1969, 0.70710677
        %v2091 = vmul.f32 %v1971, 0.70710677
        %v2092 = vmul.f32 %v1974, 0.70710677
        %v2093 = vmul.f32 %v1976, 0.70710677
        %v2094 = vmul.f32 %v1979, 0.70710677
        %v2095 = vmul.f32 %v1981, 0.70710677
        %v2096 = vmul.f32 %v1984, 0.70710677
        %v2097 = vmul.f32 %v1986, 0.70710677
        %v2098 = vmul.f32 %v1989, 0.70710677
        %v2099 = vmul.f32 %v1991, 0.70710677
        %v2100 = vmul.f32 %v1994, 0.70710677
        %v2101 = vmul.f32 %v1996, 0.70710677
        %v2102 = vand.u32 2147483647, %v1998
        %v2103 = vand.u32 2147483647, %v1999
        %v2104 = vand.u32 2147483647, %v2000
        %v2105 = vand.u32 2147483647, %v2001
        %v2106 = vand.u32 2147483647, %v2002
        %v2107 = vand.u32 2147483647, %v2003
        %v2108 = vand.u32 2147483647, %v2004
        %v2109 = vand.u32 2147483647, %v2005
        %v2110 = vand.u32 2147483647, %v2006
        %v2111 = vand.u32 2147483647, %v2007
        %v2112 = vand.u32 2147483647, %v2008
        %v2113 = vand.u32 2147483647, %v2009
        %v2114 = vand.u32 2147483647, %v2010
        %v2115 = vand.u32 2147483647, %v2011
        %v2116 = vand.u32 2147483647, %v2012
        %v2117 = vand.u32 2147483647, %v2013
        %v2118 = vand.u32 2147483647, %v2014
        %v2119 = vand.u32 2147483647, %v2015
        %v2120 = vand.u32 2147483647, %v2016
        %v2121 = vand.u32 2147483647, %v2017
        %v2122 = vand.u32 2147483647, %v2018
        %v2123 = vand.u32 2147483647, %v2019
        %v2124 = vand.u32 2147483647, %v2020
        %v2125 = vand.u32 2147483647, %v2021
        %v2126 = vand.u32 2147483647, %v2022
        %v2127 = vand.u32 2147483647, %v2023
        %v2128 = vand.u32 2147483647, %v2024
        %v2129 = vand.u32 2147483647, %v2025
        %v2130 = vand.u32 2147483647, %v2026
        %v2131 = vand.u32 2147483647, %v2027
        %v2132 = vand.u32 2147483647, %v2028
        %v2133 = vand.u32 2147483647, %v2029
        %v2134 = vand.u32 2147483647, %v2030
        %v2135 = vand.u32 2147483647, %v2031
        %v2136 = vand.u32 2147483647, %v2032
        %v2137 = vand.u32 2147483647, %v2033
        %v2138 = vand.u32 2147483647, %v2034
        %v2139 = vand.u32 2147483647, %v2035
        %v2140 = vand.u32 2147483647, %v2036
        %v2141 = vand.u32 2147483647, %v2037
        %v2142 = vand.u32 2147483647, %v2038
        %v2143 = vand.u32 2147483647, %v2039
        %v2144 = vand.u32 2147483647, %v2040
        %v2145 = vand.u32 2147483647, %v2041
        %v2146 = vand.u32 2147483647, %v2042
        %v2147 = vand.u32 2147483647, %v2043
        %v2148 = vand.u32 2147483647, %v2044
        %v2149 = vand.u32 2147483647, %v2045
        %v2150 = vand.u32 2147483647, %v2046
        %v2151 = vand.u32 2147483647, %v2047
        %v2152 = vand.u32 2147483647, %v2048
        %v2153 = vand.u32 2147483647, %v2049
        %v2154 = vand.u32 2147483647, %v2050
        %v2155 = vand.u32 2147483647, %v2051
        %v2156 = vand.u32 2147483647, %v2052
        %v2157 = vand.u32 2147483647, %v2053
        %v2158 = vand.u32 2147483647, %v2054
        %v2159 = vand.u32 2147483647, %v2055
        %v2160 = vand.u32 2147483647, %v2056
        %v2161 = vand.u32 2147483647, %v2057
        %v2162 = vand.u32 2147483647, %v2058
        %v2163 = vand.u32 2147483647, %v2059
        %v2164 = vand.u32 2147483647, %v2060
        %v2165 = vand.u32 2147483647, %v2061
        %v2166 = vand.u32 2147483647, %v2062
        %v2167 = vand.u32 2147483647, %v2063
        %v2168 = vand.u32 2147483647, %v2064
        %v2169 = vand.u32 2147483647, %v2065
        %v2170 = vand.u32 2147483647, %v2066
        %v2171 = vand.u32 2147483647, %v2067
        %v2172 = vand.u32 2147483647, %v2068
        %v2173 = vand.u32 2147483647, %v2069
        %v2174 = vand.u32 2147483647, %v2070
        %v2175 = vand.u32 2147483647, %v2071
        %v2176 = vand.u32 2147483647, %v2072
        %v2177 = vand.u32 2147483647, %v2073
        %v2178 = vand.u32 2147483647, %v2074
        %v2179 = vand.u32 2147483647, %v2075
        %v2180 = vand.u32 2147483647, %v2076
        %v2181 = vand.u32 2147483647, %v2077
        %v2182 = vand.u32 2147483647, %v2078
        %v2183 = vand.u32 2147483647, %v2079
        %v2184 = vand.u32 2147483647, %v2080
        %v2185 = vand.u32 2147483647, %v2081
        %v2186 = vand.u32 2147483647, %v2082
        %v2187 = vand.u32 2147483647, %v2083
        %v2188 = vand.u32 2147483647, %v2084
        %v2189 = vand.u32 2147483647, %v2085
        %v2190 = vand.u32 2147483647, %v2086
        %v2191 = vand.u32 2147483647, %v2087
        %v2192 = vand.u32 2147483647, %v2088
        %v2193 = vand.u32 2147483647, %v2089
        %v2194 = vand.u32 2147483647, %v2090
        %v2195 = vand.u32 2147483647, %v2091
        %v2196 = vand.u32 2147483647, %v2092
        %v2197 = vand.u32 2147483647, %v2093
        %v2198 = vand.u32 2147483647, %v2094
        %v2199 = vand.u32 2147483647, %v2095
        %v2200 = vand.u32 2147483647, %v2096
        %v2201 = vand.u32 2147483647, %v2097
        %v2202 = vand.u32 2147483647, %v2098
        %v2203 = vand.u32 2147483647, %v2099
        %v2204 = vand.u32 2147483647, %v2100
        %v2205 = vand.u32 2147483647, %v2101
        %v2206 = vmul.f32 %v2102, 0.3275911
        %v2207 = vmul.f32 %v2103, 0.3275911
        %v2208 = vmul.f32 %v2104, 0.3275911
        %v2209 = vmul.f32 %v2105, 0.3275911
        %v2210 = vmul.f32 %v2106, 0.3275911
        %v2211 = vmul.f32 %v2107, 0.3275911
        %v2212 = vmul.f32 %v2108, 0.3275911
        %v2213 = vmul.f32 %v2109, 0.3275911
        %v2214 = vmul.f32 %v2110, 0.3275911
        %v2215 = vmul.f32 %v2111, 0.3275911
        %v2216 = vmul.f32 %v2112, 0.3275911
        %v2217 = vmul.f32 %v2113, 0.3275911
        %v2218 = vmul.f32 %v2114, 0.3275911
        %v2219 = vmul.f32 %v2115, 0.3275911
        %v2220 = vmul.f32 %v2116, 0.3275911
        %v2221 = vmul.f32 %v2117, 0.3275911
        %v2222 = vmul.f32 %v2118, 0.3275911
        %v2223 = vmul.f32 %v2119, 0.3275911
        %v2224 = vmul.f32 %v2120, 0.3275911
        %v2225 = vmul.f32 %v2121, 0.3275911
        %v2226 = vmul.f32 %v2122, 0.3275911
        %v2227 = vmul.f32 %v2123, 0.3275911
        %v2228 = vmul.f32 %v2124, 0.3275911
        %v2229 = vmul.f32 %v2125, 0.3275911
        %v2230 = vmul.f32 %v2126, 0.3275911
        %v2231 = vmul.f32 %v2127, 0.3275911
        %v2232 = vmul.f32 %v2128, 0.3275911
        %v2233 = vmul.f32 %v2129, 0.3275911
        %v2234 = vmul.f32 %v2130, 0.3275911
        %v2235 = vmul.f32 %v2131, 0.3275911
        %v2236 = vmul.f32 %v2132, 0.3275911
        %v2237 = vmul.f32 %v2133, 0.3275911
        %v2238 = vmul.f32 %v2134, 0.3275911
        %v2239 = vmul.f32 %v2135, 0.3275911
        %v2240 = vmul.f32 %v2136, 0.3275911
        %v2241 = vmul.f32 %v2137, 0.3275911
        %v2242 = vmul.f32 %v2138, 0.3275911
        %v2243 = vmul.f32 %v2139, 0.3275911
        %v2244 = vmul.f32 %v2140, 0.3275911
        %v2245 = vmul.f32 %v2141, 0.3275911
        %v2246 = vmul.f32 %v2142, 0.3275911
        %v2247 = vmul.f32 %v2143, 0.3275911
        %v2248 = vmul.f32 %v2144, 0.3275911
        %v2249 = vmul.f32 %v2145, 0.3275911
        %v2250 = vmul.f32 %v2146, 0.3275911
        %v2251 = vmul.f32 %v2147, 0.3275911
        %v2252 = vmul.f32 %v2148, 0.3275911
        %v2253 = vmul.f32 %v2149, 0.3275911
        %v2254 = vmul.f32 %v2150, 0.3275911
        %v2255 = vmul.f32 %v2151, 0.3275911
        %v2256 = vmul.f32 %v2152, 0.3275911
        %v2257 = vmul.f32 %v2153, 0.3275911
        %v2258 = vmul.f32 %v2154, 0.3275911
        %v2259 = vmul.f32 %v2155, 0.3275911
        %v2260 = vmul.f32 %v2156, 0.3275911
        %v2261 = vmul.f32 %v2157, 0.3275911
        %v2262 = vmul.f32 %v2158, 0.3275911
        %v2263 = vmul.f32 %v2159, 0.3275911
        %v2264 = vmul.f32 %v2160, 0.3275911
        %v2265 = vmul.f32 %v2161, 0.3275911
        %v2266 = vmul.f32 %v2162, 0.3275911
        %v2267 = vmul.f32 %v2163, 0.3275911
        %v2268 = vmul.f32 %v2164, 0.3275911
        %v2269 = vmul.f32 %v2165, 0.3275911
        %v2270 = vmul.f32 %v2166, 0.3275911
        %v2271 = vmul.f32 %v2167, 0.3275911
        %v2272 = vmul.f32 %v2168, 0.3275911
        %v2273 = vmul.f32 %v2169, 0.3275911
        %v2274 = vmul.f32 %v2170, 0.3275911
        %v2275 = vmul.f32 %v2171, 0.3275911
        %v2276 = vmul.f32 %v2172, 0.3275911
        %v2277 = vmul.f32 %v2173, 0.3275911
        %v2278 = vmul.f32 %v2174, 0.3275911
        %v2279 = vmul.f32 %v2175, 0.3275911
        %v2280 = vmul.f32 %v2176, 0.3275911
        %v2281 = vmul.f32 %v2177, 0.3275911
        %v2282 = vmul.f32 %v2178, 0.3275911
        %v2283 = vmul.f32 %v2179, 0.3275911
        %v2284 = vmul.f32 %v2180, 0.3275911
        %v2285 = vmul.f32 %v2181, 0.3275911
        %v2286 = vmul.f32 %v2182, 0.3275911
        %v2287 = vmul.f32 %v2183, 0.3275911
        %v2288 = vmul.f32 %v2184, 0.3275911
        %v2289 = vmul.f32 %v2185, 0.3275911
        %v2290 = vmul.f32 %v2186, 0.3275911
        %v2291 = vmul.f32 %v2187, 0.3275911
        %v2292 = vmul.f32 %v2188, 0.3275911
        %v2293 = vmul.f32 %v2189, 0.3275911
        %v2294 = vmul.f32 %v2190, 0.3275911
        %v2295 = vmul.f32 %v2191, 0.3275911
        %v2296 = vmul.f32 %v2192, 0.3275911
        %v2297 = vmul.f32 %v2193, 0.3275911
        %v2298 = vmul.f32 %v2194, 0.3275911
        %v2299 = vmul.f32 %v2195, 0.3275911
        %v2300 = vmul.f32 %v2196, 0.3275911
        %v2301 = vmul.f32 %v2197, 0.3275911
        %v2302 = vmul.f32 %v2198, 0.3275911
        %v2303 = vmul.f32 %v2199, 0.3275911
        %v2304 = vmul.f32 %v2200, 0.3275911
        %v2305 = vmul.f32 %v2201, 0.3275911
        %v2306 = vmul.f32 %v2202, 0.3275911
        %v2307 = vmul.f32 %v2203, 0.3275911
        %v2308 = vmul.f32 %v2204, 0.3275911
        %v2309 = vmul.f32 %v2205, 0.3275911
        %v2310 = vadd.f32 %v2206, 1.0
        %v2311 = vadd.f32 %v2207, 1.0
        %v2312 = vadd.f32 %v2208, 1.0
        %v2313 = vadd.f32 %v2209, 1.0
        %v2314 = vadd.f32 %v2210, 1.0
        %v2315 = vadd.f32 %v2211, 1.0
        %v2316 = vadd.f32 %v2212, 1.0
        %v2317 = vadd.f32 %v2213, 1.0
        %v2318 = vadd.f32 %v2214, 1.0
        %v2319 = vadd.f32 %v2215, 1.0
        %v2320 = vadd.f32 %v2216, 1.0
        %v2321 = vadd.f32 %v2217, 1.0
        %v2322 = vadd.f32 %v2218, 1.0
        %v2323 = vadd.f32 %v2219, 1.0
        %v2324 = vadd.f32 %v2220, 1.0
        %v2325 = vadd.f32 %v2221, 1.0
        %v2326 = vadd.f32 %v2222, 1.0
        %v2327 = vadd.f32 %v2223, 1.0
        %v2328 = vadd.f32 %v2224, 1.0
        %v2329 = vadd.f32 %v2225, 1.0
        %v2330 = vadd.f32 %v2226, 1.0
        %v2331 = vadd.f32 %v2227, 1.0
        %v2332 = vadd.f32 %v2228, 1.0
        %v2333 = vadd.f32 %v2229, 1.0
        %v2334 = vadd.f32 %v2230, 1.0
        %v2335 = vadd.f32 %v2231, 1.0
        %v2336 = vadd.f32 %v2232, 1.0
        %v2337 = vadd.f32 %v2233, 1.0
        %v2338 = vadd.f32 %v2234, 1.0
        %v2339 = vadd.f32 %v2235, 1.0
        %v2340 = vadd.f32 %v2236, 1.0
        %v2341 = vadd.f32 %v2237, 1.0
        %v2342 = vadd.f32 %v2238, 1.0
        %v2343 = vadd.f32 %v2239, 1.0
        %v2344 = vadd.f32 %v2240, 1.0
        %v2345 = vadd.f32 %v2241, 1.0
        %v2346 = vadd.f32 %v2242, 1.0
        %v2347 = vadd.f32 %v2243, 1.0
        %v2348 = vadd.f32 %v2244, 1.0
        %v2349 = vadd.f32 %v2245, 1.0
        %v2350 = vadd.f32 %v2246, 1.0
        %v2351 = vadd.f32 %v2247, 1.0
        %v2352 = vadd.f32 %v2248, 1.0
        %v2353 = vadd.f32 %v2249, 1.0
        %v2354 = vadd.f32 %v2250, 1.0
        %v2355 = vadd.f32 %v2251, 1.0
        %v2356 = vadd.f32 %v2252, 1.0
        %v2357 = vadd.f32 %v2253, 1.0
        %v2358 = vadd.f32 %v2254, 1.0
        %v2359 = vadd.f32 %v2255, 1.0
        %v2360 = vadd.f32 %v2256, 1.0
        %v2361 = vadd.f32 %v2257, 1.0
        %v2362 = vadd.f32 %v2258, 1.0
        %v2363 = vadd.f32 %v2259, 1.0
        %v2364 = vadd.f32 %v2260, 1.0
        %v2365 = vadd.f32 %v2261, 1.0
        %v2366 = vadd.f32 %v2262, 1.0
        %v2367 = vadd.f32 %v2263, 1.0
        %v2368 = vadd.f32 %v2264, 1.0
        %v2369 = vadd.f32 %v2265, 1.0
        %v2370 = vadd.f32 %v2266, 1.0
        %v2371 = vadd.f32 %v2267, 1.0
        %v2372 = vadd.f32 %v2268, 1.0
        %v2373 = vadd.f32 %v2269, 1.0
        %v2374 = vadd.f32 %v2270, 1.0
        %v2375 = vadd.f32 %v2271, 1.0
        %v2376 = vadd.f32 %v2272, 1.0
        %v2377 = vadd.f32 %v2273, 1.0
        %v2378 = vadd.f32 %v2274, 1.0
        %v2379 = vadd.f32 %v2275, 1.0
        %v2380 = vadd.f32 %v2276, 1.0
        %v2381 = vadd.f32 %v2277, 1.0
        %v2382 = vadd.f32 %v2278, 1.0
        %v2383 = vadd.f32 %v2279, 1.0
        %v2384 = vadd.f32 %v2280, 1.0
        %v2385 = vadd.f32 %v2281, 1.0
        %v2386 = vadd.f32 %v2282, 1.0
        %v2387 = vadd.f32 %v2283, 1.0
        %v2388 = vadd.f32 %v2284, 1.0
        %v2389 = vadd.f32 %v2285, 1.0
        %v2390 = vadd.f32 %v2286, 1.0
        %v2391 = vadd.f32 %v2287, 1.0
        %v2392 = vadd.f32 %v2288, 1.0
        %v2393 = vadd.f32 %v2289, 1.0
        %v2394 = vadd.f32 %v2290, 1.0
        %v2395 = vadd.f32 %v2291, 1.0
        %v2396 = vadd.f32 %v2292, 1.0
        %v2397 = vadd.f32 %v2293, 1.0
        %v2398 = vadd.f32 %v2294, 1.0
        %v2399 = vadd.f32 %v2295, 1.0
        %v2400 = vadd.f32 %v2296, 1.0
        %v2401 = vadd.f32 %v2297, 1.0
        %v2402 = vadd.f32 %v2298, 1.0
        %v2403 = vadd.f32 %v2299, 1.0
        %v2404 = vadd.f32 %v2300, 1.0
        %v2405 = vadd.f32 %v2301, 1.0
        %v2406 = vadd.f32 %v2302, 1.0
        %v2407 = vadd.f32 %v2303, 1.0
        %v2408 = vadd.f32 %v2304, 1.0
        %v2409 = vadd.f32 %v2305, 1.0
        %v2410 = vadd.f32 %v2306, 1.0
        %v2411 = vadd.f32 %v2307, 1.0
        %v2412 = vadd.f32 %v2308, 1.0
        %v2413 = vadd.f32 %v2309, 1.0
        %v2414 = vrcp.pop %v2310
        %v2415 = vmul.f32 %v2310, %v2414
        %v2416 = vsub.f32 1.0, %v2415
        %v2417 = vmul.f32 %v2414, %v2416
        %v2418 = vadd.f32 %v2414, %v2417
        %vm2419 = vweird.f32 %v2310
        %vm2420 = vweird.f32 %v2414
        %vm2421 = vmor %vm2419, %vm2420
        %v2422 = vsel %vm2421, %v2414, %v2418
        %v2423 = vand.u32 2147483647, %v2310
        %vm2424 = vcmp.eq.f32.partialorder %v2423, 8.507059e+37
        %v2425 = vand.u32 %v2310, 2147483648
        %v2426 = vor.u32 1.1754944e-38, %v2425
        %v2427 = vsel %vm2424, %v2426, %v2422
        %v2428 = vmul.f32 1.0, %v2427
        %v2429 = vrcp.pop %v2311
        %v2430 = vmul.f32 %v2311, %v2429
        %v2431 = vsub.f32 1.0, %v2430
        %v2432 = vmul.f32 %v2429, %v2431
        %v2433 = vadd.f32 %v2429, %v2432
        %vm2434 = vweird.f32 %v2311
        %vm2435 = vweird.f32 %v2429
        %vm2436 = vmor %vm2434, %vm2435
        %v2437 = vsel %vm2436, %v2429, %v2433
        %v2438 = vand.u32 2147483647, %v2311
        %vm2439 = vcmp.eq.f32.partialorder %v2438, 8.507059e+37
        %v2440 = vand.u32 %v2311, 2147483648
        %v2441 = vor.u32 1.1754944e-38, %v2440
        %v2442 = vsel %vm2439, %v2441, %v2437
        %v2443 = vmul.f32 1.0, %v2442
        %v2444 = vrcp.pop %v2312
        %v2445 = vmul.f32 %v2312, %v2444
        %v2446 = vsub.f32 1.0, %v2445
        %v2447 = vmul.f32 %v2444, %v2446
        %v2448 = vadd.f32 %v2444, %v2447
        %vm2449 = vweird.f32 %v2312
        %vm2450 = vweird.f32 %v2444
        %vm2451 = vmor %vm2449, %vm2450
        %v2452 = vsel %vm2451, %v2444, %v2448
        %v2453 = vand.u32 2147483647, %v2312
        %vm2454 = vcmp.eq.f32.partialorder %v2453, 8.507059e+37
        %v2455 = vand.u32 %v2312, 2147483648
        %v2456 = vor.u32 1.1754944e-38, %v2455
        %v2457 = vsel %vm2454, %v2456, %v2452
        %v2458 = vmul.f32 1.0, %v2457
        %v2459 = vrcp.pop %v2313
        %v2460 = vmul.f32 %v2313, %v2459
        %v2461 = vsub.f32 1.0, %v2460
        %v2462 = vmul.f32 %v2459, %v2461
        %v2463 = vadd.f32 %v2459, %v2462
        %vm2464 = vweird.f32 %v2313
        %vm2465 = vweird.f32 %v2459
        %vm2466 = vmor %vm2464, %vm2465
        %v2467 = vsel %vm2466, %v2459, %v2463
        %v2468 = vand.u32 2147483647, %v2313
        %vm2469 = vcmp.eq.f32.partialorder %v2468, 8.507059e+37
        %v2470 = vand.u32 %v2313, 2147483648
        %v2471 = vor.u32 1.1754944e-38, %v2470
        %v2472 = vsel %vm2469, %v2471, %v2467
        %v2473 = vmul.f32 1.0, %v2472
        %v2474 = vrcp.pop %v2314
        %v2475 = vmul.f32 %v2314, %v2474
        %v2476 = vsub.f32 1.0, %v2475
        %v2477 = vmul.f32 %v2474, %v2476
        %v2478 = vadd.f32 %v2474, %v2477
        %vm2479 = vweird.f32 %v2314
        %vm2480 = vweird.f32 %v2474
        %vm2481 = vmor %vm2479, %vm2480
        %v2482 = vsel %vm2481, %v2474, %v2478
        %v2483 = vand.u32 2147483647, %v2314
        %vm2484 = vcmp.eq.f32.partialorder %v2483, 8.507059e+37
        %v2485 = vand.u32 %v2314, 2147483648
        %v2486 = vor.u32 1.1754944e-38, %v2485
        %v2487 = vsel %vm2484, %v2486, %v2482
        %v2488 = vmul.f32 1.0, %v2487
        %v2489 = vrcp.pop %v2315
        %v2490 = vmul.f32 %v2315, %v2489
        %v2491 = vsub.f32 1.0, %v2490
        %v2492 = vmul.f32 %v2489, %v2491
        %v2493 = vadd.f32 %v2489, %v2492
        %vm2494 = vweird.f32 %v2315
        %vm2495 = vweird.f32 %v2489
        %vm2496 = vmor %vm2494, %vm2495
        %v2497 = vsel %vm2496, %v2489, %v2493
        %v2498 = vand.u32 2147483647, %v2315
        %vm2499 = vcmp.eq.f32.partialorder %v2498, 8.507059e+37
        %v2500 = vand.u32 %v2315, 2147483648
        %v2501 = vor.u32 1.1754944e-38, %v2500
        %v2502 = vsel %vm2499, %v2501, %v2497
        %v2503 = vmul.f32 1.0, %v2502
        %v2504 = vrcp.pop %v2316
        %v2505 = vmul.f32 %v2316, %v2504
        %v2506 = vsub.f32 1.0, %v2505
        %v2507 = vmul.f32 %v2504, %v2506
        %v2508 = vadd.f32 %v2504, %v2507
        %vm2509 = vweird.f32 %v2316
        %vm2510 = vweird.f32 %v2504
        %vm2511 = vmor %vm2509, %vm2510
        %v2512 = vsel %vm2511, %v2504, %v2508
        %v2513 = vand.u32 2147483647, %v2316
        %vm2514 = vcmp.eq.f32.partialorder %v2513, 8.507059e+37
        %v2515 = vand.u32 %v2316, 2147483648
        %v2516 = vor.u32 1.1754944e-38, %v2515
        %v2517 = vsel %vm2514, %v2516, %v2512
        %v2518 = vmul.f32 1.0, %v2517
        %v2519 = vrcp.pop %v2317
        %v2520 = vmul.f32 %v2317, %v2519
        %v2521 = vsub.f32 1.0, %v2520
        %v2522 = vmul.f32 %v2519, %v2521
        %v2523 = vadd.f32 %v2519, %v2522
        %vm2524 = vweird.f32 %v2317
        %vm2525 = vweird.f32 %v2519
        %vm2526 = vmor %vm2524, %vm2525
        %v2527 = vsel %vm2526, %v2519, %v2523
        %v2528 = vand.u32 2147483647, %v2317
        %vm2529 = vcmp.eq.f32.partialorder %v2528, 8.507059e+37
        %v2530 = vand.u32 %v2317, 2147483648
        %v2531 = vor.u32 1.1754944e-38, %v2530
        %v2532 = vsel %vm2529, %v2531, %v2527
        %v2533 = vmul.f32 1.0, %v2532
        %v2534 = vrcp.pop %v2318
        %v2535 = vmul.f32 %v2318, %v2534
        %v2536 = vsub.f32 1.0, %v2535
        %v2537 = vmul.f32 %v2534, %v2536
        %v2538 = vadd.f32 %v2534, %v2537
        %vm2539 = vweird.f32 %v2318
        %vm2540 = vweird.f32 %v2534
        %vm2541 = vmor %vm2539, %vm2540
        %v2542 = vsel %vm2541, %v2534, %v2538
        %v2543 = vand.u32 2147483647, %v2318
        %vm2544 = vcmp.eq.f32.partialorder %v2543, 8.507059e+37
        %v2545 = vand.u32 %v2318, 2147483648
        %v2546 = vor.u32 1.1754944e-38, %v2545
        %v2547 = vsel %vm2544, %v2546, %v2542
        %v2548 = vmul.f32 1.0, %v2547
        %v2549 = vrcp.pop %v2319
        %v2550 = vmul.f32 %v2319, %v2549
        %v2551 = vsub.f32 1.0, %v2550
        %v2552 = vmul.f32 %v2549, %v2551
        %v2553 = vadd.f32 %v2549, %v2552
        %vm2554 = vweird.f32 %v2319
        %vm2555 = vweird.f32 %v2549
        %vm2556 = vmor %vm2554, %vm2555
        %v2557 = vsel %vm2556, %v2549, %v2553
        %v2558 = vand.u32 2147483647, %v2319
        %vm2559 = vcmp.eq.f32.partialorder %v2558, 8.507059e+37
        %v2560 = vand.u32 %v2319, 2147483648
        %v2561 = vor.u32 1.1754944e-38, %v2560
        %v2562 = vsel %vm2559, %v2561, %v2557
        %v2563 = vmul.f32 1.0, %v2562
        %v2564 = vrcp.pop %v2320
        %v2565 = vmul.f32 %v2320, %v2564
        %v2566 = vsub.f32 1.0, %v2565
        %v2567 = vmul.f32 %v2564, %v2566
        %v2568 = vadd.f32 %v2564, %v2567
        %vm2569 = vweird.f32 %v2320
        %vm2570 = vweird.f32 %v2564
        %vm2571 = vmor %vm2569, %vm2570
        %v2572 = vsel %vm2571, %v2564, %v2568
        %v2573 = vand.u32 2147483647, %v2320
        %vm2574 = vcmp.eq.f32.partialorder %v2573, 8.507059e+37
        %v2575 = vand.u32 %v2320, 2147483648
        %v2576 = vor.u32 1.1754944e-38, %v2575
        %v2577 = vsel %vm2574, %v2576, %v2572
        %v2578 = vmul.f32 1.0, %v2577
        %v2579 = vrcp.pop %v2321
        %v2580 = vmul.f32 %v2321, %v2579
        %v2581 = vsub.f32 1.0, %v2580
        %v2582 = vmul.f32 %v2579, %v2581
        %v2583 = vadd.f32 %v2579, %v2582
        %vm2584 = vweird.f32 %v2321
        %vm2585 = vweird.f32 %v2579
        %vm2586 = vmor %vm2584, %vm2585
        %v2587 = vsel %vm2586, %v2579, %v2583
        %v2588 = vand.u32 2147483647, %v2321
        %vm2589 = vcmp.eq.f32.partialorder %v2588, 8.507059e+37
        %v2590 = vand.u32 %v2321, 2147483648
        %v2591 = vor.u32 1.1754944e-38, %v2590
        %v2592 = vsel %vm2589, %v2591, %v2587
        %v2593 = vmul.f32 1.0, %v2592
        %v2594 = vrcp.pop %v2322
        %v2595 = vmul.f32 %v2322, %v2594
        %v2596 = vsub.f32 1.0, %v2595
        %v2597 = vmul.f32 %v2594, %v2596
        %v2598 = vadd.f32 %v2594, %v2597
        %vm2599 = vweird.f32 %v2322
        %vm2600 = vweird.f32 %v2594
        %vm2601 = vmor %vm2599, %vm2600
        %v2602 = vsel %vm2601, %v2594, %v2598
        %v2603 = vand.u32 2147483647, %v2322
        %vm2604 = vcmp.eq.f32.partialorder %v2603, 8.507059e+37
        %v2605 = vand.u32 %v2322, 2147483648
        %v2606 = vor.u32 1.1754944e-38, %v2605
        %v2607 = vsel %vm2604, %v2606, %v2602
        %v2608 = vmul.f32 1.0, %v2607
        %v2609 = vrcp.pop %v2323
        %v2610 = vmul.f32 %v2323, %v2609
        %v2611 = vsub.f32 1.0, %v2610
        %v2612 = vmul.f32 %v2609, %v2611
        %v2613 = vadd.f32 %v2609, %v2612
        %vm2614 = vweird.f32 %v2323
        %vm2615 = vweird.f32 %v2609
        %vm2616 = vmor %vm2614, %vm2615
        %v2617 = vsel %vm2616, %v2609, %v2613
        %v2618 = vand.u32 2147483647, %v2323
        %vm2619 = vcmp.eq.f32.partialorder %v2618, 8.507059e+37
        %v2620 = vand.u32 %v2323, 2147483648
        %v2621 = vor.u32 1.1754944e-38, %v2620
        %v2622 = vsel %vm2619, %v2621, %v2617
        %v2623 = vmul.f32 1.0, %v2622
        %v2624 = vrcp.pop %v2324
        %v2625 = vmul.f32 %v2324, %v2624
        %v2626 = vsub.f32 1.0, %v2625
        %v2627 = vmul.f32 %v2624, %v2626
        %v2628 = vadd.f32 %v2624, %v2627
        %vm2629 = vweird.f32 %v2324
        %vm2630 = vweird.f32 %v2624
        %vm2631 = vmor %vm2629, %vm2630
        %v2632 = vsel %vm2631, %v2624, %v2628
        %v2633 = vand.u32 2147483647, %v2324
        %vm2634 = vcmp.eq.f32.partialorder %v2633, 8.507059e+37
        %v2635 = vand.u32 %v2324, 2147483648
        %v2636 = vor.u32 1.1754944e-38, %v2635
        %v2637 = vsel %vm2634, %v2636, %v2632
        %v2638 = vmul.f32 1.0, %v2637
        %v2639 = vrcp.pop %v2325
        %v2640 = vmul.f32 %v2325, %v2639
        %v2641 = vsub.f32 1.0, %v2640
        %v2642 = vmul.f32 %v2639, %v2641
        %v2643 = vadd.f32 %v2639, %v2642
        %vm2644 = vweird.f32 %v2325
        %vm2645 = vweird.f32 %v2639
        %vm2646 = vmor %vm2644, %vm2645
        %v2647 = vsel %vm2646, %v2639, %v2643
        %v2648 = vand.u32 2147483647, %v2325
        %vm2649 = vcmp.eq.f32.partialorder %v2648, 8.507059e+37
        %v2650 = vand.u32 %v2325, 2147483648
        %v2651 = vor.u32 1.1754944e-38, %v2650
        %v2652 = vsel %vm2649, %v2651, %v2647
        %v2653 = vmul.f32 1.0, %v2652
        %v2654 = vrcp.pop %v2326
        %v2655 = vmul.f32 %v2326, %v2654
        %v2656 = vsub.f32 1.0, %v2655
        %v2657 = vmul.f32 %v2654, %v2656
        %v2658 = vadd.f32 %v2654, %v2657
        %vm2659 = vweird.f32 %v2326
        %vm2660 = vweird.f32 %v2654
        %vm2661 = vmor %vm2659, %vm2660
        %v2662 = vsel %vm2661, %v2654, %v2658
        %v2663 = vand.u32 2147483647, %v2326
        %vm2664 = vcmp.eq.f32.partialorder %v2663, 8.507059e+37
        %v2665 = vand.u32 %v2326, 2147483648
        %v2666 = vor.u32 1.1754944e-38, %v2665
        %v2667 = vsel %vm2664, %v2666, %v2662
        %v2668 = vmul.f32 1.0, %v2667
        %v2669 = vrcp.pop %v2327
        %v2670 = vmul.f32 %v2327, %v2669
        %v2671 = vsub.f32 1.0, %v2670
        %v2672 = vmul.f32 %v2669, %v2671
        %v2673 = vadd.f32 %v2669, %v2672
        %vm2674 = vweird.f32 %v2327
        %vm2675 = vweird.f32 %v2669
        %vm2676 = vmor %vm2674, %vm2675
        %v2677 = vsel %vm2676, %v2669, %v2673
        %v2678 = vand.u32 2147483647, %v2327
        %vm2679 = vcmp.eq.f32.partialorder %v2678, 8.507059e+37
        %v2680 = vand.u32 %v2327, 2147483648
        %v2681 = vor.u32 1.1754944e-38, %v2680
        %v2682 = vsel %vm2679, %v2681, %v2677
        %v2683 = vmul.f32 1.0, %v2682
        %v2684 = vrcp.pop %v2328
        %v2685 = vmul.f32 %v2328, %v2684
        %v2686 = vsub.f32 1.0, %v2685
        %v2687 = vmul.f32 %v2684, %v2686
        %v2688 = vadd.f32 %v2684, %v2687
        %vm2689 = vweird.f32 %v2328
        %vm2690 = vweird.f32 %v2684
        %vm2691 = vmor %vm2689, %vm2690
        %v2692 = vsel %vm2691, %v2684, %v2688
        %v2693 = vand.u32 2147483647, %v2328
        %vm2694 = vcmp.eq.f32.partialorder %v2693, 8.507059e+37
        %v2695 = vand.u32 %v2328, 2147483648
        %v2696 = vor.u32 1.1754944e-38, %v2695
        %v2697 = vsel %vm2694, %v2696, %v2692
        %v2698 = vmul.f32 1.0, %v2697
        %v2699 = vrcp.pop %v2329
        %v2700 = vmul.f32 %v2329, %v2699
        %v2701 = vsub.f32 1.0, %v2700
        %v2702 = vmul.f32 %v2699, %v2701
        %v2703 = vadd.f32 %v2699, %v2702
        %vm2704 = vweird.f32 %v2329
        %vm2705 = vweird.f32 %v2699
        %vm2706 = vmor %vm2704, %vm2705
        %v2707 = vsel %vm2706, %v2699, %v2703
        %v2708 = vand.u32 2147483647, %v2329
        %vm2709 = vcmp.eq.f32.partialorder %v2708, 8.507059e+37
        %v2710 = vand.u32 %v2329, 2147483648
        %v2711 = vor.u32 1.1754944e-38, %v2710
        %v2712 = vsel %vm2709, %v2711, %v2707
        %v2713 = vmul.f32 1.0, %v2712
        %v2714 = vrcp.pop %v2330
        %v2715 = vmul.f32 %v2330, %v2714
        %v2716 = vsub.f32 1.0, %v2715
        %v2717 = vmul.f32 %v2714, %v2716
        %v2718 = vadd.f32 %v2714, %v2717
        %vm2719 = vweird.f32 %v2330
        %vm2720 = vweird.f32 %v2714
        %vm2721 = vmor %vm2719, %vm2720
        %v2722 = vsel %vm2721, %v2714, %v2718
        %v2723 = vand.u32 2147483647, %v2330
        %vm2724 = vcmp.eq.f32.partialorder %v2723, 8.507059e+37
        %v2725 = vand.u32 %v2330, 2147483648
        %v2726 = vor.u32 1.1754944e-38, %v2725
        %v2727 = vsel %vm2724, %v2726, %v2722
        %v2728 = vmul.f32 1.0, %v2727
        %v2729 = vrcp.pop %v2331
        %v2730 = vmul.f32 %v2331, %v2729
        %v2731 = vsub.f32 1.0, %v2730
        %v2732 = vmul.f32 %v2729, %v2731
        %v2733 = vadd.f32 %v2729, %v2732
        %vm2734 = vweird.f32 %v2331
        %vm2735 = vweird.f32 %v2729
        %vm2736 = vmor %vm2734, %vm2735
        %v2737 = vsel %vm2736, %v2729, %v2733
        %v2738 = vand.u32 2147483647, %v2331
        %vm2739 = vcmp.eq.f32.partialorder %v2738, 8.507059e+37
        %v2740 = vand.u32 %v2331, 2147483648
        %v2741 = vor.u32 1.1754944e-38, %v2740
        %v2742 = vsel %vm2739, %v2741, %v2737
        %v2743 = vmul.f32 1.0, %v2742
        %v2744 = vrcp.pop %v2332
        %v2745 = vmul.f32 %v2332, %v2744
        %v2746 = vsub.f32 1.0, %v2745
        %v2747 = vmul.f32 %v2744, %v2746
        %v2748 = vadd.f32 %v2744, %v2747
        %vm2749 = vweird.f32 %v2332
        %vm2750 = vweird.f32 %v2744
        %vm2751 = vmor %vm2749, %vm2750
        %v2752 = vsel %vm2751, %v2744, %v2748
        %v2753 = vand.u32 2147483647, %v2332
        %vm2754 = vcmp.eq.f32.partialorder %v2753, 8.507059e+37
        %v2755 = vand.u32 %v2332, 2147483648
        %v2756 = vor.u32 1.1754944e-38, %v2755
        %v2757 = vsel %vm2754, %v2756, %v2752
        %v2758 = vmul.f32 1.0, %v2757
        %v2759 = vrcp.pop %v2333
        %v2760 = vmul.f32 %v2333, %v2759
        %v2761 = vsub.f32 1.0, %v2760
        %v2762 = vmul.f32 %v2759, %v2761
        %v2763 = vadd.f32 %v2759, %v2762
        %vm2764 = vweird.f32 %v2333
        %vm2765 = vweird.f32 %v2759
        %vm2766 = vmor %vm2764, %vm2765
        %v2767 = vsel %vm2766, %v2759, %v2763
        %v2768 = vand.u32 2147483647, %v2333
        %vm2769 = vcmp.eq.f32.partialorder %v2768, 8.507059e+37
        %v2770 = vand.u32 %v2333, 2147483648
        %v2771 = vor.u32 1.1754944e-38, %v2770
        %v2772 = vsel %vm2769, %v2771, %v2767
        %v2773 = vmul.f32 1.0, %v2772
        %v2774 = vrcp.pop %v2334
        %v2775 = vmul.f32 %v2334, %v2774
        %v2776 = vsub.f32 1.0, %v2775
        %v2777 = vmul.f32 %v2774, %v2776
        %v2778 = vadd.f32 %v2774, %v2777
        %vm2779 = vweird.f32 %v2334
        %vm2780 = vweird.f32 %v2774
        %vm2781 = vmor %vm2779, %vm2780
        %v2782 = vsel %vm2781, %v2774, %v2778
        %v2783 = vand.u32 2147483647, %v2334
        %vm2784 = vcmp.eq.f32.partialorder %v2783, 8.507059e+37
        %v2785 = vand.u32 %v2334, 2147483648
        %v2786 = vor.u32 1.1754944e-38, %v2785
        %v2787 = vsel %vm2784, %v2786, %v2782
        %v2788 = vmul.f32 1.0, %v2787
        %v2789 = vrcp.pop %v2335
        %v2790 = vmul.f32 %v2335, %v2789
        %v2791 = vsub.f32 1.0, %v2790
        %v2792 = vmul.f32 %v2789, %v2791
        %v2793 = vadd.f32 %v2789, %v2792
        %vm2794 = vweird.f32 %v2335
        %vm2795 = vweird.f32 %v2789
        %vm2796 = vmor %vm2794, %vm2795
        %v2797 = vsel %vm2796, %v2789, %v2793
        %v2798 = vand.u32 2147483647, %v2335
        %vm2799 = vcmp.eq.f32.partialorder %v2798, 8.507059e+37
        %v2800 = vand.u32 %v2335, 2147483648
        %v2801 = vor.u32 1.1754944e-38, %v2800
        %v2802 = vsel %vm2799, %v2801, %v2797
        %v2803 = vmul.f32 1.0, %v2802
        %v2804 = vrcp.pop %v2336
        %v2805 = vmul.f32 %v2336, %v2804
        %v2806 = vsub.f32 1.0, %v2805
        %v2807 = vmul.f32 %v2804, %v2806
        %v2808 = vadd.f32 %v2804, %v2807
        %vm2809 = vweird.f32 %v2336
        %vm2810 = vweird.f32 %v2804
        %vm2811 = vmor %vm2809, %vm2810
        %v2812 = vsel %vm2811, %v2804, %v2808
        %v2813 = vand.u32 2147483647, %v2336
        %vm2814 = vcmp.eq.f32.partialorder %v2813, 8.507059e+37
        %v2815 = vand.u32 %v2336, 2147483648
        %v2816 = vor.u32 1.1754944e-38, %v2815
        %v2817 = vsel %vm2814, %v2816, %v2812
        %v2818 = vmul.f32 1.0, %v2817
        %v2819 = vrcp.pop %v2337
        %v2820 = vmul.f32 %v2337, %v2819
        %v2821 = vsub.f32 1.0, %v2820
        %v2822 = vmul.f32 %v2819, %v2821
        %v2823 = vadd.f32 %v2819, %v2822
        %vm2824 = vweird.f32 %v2337
        %vm2825 = vweird.f32 %v2819
        %vm2826 = vmor %vm2824, %vm2825
        %v2827 = vsel %vm2826, %v2819, %v2823
        %v2828 = vand.u32 2147483647, %v2337
        %vm2829 = vcmp.eq.f32.partialorder %v2828, 8.507059e+37
        %v2830 = vand.u32 %v2337, 2147483648
        %v2831 = vor.u32 1.1754944e-38, %v2830
        %v2832 = vsel %vm2829, %v2831, %v2827
        %v2833 = vmul.f32 1.0, %v2832
        %v2834 = vrcp.pop %v2338
        %v2835 = vmul.f32 %v2338, %v2834
        %v2836 = vsub.f32 1.0, %v2835
        %v2837 = vmul.f32 %v2834, %v2836
        %v2838 = vadd.f32 %v2834, %v2837
        %vm2839 = vweird.f32 %v2338
        %vm2840 = vweird.f32 %v2834
        %vm2841 = vmor %vm2839, %vm2840
        %v2842 = vsel %vm2841, %v2834, %v2838
        %v2843 = vand.u32 2147483647, %v2338
        %vm2844 = vcmp.eq.f32.partialorder %v2843, 8.507059e+37
        %v2845 = vand.u32 %v2338, 2147483648
        %v2846 = vor.u32 1.1754944e-38, %v2845
        %v2847 = vsel %vm2844, %v2846, %v2842
        %v2848 = vmul.f32 1.0, %v2847
        %v2849 = vrcp.pop %v2339
        %v2850 = vmul.f32 %v2339, %v2849
        %v2851 = vsub.f32 1.0, %v2850
        %v2852 = vmul.f32 %v2849, %v2851
        %v2853 = vadd.f32 %v2849, %v2852
        %vm2854 = vweird.f32 %v2339
        %vm2855 = vweird.f32 %v2849
        %vm2856 = vmor %vm2854, %vm2855
        %v2857 = vsel %vm2856, %v2849, %v2853
        %v2858 = vand.u32 2147483647, %v2339
        %vm2859 = vcmp.eq.f32.partialorder %v2858, 8.507059e+37
        %v2860 = vand.u32 %v2339, 2147483648
        %v2861 = vor.u32 1.1754944e-38, %v2860
        %v2862 = vsel %vm2859, %v2861, %v2857
        %v2863 = vmul.f32 1.0, %v2862
        %v2864 = vrcp.pop %v2340
        %v2865 = vmul.f32 %v2340, %v2864
        %v2866 = vsub.f32 1.0, %v2865
        %v2867 = vmul.f32 %v2864, %v2866
        %v2868 = vadd.f32 %v2864, %v2867
        %vm2869 = vweird.f32 %v2340
        %vm2870 = vweird.f32 %v2864
        %vm2871 = vmor %vm2869, %vm2870
        %v2872 = vsel %vm2871, %v2864, %v2868
        %v2873 = vand.u32 2147483647, %v2340
        %vm2874 = vcmp.eq.f32.partialorder %v2873, 8.507059e+37
        %v2875 = vand.u32 %v2340, 2147483648
        %v2876 = vor.u32 1.1754944e-38, %v2875
        %v2877 = vsel %vm2874, %v2876, %v2872
        %v2878 = vmul.f32 1.0, %v2877
        %v2879 = vrcp.pop %v2341
        %v2880 = vmul.f32 %v2341, %v2879
        %v2881 = vsub.f32 1.0, %v2880
        %v2882 = vmul.f32 %v2879, %v2881
        %v2883 = vadd.f32 %v2879, %v2882
        %vm2884 = vweird.f32 %v2341
        %vm2885 = vweird.f32 %v2879
        %vm2886 = vmor %vm2884, %vm2885
        %v2887 = vsel %vm2886, %v2879, %v2883
        %v2888 = vand.u32 2147483647, %v2341
        %vm2889 = vcmp.eq.f32.partialorder %v2888, 8.507059e+37
        %v2890 = vand.u32 %v2341, 2147483648
        %v2891 = vor.u32 1.1754944e-38, %v2890
        %v2892 = vsel %vm2889, %v2891, %v2887
        %v2893 = vmul.f32 1.0, %v2892
        %v2894 = vrcp.pop %v2342
        %v2895 = vmul.f32 %v2342, %v2894
        %v2896 = vsub.f32 1.0, %v2895
        %v2897 = vmul.f32 %v2894, %v2896
        %v2898 = vadd.f32 %v2894, %v2897
        %vm2899 = vweird.f32 %v2342
        %vm2900 = vweird.f32 %v2894
        %vm2901 = vmor %vm2899, %vm2900
        %v2902 = vsel %vm2901, %v2894, %v2898
        %v2903 = vand.u32 2147483647, %v2342
        %vm2904 = vcmp.eq.f32.partialorder %v2903, 8.507059e+37
        %v2905 = vand.u32 %v2342, 2147483648
        %v2906 = vor.u32 1.1754944e-38, %v2905
        %v2907 = vsel %vm2904, %v2906, %v2902
        %v2908 = vmul.f32 1.0, %v2907
        %v2909 = vrcp.pop %v2343
        %v2910 = vmul.f32 %v2343, %v2909
        %v2911 = vsub.f32 1.0, %v2910
        %v2912 = vmul.f32 %v2909, %v2911
        %v2913 = vadd.f32 %v2909, %v2912
        %vm2914 = vweird.f32 %v2343
        %vm2915 = vweird.f32 %v2909
        %vm2916 = vmor %vm2914, %vm2915
        %v2917 = vsel %vm2916, %v2909, %v2913
        %v2918 = vand.u32 2147483647, %v2343
        %vm2919 = vcmp.eq.f32.partialorder %v2918, 8.507059e+37
        %v2920 = vand.u32 %v2343, 2147483648
        %v2921 = vor.u32 1.1754944e-38, %v2920
        %v2922 = vsel %vm2919, %v2921, %v2917
        %v2923 = vmul.f32 1.0, %v2922
        %v2924 = vrcp.pop %v2344
        %v2925 = vmul.f32 %v2344, %v2924
        %v2926 = vsub.f32 1.0, %v2925
        %v2927 = vmul.f32 %v2924, %v2926
        %v2928 = vadd.f32 %v2924, %v2927
        %vm2929 = vweird.f32 %v2344
        %vm2930 = vweird.f32 %v2924
        %vm2931 = vmor %vm2929, %vm2930
        %v2932 = vsel %vm2931, %v2924, %v2928
        %v2933 = vand.u32 2147483647, %v2344
        %vm2934 = vcmp.eq.f32.partialorder %v2933, 8.507059e+37
        %v2935 = vand.u32 %v2344, 2147483648
        %v2936 = vor.u32 1.1754944e-38, %v2935
        %v2937 = vsel %vm2934, %v2936, %v2932
        %v2938 = vmul.f32 1.0, %v2937
        %v2939 = vrcp.pop %v2345
        %v2940 = vmul.f32 %v2345, %v2939
        %v2941 = vsub.f32 1.0, %v2940
        %v2942 = vmul.f32 %v2939, %v2941
        %v2943 = vadd.f32 %v2939, %v2942
        %vm2944 = vweird.f32 %v2345
        %vm2945 = vweird.f32 %v2939
        %vm2946 = vmor %vm2944, %vm2945
        %v2947 = vsel %vm2946, %v2939, %v2943
        %v2948 = vand.u32 2147483647, %v2345
        %vm2949 = vcmp.eq.f32.partialorder %v2948, 8.507059e+37
        %v2950 = vand.u32 %v2345, 2147483648
        %v2951 = vor.u32 1.1754944e-38, %v2950
        %v2952 = vsel %vm2949, %v2951, %v2947
        %v2953 = vmul.f32 1.0, %v2952
        %v2954 = vrcp.pop %v2346
        %v2955 = vmul.f32 %v2346, %v2954
        %v2956 = vsub.f32 1.0, %v2955
        %v2957 = vmul.f32 %v2954, %v2956
        %v2958 = vadd.f32 %v2954, %v2957
        %vm2959 = vweird.f32 %v2346
        %vm2960 = vweird.f32 %v2954
        %vm2961 = vmor %vm2959, %vm2960
        %v2962 = vsel %vm2961, %v2954, %v2958
        %v2963 = vand.u32 2147483647, %v2346
        %vm2964 = vcmp.eq.f32.partialorder %v2963, 8.507059e+37
        %v2965 = vand.u32 %v2346, 2147483648
        %v2966 = vor.u32 1.1754944e-38, %v2965
        %v2967 = vsel %vm2964, %v2966, %v2962
        %v2968 = vmul.f32 1.0, %v2967
        %v2969 = vrcp.pop %v2347
        %v2970 = vmul.f32 %v2347, %v2969
        %v2971 = vsub.f32 1.0, %v2970
        %v2972 = vmul.f32 %v2969, %v2971
        %v2973 = vadd.f32 %v2969, %v2972
        %vm2974 = vweird.f32 %v2347
        %vm2975 = vweird.f32 %v2969
        %vm2976 = vmor %vm2974, %vm2975
        %v2977 = vsel %vm2976, %v2969, %v2973
        %v2978 = vand.u32 2147483647, %v2347
        %vm2979 = vcmp.eq.f32.partialorder %v2978, 8.507059e+37
        %v2980 = vand.u32 %v2347, 2147483648
        %v2981 = vor.u32 1.1754944e-38, %v2980
        %v2982 = vsel %vm2979, %v2981, %v2977
        %v2983 = vmul.f32 1.0, %v2982
        %v2984 = vrcp.pop %v2348
        %v2985 = vmul.f32 %v2348, %v2984
        %v2986 = vsub.f32 1.0, %v2985
        %v2987 = vmul.f32 %v2984, %v2986
        %v2988 = vadd.f32 %v2984, %v2987
        %vm2989 = vweird.f32 %v2348
        %vm2990 = vweird.f32 %v2984
        %vm2991 = vmor %vm2989, %vm2990
        %v2992 = vsel %vm2991, %v2984, %v2988
        %v2993 = vand.u32 2147483647, %v2348
        %vm2994 = vcmp.eq.f32.partialorder %v2993, 8.507059e+37
        %v2995 = vand.u32 %v2348, 2147483648
        %v2996 = vor.u32 1.1754944e-38, %v2995
        %v2997 = vsel %vm2994, %v2996, %v2992
        %v2998 = vmul.f32 1.0, %v2997
        %v2999 = vrcp.pop %v2349
        %v3000 = vmul.f32 %v2349, %v2999
        %v3001 = vsub.f32 1.0, %v3000
        %v3002 = vmul.f32 %v2999, %v3001
        %v3003 = vadd.f32 %v2999, %v3002
        %vm3004 = vweird.f32 %v2349
        %vm3005 = vweird.f32 %v2999
        %vm3006 = vmor %vm3004, %vm3005
        %v3007 = vsel %vm3006, %v2999, %v3003
        %v3008 = vand.u32 2147483647, %v2349
        %vm3009 = vcmp.eq.f32.partialorder %v3008, 8.507059e+37
        %v3010 = vand.u32 %v2349, 2147483648
        %v3011 = vor.u32 1.1754944e-38, %v3010
        %v3012 = vsel %vm3009, %v3011, %v3007
        %v3013 = vmul.f32 1.0, %v3012
        %v3014 = vrcp.pop %v2350
        %v3015 = vmul.f32 %v2350, %v3014
        %v3016 = vsub.f32 1.0, %v3015
        %v3017 = vmul.f32 %v3014, %v3016
        %v3018 = vadd.f32 %v3014, %v3017
        %vm3019 = vweird.f32 %v2350
        %vm3020 = vweird.f32 %v3014
        %vm3021 = vmor %vm3019, %vm3020
        %v3022 = vsel %vm3021, %v3014, %v3018
        %v3023 = vand.u32 2147483647, %v2350
        %vm3024 = vcmp.eq.f32.partialorder %v3023, 8.507059e+37
        %v3025 = vand.u32 %v2350, 2147483648
        %v3026 = vor.u32 1.1754944e-38, %v3025
        %v3027 = vsel %vm3024, %v3026, %v3022
        %v3028 = vmul.f32 1.0, %v3027
        %v3029 = vrcp.pop %v2351
        %v3030 = vmul.f32 %v2351, %v3029
        %v3031 = vsub.f32 1.0, %v3030
        %v3032 = vmul.f32 %v3029, %v3031
        %v3033 = vadd.f32 %v3029, %v3032
        %vm3034 = vweird.f32 %v2351
        %vm3035 = vweird.f32 %v3029
        %vm3036 = vmor %vm3034, %vm3035
        %v3037 = vsel %vm3036, %v3029, %v3033
        %v3038 = vand.u32 2147483647, %v2351
        %vm3039 = vcmp.eq.f32.partialorder %v3038, 8.507059e+37
        %v3040 = vand.u32 %v2351, 2147483648
        %v3041 = vor.u32 1.1754944e-38, %v3040
        %v3042 = vsel %vm3039, %v3041, %v3037
        %v3043 = vmul.f32 1.0, %v3042
        %v3044 = vrcp.pop %v2352
        %v3045 = vmul.f32 %v2352, %v3044
        %v3046 = vsub.f32 1.0, %v3045
        %v3047 = vmul.f32 %v3044, %v3046
        %v3048 = vadd.f32 %v3044, %v3047
        %vm3049 = vweird.f32 %v2352
        %vm3050 = vweird.f32 %v3044
        %vm3051 = vmor %vm3049, %vm3050
        %v3052 = vsel %vm3051, %v3044, %v3048
        %v3053 = vand.u32 2147483647, %v2352
        %vm3054 = vcmp.eq.f32.partialorder %v3053, 8.507059e+37
        %v3055 = vand.u32 %v2352, 2147483648
        %v3056 = vor.u32 1.1754944e-38, %v3055
        %v3057 = vsel %vm3054, %v3056, %v3052
        %v3058 = vmul.f32 1.0, %v3057
        %v3059 = vrcp.pop %v2353
        %v3060 = vmul.f32 %v2353, %v3059
        %v3061 = vsub.f32 1.0, %v3060
        %v3062 = vmul.f32 %v3059, %v3061
        %v3063 = vadd.f32 %v3059, %v3062
        %vm3064 = vweird.f32 %v2353
        %vm3065 = vweird.f32 %v3059
        %vm3066 = vmor %vm3064, %vm3065
        %v3067 = vsel %vm3066, %v3059, %v3063
        %v3068 = vand.u32 2147483647, %v2353
        %vm3069 = vcmp.eq.f32.partialorder %v3068, 8.507059e+37
        %v3070 = vand.u32 %v2353, 2147483648
        %v3071 = vor.u32 1.1754944e-38, %v3070
        %v3072 = vsel %vm3069, %v3071, %v3067
        %v3073 = vmul.f32 1.0, %v3072
        %v3074 = vrcp.pop %v2354
        %v3075 = vmul.f32 %v2354, %v3074
        %v3076 = vsub.f32 1.0, %v3075
        %v3077 = vmul.f32 %v3074, %v3076
        %v3078 = vadd.f32 %v3074, %v3077
        %vm3079 = vweird.f32 %v2354
        %vm3080 = vweird.f32 %v3074
        %vm3081 = vmor %vm3079, %vm3080
        %v3082 = vsel %vm3081, %v3074, %v3078
        %v3083 = vand.u32 2147483647, %v2354
        %vm3084 = vcmp.eq.f32.partialorder %v3083, 8.507059e+37
        %v3085 = vand.u32 %v2354, 2147483648
        %v3086 = vor.u32 1.1754944e-38, %v3085
        %v3087 = vsel %vm3084, %v3086, %v3082
        %v3088 = vmul.f32 1.0, %v3087
        %v3089 = vrcp.pop %v2355
        %v3090 = vmul.f32 %v2355, %v3089
        %v3091 = vsub.f32 1.0, %v3090
        %v3092 = vmul.f32 %v3089, %v3091
        %v3093 = vadd.f32 %v3089, %v3092
        %vm3094 = vweird.f32 %v2355
        %vm3095 = vweird.f32 %v3089
        %vm3096 = vmor %vm3094, %vm3095
        %v3097 = vsel %vm3096, %v3089, %v3093
        %v3098 = vand.u32 2147483647, %v2355
        %vm3099 = vcmp.eq.f32.partialorder %v3098, 8.507059e+37
        %v3100 = vand.u32 %v2355, 2147483648
        %v3101 = vor.u32 1.1754944e-38, %v3100
        %v3102 = vsel %vm3099, %v3101, %v3097
        %v3103 = vmul.f32 1.0, %v3102
        %v3104 = vrcp.pop %v2356
        %v3105 = vmul.f32 %v2356, %v3104
        %v3106 = vsub.f32 1.0, %v3105
        %v3107 = vmul.f32 %v3104, %v3106
        %v3108 = vadd.f32 %v3104, %v3107
        %vm3109 = vweird.f32 %v2356
        %vm3110 = vweird.f32 %v3104
        %vm3111 = vmor %vm3109, %vm3110
        %v3112 = vsel %vm3111, %v3104, %v3108
        %v3113 = vand.u32 2147483647, %v2356
        %vm3114 = vcmp.eq.f32.partialorder %v3113, 8.507059e+37
        %v3115 = vand.u32 %v2356, 2147483648
        %v3116 = vor.u32 1.1754944e-38, %v3115
        %v3117 = vsel %vm3114, %v3116, %v3112
        %v3118 = vmul.f32 1.0, %v3117
        %v3119 = vrcp.pop %v2357
        %v3120 = vmul.f32 %v2357, %v3119
        %v3121 = vsub.f32 1.0, %v3120
        %v3122 = vmul.f32 %v3119, %v3121
        %v3123 = vadd.f32 %v3119, %v3122
        %vm3124 = vweird.f32 %v2357
        %vm3125 = vweird.f32 %v3119
        %vm3126 = vmor %vm3124, %vm3125
        %v3127 = vsel %vm3126, %v3119, %v3123
        %v3128 = vand.u32 2147483647, %v2357
        %vm3129 = vcmp.eq.f32.partialorder %v3128, 8.507059e+37
        %v3130 = vand.u32 %v2357, 2147483648
        %v3131 = vor.u32 1.1754944e-38, %v3130
        %v3132 = vsel %vm3129, %v3131, %v3127
        %v3133 = vmul.f32 1.0, %v3132
        %v3134 = vrcp.pop %v2358
        %v3135 = vmul.f32 %v2358, %v3134
        %v3136 = vsub.f32 1.0, %v3135
        %v3137 = vmul.f32 %v3134, %v3136
        %v3138 = vadd.f32 %v3134, %v3137
        %vm3139 = vweird.f32 %v2358
        %vm3140 = vweird.f32 %v3134
        %vm3141 = vmor %vm3139, %vm3140
        %v3142 = vsel %vm3141, %v3134, %v3138
        %v3143 = vand.u32 2147483647, %v2358
        %vm3144 = vcmp.eq.f32.partialorder %v3143, 8.507059e+37
        %v3145 = vand.u32 %v2358, 2147483648
        %v3146 = vor.u32 1.1754944e-38, %v3145
        %v3147 = vsel %vm3144, %v3146, %v3142
        %v3148 = vmul.f32 1.0, %v3147
        %v3149 = vrcp.pop %v2359
        %v3150 = vmul.f32 %v2359, %v3149
        %v3151 = vsub.f32 1.0, %v3150
        %v3152 = vmul.f32 %v3149, %v3151
        %v3153 = vadd.f32 %v3149, %v3152
        %vm3154 = vweird.f32 %v2359
        %vm3155 = vweird.f32 %v3149
        %vm3156 = vmor %vm3154, %vm3155
        %v3157 = vsel %vm3156, %v3149, %v3153
        %v3158 = vand.u32 2147483647, %v2359
        %vm3159 = vcmp.eq.f32.partialorder %v3158, 8.507059e+37
        %v3160 = vand.u32 %v2359, 2147483648
        %v3161 = vor.u32 1.1754944e-38, %v3160
        %v3162 = vsel %vm3159, %v3161, %v3157
        %v3163 = vmul.f32 1.0, %v3162
        %v3164 = vrcp.pop %v2360
        %v3165 = vmul.f32 %v2360, %v3164
        %v3166 = vsub.f32 1.0, %v3165
        %v3167 = vmul.f32 %v3164, %v3166
        %v3168 = vadd.f32 %v3164, %v3167
        %vm3169 = vweird.f32 %v2360
        %vm3170 = vweird.f32 %v3164
        %vm3171 = vmor %vm3169, %vm3170
        %v3172 = vsel %vm3171, %v3164, %v3168
        %v3173 = vand.u32 2147483647, %v2360
        %vm3174 = vcmp.eq.f32.partialorder %v3173, 8.507059e+37
        %v3175 = vand.u32 %v2360, 2147483648
        %v3176 = vor.u32 1.1754944e-38, %v3175
        %v3177 = vsel %vm3174, %v3176, %v3172
        %v3178 = vmul.f32 1.0, %v3177
        %v3179 = vrcp.pop %v2361
        %v3180 = vmul.f32 %v2361, %v3179
        %v3181 = vsub.f32 1.0, %v3180
        %v3182 = vmul.f32 %v3179, %v3181
        %v3183 = vadd.f32 %v3179, %v3182
        %vm3184 = vweird.f32 %v2361
        %vm3185 = vweird.f32 %v3179
        %vm3186 = vmor %vm3184, %vm3185
        %v3187 = vsel %vm3186, %v3179, %v3183
        %v3188 = vand.u32 2147483647, %v2361
        %vm3189 = vcmp.eq.f32.partialorder %v3188, 8.507059e+37
        %v3190 = vand.u32 %v2361, 2147483648
        %v3191 = vor.u32 1.1754944e-38, %v3190
        %v3192 = vsel %vm3189, %v3191, %v3187
        %v3193 = vmul.f32 1.0, %v3192
        %v3194 = vrcp.pop %v2362
        %v3195 = vmul.f32 %v2362, %v3194
        %v3196 = vsub.f32 1.0, %v3195
        %v3197 = vmul.f32 %v3194, %v3196
        %v3198 = vadd.f32 %v3194, %v3197
        %vm3199 = vweird.f32 %v2362
        %vm3200 = vweird.f32 %v3194
        %vm3201 = vmor %vm3199, %vm3200
        %v3202 = vsel %vm3201, %v3194, %v3198
        %v3203 = vand.u32 2147483647, %v2362
        %vm3204 = vcmp.eq.f32.partialorder %v3203, 8.507059e+37
        %v3205 = vand.u32 %v2362, 2147483648
        %v3206 = vor.u32 1.1754944e-38, %v3205
        %v3207 = vsel %vm3204, %v3206, %v3202
        %v3208 = vmul.f32 1.0, %v3207
        %v3209 = vrcp.pop %v2363
        %v3210 = vmul.f32 %v2363, %v3209
        %v3211 = vsub.f32 1.0, %v3210
        %v3212 = vmul.f32 %v3209, %v3211
        %v3213 = vadd.f32 %v3209, %v3212
        %vm3214 = vweird.f32 %v2363
        %vm3215 = vweird.f32 %v3209
        %vm3216 = vmor %vm3214, %vm3215
        %v3217 = vsel %vm3216, %v3209, %v3213
        %v3218 = vand.u32 2147483647, %v2363
        %vm3219 = vcmp.eq.f32.partialorder %v3218, 8.507059e+37
        %v3220 = vand.u32 %v2363, 2147483648
        %v3221 = vor.u32 1.1754944e-38, %v3220
        %v3222 = vsel %vm3219, %v3221, %v3217
        %v3223 = vmul.f32 1.0, %v3222
        %v3224 = vrcp.pop %v2364
        %v3225 = vmul.f32 %v2364, %v3224
        %v3226 = vsub.f32 1.0, %v3225
        %v3227 = vmul.f32 %v3224, %v3226
        %v3228 = vadd.f32 %v3224, %v3227
        %vm3229 = vweird.f32 %v2364
        %vm3230 = vweird.f32 %v3224
        %vm3231 = vmor %vm3229, %vm3230
        %v3232 = vsel %vm3231, %v3224, %v3228
        %v3233 = vand.u32 2147483647, %v2364
        %vm3234 = vcmp.eq.f32.partialorder %v3233, 8.507059e+37
        %v3235 = vand.u32 %v2364, 2147483648
        %v3236 = vor.u32 1.1754944e-38, %v3235
        %v3237 = vsel %vm3234, %v3236, %v3232
        %v3238 = vmul.f32 1.0, %v3237
        %v3239 = vrcp.pop %v2365
        %v3240 = vmul.f32 %v2365, %v3239
        %v3241 = vsub.f32 1.0, %v3240
        %v3242 = vmul.f32 %v3239, %v3241
        %v3243 = vadd.f32 %v3239, %v3242
        %vm3244 = vweird.f32 %v2365
        %vm3245 = vweird.f32 %v3239
        %vm3246 = vmor %vm3244, %vm3245
        %v3247 = vsel %vm3246, %v3239, %v3243
        %v3248 = vand.u32 2147483647, %v2365
        %vm3249 = vcmp.eq.f32.partialorder %v3248, 8.507059e+37
        %v3250 = vand.u32 %v2365, 2147483648
        %v3251 = vor.u32 1.1754944e-38, %v3250
        %v3252 = vsel %vm3249, %v3251, %v3247
        %v3253 = vmul.f32 1.0, %v3252
        %v3254 = vrcp.pop %v2366
        %v3255 = vmul.f32 %v2366, %v3254
        %v3256 = vsub.f32 1.0, %v3255
        %v3257 = vmul.f32 %v3254, %v3256
        %v3258 = vadd.f32 %v3254, %v3257
        %vm3259 = vweird.f32 %v2366
        %vm3260 = vweird.f32 %v3254
        %vm3261 = vmor %vm3259, %vm3260
        %v3262 = vsel %vm3261, %v3254, %v3258
        %v3263 = vand.u32 2147483647, %v2366
        %vm3264 = vcmp.eq.f32.partialorder %v3263, 8.507059e+37
        %v3265 = vand.u32 %v2366, 2147483648
        %v3266 = vor.u32 1.1754944e-38, %v3265
        %v3267 = vsel %vm3264, %v3266, %v3262
        %v3268 = vmul.f32 1.0, %v3267
        %v3269 = vrcp.pop %v2367
        %v3270 = vmul.f32 %v2367, %v3269
        %v3271 = vsub.f32 1.0, %v3270
        %v3272 = vmul.f32 %v3269, %v3271
        %v3273 = vadd.f32 %v3269, %v3272
        %vm3274 = vweird.f32 %v2367
        %vm3275 = vweird.f32 %v3269
        %vm3276 = vmor %vm3274, %vm3275
        %v3277 = vsel %vm3276, %v3269, %v3273
        %v3278 = vand.u32 2147483647, %v2367
        %vm3279 = vcmp.eq.f32.partialorder %v3278, 8.507059e+37
        %v3280 = vand.u32 %v2367, 2147483648
        %v3281 = vor.u32 1.1754944e-38, %v3280
        %v3282 = vsel %vm3279, %v3281, %v3277
        %v3283 = vmul.f32 1.0, %v3282
        %v3284 = vrcp.pop %v2368
        %v3285 = vmul.f32 %v2368, %v3284
        %v3286 = vsub.f32 1.0, %v3285
        %v3287 = vmul.f32 %v3284, %v3286
        %v3288 = vadd.f32 %v3284, %v3287
        %vm3289 = vweird.f32 %v2368
        %vm3290 = vweird.f32 %v3284
        %vm3291 = vmor %vm3289, %vm3290
        %v3292 = vsel %vm3291, %v3284, %v3288
        %v3293 = vand.u32 2147483647, %v2368
        %vm3294 = vcmp.eq.f32.partialorder %v3293, 8.507059e+37
        %v3295 = vand.u32 %v2368, 2147483648
        %v3296 = vor.u32 1.1754944e-38, %v3295
        %v3297 = vsel %vm3294, %v3296, %v3292
        %v3298 = vmul.f32 1.0, %v3297
        %v3299 = vrcp.pop %v2369
        %v3300 = vmul.f32 %v2369, %v3299
        %v3301 = vsub.f32 1.0, %v3300
        %v3302 = vmul.f32 %v3299, %v3301
        %v3303 = vadd.f32 %v3299, %v3302
        %vm3304 = vweird.f32 %v2369
        %vm3305 = vweird.f32 %v3299
        %vm3306 = vmor %vm3304, %vm3305
        %v3307 = vsel %vm3306, %v3299, %v3303
        %v3308 = vand.u32 2147483647, %v2369
        %vm3309 = vcmp.eq.f32.partialorder %v3308, 8.507059e+37
        %v3310 = vand.u32 %v2369, 2147483648
        %v3311 = vor.u32 1.1754944e-38, %v3310
        %v3312 = vsel %vm3309, %v3311, %v3307
        %v3313 = vmul.f32 1.0, %v3312
        %v3314 = vrcp.pop %v2370
        %v3315 = vmul.f32 %v2370, %v3314
        %v3316 = vsub.f32 1.0, %v3315
        %v3317 = vmul.f32 %v3314, %v3316
        %v3318 = vadd.f32 %v3314, %v3317
        %vm3319 = vweird.f32 %v2370
        %vm3320 = vweird.f32 %v3314
        %vm3321 = vmor %vm3319, %vm3320
        %v3322 = vsel %vm3321, %v3314, %v3318
        %v3323 = vand.u32 2147483647, %v2370
        %vm3324 = vcmp.eq.f32.partialorder %v3323, 8.507059e+37
        %v3325 = vand.u32 %v2370, 2147483648
        %v3326 = vor.u32 1.1754944e-38, %v3325
        %v3327 = vsel %vm3324, %v3326, %v3322
        %v3328 = vmul.f32 1.0, %v3327
        %v3329 = vrcp.pop %v2371
        %v3330 = vmul.f32 %v2371, %v3329
        %v3331 = vsub.f32 1.0, %v3330
        %v3332 = vmul.f32 %v3329, %v3331
        %v3333 = vadd.f32 %v3329, %v3332
        %vm3334 = vweird.f32 %v2371
        %vm3335 = vweird.f32 %v3329
        %vm3336 = vmor %vm3334, %vm3335
        %v3337 = vsel %vm3336, %v3329, %v3333
        %v3338 = vand.u32 2147483647, %v2371
        %vm3339 = vcmp.eq.f32.partialorder %v3338, 8.507059e+37
        %v3340 = vand.u32 %v2371, 2147483648
        %v3341 = vor.u32 1.1754944e-38, %v3340
        %v3342 = vsel %vm3339, %v3341, %v3337
        %v3343 = vmul.f32 1.0, %v3342
        %v3344 = vrcp.pop %v2372
        %v3345 = vmul.f32 %v2372, %v3344
        %v3346 = vsub.f32 1.0, %v3345
        %v3347 = vmul.f32 %v3344, %v3346
        %v3348 = vadd.f32 %v3344, %v3347
        %vm3349 = vweird.f32 %v2372
        %vm3350 = vweird.f32 %v3344
        %vm3351 = vmor %vm3349, %vm3350
        %v3352 = vsel %vm3351, %v3344, %v3348
        %v3353 = vand.u32 2147483647, %v2372
        %vm3354 = vcmp.eq.f32.partialorder %v3353, 8.507059e+37
        %v3355 = vand.u32 %v2372, 2147483648
        %v3356 = vor.u32 1.1754944e-38, %v3355
        %v3357 = vsel %vm3354, %v3356, %v3352
        %v3358 = vmul.f32 1.0, %v3357
        %v3359 = vrcp.pop %v2373
        %v3360 = vmul.f32 %v2373, %v3359
        %v3361 = vsub.f32 1.0, %v3360
        %v3362 = vmul.f32 %v3359, %v3361
        %v3363 = vadd.f32 %v3359, %v3362
        %vm3364 = vweird.f32 %v2373
        %vm3365 = vweird.f32 %v3359
        %vm3366 = vmor %vm3364, %vm3365
        %v3367 = vsel %vm3366, %v3359, %v3363
        %v3368 = vand.u32 2147483647, %v2373
        %vm3369 = vcmp.eq.f32.partialorder %v3368, 8.507059e+37
        %v3370 = vand.u32 %v2373, 2147483648
        %v3371 = vor.u32 1.1754944e-38, %v3370
        %v3372 = vsel %vm3369, %v3371, %v3367
        %v3373 = vmul.f32 1.0, %v3372
        %v3374 = vrcp.pop %v2374
        %v3375 = vmul.f32 %v2374, %v3374
        %v3376 = vsub.f32 1.0, %v3375
        %v3377 = vmul.f32 %v3374, %v3376
        %v3378 = vadd.f32 %v3374, %v3377
        %vm3379 = vweird.f32 %v2374
        %vm3380 = vweird.f32 %v3374
        %vm3381 = vmor %vm3379, %vm3380
        %v3382 = vsel %vm3381, %v3374, %v3378
        %v3383 = vand.u32 2147483647, %v2374
        %vm3384 = vcmp.eq.f32.partialorder %v3383, 8.507059e+37
        %v3385 = vand.u32 %v2374, 2147483648
        %v3386 = vor.u32 1.1754944e-38, %v3385
        %v3387 = vsel %vm3384, %v3386, %v3382
        %v3388 = vmul.f32 1.0, %v3387
        %v3389 = vrcp.pop %v2375
        %v3390 = vmul.f32 %v2375, %v3389
        %v3391 = vsub.f32 1.0, %v3390
        %v3392 = vmul.f32 %v3389, %v3391
        %v3393 = vadd.f32 %v3389, %v3392
        %vm3394 = vweird.f32 %v2375
        %vm3395 = vweird.f32 %v3389
        %vm3396 = vmor %vm3394, %vm3395
        %v3397 = vsel %vm3396, %v3389, %v3393
        %v3398 = vand.u32 2147483647, %v2375
        %vm3399 = vcmp.eq.f32.partialorder %v3398, 8.507059e+37
        %v3400 = vand.u32 %v2375, 2147483648
        %v3401 = vor.u32 1.1754944e-38, %v3400
        %v3402 = vsel %vm3399, %v3401, %v3397
        %v3403 = vmul.f32 1.0, %v3402
        %v3404 = vrcp.pop %v2376
        %v3405 = vmul.f32 %v2376, %v3404
        %v3406 = vsub.f32 1.0, %v3405
        %v3407 = vmul.f32 %v3404, %v3406
        %v3408 = vadd.f32 %v3404, %v3407
        %vm3409 = vweird.f32 %v2376
        %vm3410 = vweird.f32 %v3404
        %vm3411 = vmor %vm3409, %vm3410
        %v3412 = vsel %vm3411, %v3404, %v3408
        %v3413 = vand.u32 2147483647, %v2376
        %vm3414 = vcmp.eq.f32.partialorder %v3413, 8.507059e+37
        %v3415 = vand.u32 %v2376, 2147483648
        %v3416 = vor.u32 1.1754944e-38, %v3415
        %v3417 = vsel %vm3414, %v3416, %v3412
        %v3418 = vmul.f32 1.0, %v3417
        %v3419 = vrcp.pop %v2377
        %v3420 = vmul.f32 %v2377, %v3419
        %v3421 = vsub.f32 1.0, %v3420
        %v3422 = vmul.f32 %v3419, %v3421
        %v3423 = vadd.f32 %v3419, %v3422
        %vm3424 = vweird.f32 %v2377
        %vm3425 = vweird.f32 %v3419
        %vm3426 = vmor %vm3424, %vm3425
        %v3427 = vsel %vm3426, %v3419, %v3423
        %v3428 = vand.u32 2147483647, %v2377
        %vm3429 = vcmp.eq.f32.partialorder %v3428, 8.507059e+37
        %v3430 = vand.u32 %v2377, 2147483648
        %v3431 = vor.u32 1.1754944e-38, %v3430
        %v3432 = vsel %vm3429, %v3431, %v3427
        %v3433 = vmul.f32 1.0, %v3432
        %v3434 = vrcp.pop %v2378
        %v3435 = vmul.f32 %v2378, %v3434
        %v3436 = vsub.f32 1.0, %v3435
        %v3437 = vmul.f32 %v3434, %v3436
        %v3438 = vadd.f32 %v3434, %v3437
        %vm3439 = vweird.f32 %v2378
        %vm3440 = vweird.f32 %v3434
        %vm3441 = vmor %vm3439, %vm3440
        %v3442 = vsel %vm3441, %v3434, %v3438
        %v3443 = vand.u32 2147483647, %v2378
        %vm3444 = vcmp.eq.f32.partialorder %v3443, 8.507059e+37
        %v3445 = vand.u32 %v2378, 2147483648
        %v3446 = vor.u32 1.1754944e-38, %v3445
        %v3447 = vsel %vm3444, %v3446, %v3442
        %v3448 = vmul.f32 1.0, %v3447
        %v3449 = vrcp.pop %v2379
        %v3450 = vmul.f32 %v2379, %v3449
        %v3451 = vsub.f32 1.0, %v3450
        %v3452 = vmul.f32 %v3449, %v3451
        %v3453 = vadd.f32 %v3449, %v3452
        %vm3454 = vweird.f32 %v2379
        %vm3455 = vweird.f32 %v3449
        %vm3456 = vmor %vm3454, %vm3455
        %v3457 = vsel %vm3456, %v3449, %v3453
        %v3458 = vand.u32 2147483647, %v2379
        %vm3459 = vcmp.eq.f32.partialorder %v3458, 8.507059e+37
        %v3460 = vand.u32 %v2379, 2147483648
        %v3461 = vor.u32 1.1754944e-38, %v3460
        %v3462 = vsel %vm3459, %v3461, %v3457
        %v3463 = vmul.f32 1.0, %v3462
        %v3464 = vrcp.pop %v2380
        %v3465 = vmul.f32 %v2380, %v3464
        %v3466 = vsub.f32 1.0, %v3465
        %v3467 = vmul.f32 %v3464, %v3466
        %v3468 = vadd.f32 %v3464, %v3467
        %vm3469 = vweird.f32 %v2380
        %vm3470 = vweird.f32 %v3464
        %vm3471 = vmor %vm3469, %vm3470
        %v3472 = vsel %vm3471, %v3464, %v3468
        %v3473 = vand.u32 2147483647, %v2380
        %vm3474 = vcmp.eq.f32.partialorder %v3473, 8.507059e+37
        %v3475 = vand.u32 %v2380, 2147483648
        %v3476 = vor.u32 1.1754944e-38, %v3475
        %v3477 = vsel %vm3474, %v3476, %v3472
        %v3478 = vmul.f32 1.0, %v3477
        %v3479 = vrcp.pop %v2381
        %v3480 = vmul.f32 %v2381, %v3479
        %v3481 = vsub.f32 1.0, %v3480
        %v3482 = vmul.f32 %v3479, %v3481
        %v3483 = vadd.f32 %v3479, %v3482
        %vm3484 = vweird.f32 %v2381
        %vm3485 = vweird.f32 %v3479
        %vm3486 = vmor %vm3484, %vm3485
        %v3487 = vsel %vm3486, %v3479, %v3483
        %v3488 = vand.u32 2147483647, %v2381
        %vm3489 = vcmp.eq.f32.partialorder %v3488, 8.507059e+37
        %v3490 = vand.u32 %v2381, 2147483648
        %v3491 = vor.u32 1.1754944e-38, %v3490
        %v3492 = vsel %vm3489, %v3491, %v3487
        %v3493 = vmul.f32 1.0, %v3492
        %v3494 = vrcp.pop %v2382
        %v3495 = vmul.f32 %v2382, %v3494
        %v3496 = vsub.f32 1.0, %v3495
        %v3497 = vmul.f32 %v3494, %v3496
        %v3498 = vadd.f32 %v3494, %v3497
        %vm3499 = vweird.f32 %v2382
        %vm3500 = vweird.f32 %v3494
        %vm3501 = vmor %vm3499, %vm3500
        %v3502 = vsel %vm3501, %v3494, %v3498
        %v3503 = vand.u32 2147483647, %v2382
        %vm3504 = vcmp.eq.f32.partialorder %v3503, 8.507059e+37
        %v3505 = vand.u32 %v2382, 2147483648
        %v3506 = vor.u32 1.1754944e-38, %v3505
        %v3507 = vsel %vm3504, %v3506, %v3502
        %v3508 = vmul.f32 1.0, %v3507
        %v3509 = vrcp.pop %v2383
        %v3510 = vmul.f32 %v2383, %v3509
        %v3511 = vsub.f32 1.0, %v3510
        %v3512 = vmul.f32 %v3509, %v3511
        %v3513 = vadd.f32 %v3509, %v3512
        %vm3514 = vweird.f32 %v2383
        %vm3515 = vweird.f32 %v3509
        %vm3516 = vmor %vm3514, %vm3515
        %v3517 = vsel %vm3516, %v3509, %v3513
        %v3518 = vand.u32 2147483647, %v2383
        %vm3519 = vcmp.eq.f32.partialorder %v3518, 8.507059e+37
        %v3520 = vand.u32 %v2383, 2147483648
        %v3521 = vor.u32 1.1754944e-38, %v3520
        %v3522 = vsel %vm3519, %v3521, %v3517
        %v3523 = vmul.f32 1.0, %v3522
        %v3524 = vrcp.pop %v2384
        %v3525 = vmul.f32 %v2384, %v3524
        %v3526 = vsub.f32 1.0, %v3525
        %v3527 = vmul.f32 %v3524, %v3526
        %v3528 = vadd.f32 %v3524, %v3527
        %vm3529 = vweird.f32 %v2384
        %vm3530 = vweird.f32 %v3524
        %vm3531 = vmor %vm3529, %vm3530
        %v3532 = vsel %vm3531, %v3524, %v3528
        %v3533 = vand.u32 2147483647, %v2384
        %vm3534 = vcmp.eq.f32.partialorder %v3533, 8.507059e+37
        %v3535 = vand.u32 %v2384, 2147483648
        %v3536 = vor.u32 1.1754944e-38, %v3535
        %v3537 = vsel %vm3534, %v3536, %v3532
        %v3538 = vmul.f32 1.0, %v3537
        %v3539 = vrcp.pop %v2385
        %v3540 = vmul.f32 %v2385, %v3539
        %v3541 = vsub.f32 1.0, %v3540
        %v3542 = vmul.f32 %v3539, %v3541
        %v3543 = vadd.f32 %v3539, %v3542
        %vm3544 = vweird.f32 %v2385
        %vm3545 = vweird.f32 %v3539
        %vm3546 = vmor %vm3544, %vm3545
        %v3547 = vsel %vm3546, %v3539, %v3543
        %v3548 = vand.u32 2147483647, %v2385
        %vm3549 = vcmp.eq.f32.partialorder %v3548, 8.507059e+37
        %v3550 = vand.u32 %v2385, 2147483648
        %v3551 = vor.u32 1.1754944e-38, %v3550
        %v3552 = vsel %vm3549, %v3551, %v3547
        %v3553 = vmul.f32 1.0, %v3552
        %v3554 = vrcp.pop %v2386
        %v3555 = vmul.f32 %v2386, %v3554
        %v3556 = vsub.f32 1.0, %v3555
        %v3557 = vmul.f32 %v3554, %v3556
        %v3558 = vadd.f32 %v3554, %v3557
        %vm3559 = vweird.f32 %v2386
        %vm3560 = vweird.f32 %v3554
        %vm3561 = vmor %vm3559, %vm3560
        %v3562 = vsel %vm3561, %v3554, %v3558
        %v3563 = vand.u32 2147483647, %v2386
        %vm3564 = vcmp.eq.f32.partialorder %v3563, 8.507059e+37
        %v3565 = vand.u32 %v2386, 2147483648
        %v3566 = vor.u32 1.1754944e-38, %v3565
        %v3567 = vsel %vm3564, %v3566, %v3562
        %v3568 = vmul.f32 1.0, %v3567
        %v3569 = vrcp.pop %v2387
        %v3570 = vmul.f32 %v2387, %v3569
        %v3571 = vsub.f32 1.0, %v3570
        %v3572 = vmul.f32 %v3569, %v3571
        %v3573 = vadd.f32 %v3569, %v3572
        %vm3574 = vweird.f32 %v2387
        %vm3575 = vweird.f32 %v3569
        %vm3576 = vmor %vm3574, %vm3575
        %v3577 = vsel %vm3576, %v3569, %v3573
        %v3578 = vand.u32 2147483647, %v2387
        %vm3579 = vcmp.eq.f32.partialorder %v3578, 8.507059e+37
        %v3580 = vand.u32 %v2387, 2147483648
        %v3581 = vor.u32 1.1754944e-38, %v3580
        %v3582 = vsel %vm3579, %v3581, %v3577
        %v3583 = vmul.f32 1.0, %v3582
        %v3584 = vrcp.pop %v2388
        %v3585 = vmul.f32 %v2388, %v3584
        %v3586 = vsub.f32 1.0, %v3585
        %v3587 = vmul.f32 %v3584, %v3586
        %v3588 = vadd.f32 %v3584, %v3587
        %vm3589 = vweird.f32 %v2388
        %vm3590 = vweird.f32 %v3584
        %vm3591 = vmor %vm3589, %vm3590
        %v3592 = vsel %vm3591, %v3584, %v3588
        %v3593 = vand.u32 2147483647, %v2388
        %vm3594 = vcmp.eq.f32.partialorder %v3593, 8.507059e+37
        %v3595 = vand.u32 %v2388, 2147483648
        %v3596 = vor.u32 1.1754944e-38, %v3595
        %v3597 = vsel %vm3594, %v3596, %v3592
        %v3598 = vmul.f32 1.0, %v3597
        %v3599 = vrcp.pop %v2389
        %v3600 = vmul.f32 %v2389, %v3599
        %v3601 = vsub.f32 1.0, %v3600
        %v3602 = vmul.f32 %v3599, %v3601
        %v3603 = vadd.f32 %v3599, %v3602
        %vm3604 = vweird.f32 %v2389
        %vm3605 = vweird.f32 %v3599
        %vm3606 = vmor %vm3604, %vm3605
        %v3607 = vsel %vm3606, %v3599, %v3603
        %v3608 = vand.u32 2147483647, %v2389
        %vm3609 = vcmp.eq.f32.partialorder %v3608, 8.507059e+37
        %v3610 = vand.u32 %v2389, 2147483648
        %v3611 = vor.u32 1.1754944e-38, %v3610
        %v3612 = vsel %vm3609, %v3611, %v3607
        %v3613 = vmul.f32 1.0, %v3612
        %v3614 = vrcp.pop %v2390
        %v3615 = vmul.f32 %v2390, %v3614
        %v3616 = vsub.f32 1.0, %v3615
        %v3617 = vmul.f32 %v3614, %v3616
        %v3618 = vadd.f32 %v3614, %v3617
        %vm3619 = vweird.f32 %v2390
        %vm3620 = vweird.f32 %v3614
        %vm3621 = vmor %vm3619, %vm3620
        %v3622 = vsel %vm3621, %v3614, %v3618
        %v3623 = vand.u32 2147483647, %v2390
        %vm3624 = vcmp.eq.f32.partialorder %v3623, 8.507059e+37
        %v3625 = vand.u32 %v2390, 2147483648
        %v3626 = vor.u32 1.1754944e-38, %v3625
        %v3627 = vsel %vm3624, %v3626, %v3622
        %v3628 = vmul.f32 1.0, %v3627
        %v3629 = vrcp.pop %v2391
        %v3630 = vmul.f32 %v2391, %v3629
        %v3631 = vsub.f32 1.0, %v3630
        %v3632 = vmul.f32 %v3629, %v3631
        %v3633 = vadd.f32 %v3629, %v3632
        %vm3634 = vweird.f32 %v2391
        %vm3635 = vweird.f32 %v3629
        %vm3636 = vmor %vm3634, %vm3635
        %v3637 = vsel %vm3636, %v3629, %v3633
        %v3638 = vand.u32 2147483647, %v2391
        %vm3639 = vcmp.eq.f32.partialorder %v3638, 8.507059e+37
        %v3640 = vand.u32 %v2391, 2147483648
        %v3641 = vor.u32 1.1754944e-38, %v3640
        %v3642 = vsel %vm3639, %v3641, %v3637
        %v3643 = vmul.f32 1.0, %v3642
        %v3644 = vrcp.pop %v2392
        %v3645 = vmul.f32 %v2392, %v3644
        %v3646 = vsub.f32 1.0, %v3645
        %v3647 = vmul.f32 %v3644, %v3646
        %v3648 = vadd.f32 %v3644, %v3647
        %vm3649 = vweird.f32 %v2392
        %vm3650 = vweird.f32 %v3644
        %vm3651 = vmor %vm3649, %vm3650
        %v3652 = vsel %vm3651, %v3644, %v3648
        %v3653 = vand.u32 2147483647, %v2392
        %vm3654 = vcmp.eq.f32.partialorder %v3653, 8.507059e+37
        %v3655 = vand.u32 %v2392, 2147483648
        %v3656 = vor.u32 1.1754944e-38, %v3655
        %v3657 = vsel %vm3654, %v3656, %v3652
        %v3658 = vmul.f32 1.0, %v3657
        %v3659 = vrcp.pop %v2393
        %v3660 = vmul.f32 %v2393, %v3659
        %v3661 = vsub.f32 1.0, %v3660
        %v3662 = vmul.f32 %v3659, %v3661
        %v3663 = vadd.f32 %v3659, %v3662
        %vm3664 = vweird.f32 %v2393
        %vm3665 = vweird.f32 %v3659
        %vm3666 = vmor %vm3664, %vm3665
        %v3667 = vsel %vm3666, %v3659, %v3663
        %v3668 = vand.u32 2147483647, %v2393
        %vm3669 = vcmp.eq.f32.partialorder %v3668, 8.507059e+37
        %v3670 = vand.u32 %v2393, 2147483648
        %v3671 = vor.u32 1.1754944e-38, %v3670
        %v3672 = vsel %vm3669, %v3671, %v3667
        %v3673 = vmul.f32 1.0, %v3672
        %v3674 = vrcp.pop %v2394
        %v3675 = vmul.f32 %v2394, %v3674
        %v3676 = vsub.f32 1.0, %v3675
        %v3677 = vmul.f32 %v3674, %v3676
        %v3678 = vadd.f32 %v3674, %v3677
        %vm3679 = vweird.f32 %v2394
        %vm3680 = vweird.f32 %v3674
        %vm3681 = vmor %vm3679, %vm3680
        %v3682 = vsel %vm3681, %v3674, %v3678
        %v3683 = vand.u32 2147483647, %v2394
        %vm3684 = vcmp.eq.f32.partialorder %v3683, 8.507059e+37
        %v3685 = vand.u32 %v2394, 2147483648
        %v3686 = vor.u32 1.1754944e-38, %v3685
        %v3687 = vsel %vm3684, %v3686, %v3682
        %v3688 = vmul.f32 1.0, %v3687
        %v3689 = vrcp.pop %v2395
        %v3690 = vmul.f32 %v2395, %v3689
        %v3691 = vsub.f32 1.0, %v3690
        %v3692 = vmul.f32 %v3689, %v3691
        %v3693 = vadd.f32 %v3689, %v3692
        %vm3694 = vweird.f32 %v2395
        %vm3695 = vweird.f32 %v3689
        %vm3696 = vmor %vm3694, %vm3695
        %v3697 = vsel %vm3696, %v3689, %v3693
        %v3698 = vand.u32 2147483647, %v2395
        %vm3699 = vcmp.eq.f32.partialorder %v3698, 8.507059e+37
        %v3700 = vand.u32 %v2395, 2147483648
        %v3701 = vor.u32 1.1754944e-38, %v3700
        %v3702 = vsel %vm3699, %v3701, %v3697
        %v3703 = vmul.f32 1.0, %v3702
        %v3704 = vrcp.pop %v2396
        %v3705 = vmul.f32 %v2396, %v3704
        %v3706 = vsub.f32 1.0, %v3705
        %v3707 = vmul.f32 %v3704, %v3706
        %v3708 = vadd.f32 %v3704, %v3707
        %vm3709 = vweird.f32 %v2396
        %vm3710 = vweird.f32 %v3704
        %vm3711 = vmor %vm3709, %vm3710
        %v3712 = vsel %vm3711, %v3704, %v3708
        %v3713 = vand.u32 2147483647, %v2396
        %vm3714 = vcmp.eq.f32.partialorder %v3713, 8.507059e+37
        %v3715 = vand.u32 %v2396, 2147483648
        %v3716 = vor.u32 1.1754944e-38, %v3715
        %v3717 = vsel %vm3714, %v3716, %v3712
        %v3718 = vmul.f32 1.0, %v3717
        %v3719 = vrcp.pop %v2397
        %v3720 = vmul.f32 %v2397, %v3719
        %v3721 = vsub.f32 1.0, %v3720
        %v3722 = vmul.f32 %v3719, %v3721
        %v3723 = vadd.f32 %v3719, %v3722
        %vm3724 = vweird.f32 %v2397
        %vm3725 = vweird.f32 %v3719
        %vm3726 = vmor %vm3724, %vm3725
        %v3727 = vsel %vm3726, %v3719, %v3723
        %v3728 = vand.u32 2147483647, %v2397
        %vm3729 = vcmp.eq.f32.partialorder %v3728, 8.507059e+37
        %v3730 = vand.u32 %v2397, 2147483648
        %v3731 = vor.u32 1.1754944e-38, %v3730
        %v3732 = vsel %vm3729, %v3731, %v3727
        %v3733 = vmul.f32 1.0, %v3732
        %v3734 = vrcp.pop %v2398
        %v3735 = vmul.f32 %v2398, %v3734
        %v3736 = vsub.f32 1.0, %v3735
        %v3737 = vmul.f32 %v3734, %v3736
        %v3738 = vadd.f32 %v3734, %v3737
        %vm3739 = vweird.f32 %v2398
        %vm3740 = vweird.f32 %v3734
        %vm3741 = vmor %vm3739, %vm3740
        %v3742 = vsel %vm3741, %v3734, %v3738
        %v3743 = vand.u32 2147483647, %v2398
        %vm3744 = vcmp.eq.f32.partialorder %v3743, 8.507059e+37
        %v3745 = vand.u32 %v2398, 2147483648
        %v3746 = vor.u32 1.1754944e-38, %v3745
        %v3747 = vsel %vm3744, %v3746, %v3742
        %v3748 = vmul.f32 1.0, %v3747
        %v3749 = vrcp.pop %v2399
        %v3750 = vmul.f32 %v2399, %v3749
        %v3751 = vsub.f32 1.0, %v3750
        %v3752 = vmul.f32 %v3749, %v3751
        %v3753 = vadd.f32 %v3749, %v3752
        %vm3754 = vweird.f32 %v2399
        %vm3755 = vweird.f32 %v3749
        %vm3756 = vmor %vm3754, %vm3755
        %v3757 = vsel %vm3756, %v3749, %v3753
        %v3758 = vand.u32 2147483647, %v2399
        %vm3759 = vcmp.eq.f32.partialorder %v3758, 8.507059e+37
        %v3760 = vand.u32 %v2399, 2147483648
        %v3761 = vor.u32 1.1754944e-38, %v3760
        %v3762 = vsel %vm3759, %v3761, %v3757
        %v3763 = vmul.f32 1.0, %v3762
        %v3764 = vrcp.pop %v2400
        %v3765 = vmul.f32 %v2400, %v3764
        %v3766 = vsub.f32 1.0, %v3765
        %v3767 = vmul.f32 %v3764, %v3766
        %v3768 = vadd.f32 %v3764, %v3767
        %vm3769 = vweird.f32 %v2400
        %vm3770 = vweird.f32 %v3764
        %vm3771 = vmor %vm3769, %vm3770
        %v3772 = vsel %vm3771, %v3764, %v3768
        %v3773 = vand.u32 2147483647, %v2400
        %vm3774 = vcmp.eq.f32.partialorder %v3773, 8.507059e+37
        %v3775 = vand.u32 %v2400, 2147483648
        %v3776 = vor.u32 1.1754944e-38, %v3775
        %v3777 = vsel %vm3774, %v3776, %v3772
        %v3778 = vmul.f32 1.0, %v3777
        %v3779 = vrcp.pop %v2401
        %v3780 = vmul.f32 %v2401, %v3779
        %v3781 = vsub.f32 1.0, %v3780
        %v3782 = vmul.f32 %v3779, %v3781
        %v3783 = vadd.f32 %v3779, %v3782
        %vm3784 = vweird.f32 %v2401
        %vm3785 = vweird.f32 %v3779
        %vm3786 = vmor %vm3784, %vm3785
        %v3787 = vsel %vm3786, %v3779, %v3783
        %v3788 = vand.u32 2147483647, %v2401
        %vm3789 = vcmp.eq.f32.partialorder %v3788, 8.507059e+37
        %v3790 = vand.u32 %v2401, 2147483648
        %v3791 = vor.u32 1.1754944e-38, %v3790
        %v3792 = vsel %vm3789, %v3791, %v3787
        %v3793 = vmul.f32 1.0, %v3792
        %v3794 = vrcp.pop %v2402
        %v3795 = vmul.f32 %v2402, %v3794
        %v3796 = vsub.f32 1.0, %v3795
        %v3797 = vmul.f32 %v3794, %v3796
        %v3798 = vadd.f32 %v3794, %v3797
        %vm3799 = vweird.f32 %v2402
        %vm3800 = vweird.f32 %v3794
        %vm3801 = vmor %vm3799, %vm3800
        %v3802 = vsel %vm3801, %v3794, %v3798
        %v3803 = vand.u32 2147483647, %v2402
        %vm3804 = vcmp.eq.f32.partialorder %v3803, 8.507059e+37
        %v3805 = vand.u32 %v2402, 2147483648
        %v3806 = vor.u32 1.1754944e-38, %v3805
        %v3807 = vsel %vm3804, %v3806, %v3802
        %v3808 = vmul.f32 1.0, %v3807
        %v3809 = vrcp.pop %v2403
        %v3810 = vmul.f32 %v2403, %v3809
        %v3811 = vsub.f32 1.0, %v3810
        %v3812 = vmul.f32 %v3809, %v3811
        %v3813 = vadd.f32 %v3809, %v3812
        %vm3814 = vweird.f32 %v2403
        %vm3815 = vweird.f32 %v3809
        %vm3816 = vmor %vm3814, %vm3815
        %v3817 = vsel %vm3816, %v3809, %v3813
        %v3818 = vand.u32 2147483647, %v2403
        %vm3819 = vcmp.eq.f32.partialorder %v3818, 8.507059e+37
        %v3820 = vand.u32 %v2403, 2147483648
        %v3821 = vor.u32 1.1754944e-38, %v3820
        %v3822 = vsel %vm3819, %v3821, %v3817
        %v3823 = vmul.f32 1.0, %v3822
        %v3824 = vrcp.pop %v2404
        %v3825 = vmul.f32 %v2404, %v3824
        %v3826 = vsub.f32 1.0, %v3825
        %v3827 = vmul.f32 %v3824, %v3826
        %v3828 = vadd.f32 %v3824, %v3827
        %vm3829 = vweird.f32 %v2404
        %vm3830 = vweird.f32 %v3824
        %vm3831 = vmor %vm3829, %vm3830
        %v3832 = vsel %vm3831, %v3824, %v3828
        %v3833 = vand.u32 2147483647, %v2404
        %vm3834 = vcmp.eq.f32.partialorder %v3833, 8.507059e+37
        %v3835 = vand.u32 %v2404, 2147483648
        %v3836 = vor.u32 1.1754944e-38, %v3835
        %v3837 = vsel %vm3834, %v3836, %v3832
        %v3838 = vmul.f32 1.0, %v3837
        %v3839 = vrcp.pop %v2405
        %v3840 = vmul.f32 %v2405, %v3839
        %v3841 = vsub.f32 1.0, %v3840
        %v3842 = vmul.f32 %v3839, %v3841
        %v3843 = vadd.f32 %v3839, %v3842
        %vm3844 = vweird.f32 %v2405
        %vm3845 = vweird.f32 %v3839
        %vm3846 = vmor %vm3844, %vm3845
        %v3847 = vsel %vm3846, %v3839, %v3843
        %v3848 = vand.u32 2147483647, %v2405
        %vm3849 = vcmp.eq.f32.partialorder %v3848, 8.507059e+37
        %v3850 = vand.u32 %v2405, 2147483648
        %v3851 = vor.u32 1.1754944e-38, %v3850
        %v3852 = vsel %vm3849, %v3851, %v3847
        %v3853 = vmul.f32 1.0, %v3852
        %v3854 = vrcp.pop %v2406
        %v3855 = vmul.f32 %v2406, %v3854
        %v3856 = vsub.f32 1.0, %v3855
        %v3857 = vmul.f32 %v3854, %v3856
        %v3858 = vadd.f32 %v3854, %v3857
        %vm3859 = vweird.f32 %v2406
        %vm3860 = vweird.f32 %v3854
        %vm3861 = vmor %vm3859, %vm3860
        %v3862 = vsel %vm3861, %v3854, %v3858
        %v3863 = vand.u32 2147483647, %v2406
        %vm3864 = vcmp.eq.f32.partialorder %v3863, 8.507059e+37
        %v3865 = vand.u32 %v2406, 2147483648
        %v3866 = vor.u32 1.1754944e-38, %v3865
        %v3867 = vsel %vm3864, %v3866, %v3862
        %v3868 = vmul.f32 1.0, %v3867
        %v3869 = vrcp.pop %v2407
        %v3870 = vmul.f32 %v2407, %v3869
        %v3871 = vsub.f32 1.0, %v3870
        %v3872 = vmul.f32 %v3869, %v3871
        %v3873 = vadd.f32 %v3869, %v3872
        %vm3874 = vweird.f32 %v2407
        %vm3875 = vweird.f32 %v3869
        %vm3876 = vmor %vm3874, %vm3875
        %v3877 = vsel %vm3876, %v3869, %v3873
        %v3878 = vand.u32 2147483647, %v2407
        %vm3879 = vcmp.eq.f32.partialorder %v3878, 8.507059e+37
        %v3880 = vand.u32 %v2407, 2147483648
        %v3881 = vor.u32 1.1754944e-38, %v3880
        %v3882 = vsel %vm3879, %v3881, %v3877
        %v3883 = vmul.f32 1.0, %v3882
        %v3884 = vrcp.pop %v2408
        %v3885 = vmul.f32 %v2408, %v3884
        %v3886 = vsub.f32 1.0, %v3885
        %v3887 = vmul.f32 %v3884, %v3886
        %v3888 = vadd.f32 %v3884, %v3887
        %vm3889 = vweird.f32 %v2408
        %vm3890 = vweird.f32 %v3884
        %vm3891 = vmor %vm3889, %vm3890
        %v3892 = vsel %vm3891, %v3884, %v3888
        %v3893 = vand.u32 2147483647, %v2408
        %vm3894 = vcmp.eq.f32.partialorder %v3893, 8.507059e+37
        %v3895 = vand.u32 %v2408, 2147483648
        %v3896 = vor.u32 1.1754944e-38, %v3895
        %v3897 = vsel %vm3894, %v3896, %v3892
        %v3898 = vmul.f32 1.0, %v3897
        %v3899 = vrcp.pop %v2409
        %v3900 = vmul.f32 %v2409, %v3899
        %v3901 = vsub.f32 1.0, %v3900
        %v3902 = vmul.f32 %v3899, %v3901
        %v3903 = vadd.f32 %v3899, %v3902
        %vm3904 = vweird.f32 %v2409
        %vm3905 = vweird.f32 %v3899
        %vm3906 = vmor %vm3904, %vm3905
        %v3907 = vsel %vm3906, %v3899, %v3903
        %v3908 = vand.u32 2147483647, %v2409
        %vm3909 = vcmp.eq.f32.partialorder %v3908, 8.507059e+37
        %v3910 = vand.u32 %v2409, 2147483648
        %v3911 = vor.u32 1.1754944e-38, %v3910
        %v3912 = vsel %vm3909, %v3911, %v3907
        %v3913 = vmul.f32 1.0, %v3912
        %v3914 = vrcp.pop %v2410
        %v3915 = vmul.f32 %v2410, %v3914
        %v3916 = vsub.f32 1.0, %v3915
        %v3917 = vmul.f32 %v3914, %v3916
        %v3918 = vadd.f32 %v3914, %v3917
        %vm3919 = vweird.f32 %v2410
        %vm3920 = vweird.f32 %v3914
        %vm3921 = vmor %vm3919, %vm3920
        %v3922 = vsel %vm3921, %v3914, %v3918
        %v3923 = vand.u32 2147483647, %v2410
        %vm3924 = vcmp.eq.f32.partialorder %v3923, 8.507059e+37
        %v3925 = vand.u32 %v2410, 2147483648
        %v3926 = vor.u32 1.1754944e-38, %v3925
        %v3927 = vsel %vm3924, %v3926, %v3922
        %v3928 = vmul.f32 1.0, %v3927
        %v3929 = vrcp.pop %v2411
        %v3930 = vmul.f32 %v2411, %v3929
        %v3931 = vsub.f32 1.0, %v3930
        %v3932 = vmul.f32 %v3929, %v3931
        %v3933 = vadd.f32 %v3929, %v3932
        %vm3934 = vweird.f32 %v2411
        %vm3935 = vweird.f32 %v3929
        %vm3936 = vmor %vm3934, %vm3935
        %v3937 = vsel %vm3936, %v3929, %v3933
        %v3938 = vand.u32 2147483647, %v2411
        %vm3939 = vcmp.eq.f32.partialorder %v3938, 8.507059e+37
        %v3940 = vand.u32 %v2411, 2147483648
        %v3941 = vor.u32 1.1754944e-38, %v3940
        %v3942 = vsel %vm3939, %v3941, %v3937
        %v3943 = vmul.f32 1.0, %v3942
        %v3944 = vrcp.pop %v2412
        %v3945 = vmul.f32 %v2412, %v3944
        %v3946 = vsub.f32 1.0, %v3945
        %v3947 = vmul.f32 %v3944, %v3946
        %v3948 = vadd.f32 %v3944, %v3947
        %vm3949 = vweird.f32 %v2412
        %vm3950 = vweird.f32 %v3944
        %vm3951 = vmor %vm3949, %vm3950
        %v3952 = vsel %vm3951, %v3944, %v3948
        %v3953 = vand.u32 2147483647, %v2412
        %vm3954 = vcmp.eq.f32.partialorder %v3953, 8.507059e+37
        %v3955 = vand.u32 %v2412, 2147483648
        %v3956 = vor.u32 1.1754944e-38, %v3955
        %v3957 = vsel %vm3954, %v3956, %v3952
        %v3958 = vmul.f32 1.0, %v3957
        %v3959 = vrcp.pop %v2413
        %v3960 = vmul.f32 %v2413, %v3959
        %v3961 = vsub.f32 1.0, %v3960
        %v3962 = vmul.f32 %v3959, %v3961
        %v3963 = vadd.f32 %v3959, %v3962
        %vm3964 = vweird.f32 %v2413
        %vm3965 = vweird.f32 %v3959
        %vm3966 = vmor %vm3964, %vm3965
        %v3967 = vsel %vm3966, %v3959, %v3963
        %v3968 = vand.u32 2147483647, %v2413
        %vm3969 = vcmp.eq.f32.partialorder %v3968, 8.507059e+37
        %v3970 = vand.u32 %v2413, 2147483648
        %v3971 = vor.u32 1.1754944e-38, %v3970
        %v3972 = vsel %vm3969, %v3971, %v3967
        %v3973 = vmul.f32 1.0, %v3972
        %v3974 = vmul.f32 %v2428, 1.0614054
        %v3975 = vmul.f32 %v2443, 1.0614054
        %v3976 = vmul.f32 %v2458, 1.0614054
        %v3977 = vmul.f32 %v2473, 1.0614054
        %v3978 = vmul.f32 %v2488, 1.0614054
        %v3979 = vmul.f32 %v2503, 1.0614054
        %v3980 = vmul.f32 %v2518, 1.0614054
        %v3981 = vmul.f32 %v2533, 1.0614054
        %v3982 = vmul.f32 %v2548, 1.0614054
        %v3983 = vmul.f32 %v2563, 1.0614054
        %v3984 = vmul.f32 %v2578, 1.0614054
        %v3985 = vmul.f32 %v2593, 1.0614054
        %v3986 = vmul.f32 %v2608, 1.0614054
        %v3987 = vmul.f32 %v2623, 1.0614054
        %v3988 = vmul.f32 %v2638, 1.0614054
        %v3989 = vmul.f32 %v2653, 1.0614054
        %v3990 = vmul.f32 %v2668, 1.0614054
        %v3991 = vmul.f32 %v2683, 1.0614054
        %v3992 = vmul.f32 %v2698, 1.0614054
        %v3993 = vmul.f32 %v2713, 1.0614054
        %v3994 = vmul.f32 %v2728, 1.0614054
        %v3995 = vmul.f32 %v2743, 1.0614054
        %v3996 = vmul.f32 %v2758, 1.0614054
        %v3997 = vmul.f32 %v2773, 1.0614054
        %v3998 = vmul.f32 %v2788, 1.0614054
        %v3999 = vmul.f32 %v2803, 1.0614054
        %v4000 = vmul.f32 %v2818, 1.0614054
        %v4001 = vmul.f32 %v2833, 1.0614054
        %v4002 = vmul.f32 %v2848, 1.0614054
        %v4003 = vmul.f32 %v2863, 1.0614054
        %v4004 = vmul.f32 %v2878, 1.0614054
        %v4005 = vmul.f32 %v2893, 1.0614054
        %v4006 = vmul.f32 %v2908, 1.0614054
        %v4007 = vmul.f32 %v2923, 1.0614054
        %v4008 = vmul.f32 %v2938, 1.0614054
        %v4009 = vmul.f32 %v2953, 1.0614054
        %v4010 = vmul.f32 %v2968, 1.0614054
        %v4011 = vmul.f32 %v2983, 1.0614054
        %v4012 = vmul.f32 %v2998, 1.0614054
        %v4013 = vmul.f32 %v3013, 1.0614054
        %v4014 = vmul.f32 %v3028, 1.0614054
        %v4015 = vmul.f32 %v3043, 1.0614054
        %v4016 = vmul.f32 %v3058, 1.0614054
        %v4017 = vmul.f32 %v3073, 1.0614054
        %v4018 = vmul.f32 %v3088, 1.0614054
        %v4019 = vmul.f32 %v3103, 1.0614054
        %v4020 = vmul.f32 %v3118, 1.0614054
        %v4021 = vmul.f32 %v3133, 1.0614054
        %v4022 = vmul.f32 %v3148, 1.0614054
        %v4023 = vmul.f32 %v3163, 1.0614054
        %v4024 = vmul.f32 %v3178, 1.0614054
        %v4025 = vmul.f32 %v3193, 1.0614054
        %v4026 = vmul.f32 %v3208, 1.0614054
        %v4027 = vmul.f32 %v3223, 1.0614054
        %v4028 = vmul.f32 %v3238, 1.0614054
        %v4029 = vmul.f32 %v3253, 1.0614054
        %v4030 = vmul.f32 %v3268, 1.0614054
        %v4031 = vmul.f32 %v3283, 1.0614054
        %v4032 = vmul.f32 %v3298, 1.0614054
        %v4033 = vmul.f32 %v3313, 1.0614054
        %v4034 = vmul.f32 %v3328, 1.0614054
        %v4035 = vmul.f32 %v3343, 1.0614054
        %v4036 = vmul.f32 %v3358, 1.0614054
        %v4037 = vmul.f32 %v3373, 1.0614054
        %v4038 = vmul.f32 %v3388, 1.0614054
        %v4039 = vmul.f32 %v3403, 1.0614054
        %v4040 = vmul.f32 %v3418, 1.0614054
        %v4041 = vmul.f32 %v3433, 1.0614054
        %v4042 = vmul.f32 %v3448, 1.0614054
        %v4043 = vmul.f32 %v3463, 1.0614054
        %v4044 = vmul.f32 %v3478, 1.0614054
        %v4045 = vmul.f32 %v3493, 1.0614054
        %v4046 = vmul.f32 %v3508, 1.0614054
        %v4047 = vmul.f32 %v3523, 1.0614054
        %v4048 = vmul.f32 %v3538, 1.0614054
        %v4049 = vmul.f32 %v3553, 1.0614054
        %v4050 = vmul.f32 %v3568, 1.0614054
        %v4051 = vmul.f32 %v3583, 1.0614054
        %v4052 = vmul.f32 %v3598, 1.0614054
        %v4053 = vmul.f32 %v3613, 1.0614054
        %v4054 = vmul.f32 %v3628, 1.0614054
        %v4055 = vmul.f32 %v3643, 1.0614054
        %v4056 = vmul.f32 %v3658, 1.0614054
        %v4057 = vmul.f32 %v3673, 1.0614054
        %v4058 = vmul.f32 %v3688, 1.0614054
        %v4059 = vmul.f32 %v3703, 1.0614054
        %v4060 = vmul.f32 %v3718, 1.0614054
        %v4061 = vmul.f32 %v3733, 1.0614054
        %v4062 = vmul.f32 %v3748, 1.0614054
        %v4063 = vmul.f32 %v3763, 1.0614054
        %v4064 = vmul.f32 %v3778, 1.0614054
        %v4065 = vmul.f32 %v3793, 1.0614054
        %v4066 = vmul.f32 %v3808, 1.0614054
        %v4067 = vmul.f32 %v3823, 1.0614054
        %v4068 = vmul.f32 %v3838, 1.0614054
        %v4069 = vmul.f32 %v3853, 1.0614054
        %v4070 = vmul.f32 %v3868, 1.0614054
        %v4071 = vmul.f32 %v3883, 1.0614054
        %v4072 = vmul.f32 %v3898, 1.0614054
        %v4073 = vmul.f32 %v3913, 1.0614054
        %v4074 = vmul.f32 %v3928, 1.0614054
        %v4075 = vmul.f32 %v3943, 1.0614054
        %v4076 = vmul.f32 %v3958, 1.0614054
        %v4077 = vmul.f32 %v3973, 1.0614054
        %v4078 = vadd.f32 %v3974, -1.4531521
        %v4079 = vadd.f32 %v3975, -1.4531521
        %v4080 = vadd.f32 %v3976, -1.4531521
        %v4081 = vadd.f32 %v3977, -1.4531521
        %v4082 = vadd.f32 %v3978, -1.4531521
        %v4083 = vadd.f32 %v3979, -1.4531521
        %v4084 = vadd.f32 %v3980, -1.4531521
        %v4085 = vadd.f32 %v3981, -1.4531521
        %v4086 = vadd.f32 %v3982, -1.4531521
        %v4087 = vadd.f32 %v3983, -1.4531521
        %v4088 = vadd.f32 %v3984, -1.4531521
        %v4089 = vadd.f32 %v3985, -1.4531521
        %v4090 = vadd.f32 %v3986, -1.4531521
        %v4091 = vadd.f32 %v3987, -1.4531521
        %v4092 = vadd.f32 %v3988, -1.4531521
        %v4093 = vadd.f32 %v3989, -1.4531521
        %v4094 = vadd.f32 %v3990, -1.4531521
        %v4095 = vadd.f32 %v3991, -1.4531521
        %v4096 = vadd.f32 %v3992, -1.4531521
        %v4097 = vadd.f32 %v3993, -1.4531521
        %v4098 = vadd.f32 %v3994, -1.4531521
        %v4099 = vadd.f32 %v3995, -1.4531521
        %v4100 = vadd.f32 %v3996, -1.4531521
        %v4101 = vadd.f32 %v3997, -1.4531521
        %v4102 = vadd.f32 %v3998, -1.4531521
        %v4103 = vadd.f32 %v3999, -1.4531521
        %v4104 = vadd.f32 %v4000, -1.4531521
        %v4105 = vadd.f32 %v4001, -1.4531521
        %v4106 = vadd.f32 %v4002, -1.4531521
        %v4107 = vadd.f32 %v4003, -1.4531521
        %v4108 = vadd.f32 %v4004, -1.4531521
        %v4109 = vadd.f32 %v4005, -1.4531521
        %v4110 = vadd.f32 %v4006, -1.4531521
        %v4111 = vadd.f32 %v4007, -1.4531521
        %v4112 = vadd.f32 %v4008, -1.4531521
        %v4113 = vadd.f32 %v4009, -1.4531521
        %v4114 = vadd.f32 %v4010, -1.4531521
        %v4115 = vadd.f32 %v4011, -1.4531521
        %v4116 = vadd.f32 %v4012, -1.4531521
        %v4117 = vadd.f32 %v4013, -1.4531521
        %v4118 = vadd.f32 %v4014, -1.4531521
        %v4119 = vadd.f32 %v4015, -1.4531521
        %v4120 = vadd.f32 %v4016, -1.4531521
        %v4121 = vadd.f32 %v4017, -1.4531521
        %v4122 = vadd.f32 %v4018, -1.4531521
        %v4123 = vadd.f32 %v4019, -1.4531521
        %v4124 = vadd.f32 %v4020, -1.4531521
        %v4125 = vadd.f32 %v4021, -1.4531521
        %v4126 = vadd.f32 %v4022, -1.4531521
        %v4127 = vadd.f32 %v4023, -1.4531521
        %v4128 = vadd.f32 %v4024, -1.4531521
        %v4129 = vadd.f32 %v4025, -1.4531521
        %v4130 = vadd.f32 %v4026, -1.4531521
        %v4131 = vadd.f32 %v4027, -1.4531521
        %v4132 = vadd.f32 %v4028, -1.4531521
        %v4133 = vadd.f32 %v4029, -1.4531521
        %v4134 = vadd.f32 %v4030, -1.4531521
        %v4135 = vadd.f32 %v4031, -1.4531521
        %v4136 = vadd.f32 %v4032, -1.4531521
        %v4137 = vadd.f32 %v4033, -1.4531521
        %v4138 = vadd.f32 %v4034, -1.4531521
        %v4139 = vadd.f32 %v4035, -1.4531521
        %v4140 = vadd.f32 %v4036, -1.4531521
        %v4141 = vadd.f32 %v4037, -1.4531521
        %v4142 = vadd.f32 %v4038, -1.4531521
        %v4143 = vadd.f32 %v4039, -1.4531521
        %v4144 = vadd.f32 %v4040, -1.4531521
        %v4145 = vadd.f32 %v4041, -1.4531521
        %v4146 = vadd.f32 %v4042, -1.4531521
        %v4147 = vadd.f32 %v4043, -1.4531521
        %v4148 = vadd.f32 %v4044, -1.4531521
        %v4149 = vadd.f32 %v4045, -1.4531521
        %v4150 = vadd.f32 %v4046, -1.4531521
        %v4151 = vadd.f32 %v4047, -1.4531521
        %v4152 = vadd.f32 %v4048, -1.4531521
        %v4153 = vadd.f32 %v4049, -1.4531521
        %v4154 = vadd.f32 %v4050, -1.4531521
        %v4155 = vadd.f32 %v4051, -1.4531521
        %v4156 = vadd.f32 %v4052, -1.4531521
        %v4157 = vadd.f32 %v4053, -1.4531521
        %v4158 = vadd.f32 %v4054, -1.4531521
        %v4159 = vadd.f32 %v4055, -1.4531521
        %v4160 = vadd.f32 %v4056, -1.4531521
        %v4161 = vadd.f32 %v4057, -1.4531521
        %v4162 = vadd.f32 %v4058, -1.4531521
        %v4163 = vadd.f32 %v4059, -1.4531521
        %v4164 = vadd.f32 %v4060, -1.4531521
        %v4165 = vadd.f32 %v4061, -1.4531521
        %v4166 = vadd.f32 %v4062, -1.4531521
        %v4167 = vadd.f32 %v4063, -1.4531521
        %v4168 = vadd.f32 %v4064, -1.4531521
        %v4169 = vadd.f32 %v4065, -1.4531521
        %v4170 = vadd.f32 %v4066, -1.4531521
        %v4171 = vadd.f32 %v4067, -1.4531521
        %v4172 = vadd.f32 %v4068, -1.4531521
        %v4173 = vadd.f32 %v4069, -1.4531521
        %v4174 = vadd.f32 %v4070, -1.4531521
        %v4175 = vadd.f32 %v4071, -1.4531521
        %v4176 = vadd.f32 %v4072, -1.4531521
        %v4177 = vadd.f32 %v4073, -1.4531521
        %v4178 = vadd.f32 %v4074, -1.4531521
        %v4179 = vadd.f32 %v4075, -1.4531521
        %v4180 = vadd.f32 %v4076, -1.4531521
        %v4181 = vadd.f32 %v4077, -1.4531521
        %v4182 = vmul.f32 %v2428, %v4078
        %v4183 = vmul.f32 %v2443, %v4079
        %v4184 = vmul.f32 %v2458, %v4080
        %v4185 = vmul.f32 %v2473, %v4081
        %v4186 = vmul.f32 %v2488, %v4082
        %v4187 = vmul.f32 %v2503, %v4083
        %v4188 = vmul.f32 %v2518, %v4084
        %v4189 = vmul.f32 %v2533, %v4085
        %v4190 = vmul.f32 %v2548, %v4086
        %v4191 = vmul.f32 %v2563, %v4087
        %v4192 = vmul.f32 %v2578, %v4088
        %v4193 = vmul.f32 %v2593, %v4089
        %v4194 = vmul.f32 %v2608, %v4090
        %v4195 = vmul.f32 %v2623, %v4091
        %v4196 = vmul.f32 %v2638, %v4092
        %v4197 = vmul.f32 %v2653, %v4093
        %v4198 = vmul.f32 %v2668, %v4094
        %v4199 = vmul.f32 %v2683, %v4095
        %v4200 = vmul.f32 %v2698, %v4096
        %v4201 = vmul.f32 %v2713, %v4097
        %v4202 = vmul.f32 %v2728, %v4098
        %v4203 = vmul.f32 %v2743, %v4099
        %v4204 = vmul.f32 %v2758, %v4100
        %v4205 = vmul.f32 %v2773, %v4101
        %v4206 = vmul.f32 %v2788, %v4102
        %v4207 = vmul.f32 %v2803, %v4103
        %v4208 = vmul.f32 %v2818, %v4104
        %v4209 = vmul.f32 %v2833, %v4105
        %v4210 = vmul.f32 %v2848, %v4106
        %v4211 = vmul.f32 %v2863, %v4107
        %v4212 = vmul.f32 %v2878, %v4108
        %v4213 = vmul.f32 %v2893, %v4109
        %v4214 = vmul.f32 %v2908, %v4110
        %v4215 = vmul.f32 %v2923, %v4111
        %v4216 = vmul.f32 %v2938, %v4112
        %v4217 = vmul.f32 %v2953, %v4113
        %v4218 = vmul.f32 %v2968, %v4114
        %v4219 = vmul.f32 %v2983, %v4115
        %v4220 = vmul.f32 %v2998, %v4116
        %v4221 = vmul.f32 %v3013, %v4117
        %v4222 = vmul.f32 %v3028, %v4118
        %v4223 = vmul.f32 %v3043, %v4119
        %v4224 = vmul.f32 %v3058, %v4120
        %v4225 = vmul.f32 %v3073, %v4121
        %v4226 = vmul.f32 %v3088, %v4122
        %v4227 = vmul.f32 %v3103, %v4123
        %v4228 = vmul.f32 %v3118, %v4124
        %v4229 = vmul.f32 %v3133, %v4125
        %v4230 = vmul.f32 %v3148, %v4126
        %v4231 = vmul.f32 %v3163, %v4127
        %v4232 = vmul.f32 %v3178, %v4128
        %v4233 = vmul.f32 %v3193, %v4129
        %v4234 = vmul.f32 %v3208, %v4130
        %v4235 = vmul.f32 %v3223, %v4131
        %v4236 = vmul.f32 %v3238, %v4132
        %v4237 = vmul.f32 %v3253, %v4133
        %v4238 = vmul.f32 %v3268, %v4134
        %v4239 = vmul.f32 %v3283, %v4135
        %v4240 = vmul.f32 %v3298, %v4136
        %v4241 = vmul.f32 %v3313, %v4137
        %v4242 = vmul.f32 %v3328, %v4138
        %v4243 = vmul.f32 %v3343, %v4139
        %v4244 = vmul.f32 %v3358, %v4140
        %v4245 = vmul.f32 %v3373, %v4141
        %v4246 = vmul.f32 %v3388, %v4142
        %v4247 = vmul.f32 %v3403, %v4143
        %v4248 = vmul.f32 %v3418, %v4144
        %v4249 = vmul.f32 %v3433, %v4145
        %v4250 = vmul.f32 %v3448, %v4146
        %v4251 = vmul.f32 %v3463, %v4147
        %v4252 = vmul.f32 %v3478, %v4148
        %v4253 = vmul.f32 %v3493, %v4149
        %v4254 = vmul.f32 %v3508, %v4150
        %v4255 = vmul.f32 %v3523, %v4151
        %v4256 = vmul.f32 %v3538, %v4152
        %v4257 = vmul.f32 %v3553, %v4153
        %v4258 = vmul.f32 %v3568, %v4154
        %v4259 = vmul.f32 %v3583, %v4155
        %v4260 = vmul.f32 %v3598, %v4156
        %v4261 = vmul.f32 %v3613, %v4157
        %v4262 = vmul.f32 %v3628, %v4158
        %v4263 = vmul.f32 %v3643, %v4159
        %v4264 = vmul.f32 %v3658, %v4160
        %v4265 = vmul.f32 %v3673, %v4161
        %v4266 = vmul.f32 %v3688, %v4162
        %v4267 = vmul.f32 %v3703, %v4163
        %v4268 = vmul.f32 %v3718, %v4164
        %v4269 = vmul.f32 %v3733, %v4165
        %v4270 = vmul.f32 %v3748, %v4166
        %v4271 = vmul.f32 %v3763, %v4167
        %v4272 = vmul.f32 %v3778, %v4168
        %v4273 = vmul.f32 %v3793, %v4169
        %v4274 = vmul.f32 %v3808, %v4170
        %v4275 = vmul.f32 %v3823, %v4171
        %v4276 = vmul.f32 %v3838, %v4172
        %v4277 = vmul.f32 %v3853, %v4173
        %v4278 = vmul.f32 %v3868, %v4174
        %v4279 = vmul.f32 %v3883, %v4175
        %v4280 = vmul.f32 %v3898, %v4176
        %v4281 = vmul.f32 %v3913, %v4177
        %v4282 = vmul.f32 %v3928, %v4178
        %v4283 = vmul.f32 %v3943, %v4179
        %v4284 = vmul.f32 %v3958, %v4180
        %v4285 = vmul.f32 %v3973, %v4181
        %v4286 = vadd.f32 %v4182, 1.4214138
        %v4287 = vadd.f32 %v4183, 1.4214138
        %v4288 = vadd.f32 %v4184, 1.4214138
        %v4289 = vadd.f32 %v4185, 1.4214138
        %v4290 = vadd.f32 %v4186, 1.4214138
        %v4291 = vadd.f32 %v4187, 1.4214138
        %v4292 = vadd.f32 %v4188, 1.4214138
        %v4293 = vadd.f32 %v4189, 1.4214138
        %v4294 = vadd.f32 %v4190, 1.4214138
        %v4295 = vadd.f32 %v4191, 1.4214138
        %v4296 = vadd.f32 %v4192, 1.4214138
        %v4297 = vadd.f32 %v4193, 1.4214138
        %v4298 = vadd.f32 %v4194, 1.4214138
        %v4299 = vadd.f32 %v4195, 1.4214138
        %v4300 = vadd.f32 %v4196, 1.4214138
        %v4301 = vadd.f32 %v4197, 1.4214138
        %v4302 = vadd.f32 %v4198, 1.4214138
        %v4303 = vadd.f32 %v4199, 1.4214138
        %v4304 = vadd.f32 %v4200, 1.4214138
        %v4305 = vadd.f32 %v4201, 1.4214138
        %v4306 = vadd.f32 %v4202, 1.4214138
        %v4307 = vadd.f32 %v4203, 1.4214138
        %v4308 = vadd.f32 %v4204, 1.4214138
        %v4309 = vadd.f32 %v4205, 1.4214138
        %v4310 = vadd.f32 %v4206, 1.4214138
        %v4311 = vadd.f32 %v4207, 1.4214138
        %v4312 = vadd.f32 %v4208, 1.4214138
        %v4313 = vadd.f32 %v4209, 1.4214138
        %v4314 = vadd.f32 %v4210, 1.4214138
        %v4315 = vadd.f32 %v4211, 1.4214138
        %v4316 = vadd.f32 %v4212, 1.4214138
        %v4317 = vadd.f32 %v4213, 1.4214138
        %v4318 = vadd.f32 %v4214, 1.4214138
        %v4319 = vadd.f32 %v4215, 1.4214138
        %v4320 = vadd.f32 %v4216, 1.4214138
        %v4321 = vadd.f32 %v4217, 1.4214138
        %v4322 = vadd.f32 %v4218, 1.4214138
        %v4323 = vadd.f32 %v4219, 1.4214138
        %v4324 = vadd.f32 %v4220, 1.4214138
        %v4325 = vadd.f32 %v4221, 1.4214138
        %v4326 = vadd.f32 %v4222, 1.4214138
        %v4327 = vadd.f32 %v4223, 1.4214138
        %v4328 = vadd.f32 %v4224, 1.4214138
        %v4329 = vadd.f32 %v4225, 1.4214138
        %v4330 = vadd.f32 %v4226, 1.4214138
        %v4331 = vadd.f32 %v4227, 1.4214138
        %v4332 = vadd.f32 %v4228, 1.4214138
        %v4333 = vadd.f32 %v4229, 1.4214138
        %v4334 = vadd.f32 %v4230, 1.4214138
        %v4335 = vadd.f32 %v4231, 1.4214138
        %v4336 = vadd.f32 %v4232, 1.4214138
        %v4337 = vadd.f32 %v4233, 1.4214138
        %v4338 = vadd.f32 %v4234, 1.4214138
        %v4339 = vadd.f32 %v4235, 1.4214138
        %v4340 = vadd.f32 %v4236, 1.4214138
        %v4341 = vadd.f32 %v4237, 1.4214138
        %v4342 = vadd.f32 %v4238, 1.4214138
        %v4343 = vadd.f32 %v4239, 1.4214138
        %v4344 = vadd.f32 %v4240, 1.4214138
        %v4345 = vadd.f32 %v4241, 1.4214138
        %v4346 = vadd.f32 %v4242, 1.4214138
        %v4347 = vadd.f32 %v4243, 1.4214138
        %v4348 = vadd.f32 %v4244, 1.4214138
        %v4349 = vadd.f32 %v4245, 1.4214138
        %v4350 = vadd.f32 %v4246, 1.4214138
        %v4351 = vadd.f32 %v4247, 1.4214138
        %v4352 = vadd.f32 %v4248, 1.4214138
        %v4353 = vadd.f32 %v4249, 1.4214138
        %v4354 = vadd.f32 %v4250, 1.4214138
        %v4355 = vadd.f32 %v4251, 1.4214138
        %v4356 = vadd.f32 %v4252, 1.4214138
        %v4357 = vadd.f32 %v4253, 1.4214138
        %v4358 = vadd.f32 %v4254, 1.4214138
        %v4359 = vadd.f32 %v4255, 1.4214138
        %v4360 = vadd.f32 %v4256, 1.4214138
        %v4361 = vadd.f32 %v4257, 1.4214138
        %v4362 = vadd.f32 %v4258, 1.4214138
        %v4363 = vadd.f32 %v4259, 1.4214138
        %v4364 = vadd.f32 %v4260, 1.4214138
        %v4365 = vadd.f32 %v4261, 1.4214138
        %v4366 = vadd.f32 %v4262, 1.4214138
        %v4367 = vadd.f32 %v4263, 1.4214138
        %v4368 = vadd.f32 %v4264, 1.4214138
        %v4369 = vadd.f32 %v4265, 1.4214138
        %v4370 = vadd.f32 %v4266, 1.4214138
        %v4371 = vadd.f32 %v4267, 1.4214138
        %v4372 = vadd.f32 %v4268, 1.4214138
        %v4373 = vadd.f32 %v4269, 1.4214138
        %v4374 = vadd.f32 %v4270, 1.4214138
        %v4375 = vadd.f32 %v4271, 1.4214138
        %v4376 = vadd.f32 %v4272, 1.4214138
        %v4377 = vadd.f32 %v4273, 1.4214138
        %v4378 = vadd.f32 %v4274, 1.4214138
        %v4379 = vadd.f32 %v4275, 1.4214138
        %v4380 = vadd.f32 %v4276, 1.4214138
        %v4381 = vadd.f32 %v4277, 1.4214138
        %v4382 = vadd.f32 %v4278, 1.4214138
        %v4383 = vadd.f32 %v4279, 1.4214138
        %v4384 = vadd.f32 %v4280, 1.4214138
        %v4385 = vadd.f32 %v4281, 1.4214138
        %v4386 = vadd.f32 %v4282, 1.4214138
        %v4387 = vadd.f32 %v4283, 1.4214138
        %v4388 = vadd.f32 %v4284, 1.4214138
        %v4389 = vadd.f32 %v4285, 1.4214138
        %v4390 = vmul.f32 %v2428, %v4286
        %v4391 = vmul.f32 %v2443, %v4287
        %v4392 = vmul.f32 %v2458, %v4288
        %v4393 = vmul.f32 %v2473, %v4289
        %v4394 = vmul.f32 %v2488, %v4290
        %v4395 = vmul.f32 %v2503, %v4291
        %v4396 = vmul.f32 %v2518, %v4292
        %v4397 = vmul.f32 %v2533, %v4293
        %v4398 = vmul.f32 %v2548, %v4294
        %v4399 = vmul.f32 %v2563, %v4295
        %v4400 = vmul.f32 %v2578, %v4296
        %v4401 = vmul.f32 %v2593, %v4297
        %v4402 = vmul.f32 %v2608, %v4298
        %v4403 = vmul.f32 %v2623, %v4299
        %v4404 = vmul.f32 %v2638, %v4300
        %v4405 = vmul.f32 %v2653, %v4301
        %v4406 = vmul.f32 %v2668, %v4302
        %v4407 = vmul.f32 %v2683, %v4303
        %v4408 = vmul.f32 %v2698, %v4304
        %v4409 = vmul.f32 %v2713, %v4305
        %v4410 = vmul.f32 %v2728, %v4306
        %v4411 = vmul.f32 %v2743, %v4307
        %v4412 = vmul.f32 %v2758, %v4308
        %v4413 = vmul.f32 %v2773, %v4309
        %v4414 = vmul.f32 %v2788, %v4310
        %v4415 = vmul.f32 %v2803, %v4311
        %v4416 = vmul.f32 %v2818, %v4312
        %v4417 = vmul.f32 %v2833, %v4313
        %v4418 = vmul.f32 %v2848, %v4314
        %v4419 = vmul.f32 %v2863, %v4315
        %v4420 = vmul.f32 %v2878, %v4316
        %v4421 = vmul.f32 %v2893, %v4317
        %v4422 = vmul.f32 %v2908, %v4318
        %v4423 = vmul.f32 %v2923, %v4319
        %v4424 = vmul.f32 %v2938, %v4320
        %v4425 = vmul.f32 %v2953, %v4321
        %v4426 = vmul.f32 %v2968, %v4322
        %v4427 = vmul.f32 %v2983, %v4323
        %v4428 = vmul.f32 %v2998, %v4324
        %v4429 = vmul.f32 %v3013, %v4325
        %v4430 = vmul.f32 %v3028, %v4326
        %v4431 = vmul.f32 %v3043, %v4327
        %v4432 = vmul.f32 %v3058, %v4328
        %v4433 = vmul.f32 %v3073, %v4329
        %v4434 = vmul.f32 %v3088, %v4330
        %v4435 = vmul.f32 %v3103, %v4331
        %v4436 = vmul.f32 %v3118, %v4332
        %v4437 = vmul.f32 %v3133, %v4333
        %v4438 = vmul.f32 %v3148, %v4334
        %v4439 = vmul.f32 %v3163, %v4335
        %v4440 = vmul.f32 %v3178, %v4336
        %v4441 = vmul.f32 %v3193, %v4337
        %v4442 = vmul.f32 %v3208, %v4338
        %v4443 = vmul.f32 %v3223, %v4339
        %v4444 = vmul.f32 %v3238, %v4340
        %v4445 = vmul.f32 %v3253, %v4341
        %v4446 = vmul.f32 %v3268, %v4342
        %v4447 = vmul.f32 %v3283, %v4343
        %v4448 = vmul.f32 %v3298, %v4344
        %v4449 = vmul.f32 %v3313, %v4345
        %v4450 = vmul.f32 %v3328, %v4346
        %v4451 = vmul.f32 %v3343, %v4347
        %v4452 = vmul.f32 %v3358, %v4348
        %v4453 = vmul.f32 %v3373, %v4349
        %v4454 = vmul.f32 %v3388, %v4350
        %v4455 = vmul.f32 %v3403, %v4351
        %v4456 = vmul.f32 %v3418, %v4352
        %v4457 = vmul.f32 %v3433, %v4353
        %v4458 = vmul.f32 %v3448, %v4354
        %v4459 = vmul.f32 %v3463, %v4355
        %v4460 = vmul.f32 %v3478, %v4356
        %v4461 = vmul.f32 %v3493, %v4357
        %v4462 = vmul.f32 %v3508, %v4358
        %v4463 = vmul.f32 %v3523, %v4359
        %v4464 = vmul.f32 %v3538, %v4360
        %v4465 = vmul.f32 %v3553, %v4361
        %v4466 = vmul.f32 %v3568, %v4362
        %v4467 = vmul.f32 %v3583, %v4363
        %v4468 = vmul.f32 %v3598, %v4364
        %v4469 = vmul.f32 %v3613, %v4365
        %v4470 = vmul.f32 %v3628, %v4366
        %v4471 = vmul.f32 %v3643, %v4367
        %v4472 = vmul.f32 %v3658, %v4368
        %v4473 = vmul.f32 %v3673, %v4369
        %v4474 = vmul.f32 %v3688, %v4370
        %v4475 = vmul.f32 %v3703, %v4371
        %v4476 = vmul.f32 %v3718, %v4372
        %v4477 = vmul.f32 %v3733, %v4373
        %v4478 = vmul.f32 %v3748, %v4374
        %v4479 = vmul.f32 %v3763, %v4375
        %v4480 = vmul.f32 %v3778, %v4376
        %v4481 = vmul.f32 %v3793, %v4377
        %v4482 = vmul.f32 %v3808, %v4378
        %v4483 = vmul.f32 %v3823, %v4379
        %v4484 = vmul.f32 %v3838, %v4380
        %v4485 = vmul.f32 %v3853, %v4381
        %v4486 = vmul.f32 %v3868, %v4382
        %v4487 = vmul.f32 %v3883, %v4383
        %v4488 = vmul.f32 %v3898, %v4384
        %v4489 = vmul.f32 %v3913, %v4385
        %v4490 = vmul.f32 %v3928, %v4386
        %v4491 = vmul.f32 %v3943, %v4387
        %v4492 = vmul.f32 %v3958, %v4388
        %v4493 = vmul.f32 %v3973, %v4389
        %v4494 = vadd.f32 %v4390, -0.28449672
        %v4495 = vadd.f32 %v4391, -0.28449672
        %v4496 = vadd.f32 %v4392, -0.28449672
        %v4497 = vadd.f32 %v4393, -0.28449672
        %v4498 = vadd.f32 %v4394, -0.28449672
        %v4499 = vadd.f32 %v4395, -0.28449672
        %v4500 = vadd.f32 %v4396, -0.28449672
        %v4501 = vadd.f32 %v4397, -0.28449672
        %v4502 = vadd.f32 %v4398, -0.28449672
        %v4503 = vadd.f32 %v4399, -0.28449672
        %v4504 = vadd.f32 %v4400, -0.28449672
        %v4505 = vadd.f32 %v4401, -0.28449672
        %v4506 = vadd.f32 %v4402, -0.28449672
        %v4507 = vadd.f32 %v4403, -0.28449672
        %v4508 = vadd.f32 %v4404, -0.28449672
        %v4509 = vadd.f32 %v4405, -0.28449672
        %v4510 = vadd.f32 %v4406, -0.28449672
        %v4511 = vadd.f32 %v4407, -0.28449672
        %v4512 = vadd.f32 %v4408, -0.28449672
        %v4513 = vadd.f32 %v4409, -0.28449672
        %v4514 = vadd.f32 %v4410, -0.28449672
        %v4515 = vadd.f32 %v4411, -0.28449672
        %v4516 = vadd.f32 %v4412, -0.28449672
        %v4517 = vadd.f32 %v4413, -0.28449672
        %v4518 = vadd.f32 %v4414, -0.28449672
        %v4519 = vadd.f32 %v4415, -0.28449672
        %v4520 = vadd.f32 %v4416, -0.28449672
        %v4521 = vadd.f32 %v4417, -0.28449672
        %v4522 = vadd.f32 %v4418, -0.28449672
        %v4523 = vadd.f32 %v4419, -0.28449672
        %v4524 = vadd.f32 %v4420, -0.28449672
        %v4525 = vadd.f32 %v4421, -0.28449672
        %v4526 = vadd.f32 %v4422, -0.28449672
        %v4527 = vadd.f32 %v4423, -0.28449672
        %v4528 = vadd.f32 %v4424, -0.28449672
        %v4529 = vadd.f32 %v4425, -0.28449672
        %v4530 = vadd.f32 %v4426, -0.28449672
        %v4531 = vadd.f32 %v4427, -0.28449672
        %v4532 = vadd.f32 %v4428, -0.28449672
        %v4533 = vadd.f32 %v4429, -0.28449672
        %v4534 = vadd.f32 %v4430, -0.28449672
        %v4535 = vadd.f32 %v4431, -0.28449672
        %v4536 = vadd.f32 %v4432, -0.28449672
        %v4537 = vadd.f32 %v4433, -0.28449672
        %v4538 = vadd.f32 %v4434, -0.28449672
        %v4539 = vadd.f32 %v4435, -0.28449672
        %v4540 = vadd.f32 %v4436, -0.28449672
        %v4541 = vadd.f32 %v4437, -0.28449672
        %v4542 = vadd.f32 %v4438, -0.28449672
        %v4543 = vadd.f32 %v4439, -0.28449672
        %v4544 = vadd.f32 %v4440, -0.28449672
        %v4545 = vadd.f32 %v4441, -0.28449672
        %v4546 = vadd.f32 %v4442, -0.28449672
        %v4547 = vadd.f32 %v4443, -0.28449672
        %v4548 = vadd.f32 %v4444, -0.28449672
        %v4549 = vadd.f32 %v4445, -0.28449672
        %v4550 = vadd.f32 %v4446, -0.28449672
        %v4551 = vadd.f32 %v4447, -0.28449672
        %v4552 = vadd.f32 %v4448, -0.28449672
        %v4553 = vadd.f32 %v4449, -0.28449672
        %v4554 = vadd.f32 %v4450, -0.28449672
        %v4555 = vadd.f32 %v4451, -0.28449672
        %v4556 = vadd.f32 %v4452, -0.28449672
        %v4557 = vadd.f32 %v4453, -0.28449672
        %v4558 = vadd.f32 %v4454, -0.28449672
        %v4559 = vadd.f32 %v4455, -0.28449672
        %v4560 = vadd.f32 %v4456, -0.28449672
        %v4561 = vadd.f32 %v4457, -0.28449672
        %v4562 = vadd.f32 %v4458, -0.28449672
        %v4563 = vadd.f32 %v4459, -0.28449672
        %v4564 = vadd.f32 %v4460, -0.28449672
        %v4565 = vadd.f32 %v4461, -0.28449672
        %v4566 = vadd.f32 %v4462, -0.28449672
        %v4567 = vadd.f32 %v4463, -0.28449672
        %v4568 = vadd.f32 %v4464, -0.28449672
        %v4569 = vadd.f32 %v4465, -0.28449672
        %v4570 = vadd.f32 %v4466, -0.28449672
        %v4571 = vadd.f32 %v4467, -0.28449672
        %v4572 = vadd.f32 %v4468, -0.28449672
        %v4573 = vadd.f32 %v4469, -0.28449672
        %v4574 = vadd.f32 %v4470, -0.28449672
        %v4575 = vadd.f32 %v4471, -0.28449672
        %v4576 = vadd.f32 %v4472, -0.28449672
        %v4577 = vadd.f32 %v4473, -0.28449672
        %v4578 = vadd.f32 %v4474, -0.28449672
        %v4579 = vadd.f32 %v4475, -0.28449672
        %v4580 = vadd.f32 %v4476, -0.28449672
        %v4581 = vadd.f32 %v4477, -0.28449672
        %v4582 = vadd.f32 %v4478, -0.28449672
        %v4583 = vadd.f32 %v4479, -0.28449672
        %v4584 = vadd.f32 %v4480, -0.28449672
        %v4585 = vadd.f32 %v4481, -0.28449672
        %v4586 = vadd.f32 %v4482, -0.28449672
        %v4587 = vadd.f32 %v4483, -0.28449672
        %v4588 = vadd.f32 %v4484, -0.28449672
        %v4589 = vadd.f32 %v4485, -0.28449672
        %v4590 = vadd.f32 %v4486, -0.28449672
        %v4591 = vadd.f32 %v4487, -0.28449672
        %v4592 = vadd.f32 %v4488, -0.28449672
        %v4593 = vadd.f32 %v4489, -0.28449672
        %v4594 = vadd.f32 %v4490, -0.28449672
        %v4595 = vadd.f32 %v4491, -0.28449672
        %v4596 = vadd.f32 %v4492, -0.28449672
        %v4597 = vadd.f32 %v4493, -0.28449672
        %v4598 = vmul.f32 %v2428, %v4494
        %v4599 = vmul.f32 %v2443, %v4495
        %v4600 = vmul.f32 %v2458, %v4496
        %v4601 = vmul.f32 %v2473, %v4497
        %v4602 = vmul.f32 %v2488, %v4498
        %v4603 = vmul.f32 %v2503, %v4499
        %v4604 = vmul.f32 %v2518, %v4500
        %v4605 = vmul.f32 %v2533, %v4501
        %v4606 = vmul.f32 %v2548, %v4502
        %v4607 = vmul.f32 %v2563, %v4503
        %v4608 = vmul.f32 %v2578, %v4504
        %v4609 = vmul.f32 %v2593, %v4505
        %v4610 = vmul.f32 %v2608, %v4506
        %v4611 = vmul.f32 %v2623, %v4507
        %v4612 = vmul.f32 %v2638, %v4508
        %v4613 = vmul.f32 %v2653, %v4509
        %v4614 = vmul.f32 %v2668, %v4510
        %v4615 = vmul.f32 %v2683, %v4511
        %v4616 = vmul.f32 %v2698, %v4512
        %v4617 = vmul.f32 %v2713, %v4513
        %v4618 = vmul.f32 %v2728, %v4514
        %v4619 = vmul.f32 %v2743, %v4515
        %v4620 = vmul.f32 %v2758, %v4516
        %v4621 = vmul.f32 %v2773, %v4517
        %v4622 = vmul.f32 %v2788, %v4518
        %v4623 = vmul.f32 %v2803, %v4519
        %v4624 = vmul.f32 %v2818, %v4520
        %v4625 = vmul.f32 %v2833, %v4521
        %v4626 = vmul.f32 %v2848, %v4522
        %v4627 = vmul.f32 %v2863, %v4523
        %v4628 = vmul.f32 %v2878, %v4524
        %v4629 = vmul.f32 %v2893, %v4525
        %v4630 = vmul.f32 %v2908, %v4526
        %v4631 = vmul.f32 %v2923, %v4527
        %v4632 = vmul.f32 %v2938, %v4528
        %v4633 = vmul.f32 %v2953, %v4529
        %v4634 = vmul.f32 %v2968, %v4530
        %v4635 = vmul.f32 %v2983, %v4531
        %v4636 = vmul.f32 %v2998, %v4532
        %v4637 = vmul.f32 %v3013, %v4533
        %v4638 = vmul.f32 %v3028, %v4534
        %v4639 = vmul.f32 %v3043, %v4535
        %v4640 = vmul.f32 %v3058, %v4536
        %v4641 = vmul.f32 %v3073, %v4537
        %v4642 = vmul.f32 %v3088, %v4538
        %v4643 = vmul.f32 %v3103, %v4539
        %v4644 = vmul.f32 %v3118, %v4540
        %v4645 = vmul.f32 %v3133, %v4541
        %v4646 = vmul.f32 %v3148, %v4542
        %v4647 = vmul.f32 %v3163, %v4543
        %v4648 = vmul.f32 %v3178, %v4544
        %v4649 = vmul.f32 %v3193, %v4545
        %v4650 = vmul.f32 %v3208, %v4546
        %v4651 = vmul.f32 %v3223, %v4547
        %v4652 = vmul.f32 %v3238, %v4548
        %v4653 = vmul.f32 %v3253, %v4549
        %v4654 = vmul.f32 %v3268, %v4550
        %v4655 = vmul.f32 %v3283, %v4551
        %v4656 = vmul.f32 %v3298, %v4552
        %v4657 = vmul.f32 %v3313, %v4553
        %v4658 = vmul.f32 %v3328, %v4554
        %v4659 = vmul.f32 %v3343, %v4555
        %v4660 = vmul.f32 %v3358, %v4556
        %v4661 = vmul.f32 %v3373, %v4557
        %v4662 = vmul.f32 %v3388, %v4558
        %v4663 = vmul.f32 %v3403, %v4559
        %v4664 = vmul.f32 %v3418, %v4560
        %v4665 = vmul.f32 %v3433, %v4561
        %v4666 = vmul.f32 %v3448, %v4562
        %v4667 = vmul.f32 %v3463, %v4563
        %v4668 = vmul.f32 %v3478, %v4564
        %v4669 = vmul.f32 %v3493, %v4565
        %v4670 = vmul.f32 %v3508, %v4566
        %v4671 = vmul.f32 %v3523, %v4567
        %v4672 = vmul.f32 %v3538, %v4568
        %v4673 = vmul.f32 %v3553, %v4569
        %v4674 = vmul.f32 %v3568, %v4570
        %v4675 = vmul.f32 %v3583, %v4571
        %v4676 = vmul.f32 %v3598, %v4572
        %v4677 = vmul.f32 %v3613, %v4573
        %v4678 = vmul.f32 %v3628, %v4574
        %v4679 = vmul.f32 %v3643, %v4575
        %v4680 = vmul.f32 %v3658, %v4576
        %v4681 = vmul.f32 %v3673, %v4577
        %v4682 = vmul.f32 %v3688, %v4578
        %v4683 = vmul.f32 %v3703, %v4579
        %v4684 = vmul.f32 %v3718, %v4580
        %v4685 = vmul.f32 %v3733, %v4581
        %v4686 = vmul.f32 %v3748, %v4582
        %v4687 = vmul.f32 %v3763, %v4583
        %v4688 = vmul.f32 %v3778, %v4584
        %v4689 = vmul.f32 %v3793, %v4585
        %v4690 = vmul.f32 %v3808, %v4586
        %v4691 = vmul.f32 %v3823, %v4587
        %v4692 = vmul.f32 %v3838, %v4588
        %v4693 = vmul.f32 %v3853, %v4589
        %v4694 = vmul.f32 %v3868, %v4590
        %v4695 = vmul.f32 %v3883, %v4591
        %v4696 = vmul.f32 %v3898, %v4592
        %v4697 = vmul.f32 %v3913, %v4593
        %v4698 = vmul.f32 %v3928, %v4594
        %v4699 = vmul.f32 %v3943, %v4595
        %v4700 = vmul.f32 %v3958, %v4596
        %v4701 = vmul.f32 %v3973, %v4597
        %v4702 = vadd.f32 %v4598, 0.2548296
        %v4703 = vadd.f32 %v4599, 0.2548296
        %v4704 = vadd.f32 %v4600, 0.2548296
        %v4705 = vadd.f32 %v4601, 0.2548296
        %v4706 = vadd.f32 %v4602, 0.2548296
        %v4707 = vadd.f32 %v4603, 0.2548296
        %v4708 = vadd.f32 %v4604, 0.2548296
        %v4709 = vadd.f32 %v4605, 0.2548296
        %v4710 = vadd.f32 %v4606, 0.2548296
        %v4711 = vadd.f32 %v4607, 0.2548296
        %v4712 = vadd.f32 %v4608, 0.2548296
        %v4713 = vadd.f32 %v4609, 0.2548296
        %v4714 = vadd.f32 %v4610, 0.2548296
        %v4715 = vadd.f32 %v4611, 0.2548296
        %v4716 = vadd.f32 %v4612, 0.2548296
        %v4717 = vadd.f32 %v4613, 0.2548296
        %v4718 = vadd.f32 %v4614, 0.2548296
        %v4719 = vadd.f32 %v4615, 0.2548296
        %v4720 = vadd.f32 %v4616, 0.2548296
        %v4721 = vadd.f32 %v4617, 0.2548296
        %v4722 = vadd.f32 %v4618, 0.2548296
        %v4723 = vadd.f32 %v4619, 0.2548296
        %v4724 = vadd.f32 %v4620, 0.2548296
        %v4725 = vadd.f32 %v4621, 0.2548296
        %v4726 = vadd.f32 %v4622, 0.2548296
        %v4727 = vadd.f32 %v4623, 0.2548296
        %v4728 = vadd.f32 %v4624, 0.2548296
        %v4729 = vadd.f32 %v4625, 0.2548296
        %v4730 = vadd.f32 %v4626, 0.2548296
        %v4731 = vadd.f32 %v4627, 0.2548296
        %v4732 = vadd.f32 %v4628, 0.2548296
        %v4733 = vadd.f32 %v4629, 0.2548296
        %v4734 = vadd.f32 %v4630, 0.2548296
        %v4735 = vadd.f32 %v4631, 0.2548296
        %v4736 = vadd.f32 %v4632, 0.2548296
        %v4737 = vadd.f32 %v4633, 0.2548296
        %v4738 = vadd.f32 %v4634, 0.2548296
        %v4739 = vadd.f32 %v4635, 0.2548296
        %v4740 = vadd.f32 %v4636, 0.2548296
        %v4741 = vadd.f32 %v4637, 0.2548296
        %v4742 = vadd.f32 %v4638, 0.2548296
        %v4743 = vadd.f32 %v4639, 0.2548296
        %v4744 = vadd.f32 %v4640, 0.2548296
        %v4745 = vadd.f32 %v4641, 0.2548296
        %v4746 = vadd.f32 %v4642, 0.2548296
        %v4747 = vadd.f32 %v4643, 0.2548296
        %v4748 = vadd.f32 %v4644, 0.2548296
        %v4749 = vadd.f32 %v4645, 0.2548296
        %v4750 = vadd.f32 %v4646, 0.2548296
        %v4751 = vadd.f32 %v4647, 0.2548296
        %v4752 = vadd.f32 %v4648, 0.2548296
        %v4753 = vadd.f32 %v4649, 0.2548296
        %v4754 = vadd.f32 %v4650, 0.2548296
        %v4755 = vadd.f32 %v4651, 0.2548296
        %v4756 = vadd.f32 %v4652, 0.2548296
        %v4757 = vadd.f32 %v4653, 0.2548296
        %v4758 = vadd.f32 %v4654, 0.2548296
        %v4759 = vadd.f32 %v4655, 0.2548296
        %v4760 = vadd.f32 %v4656, 0.2548296
        %v4761 = vadd.f32 %v4657, 0.2548296
        %v4762 = vadd.f32 %v4658, 0.2548296
        %v4763 = vadd.f32 %v4659, 0.2548296
        %v4764 = vadd.f32 %v4660, 0.2548296
        %v4765 = vadd.f32 %v4661, 0.2548296
        %v4766 = vadd.f32 %v4662, 0.2548296
        %v4767 = vadd.f32 %v4663, 0.2548296
        %v4768 = vadd.f32 %v4664, 0.2548296
        %v4769 = vadd.f32 %v4665, 0.2548296
        %v4770 = vadd.f32 %v4666, 0.2548296
        %v4771 = vadd.f32 %v4667, 0.2548296
        %v4772 = vadd.f32 %v4668, 0.2548296
        %v4773 = vadd.f32 %v4669, 0.2548296
        %v4774 = vadd.f32 %v4670, 0.2548296
        %v4775 = vadd.f32 %v4671, 0.2548296
        %v4776 = vadd.f32 %v4672, 0.2548296
        %v4777 = vadd.f32 %v4673, 0.2548296
        %v4778 = vadd.f32 %v4674, 0.2548296
        %v4779 = vadd.f32 %v4675, 0.2548296
        %v4780 = vadd.f32 %v4676, 0.2548296
        %v4781 = vadd.f32 %v4677, 0.2548296
        %v4782 = vadd.f32 %v4678, 0.2548296
        %v4783 = vadd.f32 %v4679, 0.2548296
        %v4784 = vadd.f32 %v4680, 0.2548296
        %v4785 = vadd.f32 %v4681, 0.2548296
        %v4786 = vadd.f32 %v4682, 0.2548296
        %v4787 = vadd.f32 %v4683, 0.2548296
        %v4788 = vadd.f32 %v4684, 0.2548296
        %v4789 = vadd.f32 %v4685, 0.2548296
        %v4790 = vadd.f32 %v4686, 0.2548296
        %v4791 = vadd.f32 %v4687, 0.2548296
        %v4792 = vadd.f32 %v4688, 0.2548296
        %v4793 = vadd.f32 %v4689, 0.2548296
        %v4794 = vadd.f32 %v4690, 0.2548296
        %v4795 = vadd.f32 %v4691, 0.2548296
        %v4796 = vadd.f32 %v4692, 0.2548296
        %v4797 = vadd.f32 %v4693, 0.2548296
        %v4798 = vadd.f32 %v4694, 0.2548296
        %v4799 = vadd.f32 %v4695, 0.2548296
        %v4800 = vadd.f32 %v4696, 0.2548296
        %v4801 = vadd.f32 %v4697, 0.2548296
        %v4802 = vadd.f32 %v4698, 0.2548296
        %v4803 = vadd.f32 %v4699, 0.2548296
        %v4804 = vadd.f32 %v4700, 0.2548296
        %v4805 = vadd.f32 %v4701, 0.2548296
        %v4806 = vmul.f32 %v2428, %v4702
        %v4807 = vmul.f32 %v2443, %v4703
        %v4808 = vmul.f32 %v2458, %v4704
        %v4809 = vmul.f32 %v2473, %v4705
        %v4810 = vmul.f32 %v2488, %v4706
        %v4811 = vmul.f32 %v2503, %v4707
        %v4812 = vmul.f32 %v2518, %v4708
        %v4813 = vmul.f32 %v2533, %v4709
        %v4814 = vmul.f32 %v2548, %v4710
        %v4815 = vmul.f32 %v2563, %v4711
        %v4816 = vmul.f32 %v2578, %v4712
        %v4817 = vmul.f32 %v2593, %v4713
        %v4818 = vmul.f32 %v2608, %v4714
        %v4819 = vmul.f32 %v2623, %v4715
        %v4820 = vmul.f32 %v2638, %v4716
        %v4821 = vmul.f32 %v2653, %v4717
        %v4822 = vmul.f32 %v2668, %v4718
        %v4823 = vmul.f32 %v2683, %v4719
        %v4824 = vmul.f32 %v2698, %v4720
        %v4825 = vmul.f32 %v2713, %v4721
        %v4826 = vmul.f32 %v2728, %v4722
        %v4827 = vmul.f32 %v2743, %v4723
        %v4828 = vmul.f32 %v2758, %v4724
        %v4829 = vmul.f32 %v2773, %v4725
        %v4830 = vmul.f32 %v2788, %v4726
        %v4831 = vmul.f32 %v2803, %v4727
        %v4832 = vmul.f32 %v2818, %v4728
        %v4833 = vmul.f32 %v2833, %v4729
        %v4834 = vmul.f32 %v2848, %v4730
        %v4835 = vmul.f32 %v2863, %v4731
        %v4836 = vmul.f32 %v2878, %v4732
        %v4837 = vmul.f32 %v2893, %v4733
        %v4838 = vmul.f32 %v2908, %v4734
        %v4839 = vmul.f32 %v2923, %v4735
        %v4840 = vmul.f32 %v2938, %v4736
        %v4841 = vmul.f32 %v2953, %v4737
        %v4842 = vmul.f32 %v2968, %v4738
        %v4843 = vmul.f32 %v2983, %v4739
        %v4844 = vmul.f32 %v2998, %v4740
        %v4845 = vmul.f32 %v3013, %v4741
        %v4846 = vmul.f32 %v3028, %v4742
        %v4847 = vmul.f32 %v3043, %v4743
        %v4848 = vmul.f32 %v3058, %v4744
        %v4849 = vmul.f32 %v3073, %v4745
        %v4850 = vmul.f32 %v3088, %v4746
        %v4851 = vmul.f32 %v3103, %v4747
        %v4852 = vmul.f32 %v3118, %v4748
        %v4853 = vmul.f32 %v3133, %v4749
        %v4854 = vmul.f32 %v3148, %v4750
        %v4855 = vmul.f32 %v3163, %v4751
        %v4856 = vmul.f32 %v3178, %v4752
        %v4857 = vmul.f32 %v3193, %v4753
        %v4858 = vmul.f32 %v3208, %v4754
        %v4859 = vmul.f32 %v3223, %v4755
        %v4860 = vmul.f32 %v3238, %v4756
        %v4861 = vmul.f32 %v3253, %v4757
        %v4862 = vmul.f32 %v3268, %v4758
        %v4863 = vmul.f32 %v3283, %v4759
        %v4864 = vmul.f32 %v3298, %v4760
        %v4865 = vmul.f32 %v3313, %v4761
        %v4866 = vmul.f32 %v3328, %v4762
        %v4867 = vmul.f32 %v3343, %v4763
        %v4868 = vmul.f32 %v3358, %v4764
        %v4869 = vmul.f32 %v3373, %v4765
        %v4870 = vmul.f32 %v3388, %v4766
        %v4871 = vmul.f32 %v3403, %v4767
        %v4872 = vmul.f32 %v3418, %v4768
        %v4873 = vmul.f32 %v3433, %v4769
        %v4874 = vmul.f32 %v3448, %v4770
        %v4875 = vmul.f32 %v3463, %v4771
        %v4876 = vmul.f32 %v3478, %v4772
        %v4877 = vmul.f32 %v3493, %v4773
        %v4878 = vmul.f32 %v3508, %v4774
        %v4879 = vmul.f32 %v3523, %v4775
        %v4880 = vmul.f32 %v3538, %v4776
        %v4881 = vmul.f32 %v3553, %v4777
        %v4882 = vmul.f32 %v3568, %v4778
        %v4883 = vmul.f32 %v3583, %v4779
        %v4884 = vmul.f32 %v3598, %v4780
        %v4885 = vmul.f32 %v3613, %v4781
        %v4886 = vmul.f32 %v3628, %v4782
        %v4887 = vmul.f32 %v3643, %v4783
        %v4888 = vmul.f32 %v3658, %v4784
        %v4889 = vmul.f32 %v3673, %v4785
        %v4890 = vmul.f32 %v3688, %v4786
        %v4891 = vmul.f32 %v3703, %v4787
        %v4892 = vmul.f32 %v3718, %v4788
        %v4893 = vmul.f32 %v3733, %v4789
        %v4894 = vmul.f32 %v3748, %v4790
        %v4895 = vmul.f32 %v3763, %v4791
        %v4896 = vmul.f32 %v3778, %v4792
        %v4897 = vmul.f32 %v3793, %v4793
        %v4898 = vmul.f32 %v3808, %v4794
        %v4899 = vmul.f32 %v3823, %v4795
        %v4900 = vmul.f32 %v3838, %v4796
        %v4901 = vmul.f32 %v3853, %v4797
        %v4902 = vmul.f32 %v3868, %v4798
        %v4903 = vmul.f32 %v3883, %v4799
        %v4904 = vmul.f32 %v3898, %v4800
        %v4905 = vmul.f32 %v3913, %v4801
        %v4906 = vmul.f32 %v3928, %v4802
        %v4907 = vmul.f32 %v3943, %v4803
        %v4908 = vmul.f32 %v3958, %v4804
        %v4909 = vmul.f32 %v3973, %v4805
        %v4910 = vsub.f32 0.0, %v2102
        %v4911 = vsub.f32 0.0, %v2103
        %v4912 = vsub.f32 0.0, %v2104
        %v4913 = vsub.f32 0.0, %v2105
        %v4914 = vsub.f32 0.0, %v2106
        %v4915 = vsub.f32 0.0, %v2107
        %v4916 = vsub.f32 0.0, %v2108
        %v4917 = vsub.f32 0.0, %v2109
        %v4918 = vsub.f32 0.0, %v2110
        %v4919 = vsub.f32 0.0, %v2111
        %v4920 = vsub.f32 0.0, %v2112
        %v4921 = vsub.f32 0.0, %v2113
        %v4922 = vsub.f32 0.0, %v2114
        %v4923 = vsub.f32 0.0, %v2115
        %v4924 = vsub.f32 0.0, %v2116
        %v4925 = vsub.f32 0.0, %v2117
        %v4926 = vsub.f32 0.0, %v2118
        %v4927 = vsub.f32 0.0, %v2119
        %v4928 = vsub.f32 0.0, %v2120
        %v4929 = vsub.f32 0.0, %v2121
        %v4930 = vsub.f32 0.0, %v2122
        %v4931 = vsub.f32 0.0, %v2123
        %v4932 = vsub.f32 0.0, %v2124
        %v4933 = vsub.f32 0.0, %v2125
        %v4934 = vsub.f32 0.0, %v2126
        %v4935 = vsub.f32 0.0, %v2127
        %v4936 = vsub.f32 0.0, %v2128
        %v4937 = vsub.f32 0.0, %v2129
        %v4938 = vsub.f32 0.0, %v2130
        %v4939 = vsub.f32 0.0, %v2131
        %v4940 = vsub.f32 0.0, %v2132
        %v4941 = vsub.f32 0.0, %v2133
        %v4942 = vsub.f32 0.0, %v2134
        %v4943 = vsub.f32 0.0, %v2135
        %v4944 = vsub.f32 0.0, %v2136
        %v4945 = vsub.f32 0.0, %v2137
        %v4946 = vsub.f32 0.0, %v2138
        %v4947 = vsub.f32 0.0, %v2139
        %v4948 = vsub.f32 0.0, %v2140
        %v4949 = vsub.f32 0.0, %v2141
        %v4950 = vsub.f32 0.0, %v2142
        %v4951 = vsub.f32 0.0, %v2143
        %v4952 = vsub.f32 0.0, %v2144
        %v4953 = vsub.f32 0.0, %v2145
        %v4954 = vsub.f32 0.0, %v2146
        %v4955 = vsub.f32 0.0, %v2147
        %v4956 = vsub.f32 0.0, %v2148
        %v4957 = vsub.f32 0.0, %v2149
        %v4958 = vsub.f32 0.0, %v2150
        %v4959 = vsub.f32 0.0, %v2151
        %v4960 = vsub.f32 0.0, %v2152
        %v4961 = vsub.f32 0.0, %v2153
        %v4962 = vsub.f32 0.0, %v2154
        %v4963 = vsub.f32 0.0, %v2155
        %v4964 = vsub.f32 0.0, %v2156
        %v4965 = vsub.f32 0.0, %v2157
        %v4966 = vsub.f32 0.0, %v2158
        %v4967 = vsub.f32 0.0, %v2159
        %v4968 = vsub.f32 0.0, %v2160
        %v4969 = vsub.f32 0.0, %v2161
        %v4970 = vsub.f32 0.0, %v2162
        %v4971 = vsub.f32 0.0, %v2163
        %v4972 = vsub.f32 0.0, %v2164
        %v4973 = vsub.f32 0.0, %v2165
        %v4974 = vsub.f32 0.0, %v2166
        %v4975 = vsub.f32 0.0, %v2167
        %v4976 = vsub.f32 0.0, %v2168
        %v4977 = vsub.f32 0.0, %v2169
        %v4978 = vsub.f32 0.0, %v2170
        %v4979 = vsub.f32 0.0, %v2171
        %v4980 = vsub.f32 0.0, %v2172
        %v4981 = vsub.f32 0.0, %v2173
        %v4982 = vsub.f32 0.0, %v2174
        %v4983 = vsub.f32 0.0, %v2175
        %v4984 = vsub.f32 0.0, %v2176
        %v4985 = vsub.f32 0.0, %v2177
        %v4986 = vsub.f32 0.0, %v2178
        %v4987 = vsub.f32 0.0, %v2179
        %v4988 = vsub.f32 0.0, %v2180
        %v4989 = vsub.f32 0.0, %v2181
        %v4990 = vsub.f32 0.0, %v2182
        %v4991 = vsub.f32 0.0, %v2183
        %v4992 = vsub.f32 0.0, %v2184
        %v4993 = vsub.f32 0.0, %v2185
        %v4994 = vsub.f32 0.0, %v2186
        %v4995 = vsub.f32 0.0, %v2187
        %v4996 = vsub.f32 0.0, %v2188
        %v4997 = vsub.f32 0.0, %v2189
        %v4998 = vsub.f32 0.0, %v2190
        %v4999 = vsub.f32 0.0, %v2191
        %v5000 = vsub.f32 0.0, %v2192
        %v5001 = vsub.f32 0.0, %v2193
        %v5002 = vsub.f32 0.0, %v2194
        %v5003 = vsub.f32 0.0, %v2195
        %v5004 = vsub.f32 0.0, %v2196
        %v5005 = vsub.f32 0.0, %v2197
        %v5006 = vsub.f32 0.0, %v2198
        %v5007 = vsub.f32 0.0, %v2199
        %v5008 = vsub.f32 0.0, %v2200
        %v5009 = vsub.f32 0.0, %v2201
        %v5010 = vsub.f32 0.0, %v2202
        %v5011 = vsub.f32 0.0, %v2203
        %v5012 = vsub.f32 0.0, %v2204
        %v5013 = vsub.f32 0.0, %v2205
        %v5014 = vmul.f32 %v4910, %v2102
        %v5015 = vmul.f32 %v4911, %v2103
        %v5016 = vmul.f32 %v4912, %v2104
        %v5017 = vmul.f32 %v4913, %v2105
        %v5018 = vmul.f32 %v4914, %v2106
        %v5019 = vmul.f32 %v4915, %v2107
        %v5020 = vmul.f32 %v4916, %v2108
        %v5021 = vmul.f32 %v4917, %v2109
        %v5022 = vmul.f32 %v4918, %v2110
        %v5023 = vmul.f32 %v4919, %v2111
        %v5024 = vmul.f32 %v4920, %v2112
        %v5025 = vmul.f32 %v4921, %v2113
        %v5026 = vmul.f32 %v4922, %v2114
        %v5027 = vmul.f32 %v4923, %v2115
        %v5028 = vmul.f32 %v4924, %v2116
        %v5029 = vmul.f32 %v4925, %v2117
        %v5030 = vmul.f32 %v4926, %v2118
        %v5031 = vmul.f32 %v4927, %v2119
        %v5032 = vmul.f32 %v4928, %v2120
        %v5033 = vmul.f32 %v4929, %v2121
        %v5034 = vmul.f32 %v4930, %v2122
        %v5035 = vmul.f32 %v4931, %v2123
        %v5036 = vmul.f32 %v4932, %v2124
        %v5037 = vmul.f32 %v4933, %v2125
        %v5038 = vmul.f32 %v4934, %v2126
        %v5039 = vmul.f32 %v4935, %v2127
        %v5040 = vmul.f32 %v4936, %v2128
        %v5041 = vmul.f32 %v4937, %v2129
        %v5042 = vmul.f32 %v4938, %v2130
        %v5043 = vmul.f32 %v4939, %v2131
        %v5044 = vmul.f32 %v4940, %v2132
        %v5045 = vmul.f32 %v4941, %v2133
        %v5046 = vmul.f32 %v4942, %v2134
        %v5047 = vmul.f32 %v4943, %v2135
        %v5048 = vmul.f32 %v4944, %v2136
        %v5049 = vmul.f32 %v4945, %v2137
        %v5050 = vmul.f32 %v4946, %v2138
        %v5051 = vmul.f32 %v4947, %v2139
        %v5052 = vmul.f32 %v4948, %v2140
        %v5053 = vmul.f32 %v4949, %v2141
        %v5054 = vmul.f32 %v4950, %v2142
        %v5055 = vmul.f32 %v4951, %v2143
        %v5056 = vmul.f32 %v4952, %v2144
        %v5057 = vmul.f32 %v4953, %v2145
        %v5058 = vmul.f32 %v4954, %v2146
        %v5059 = vmul.f32 %v4955, %v2147
        %v5060 = vmul.f32 %v4956, %v2148
        %v5061 = vmul.f32 %v4957, %v2149
        %v5062 = vmul.f32 %v4958, %v2150
        %v5063 = vmul.f32 %v4959, %v2151
        %v5064 = vmul.f32 %v4960, %v2152
        %v5065 = vmul.f32 %v4961, %v2153
        %v5066 = vmul.f32 %v4962, %v2154
        %v5067 = vmul.f32 %v4963, %v2155
        %v5068 = vmul.f32 %v4964, %v2156
        %v5069 = vmul.f32 %v4965, %v2157
        %v5070 = vmul.f32 %v4966, %v2158
        %v5071 = vmul.f32 %v4967, %v2159
        %v5072 = vmul.f32 %v4968, %v2160
        %v5073 = vmul.f32 %v4969, %v2161
        %v5074 = vmul.f32 %v4970, %v2162
        %v5075 = vmul.f32 %v4971, %v2163
        %v5076 = vmul.f32 %v4972, %v2164
        %v5077 = vmul.f32 %v4973, %v2165
        %v5078 = vmul.f32 %v4974, %v2166
        %v5079 = vmul.f32 %v4975, %v2167
        %v5080 = vmul.f32 %v4976, %v2168
        %v5081 = vmul.f32 %v4977, %v2169
        %v5082 = vmul.f32 %v4978, %v2170
        %v5083 = vmul.f32 %v4979, %v2171
        %v5084 = vmul.f32 %v4980, %v2172
        %v5085 = vmul.f32 %v4981, %v2173
        %v5086 = vmul.f32 %v4982, %v2174
        %v5087 = vmul.f32 %v4983, %v2175
        %v5088 = vmul.f32 %v4984, %v2176
        %v5089 = vmul.f32 %v4985, %v2177
        %v5090 = vmul.f32 %v4986, %v2178
        %v5091 = vmul.f32 %v4987, %v2179
        %v5092 = vmul.f32 %v4988, %v2180
        %v5093 = vmul.f32 %v4989, %v2181
        %v5094 = vmul.f32 %v4990, %v2182
        %v5095 = vmul.f32 %v4991, %v2183
        %v5096 = vmul.f32 %v4992, %v2184
        %v5097 = vmul.f32 %v4993, %v2185
        %v5098 = vmul.f32 %v4994, %v2186
        %v5099 = vmul.f32 %v4995, %v2187
        %v5100 = vmul.f32 %v4996, %v2188
        %v5101 = vmul.f32 %v4997, %v2189
        %v5102 = vmul.f32 %v4998, %v2190
        %v5103 = vmul.f32 %v4999, %v2191
        %v5104 = vmul.f32 %v5000, %v2192
        %v5105 = vmul.f32 %v5001, %v2193
        %v5106 = vmul.f32 %v5002, %v2194
        %v5107 = vmul.f32 %v5003, %v2195
        %v5108 = vmul.f32 %v5004, %v2196
        %v5109 = vmul.f32 %v5005, %v2197
        %v5110 = vmul.f32 %v5006, %v2198
        %v5111 = vmul.f32 %v5007, %v2199
        %v5112 = vmul.f32 %v5008, %v2200
        %v5113 = vmul.f32 %v5009, %v2201
        %v5114 = vmul.f32 %v5010, %v2202
        %v5115 = vmul.f32 %v5011, %v2203
        %v5116 = vmul.f32 %v5012, %v2204
        %v5117 = vmul.f32 %v5013, %v2205
        %v5118 = vmul.f32 %v5014, 1.442695
        %v5119 = vpow.pop %v5118
        %v5120 = vmul.f32 %v5015, 1.442695
        %v5121 = vpow.pop %v5120
        %v5122 = vmul.f32 %v5016, 1.442695
        %v5123 = vpow.pop %v5122
        %v5124 = vmul.f32 %v5017, 1.442695
        %v5125 = vpow.pop %v5124
        %v5126 = vmul.f32 %v5018, 1.442695
        %v5127 = vpow.pop %v5126
        %v5128 = vmul.f32 %v5019, 1.442695
        %v5129 = vpow.pop %v5128
        %v5130 = vmul.f32 %v5020, 1.442695
        %v5131 = vpow.pop %v5130
        %v5132 = vmul.f32 %v5021, 1.442695
        %v5133 = vpow.pop %v5132
        %v5134 = vmul.f32 %v5022, 1.442695
        %v5135 = vpow.pop %v5134
        %v5136 = vmul.f32 %v5023, 1.442695
        %v5137 = vpow.pop %v5136
        %v5138 = vmul.f32 %v5024, 1.442695
        %v5139 = vpow.pop %v5138
        %v5140 = vmul.f32 %v5025, 1.442695
        %v5141 = vpow.pop %v5140
        %v5142 = vmul.f32 %v5026, 1.442695
        %v5143 = vpow.pop %v5142
        %v5144 = vmul.f32 %v5027, 1.442695
        %v5145 = vpow.pop %v5144
        %v5146 = vmul.f32 %v5028, 1.442695
        %v5147 = vpow.pop %v5146
        %v5148 = vmul.f32 %v5029, 1.442695
        %v5149 = vpow.pop %v5148
        %v5150 = vmul.f32 %v5030, 1.442695
        %v5151 = vpow.pop %v5150
        %v5152 = vmul.f32 %v5031, 1.442695
        %v5153 = vpow.pop %v5152
        %v5154 = vmul.f32 %v5032, 1.442695
        %v5155 = vpow.pop %v5154
        %v5156 = vmul.f32 %v5033, 1.442695
        %v5157 = vpow.pop %v5156
        %v5158 = vmul.f32 %v5034, 1.442695
        %v5159 = vpow.pop %v5158
        %v5160 = vmul.f32 %v5035, 1.442695
        %v5161 = vpow.pop %v5160
        %v5162 = vmul.f32 %v5036, 1.442695
        %v5163 = vpow.pop %v5162
        %v5164 = vmul.f32 %v5037, 1.442695
        %v5165 = vpow.pop %v5164
        %v5166 = vmul.f32 %v5038, 1.442695
        %v5167 = vpow.pop %v5166
        %v5168 = vmul.f32 %v5039, 1.442695
        %v5169 = vpow.pop %v5168
        %v5170 = vmul.f32 %v5040, 1.442695
        %v5171 = vpow.pop %v5170
        %v5172 = vmul.f32 %v5041, 1.442695
        %v5173 = vpow.pop %v5172
        %v5174 = vmul.f32 %v5042, 1.442695
        %v5175 = vpow.pop %v5174
        %v5176 = vmul.f32 %v5043, 1.442695
        %v5177 = vpow.pop %v5176
        %v5178 = vmul.f32 %v5044, 1.442695
        %v5179 = vpow.pop %v5178
        %v5180 = vmul.f32 %v5045, 1.442695
        %v5181 = vpow.pop %v5180
        %v5182 = vmul.f32 %v5046, 1.442695
        %v5183 = vpow.pop %v5182
        %v5184 = vmul.f32 %v5047, 1.442695
        %v5185 = vpow.pop %v5184
        %v5186 = vmul.f32 %v5048, 1.442695
        %v5187 = vpow.pop %v5186
        %v5188 = vmul.f32 %v5049, 1.442695
        %v5189 = vpow.pop %v5188
        %v5190 = vmul.f32 %v5050, 1.442695
        %v5191 = vpow.pop %v5190
        %v5192 = vmul.f32 %v5051, 1.442695
        %v5193 = vpow.pop %v5192
        %v5194 = vmul.f32 %v5052, 1.442695
        %v5195 = vpow.pop %v5194
        %v5196 = vmul.f32 %v5053, 1.442695
        %v5197 = vpow.pop %v5196
        %v5198 = vmul.f32 %v5054, 1.442695
        %v5199 = vpow.pop %v5198
        %v5200 = vmul.f32 %v5055, 1.442695
        %v5201 = vpow.pop %v5200
        %v5202 = vmul.f32 %v5056, 1.442695
        %v5203 = vpow.pop %v5202
        %v5204 = vmul.f32 %v5057, 1.442695
        %v5205 = vpow.pop %v5204
        %v5206 = vmul.f32 %v5058, 1.442695
        %v5207 = vpow.pop %v5206
        %v5208 = vmul.f32 %v5059, 1.442695
        %v5209 = vpow.pop %v5208
        %v5210 = vmul.f32 %v5060, 1.442695
        %v5211 = vpow.pop %v5210
        %v5212 = vmul.f32 %v5061, 1.442695
        %v5213 = vpow.pop %v5212
        %v5214 = vmul.f32 %v5062, 1.442695
        %v5215 = vpow.pop %v5214
        %v5216 = vmul.f32 %v5063, 1.442695
        %v5217 = vpow.pop %v5216
        %v5218 = vmul.f32 %v5064, 1.442695
        %v5219 = vpow.pop %v5218
        %v5220 = vmul.f32 %v5065, 1.442695
        %v5221 = vpow.pop %v5220
        %v5222 = vmul.f32 %v5066, 1.442695
        %v5223 = vpow.pop %v5222
        %v5224 = vmul.f32 %v5067, 1.442695
        %v5225 = vpow.pop %v5224
        %v5226 = vmul.f32 %v5068, 1.442695
        %v5227 = vpow.pop %v5226
        %v5228 = vmul.f32 %v5069, 1.442695
        %v5229 = vpow.pop %v5228
        %v5230 = vmul.f32 %v5070, 1.442695
        %v5231 = vpow.pop %v5230
        %v5232 = vmul.f32 %v5071, 1.442695
        %v5233 = vpow.pop %v5232
        %v5234 = vmul.f32 %v5072, 1.442695
        %v5235 = vpow.pop %v5234
        %v5236 = vmul.f32 %v5073, 1.442695
        %v5237 = vpow.pop %v5236
        %v5238 = vmul.f32 %v5074, 1.442695
        %v5239 = vpow.pop %v5238
        %v5240 = vmul.f32 %v5075, 1.442695
        %v5241 = vpow.pop %v5240
        %v5242 = vmul.f32 %v5076, 1.442695
        %v5243 = vpow.pop %v5242
        %v5244 = vmul.f32 %v5077, 1.442695
        %v5245 = vpow.pop %v5244
        %v5246 = vmul.f32 %v5078, 1.442695
        %v5247 = vpow.pop %v5246
        %v5248 = vmul.f32 %v5079, 1.442695
        %v5249 = vpow.pop %v5248
        %v5250 = vmul.f32 %v5080, 1.442695
        %v5251 = vpow.pop %v5250
        %v5252 = vmul.f32 %v5081, 1.442695
        %v5253 = vpow.pop %v5252
        %v5254 = vmul.f32 %v5082, 1.442695
        %v5255 = vpow.pop %v5254
        %v5256 = vmul.f32 %v5083, 1.442695
        %v5257 = vpow.pop %v5256
        %v5258 = vmul.f32 %v5084, 1.442695
        %v5259 = vpow.pop %v5258
        %v5260 = vmul.f32 %v5085, 1.442695
        %v5261 = vpow.pop %v5260
        %v5262 = vmul.f32 %v5086, 1.442695
        %v5263 = vpow.pop %v5262
        %v5264 = vmul.f32 %v5087, 1.442695
        %v5265 = vpow.pop %v5264
        %v5266 = vmul.f32 %v5088, 1.442695
        %v5267 = vpow.pop %v5266
        %v5268 = vmul.f32 %v5089, 1.442695
        %v5269 = vpow.pop %v5268
        %v5270 = vmul.f32 %v5090, 1.442695
        %v5271 = vpow.pop %v5270
        %v5272 = vmul.f32 %v5091, 1.442695
        %v5273 = vpow.pop %v5272
        %v5274 = vmul.f32 %v5092, 1.442695
        %v5275 = vpow.pop %v5274
        %v5276 = vmul.f32 %v5093, 1.442695
        %v5277 = vpow.pop %v5276
        %v5278 = vmul.f32 %v5094, 1.442695
        %v5279 = vpow.pop %v5278
        %v5280 = vmul.f32 %v5095, 1.442695
        %v5281 = vpow.pop %v5280
        %v5282 = vmul.f32 %v5096, 1.442695
        %v5283 = vpow.pop %v5282
        %v5284 = vmul.f32 %v5097, 1.442695
        %v5285 = vpow.pop %v5284
        %v5286 = vmul.f32 %v5098, 1.442695
        %v5287 = vpow.pop %v5286
        %v5288 = vmul.f32 %v5099, 1.442695
        %v5289 = vpow.pop %v5288
        %v5290 = vmul.f32 %v5100, 1.442695
        %v5291 = vpow.pop %v5290
        %v5292 = vmul.f32 %v5101, 1.442695
        %v5293 = vpow.pop %v5292
        %v5294 = vmul.f32 %v5102, 1.442695
        %v5295 = vpow.pop %v5294
        %v5296 = vmul.f32 %v5103, 1.442695
        %v5297 = vpow.pop %v5296
        %v5298 = vmul.f32 %v5104, 1.442695
        %v5299 = vpow.pop %v5298
        %v5300 = vmul.f32 %v5105, 1.442695
        %v5301 = vpow.pop %v5300
        %v5302 = vmul.f32 %v5106, 1.442695
        %v5303 = vpow.pop %v5302
        %v5304 = vmul.f32 %v5107, 1.442695
        %v5305 = vpow.pop %v5304
        %v5306 = vmul.f32 %v5108, 1.442695
        %v5307 = vpow.pop %v5306
        %v5308 = vmul.f32 %v5109, 1.442695
        %v5309 = vpow.pop %v5308
        %v5310 = vmul.f32 %v5110, 1.442695
        %v5311 = vpow.pop %v5310
        %v5312 = vmul.f32 %v5111, 1.442695
        %v5313 = vpow.pop %v5312
        %v5314 = vmul.f32 %v5112, 1.442695
        %v5315 = vpow.pop %v5314
        %v5316 = vmul.f32 %v5113, 1.442695
        %v5317 = vpow.pop %v5316
        %v5318 = vmul.f32 %v5114, 1.442695
        %v5319 = vpow.pop %v5318
        %v5320 = vmul.f32 %v5115, 1.442695
        %v5321 = vpow.pop %v5320
        %v5322 = vmul.f32 %v5116, 1.442695
        %v5323 = vpow.pop %v5322
        %v5324 = vmul.f32 %v5117, 1.442695
        %v5325 = vpow.pop %v5324
        %v5326 = vmul.f32 %v4806, %v5119
        %v5327 = vmul.f32 %v4807, %v5121
        %v5328 = vmul.f32 %v4808, %v5123
        %v5329 = vmul.f32 %v4809, %v5125
        %v5330 = vmul.f32 %v4810, %v5127
        %v5331 = vmul.f32 %v4811, %v5129
        %v5332 = vmul.f32 %v4812, %v5131
        %v5333 = vmul.f32 %v4813, %v5133
        %v5334 = vmul.f32 %v4814, %v5135
        %v5335 = vmul.f32 %v4815, %v5137
        %v5336 = vmul.f32 %v4816, %v5139
        %v5337 = vmul.f32 %v4817, %v5141
        %v5338 = vmul.f32 %v4818, %v5143
        %v5339 = vmul.f32 %v4819, %v5145
        %v5340 = vmul.f32 %v4820, %v5147
        %v5341 = vmul.f32 %v4821, %v5149
        %v5342 = vmul.f32 %v4822, %v5151
        %v5343 = vmul.f32 %v4823, %v5153
        %v5344 = vmul.f32 %v4824, %v5155
        %v5345 = vmul.f32 %v4825, %v5157
        %v5346 = vmul.f32 %v4826, %v5159
        %v5347 = vmul.f32 %v4827, %v5161
        %v5348 = vmul.f32 %v4828, %v5163
        %v5349 = vmul.f32 %v4829, %v5165
        %v5350 = vmul.f32 %v4830, %v5167
        %v5351 = vmul.f32 %v4831, %v5169
        %v5352 = vmul.f32 %v4832, %v5171
        %v5353 = vmul.f32 %v4833, %v5173
        %v5354 = vmul.f32 %v4834, %v5175
        %v5355 = vmul.f32 %v4835, %v5177
        %v5356 = vmul.f32 %v4836, %v5179
        %v5357 = vmul.f32 %v4837, %v5181
        %v5358 = vmul.f32 %v4838, %v5183
        %v5359 = vmul.f32 %v4839, %v5185
        %v5360 = vmul.f32 %v4840, %v5187
        %v5361 = vmul.f32 %v4841, %v5189
        %v5362 = vmul.f32 %v4842, %v5191
        %v5363 = vmul.f32 %v4843, %v5193
        %v5364 = vmul.f32 %v4844, %v5195
        %v5365 = vmul.f32 %v4845, %v5197
        %v5366 = vmul.f32 %v4846, %v5199
        %v5367 = vmul.f32 %v4847, %v5201
        %v5368 = vmul.f32 %v4848, %v5203
        %v5369 = vmul.f32 %v4849, %v5205
        %v5370 = vmul.f32 %v4850, %v5207
        %v5371 = vmul.f32 %v4851, %v5209
        %v5372 = vmul.f32 %v4852, %v5211
        %v5373 = vmul.f32 %v4853, %v5213
        %v5374 = vmul.f32 %v4854, %v5215
        %v5375 = vmul.f32 %v4855, %v5217
        %v5376 = vmul.f32 %v4856, %v5219
        %v5377 = vmul.f32 %v4857, %v5221
        %v5378 = vmul.f32 %v4858, %v5223
        %v5379 = vmul.f32 %v4859, %v5225
        %v5380 = vmul.f32 %v4860, %v5227
        %v5381 = vmul.f32 %v4861, %v5229
        %v5382 = vmul.f32 %v4862, %v5231
        %v5383 = vmul.f32 %v4863, %v5233
        %v5384 = vmul.f32 %v4864, %v5235
        %v5385 = vmul.f32 %v4865, %v5237
        %v5386 = vmul.f32 %v4866, %v5239
        %v5387 = vmul.f32 %v4867, %v5241
        %v5388 = vmul.f32 %v4868, %v5243
        %v5389 = vmul.f32 %v4869, %v5245
        %v5390 = vmul.f32 %v4870, %v5247
        %v5391 = vmul.f32 %v4871, %v5249
        %v5392 = vmul.f32 %v4872, %v5251
        %v5393 = vmul.f32 %v4873, %v5253
        %v5394 = vmul.f32 %v4874, %v5255
        %v5395 = vmul.f32 %v4875, %v5257
        %v5396 = vmul.f32 %v4876, %v5259
        %v5397 = vmul.f32 %v4877, %v5261
        %v5398 = vmul.f32 %v4878, %v5263
        %v5399 = vmul.f32 %v4879, %v5265
        %v5400 = vmul.f32 %v4880, %v5267
        %v5401 = vmul.f32 %v4881, %v5269
        %v5402 = vmul.f32 %v4882, %v5271
        %v5403 = vmul.f32 %v4883, %v5273
        %v5404 = vmul.f32 %v4884, %v5275
        %v5405 = vmul.f32 %v4885, %v5277
        %v5406 = vmul.f32 %v4886, %v5279
        %v5407 = vmul.f32 %v4887, %v5281
        %v5408 = vmul.f32 %v4888, %v5283
        %v5409 = vmul.f32 %v4889, %v5285
        %v5410 = vmul.f32 %v4890, %v5287
        %v5411 = vmul.f32 %v4891, %v5289
        %v5412 = vmul.f32 %v4892, %v5291
        %v5413 = vmul.f32 %v4893, %v5293
        %v5414 = vmul.f32 %v4894, %v5295
        %v5415 = vmul.f32 %v4895, %v5297
        %v5416 = vmul.f32 %v4896, %v5299
        %v5417 = vmul.f32 %v4897, %v5301
        %v5418 = vmul.f32 %v4898, %v5303
        %v5419 = vmul.f32 %v4899, %v5305
        %v5420 = vmul.f32 %v4900, %v5307
        %v5421 = vmul.f32 %v4901, %v5309
        %v5422 = vmul.f32 %v4902, %v5311
        %v5423 = vmul.f32 %v4903, %v5313
        %v5424 = vmul.f32 %v4904, %v5315
        %v5425 = vmul.f32 %v4905, %v5317
        %v5426 = vmul.f32 %v4906, %v5319
        %v5427 = vmul.f32 %v4907, %v5321
        %v5428 = vmul.f32 %v4908, %v5323
        %v5429 = vmul.f32 %v4909, %v5325
        %v5430 = vsub.f32 1.0, %v5326
        %v5431 = vsub.f32 1.0, %v5327
        %v5432 = vsub.f32 1.0, %v5328
        %v5433 = vsub.f32 1.0, %v5329
        %v5434 = vsub.f32 1.0, %v5330
        %v5435 = vsub.f32 1.0, %v5331
        %v5436 = vsub.f32 1.0, %v5332
        %v5437 = vsub.f32 1.0, %v5333
        %v5438 = vsub.f32 1.0, %v5334
        %v5439 = vsub.f32 1.0, %v5335
        %v5440 = vsub.f32 1.0, %v5336
        %v5441 = vsub.f32 1.0, %v5337
        %v5442 = vsub.f32 1.0, %v5338
        %v5443 = vsub.f32 1.0, %v5339
        %v5444 = vsub.f32 1.0, %v5340
        %v5445 = vsub.f32 1.0, %v5341
        %v5446 = vsub.f32 1.0, %v5342
        %v5447 = vsub.f32 1.0, %v5343
        %v5448 = vsub.f32 1.0, %v5344
        %v5449 = vsub.f32 1.0, %v5345
        %v5450 = vsub.f32 1.0, %v5346
        %v5451 = vsub.f32 1.0, %v5347
        %v5452 = vsub.f32 1.0, %v5348
        %v5453 = vsub.f32 1.0, %v5349
        %v5454 = vsub.f32 1.0, %v5350
        %v5455 = vsub.f32 1.0, %v5351
        %v5456 = vsub.f32 1.0, %v5352
        %v5457 = vsub.f32 1.0, %v5353
        %v5458 = vsub.f32 1.0, %v5354
        %v5459 = vsub.f32 1.0, %v5355
        %v5460 = vsub.f32 1.0, %v5356
        %v5461 = vsub.f32 1.0, %v5357
        %v5462 = vsub.f32 1.0, %v5358
        %v5463 = vsub.f32 1.0, %v5359
        %v5464 = vsub.f32 1.0, %v5360
        %v5465 = vsub.f32 1.0, %v5361
        %v5466 = vsub.f32 1.0, %v5362
        %v5467 = vsub.f32 1.0, %v5363
        %v5468 = vsub.f32 1.0, %v5364
        %v5469 = vsub.f32 1.0, %v5365
        %v5470 = vsub.f32 1.0, %v5366
        %v5471 = vsub.f32 1.0, %v5367
        %v5472 = vsub.f32 1.0, %v5368
        %v5473 = vsub.f32 1.0, %v5369
        %v5474 = vsub.f32 1.0, %v5370
        %v5475 = vsub.f32 1.0, %v5371
        %v5476 = vsub.f32 1.0, %v5372
        %v5477 = vsub.f32 1.0, %v5373
        %v5478 = vsub.f32 1.0, %v5374
        %v5479 = vsub.f32 1.0, %v5375
        %v5480 = vsub.f32 1.0, %v5376
        %v5481 = vsub.f32 1.0, %v5377
        %v5482 = vsub.f32 1.0, %v5378
        %v5483 = vsub.f32 1.0, %v5379
        %v5484 = vsub.f32 1.0, %v5380
        %v5485 = vsub.f32 1.0, %v5381
        %v5486 = vsub.f32 1.0, %v5382
        %v5487 = vsub.f32 1.0, %v5383
        %v5488 = vsub.f32 1.0, %v5384
        %v5489 = vsub.f32 1.0, %v5385
        %v5490 = vsub.f32 1.0, %v5386
        %v5491 = vsub.f32 1.0, %v5387
        %v5492 = vsub.f32 1.0, %v5388
        %v5493 = vsub.f32 1.0, %v5389
        %v5494 = vsub.f32 1.0, %v5390
        %v5495 = vsub.f32 1.0, %v5391
        %v5496 = vsub.f32 1.0, %v5392
        %v5497 = vsub.f32 1.0, %v5393
        %v5498 = vsub.f32 1.0, %v5394
        %v5499 = vsub.f32 1.0, %v5395
        %v5500 = vsub.f32 1.0, %v5396
        %v5501 = vsub.f32 1.0, %v5397
        %v5502 = vsub.f32 1.0, %v5398
        %v5503 = vsub.f32 1.0, %v5399
        %v5504 = vsub.f32 1.0, %v5400
        %v5505 = vsub.f32 1.0, %v5401
        %v5506 = vsub.f32 1.0, %v5402
        %v5507 = vsub.f32 1.0, %v5403
        %v5508 = vsub.f32 1.0, %v5404
        %v5509 = vsub.f32 1.0, %v5405
        %v5510 = vsub.f32 1.0, %v5406
        %v5511 = vsub.f32 1.0, %v5407
        %v5512 = vsub.f32 1.0, %v5408
        %v5513 = vsub.f32 1.0, %v5409
        %v5514 = vsub.f32 1.0, %v5410
        %v5515 = vsub.f32 1.0, %v5411
        %v5516 = vsub.f32 1.0, %v5412
        %v5517 = vsub.f32 1.0, %v5413
        %v5518 = vsub.f32 1.0, %v5414
        %v5519 = vsub.f32 1.0, %v5415
        %v5520 = vsub.f32 1.0, %v5416
        %v5521 = vsub.f32 1.0, %v5417
        %v5522 = vsub.f32 1.0, %v5418
        %v5523 = vsub.f32 1.0, %v5419
        %v5524 = vsub.f32 1.0, %v5420
        %v5525 = vsub.f32 1.0, %v5421
        %v5526 = vsub.f32 1.0, %v5422
        %v5527 = vsub.f32 1.0, %v5423
        %v5528 = vsub.f32 1.0, %v5424
        %v5529 = vsub.f32 1.0, %v5425
        %v5530 = vsub.f32 1.0, %v5426
        %v5531 = vsub.f32 1.0, %v5427
        %v5532 = vsub.f32 1.0, %v5428
        %v5533 = vsub.f32 1.0, %v5429
        %vm5534 = vcmp.ge.f32.partialorder %v1998, 0.0
        %vm5535 = vcmp.ge.f32.partialorder %v1999, 0.0
        %vm5536 = vcmp.ge.f32.partialorder %v2000, 0.0
        %vm5537 = vcmp.ge.f32.partialorder %v2001, 0.0
        %vm5538 = vcmp.ge.f32.partialorder %v2002, 0.0
        %vm5539 = vcmp.ge.f32.partialorder %v2003, 0.0
        %vm5540 = vcmp.ge.f32.partialorder %v2004, 0.0
        %vm5541 = vcmp.ge.f32.partialorder %v2005, 0.0
        %vm5542 = vcmp.ge.f32.partialorder %v2006, 0.0
        %vm5543 = vcmp.ge.f32.partialorder %v2007, 0.0
        %vm5544 = vcmp.ge.f32.partialorder %v2008, 0.0
        %vm5545 = vcmp.ge.f32.partialorder %v2009, 0.0
        %vm5546 = vcmp.ge.f32.partialorder %v2010, 0.0
        %vm5547 = vcmp.ge.f32.partialorder %v2011, 0.0
        %vm5548 = vcmp.ge.f32.partialorder %v2012, 0.0
        %vm5549 = vcmp.ge.f32.partialorder %v2013, 0.0
        %vm5550 = vcmp.ge.f32.partialorder %v2014, 0.0
        %vm5551 = vcmp.ge.f32.partialorder %v2015, 0.0
        %vm5552 = vcmp.ge.f32.partialorder %v2016, 0.0
        %vm5553 = vcmp.ge.f32.partialorder %v2017, 0.0
        %vm5554 = vcmp.ge.f32.partialorder %v2018, 0.0
        %vm5555 = vcmp.ge.f32.partialorder %v2019, 0.0
        %vm5556 = vcmp.ge.f32.partialorder %v2020, 0.0
        %vm5557 = vcmp.ge.f32.partialorder %v2021, 0.0
        %vm5558 = vcmp.ge.f32.partialorder %v2022, 0.0
        %vm5559 = vcmp.ge.f32.partialorder %v2023, 0.0
        %vm5560 = vcmp.ge.f32.partialorder %v2024, 0.0
        %vm5561 = vcmp.ge.f32.partialorder %v2025, 0.0
        %vm5562 = vcmp.ge.f32.partialorder %v2026, 0.0
        %vm5563 = vcmp.ge.f32.partialorder %v2027, 0.0
        %vm5564 = vcmp.ge.f32.partialorder %v2028, 0.0
        %vm5565 = vcmp.ge.f32.partialorder %v2029, 0.0
        %vm5566 = vcmp.ge.f32.partialorder %v2030, 0.0
        %vm5567 = vcmp.ge.f32.partialorder %v2031, 0.0
        %vm5568 = vcmp.ge.f32.partialorder %v2032, 0.0
        %vm5569 = vcmp.ge.f32.partialorder %v2033, 0.0
        %vm5570 = vcmp.ge.f32.partialorder %v2034, 0.0
        %vm5571 = vcmp.ge.f32.partialorder %v2035, 0.0
        %vm5572 = vcmp.ge.f32.partialorder %v2036, 0.0
        %vm5573 = vcmp.ge.f32.partialorder %v2037, 0.0
        %vm5574 = vcmp.ge.f32.partialorder %v2038, 0.0
        %vm5575 = vcmp.ge.f32.partialorder %v2039, 0.0
        %vm5576 = vcmp.ge.f32.partialorder %v2040, 0.0
        %vm5577 = vcmp.ge.f32.partialorder %v2041, 0.0
        %vm5578 = vcmp.ge.f32.partialorder %v2042, 0.0
        %vm5579 = vcmp.ge.f32.partialorder %v2043, 0.0
        %vm5580 = vcmp.ge.f32.partialorder %v2044, 0.0
        %vm5581 = vcmp.ge.f32.partialorder %v2045, 0.0
        %vm5582 = vcmp.ge.f32.partialorder %v2046, 0.0
        %vm5583 = vcmp.ge.f32.partialorder %v2047, 0.0
        %vm5584 = vcmp.ge.f32.partialorder %v2048, 0.0
        %vm5585 = vcmp.ge.f32.partialorder %v2049, 0.0
        %vm5586 = vcmp.ge.f32.partialorder %v2050, 0.0
        %vm5587 = vcmp.ge.f32.partialorder %v2051, 0.0
        %vm5588 = vcmp.ge.f32.partialorder %v2052, 0.0
        %vm5589 = vcmp.ge.f32.partialorder %v2053, 0.0
        %vm5590 = vcmp.ge.f32.partialorder %v2054, 0.0
        %vm5591 = vcmp.ge.f32.partialorder %v2055, 0.0
        %vm5592 = vcmp.ge.f32.partialorder %v2056, 0.0
        %vm5593 = vcmp.ge.f32.partialorder %v2057, 0.0
        %vm5594 = vcmp.ge.f32.partialorder %v2058, 0.0
        %vm5595 = vcmp.ge.f32.partialorder %v2059, 0.0
        %vm5596 = vcmp.ge.f32.partialorder %v2060, 0.0
        %vm5597 = vcmp.ge.f32.partialorder %v2061, 0.0
        %vm5598 = vcmp.ge.f32.partialorder %v2062, 0.0
        %vm5599 = vcmp.ge.f32.partialorder %v2063, 0.0
        %vm5600 = vcmp.ge.f32.partialorder %v2064, 0.0
        %vm5601 = vcmp.ge.f32.partialorder %v2065, 0.0
        %vm5602 = vcmp.ge.f32.partialorder %v2066, 0.0
        %vm5603 = vcmp.ge.f32.partialorder %v2067, 0.0
        %vm5604 = vcmp.ge.f32.partialorder %v2068, 0.0
        %vm5605 = vcmp.ge.f32.partialorder %v2069, 0.0
        %vm5606 = vcmp.ge.f32.partialorder %v2070, 0.0
        %vm5607 = vcmp.ge.f32.partialorder %v2071, 0.0
        %vm5608 = vcmp.ge.f32.partialorder %v2072, 0.0
        %vm5609 = vcmp.ge.f32.partialorder %v2073, 0.0
        %vm5610 = vcmp.ge.f32.partialorder %v2074, 0.0
        %vm5611 = vcmp.ge.f32.partialorder %v2075, 0.0
        %vm5612 = vcmp.ge.f32.partialorder %v2076, 0.0
        %vm5613 = vcmp.ge.f32.partialorder %v2077, 0.0
        %vm5614 = vcmp.ge.f32.partialorder %v2078, 0.0
        %vm5615 = vcmp.ge.f32.partialorder %v2079, 0.0
        %vm5616 = vcmp.ge.f32.partialorder %v2080, 0.0
        %vm5617 = vcmp.ge.f32.partialorder %v2081, 0.0
        %vm5618 = vcmp.ge.f32.partialorder %v2082, 0.0
        %vm5619 = vcmp.ge.f32.partialorder %v2083, 0.0
        %vm5620 = vcmp.ge.f32.partialorder %v2084, 0.0
        %vm5621 = vcmp.ge.f32.partialorder %v2085, 0.0
        %vm5622 = vcmp.ge.f32.partialorder %v2086, 0.0
        %vm5623 = vcmp.ge.f32.partialorder %v2087, 0.0
        %vm5624 = vcmp.ge.f32.partialorder %v2088, 0.0
        %vm5625 = vcmp.ge.f32.partialorder %v2089, 0.0
        %vm5626 = vcmp.ge.f32.partialorder %v2090, 0.0
        %vm5627 = vcmp.ge.f32.partialorder %v2091, 0.0
        %vm5628 = vcmp.ge.f32.partialorder %v2092, 0.0
        %vm5629 = vcmp.ge.f32.partialorder %v2093, 0.0
        %vm5630 = vcmp.ge.f32.partialorder %v2094, 0.0
        %vm5631 = vcmp.ge.f32.partialorder %v2095, 0.0
        %vm5632 = vcmp.ge.f32.partialorder %v2096, 0.0
        %vm5633 = vcmp.ge.f32.partialorder %v2097, 0.0
        %vm5634 = vcmp.ge.f32.partialorder %v2098, 0.0
        %vm5635 = vcmp.ge.f32.partialorder %v2099, 0.0
        %vm5636 = vcmp.ge.f32.partialorder %v2100, 0.0
        %vm5637 = vcmp.ge.f32.partialorder %v2101, 0.0
        %v5638 = vsub.f32 0.0, %v5430
        %v5639 = vsub.f32 0.0, %v5431
        %v5640 = vsub.f32 0.0, %v5432
        %v5641 = vsub.f32 0.0, %v5433
        %v5642 = vsub.f32 0.0, %v5434
        %v5643 = vsub.f32 0.0, %v5435
        %v5644 = vsub.f32 0.0, %v5436
        %v5645 = vsub.f32 0.0, %v5437
        %v5646 = vsub.f32 0.0, %v5438
        %v5647 = vsub.f32 0.0, %v5439
        %v5648 = vsub.f32 0.0, %v5440
        %v5649 = vsub.f32 0.0, %v5441
        %v5650 = vsub.f32 0.0, %v5442
        %v5651 = vsub.f32 0.0, %v5443
        %v5652 = vsub.f32 0.0, %v5444
        %v5653 = vsub.f32 0.0, %v5445
        %v5654 = vsub.f32 0.0, %v5446
        %v5655 = vsub.f32 0.0, %v5447
        %v5656 = vsub.f32 0.0, %v5448
        %v5657 = vsub.f32 0.0, %v5449
        %v5658 = vsub.f32 0.0, %v5450
        %v5659 = vsub.f32 0.0, %v5451
        %v5660 = vsub.f32 0.0, %v5452
        %v5661 = vsub.f32 0.0, %v5453
        %v5662 = vsub.f32 0.0, %v5454
        %v5663 = vsub.f32 0.0, %v5455
        %v5664 = vsub.f32 0.0, %v5456
        %v5665 = vsub.f32 0.0, %v5457
        %v5666 = vsub.f32 0.0, %v5458
        %v5667 = vsub.f32 0.0, %v5459
        %v5668 = vsub.f32 0.0, %v5460
        %v5669 = vsub.f32 0.0, %v5461
        %v5670 = vsub.f32 0.0, %v5462
        %v5671 = vsub.f32 0.0, %v5463
        %v5672 = vsub.f32 0.0, %v5464
        %v5673 = vsub.f32 0.0, %v5465
        %v5674 = vsub.f32 0.0, %v5466
        %v5675 = vsub.f32 0.0, %v5467
        %v5676 = vsub.f32 0.0, %v5468
        %v5677 = vsub.f32 0.0, %v5469
        %v5678 = vsub.f32 0.0, %v5470
        %v5679 = vsub.f32 0.0, %v5471
        %v5680 = vsub.f32 0.0, %v5472
        %v5681 = vsub.f32 0.0, %v5473
        %v5682 = vsub.f32 0.0, %v5474
        %v5683 = vsub.f32 0.0, %v5475
        %v5684 = vsub.f32 0.0, %v5476
        %v5685 = vsub.f32 0.0, %v5477
        %v5686 = vsub.f32 0.0, %v5478
        %v5687 = vsub.f32 0.0, %v5479
        %v5688 = vsub.f32 0.0, %v5480
        %v5689 = vsub.f32 0.0, %v5481
        %v5690 = vsub.f32 0.0, %v5482
        %v5691 = vsub.f32 0.0, %v5483
        %v5692 = vsub.f32 0.0, %v5484
        %v5693 = vsub.f32 0.0, %v5485
        %v5694 = vsub.f32 0.0, %v5486
        %v5695 = vsub.f32 0.0, %v5487
        %v5696 = vsub.f32 0.0, %v5488
        %v5697 = vsub.f32 0.0, %v5489
        %v5698 = vsub.f32 0.0, %v5490
        %v5699 = vsub.f32 0.0, %v5491
        %v5700 = vsub.f32 0.0, %v5492
        %v5701 = vsub.f32 0.0, %v5493
        %v5702 = vsub.f32 0.0, %v5494
        %v5703 = vsub.f32 0.0, %v5495
        %v5704 = vsub.f32 0.0, %v5496
        %v5705 = vsub.f32 0.0, %v5497
        %v5706 = vsub.f32 0.0, %v5498
        %v5707 = vsub.f32 0.0, %v5499
        %v5708 = vsub.f32 0.0, %v5500
        %v5709 = vsub.f32 0.0, %v5501
        %v5710 = vsub.f32 0.0, %v5502
        %v5711 = vsub.f32 0.0, %v5503
        %v5712 = vsub.f32 0.0, %v5504
        %v5713 = vsub.f32 0.0, %v5505
        %v5714 = vsub.f32 0.0, %v5506
        %v5715 = vsub.f32 0.0, %v5507
        %v5716 = vsub.f32 0.0, %v5508
        %v5717 = vsub.f32 0.0, %v5509
        %v5718 = vsub.f32 0.0, %v5510
        %v5719 = vsub.f32 0.0, %v5511
        %v5720 = vsub.f32 0.0, %v5512
        %v5721 = vsub.f32 0.0, %v5513
        %v5722 = vsub.f32 0.0, %v5514
        %v5723 = vsub.f32 0.0, %v5515
        %v5724 = vsub.f32 0.0, %v5516
        %v5725 = vsub.f32 0.0, %v5517
        %v5726 = vsub.f32 0.0, %v5518
        %v5727 = vsub.f32 0.0, %v5519
        %v5728 = vsub.f32 0.0, %v5520
        %v5729 = vsub.f32 0.0, %v5521
        %v5730 = vsub.f32 0.0, %v5522
        %v5731 = vsub.f32 0.0, %v5523
        %v5732 = vsub.f32 0.0, %v5524
        %v5733 = vsub.f32 0.0, %v5525
        %v5734 = vsub.f32 0.0, %v5526
        %v5735 = vsub.f32 0.0, %v5527
        %v5736 = vsub.f32 0.0, %v5528
        %v5737 = vsub.f32 0.0, %v5529
        %v5738 = vsub.f32 0.0, %v5530
        %v5739 = vsub.f32 0.0, %v5531
        %v5740 = vsub.f32 0.0, %v5532
        %v5741 = vsub.f32 0.0, %v5533
        %v5742 = vsel %vm5534, %v5430, %v5638
        %v5743 = vsel %vm5535, %v5431, %v5639
        %v5744 = vsel %vm5536, %v5432, %v5640
        %v5745 = vsel %vm5537, %v5433, %v5641
        %v5746 = vsel %vm5538, %v5434, %v5642
        %v5747 = vsel %vm5539, %v5435, %v5643
        %v5748 = vsel %vm5540, %v5436, %v5644
        %v5749 = vsel %vm5541, %v5437, %v5645
        %v5750 = vsel %vm5542, %v5438, %v5646
        %v5751 = vsel %vm5543, %v5439, %v5647
        %v5752 = vsel %vm5544, %v5440, %v5648
        %v5753 = vsel %vm5545, %v5441, %v5649
        %v5754 = vsel %vm5546, %v5442, %v5650
        %v5755 = vsel %vm5547, %v5443, %v5651
        %v5756 = vsel %vm5548, %v5444, %v5652
        %v5757 = vsel %vm5549, %v5445, %v5653
        %v5758 = vsel %vm5550, %v5446, %v5654
        %v5759 = vsel %vm5551, %v5447, %v5655
        %v5760 = vsel %vm5552, %v5448, %v5656
        %v5761 = vsel %vm5553, %v5449, %v5657
        %v5762 = vsel %vm5554, %v5450, %v5658
        %v5763 = vsel %vm5555, %v5451, %v5659
        %v5764 = vsel %vm5556, %v5452, %v5660
        %v5765 = vsel %vm5557, %v5453, %v5661
        %v5766 = vsel %vm5558, %v5454, %v5662
        %v5767 = vsel %vm5559, %v5455, %v5663
        %v5768 = vsel %vm5560, %v5456, %v5664
        %v5769 = vsel %vm5561, %v5457, %v5665
        %v5770 = vsel %vm5562, %v5458, %v5666
        %v5771 = vsel %vm5563, %v5459, %v5667
        %v5772 = vsel %vm5564, %v5460, %v5668
        %v5773 = vsel %vm5565, %v5461, %v5669
        %v5774 = vsel %vm5566, %v5462, %v5670
        %v5775 = vsel %vm5567, %v5463, %v5671
        %v5776 = vsel %vm5568, %v5464, %v5672
        %v5777 = vsel %vm5569, %v5465, %v5673
        %v5778 = vsel %vm5570, %v5466, %v5674
        %v5779 = vsel %vm5571, %v5467, %v5675
        %v5780 = vsel %vm5572, %v5468, %v5676
        %v5781 = vsel %vm5573, %v5469, %v5677
        %v5782 = vsel %vm5574, %v5470, %v5678
        %v5783 = vsel %vm5575, %v5471, %v5679
        %v5784 = vsel %vm5576, %v5472, %v5680
        %v5785 = vsel %vm5577, %v5473, %v5681
        %v5786 = vsel %vm5578, %v5474, %v5682
        %v5787 = vsel %vm5579, %v5475, %v5683
        %v5788 = vsel %vm5580, %v5476, %v5684
        %v5789 = vsel %vm5581, %v5477, %v5685
        %v5790 = vsel %vm5582, %v5478, %v5686
        %v5791 = vsel %vm5583, %v5479, %v5687
        %v5792 = vsel %vm5584, %v5480, %v5688
        %v5793 = vsel %vm5585, %v5481, %v5689
        %v5794 = vsel %vm5586, %v5482, %v5690
        %v5795 = vsel %vm5587, %v5483, %v5691
        %v5796 = vsel %vm5588, %v5484, %v5692
        %v5797 = vsel %vm5589, %v5485, %v5693
        %v5798 = vsel %vm5590, %v5486, %v5694
        %v5799 = vsel %vm5591, %v5487, %v5695
        %v5800 = vsel %vm5592, %v5488, %v5696
        %v5801 = vsel %vm5593, %v5489, %v5697
        %v5802 = vsel %vm5594, %v5490, %v5698
        %v5803 = vsel %vm5595, %v5491, %v5699
        %v5804 = vsel %vm5596, %v5492, %v5700
        %v5805 = vsel %vm5597, %v5493, %v5701
        %v5806 = vsel %vm5598, %v5494, %v5702
        %v5807 = vsel %vm5599, %v5495, %v5703
        %v5808 = vsel %vm5600, %v5496, %v5704
        %v5809 = vsel %vm5601, %v5497, %v5705
        %v5810 = vsel %vm5602, %v5498, %v5706
        %v5811 = vsel %vm5603, %v5499, %v5707
        %v5812 = vsel %vm5604, %v5500, %v5708
        %v5813 = vsel %vm5605, %v5501, %v5709
        %v5814 = vsel %vm5606, %v5502, %v5710
        %v5815 = vsel %vm5607, %v5503, %v5711
        %v5816 = vsel %vm5608, %v5504, %v5712
        %v5817 = vsel %vm5609, %v5505, %v5713
        %v5818 = vsel %vm5610, %v5506, %v5714
        %v5819 = vsel %vm5611, %v5507, %v5715
        %v5820 = vsel %vm5612, %v5508, %v5716
        %v5821 = vsel %vm5613, %v5509, %v5717
        %v5822 = vsel %vm5614, %v5510, %v5718
        %v5823 = vsel %vm5615, %v5511, %v5719
        %v5824 = vsel %vm5616, %v5512, %v5720
        %v5825 = vsel %vm5617, %v5513, %v5721
        %v5826 = vsel %vm5618, %v5514, %v5722
        %v5827 = vsel %vm5619, %v5515, %v5723
        %v5828 = vsel %vm5620, %v5516, %v5724
        %v5829 = vsel %vm5621, %v5517, %v5725
        %v5830 = vsel %vm5622, %v5518, %v5726
        %v5831 = vsel %vm5623, %v5519, %v5727
        %v5832 = vsel %vm5624, %v5520, %v5728
        %v5833 = vsel %vm5625, %v5521, %v5729
        %v5834 = vsel %vm5626, %v5522, %v5730
        %v5835 = vsel %vm5627, %v5523, %v5731
        %v5836 = vsel %vm5628, %v5524, %v5732
        %v5837 = vsel %vm5629, %v5525, %v5733
        %v5838 = vsel %vm5630, %v5526, %v5734
        %v5839 = vsel %vm5631, %v5527, %v5735
        %v5840 = vsel %vm5632, %v5528, %v5736
        %v5841 = vsel %vm5633, %v5529, %v5737
        %v5842 = vsel %vm5634, %v5530, %v5738
        %v5843 = vsel %vm5635, %v5531, %v5739
        %v5844 = vsel %vm5636, %v5532, %v5740
        %v5845 = vsel %vm5637, %v5533, %v5741
        %v5846 = vmul.f32 %v1739, 0.5
        %v5847 = vmul.f32 %v1741, 0.5
        %v5848 = vmul.f32 %v1744, 0.5
        %v5849 = vmul.f32 %v1746, 0.5
        %v5850 = vmul.f32 %v1749, 0.5
        %v5851 = vmul.f32 %v1751, 0.5
        %v5852 = vmul.f32 %v1754, 0.5
        %v5853 = vmul.f32 %v1756, 0.5
        %v5854 = vmul.f32 %v1759, 0.5
        %v5855 = vmul.f32 %v1761, 0.5
        %v5856 = vmul.f32 %v1764, 0.5
        %v5857 = vmul.f32 %v1766, 0.5
        %v5858 = vmul.f32 %v1769, 0.5
        %v5859 = vmul.f32 %v1771, 0.5
        %v5860 = vmul.f32 %v1774, 0.5
        %v5861 = vmul.f32 %v1776, 0.5
        %v5862 = vmul.f32 %v1779, 0.5
        %v5863 = vmul.f32 %v1781, 0.5
        %v5864 = vmul.f32 %v1784, 0.5
        %v5865 = vmul.f32 %v1786, 0.5
        %v5866 = vmul.f32 %v1789, 0.5
        %v5867 = vmul.f32 %v1791, 0.5
        %v5868 = vmul.f32 %v1794, 0.5
        %v5869 = vmul.f32 %v1796, 0.5
        %v5870 = vmul.f32 %v1799, 0.5
        %v5871 = vmul.f32 %v1801, 0.5
        %v5872 = vmul.f32 %v1804, 0.5
        %v5873 = vmul.f32 %v1806, 0.5
        %v5874 = vmul.f32 %v1809, 0.5
        %v5875 = vmul.f32 %v1811, 0.5
        %v5876 = vmul.f32 %v1814, 0.5
        %v5877 = vmul.f32 %v1816, 0.5
        %v5878 = vmul.f32 %v1819, 0.5
        %v5879 = vmul.f32 %v1821, 0.5
        %v5880 = vmul.f32 %v1824, 0.5
        %v5881 = vmul.f32 %v1826, 0.5
        %v5882 = vmul.f32 %v1829, 0.5
        %v5883 = vmul.f32 %v1831, 0.5
        %v5884 = vmul.f32 %v1834, 0.5
        %v5885 = vmul.f32 %v1836, 0.5
        %v5886 = vmul.f32 %v1839, 0.5
        %v5887 = vmul.f32 %v1841, 0.5
        %v5888 = vmul.f32 %v1844, 0.5
        %v5889 = vmul.f32 %v1846, 0.5
        %v5890 = vmul.f32 %v1849, 0.5
        %v5891 = vmul.f32 %v1851, 0.5
        %v5892 = vmul.f32 %v1854, 0.5
        %v5893 = vmul.f32 %v1856, 0.5
        %v5894 = vmul.f32 %v1859, 0.5
        %v5895 = vmul.f32 %v1861, 0.5
        %v5896 = vmul.f32 %v1864, 0.5
        %v5897 = vmul.f32 %v1866, 0.5
        %v5898 = vmul.f32 %v1869, 0.5
        %v5899 = vmul.f32 %v1871, 0.5
        %v5900 = vmul.f32 %v1874, 0.5
        %v5901 = vmul.f32 %v1876, 0.5
        %v5902 = vmul.f32 %v1879, 0.5
        %v5903 = vmul.f32 %v1881, 0.5
        %v5904 = vmul.f32 %v1884, 0.5
        %v5905 = vmul.f32 %v1886, 0.5
        %v5906 = vmul.f32 %v1889, 0.5
        %v5907 = vmul.f32 %v1891, 0.5
        %v5908 = vmul.f32 %v1894, 0.5
        %v5909 = vmul.f32 %v1896, 0.5
        %v5910 = vmul.f32 %v1899, 0.5
        %v5911 = vmul.f32 %v1901, 0.5
        %v5912 = vmul.f32 %v1904, 0.5
        %v5913 = vmul.f32 %v1906, 0.5
        %v5914 = vmul.f32 %v1909, 0.5
        %v5915 = vmul.f32 %v1911, 0.5
        %v5916 = vmul.f32 %v1914, 0.5
        %v5917 = vmul.f32 %v1916, 0.5
        %v5918 = vmul.f32 %v1919, 0.5
        %v5919 = vmul.f32 %v1921, 0.5
        %v5920 = vmul.f32 %v1924, 0.5
        %v5921 = vmul.f32 %v1926, 0.5
        %v5922 = vmul.f32 %v1929, 0.5
        %v5923 = vmul.f32 %v1931, 0.5
        %v5924 = vmul.f32 %v1934, 0.5
        %v5925 = vmul.f32 %v1936, 0.5
        %v5926 = vmul.f32 %v1939, 0.5
        %v5927 = vmul.f32 %v1941, 0.5
        %v5928 = vmul.f32 %v1944, 0.5
        %v5929 = vmul.f32 %v1946, 0.5
        %v5930 = vmul.f32 %v1949, 0.5
        %v5931 = vmul.f32 %v1951, 0.5
        %v5932 = vmul.f32 %v1954, 0.5
        %v5933 = vmul.f32 %v1956, 0.5
        %v5934 = vmul.f32 %v1959, 0.5
        %v5935 = vmul.f32 %v1961, 0.5
        %v5936 = vmul.f32 %v1964, 0.5
        %v5937 = vmul.f32 %v1966, 0.5
        %v5938 = vmul.f32 %v1969, 0.5
        %v5939 = vmul.f32 %v1971, 0.5
        %v5940 = vmul.f32 %v1974, 0.5
        %v5941 = vmul.f32 %v1976, 0.5
        %v5942 = vmul.f32 %v1979, 0.5
        %v5943 = vmul.f32 %v1981, 0.5
        %v5944 = vmul.f32 %v1984, 0.5
        %v5945 = vmul.f32 %v1986, 0.5
        %v5946 = vmul.f32 %v1989, 0.5
        %v5947 = vmul.f32 %v1991, 0.5
        %v5948 = vmul.f32 %v1994, 0.5
        %v5949 = vmul.f32 %v1996, 0.5
        %v5950 = vadd.f32 %v5742, 1.0
        %v5951 = vadd.f32 %v5743, 1.0
        %v5952 = vadd.f32 %v5744, 1.0
        %v5953 = vadd.f32 %v5745, 1.0
        %v5954 = vadd.f32 %v5746, 1.0
        %v5955 = vadd.f32 %v5747, 1.0
        %v5956 = vadd.f32 %v5748, 1.0
        %v5957 = vadd.f32 %v5749, 1.0
        %v5958 = vadd.f32 %v5750, 1.0
        %v5959 = vadd.f32 %v5751, 1.0
        %v5960 = vadd.f32 %v5752, 1.0
        %v5961 = vadd.f32 %v5753, 1.0
        %v5962 = vadd.f32 %v5754, 1.0
        %v5963 = vadd.f32 %v5755, 1.0
        %v5964 = vadd.f32 %v5756, 1.0
        %v5965 = vadd.f32 %v5757, 1.0
        %v5966 = vadd.f32 %v5758, 1.0
        %v5967 = vadd.f32 %v5759, 1.0
        %v5968 = vadd.f32 %v5760, 1.0
        %v5969 = vadd.f32 %v5761, 1.0
        %v5970 = vadd.f32 %v5762, 1.0
        %v5971 = vadd.f32 %v5763, 1.0
        %v5972 = vadd.f32 %v5764, 1.0
        %v5973 = vadd.f32 %v5765, 1.0
        %v5974 = vadd.f32 %v5766, 1.0
        %v5975 = vadd.f32 %v5767, 1.0
        %v5976 = vadd.f32 %v5768, 1.0
        %v5977 = vadd.f32 %v5769, 1.0
        %v5978 = vadd.f32 %v5770, 1.0
        %v5979 = vadd.f32 %v5771, 1.0
        %v5980 = vadd.f32 %v5772, 1.0
        %v5981 = vadd.f32 %v5773, 1.0
        %v5982 = vadd.f32 %v5774, 1.0
        %v5983 = vadd.f32 %v5775, 1.0
        %v5984 = vadd.f32 %v5776, 1.0
        %v5985 = vadd.f32 %v5777, 1.0
        %v5986 = vadd.f32 %v5778, 1.0
        %v5987 = vadd.f32 %v5779, 1.0
        %v5988 = vadd.f32 %v5780, 1.0
        %v5989 = vadd.f32 %v5781, 1.0
        %v5990 = vadd.f32 %v5782, 1.0
        %v5991 = vadd.f32 %v5783, 1.0
        %v5992 = vadd.f32 %v5784, 1.0
        %v5993 = vadd.f32 %v5785, 1.0
        %v5994 = vadd.f32 %v5786, 1.0
        %v5995 = vadd.f32 %v5787, 1.0
        %v5996 = vadd.f32 %v5788, 1.0
        %v5997 = vadd.f32 %v5789, 1.0
        %v5998 = vadd.f32 %v5790, 1.0
        %v5999 = vadd.f32 %v5791, 1.0
        %v6000 = vadd.f32 %v5792, 1.0
        %v6001 = vadd.f32 %v5793, 1.0
        %v6002 = vadd.f32 %v5794, 1.0
        %v6003 = vadd.f32 %v5795, 1.0
        %v6004 = vadd.f32 %v5796, 1.0
        %v6005 = vadd.f32 %v5797, 1.0
        %v6006 = vadd.f32 %v5798, 1.0
        %v6007 = vadd.f32 %v5799, 1.0
        %v6008 = vadd.f32 %v5800, 1.0
        %v6009 = vadd.f32 %v5801, 1.0
        %v6010 = vadd.f32 %v5802, 1.0
        %v6011 = vadd.f32 %v5803, 1.0
        %v6012 = vadd.f32 %v5804, 1.0
        %v6013 = vadd.f32 %v5805, 1.0
        %v6014 = vadd.f32 %v5806, 1.0
        %v6015 = vadd.f32 %v5807, 1.0
        %v6016 = vadd.f32 %v5808, 1.0
        %v6017 = vadd.f32 %v5809, 1.0
        %v6018 = vadd.f32 %v5810, 1.0
        %v6019 = vadd.f32 %v5811, 1.0
        %v6020 = vadd.f32 %v5812, 1.0
        %v6021 = vadd.f32 %v5813, 1.0
        %v6022 = vadd.f32 %v5814, 1.0
        %v6023 = vadd.f32 %v5815, 1.0
        %v6024 = vadd.f32 %v5816, 1.0
        %v6025 = vadd.f32 %v5817, 1.0
        %v6026 = vadd.f32 %v5818, 1.0
        %v6027 = vadd.f32 %v5819, 1.0
        %v6028 = vadd.f32 %v5820, 1.0
        %v6029 = vadd.f32 %v5821, 1.0
        %v6030 = vadd.f32 %v5822, 1.0
        %v6031 = vadd.f32 %v5823, 1.0
        %v6032 = vadd.f32 %v5824, 1.0
        %v6033 = vadd.f32 %v5825, 1.0
        %v6034 = vadd.f32 %v5826, 1.0
        %v6035 = vadd.f32 %v5827, 1.0
        %v6036 = vadd.f32 %v5828, 1.0
        %v6037 = vadd.f32 %v5829, 1.0
        %v6038 = vadd.f32 %v5830, 1.0
        %v6039 = vadd.f32 %v5831, 1.0
        %v6040 = vadd.f32 %v5832, 1.0
        %v6041 = vadd.f32 %v5833, 1.0
        %v6042 = vadd.f32 %v5834, 1.0
        %v6043 = vadd.f32 %v5835, 1.0
        %v6044 = vadd.f32 %v5836, 1.0
        %v6045 = vadd.f32 %v5837, 1.0
        %v6046 = vadd.f32 %v5838, 1.0
        %v6047 = vadd.f32 %v5839, 1.0
        %v6048 = vadd.f32 %v5840, 1.0
        %v6049 = vadd.f32 %v5841, 1.0
        %v6050 = vadd.f32 %v5842, 1.0
        %v6051 = vadd.f32 %v5843, 1.0
        %v6052 = vadd.f32 %v5844, 1.0
        %v6053 = vadd.f32 %v5845, 1.0
        %v6054 = vmul.f32 %v5846, %v5950
        %v6055 = vmul.f32 %v5847, %v5951
        %v6056 = vmul.f32 %v5848, %v5952
        %v6057 = vmul.f32 %v5849, %v5953
        %v6058 = vmul.f32 %v5850, %v5954
        %v6059 = vmul.f32 %v5851, %v5955
        %v6060 = vmul.f32 %v5852, %v5956
        %v6061 = vmul.f32 %v5853, %v5957
        %v6062 = vmul.f32 %v5854, %v5958
        %v6063 = vmul.f32 %v5855, %v5959
        %v6064 = vmul.f32 %v5856, %v5960
        %v6065 = vmul.f32 %v5857, %v5961
        %v6066 = vmul.f32 %v5858, %v5962
        %v6067 = vmul.f32 %v5859, %v5963
        %v6068 = vmul.f32 %v5860, %v5964
        %v6069 = vmul.f32 %v5861, %v5965
        %v6070 = vmul.f32 %v5862, %v5966
        %v6071 = vmul.f32 %v5863, %v5967
        %v6072 = vmul.f32 %v5864, %v5968
        %v6073 = vmul.f32 %v5865, %v5969
        %v6074 = vmul.f32 %v5866, %v5970
        %v6075 = vmul.f32 %v5867, %v5971
        %v6076 = vmul.f32 %v5868, %v5972
        %v6077 = vmul.f32 %v5869, %v5973
        %v6078 = vmul.f32 %v5870, %v5974
        %v6079 = vmul.f32 %v5871, %v5975
        %v6080 = vmul.f32 %v5872, %v5976
        %v6081 = vmul.f32 %v5873, %v5977
        %v6082 = vmul.f32 %v5874, %v5978
        %v6083 = vmul.f32 %v5875, %v5979
        %v6084 = vmul.f32 %v5876, %v5980
        %v6085 = vmul.f32 %v5877, %v5981
        %v6086 = vmul.f32 %v5878, %v5982
        %v6087 = vmul.f32 %v5879, %v5983
        %v6088 = vmul.f32 %v5880, %v5984
        %v6089 = vmul.f32 %v5881, %v5985
        %v6090 = vmul.f32 %v5882, %v5986
        %v6091 = vmul.f32 %v5883, %v5987
        %v6092 = vmul.f32 %v5884, %v5988
        %v6093 = vmul.f32 %v5885, %v5989
        %v6094 = vmul.f32 %v5886, %v5990
        %v6095 = vmul.f32 %v5887, %v5991
        %v6096 = vmul.f32 %v5888, %v5992
        %v6097 = vmul.f32 %v5889, %v5993
        %v6098 = vmul.f32 %v5890, %v5994
        %v6099 = vmul.f32 %v5891, %v5995
        %v6100 = vmul.f32 %v5892, %v5996
        %v6101 = vmul.f32 %v5893, %v5997
        %v6102 = vmul.f32 %v5894, %v5998
        %v6103 = vmul.f32 %v5895, %v5999
        %v6104 = vmul.f32 %v5896, %v6000
        %v6105 = vmul.f32 %v5897, %v6001
        %v6106 = vmul.f32 %v5898, %v6002
        %v6107 = vmul.f32 %v5899, %v6003
        %v6108 = vmul.f32 %v5900, %v6004
        %v6109 = vmul.f32 %v5901, %v6005
        %v6110 = vmul.f32 %v5902, %v6006
        %v6111 = vmul.f32 %v5903, %v6007
        %v6112 = vmul.f32 %v5904, %v6008
        %v6113 = vmul.f32 %v5905, %v6009
        %v6114 = vmul.f32 %v5906, %v6010
        %v6115 = vmul.f32 %v5907, %v6011
        %v6116 = vmul.f32 %v5908, %v6012
        %v6117 = vmul.f32 %v5909, %v6013
        %v6118 = vmul.f32 %v5910, %v6014
        %v6119 = vmul.f32 %v5911, %v6015
        %v6120 = vmul.f32 %v5912, %v6016
        %v6121 = vmul.f32 %v5913, %v6017
        %v6122 = vmul.f32 %v5914, %v6018
        %v6123 = vmul.f32 %v5915, %v6019
        %v6124 = vmul.f32 %v5916, %v6020
        %v6125 = vmul.f32 %v5917, %v6021
        %v6126 = vmul.f32 %v5918, %v6022
        %v6127 = vmul.f32 %v5919, %v6023
        %v6128 = vmul.f32 %v5920, %v6024
        %v6129 = vmul.f32 %v5921, %v6025
        %v6130 = vmul.f32 %v5922, %v6026
        %v6131 = vmul.f32 %v5923, %v6027
        %v6132 = vmul.f32 %v5924, %v6028
        %v6133 = vmul.f32 %v5925, %v6029
        %v6134 = vmul.f32 %v5926, %v6030
        %v6135 = vmul.f32 %v5927, %v6031
        %v6136 = vmul.f32 %v5928, %v6032
        %v6137 = vmul.f32 %v5929, %v6033
        %v6138 = vmul.f32 %v5930, %v6034
        %v6139 = vmul.f32 %v5931, %v6035
        %v6140 = vmul.f32 %v5932, %v6036
        %v6141 = vmul.f32 %v5933, %v6037
        %v6142 = vmul.f32 %v5934, %v6038
        %v6143 = vmul.f32 %v5935, %v6039
        %v6144 = vmul.f32 %v5936, %v6040
        %v6145 = vmul.f32 %v5937, %v6041
        %v6146 = vmul.f32 %v5938, %v6042
        %v6147 = vmul.f32 %v5939, %v6043
        %v6148 = vmul.f32 %v5940, %v6044
        %v6149 = vmul.f32 %v5941, %v6045
        %v6150 = vmul.f32 %v5942, %v6046
        %v6151 = vmul.f32 %v5943, %v6047
        %v6152 = vmul.f32 %v5944, %v6048
        %v6153 = vmul.f32 %v5945, %v6049
        %v6154 = vmul.f32 %v5946, %v6050
        %v6155 = vmul.f32 %v5947, %v6051
        %v6156 = vmul.f32 %v5948, %v6052
        %v6157 = vmul.f32 %v5949, %v6053
        %v6158 = vmax.f32 %v6054, %v6080
        %v6159 = vmax.f32 %v6055, %v6081
        %v6160 = vmax.f32 %v6056, %v6082
        %v6161 = vmax.f32 %v6057, %v6083
        %v6162 = vmax.f32 %v6058, %v6084
        %v6163 = vmax.f32 %v6059, %v6085
        %v6164 = vmax.f32 %v6060, %v6086
        %v6165 = vmax.f32 %v6061, %v6087
        %v6166 = vmax.f32 %v6062, %v6088
        %v6167 = vmax.f32 %v6063, %v6089
        %v6168 = vmax.f32 %v6064, %v6090
        %v6169 = vmax.f32 %v6065, %v6091
        %v6170 = vmax.f32 %v6066, %v6092
        %v6171 = vmax.f32 %v6067, %v6093
        %v6172 = vmax.f32 %v6068, %v6094
        %v6173 = vmax.f32 %v6069, %v6095
        %v6174 = vmax.f32 %v6070, %v6096
        %v6175 = vmax.f32 %v6071, %v6097
        %v6176 = vmax.f32 %v6072, %v6098
        %v6177 = vmax.f32 %v6073, %v6099
        %v6178 = vmax.f32 %v6074, %v6100
        %v6179 = vmax.f32 %v6075, %v6101
        %v6180 = vmax.f32 %v6076, %v6102
        %v6181 = vmax.f32 %v6077, %v6103
        %v6182 = vmax.f32 %v6078, %v6104
        %v6183 = vmax.f32 %v6079, %v6105
        %v6184 = vmax.f32 %v6106, %v6132
        %v6185 = vmax.f32 %v6107, %v6133
        %v6186 = vmax.f32 %v6108, %v6134
        %v6187 = vmax.f32 %v6109, %v6135
        %v6188 = vmax.f32 %v6110, %v6136
        %v6189 = vmax.f32 %v6111, %v6137
        %v6190 = vmax.f32 %v6112, %v6138
        %v6191 = vmax.f32 %v6113, %v6139
        %v6192 = vmax.f32 %v6114, %v6140
        %v6193 = vmax.f32 %v6115, %v6141
        %v6194 = vmax.f32 %v6116, %v6142
        %v6195 = vmax.f32 %v6117, %v6143
        %v6196 = vmax.f32 %v6118, %v6144
        %v6197 = vmax.f32 %v6119, %v6145
        %v6198 = vmax.f32 %v6120, %v6146
        %v6199 = vmax.f32 %v6121, %v6147
        %v6200 = vmax.f32 %v6122, %v6148
        %v6201 = vmax.f32 %v6123, %v6149
        %v6202 = vmax.f32 %v6124, %v6150
        %v6203 = vmax.f32 %v6125, %v6151
        %v6204 = vmax.f32 %v6126, %v6152
        %v6205 = vmax.f32 %v6127, %v6153
        %v6206 = vmax.f32 %v6128, %v6154
        %v6207 = vmax.f32 %v6129, %v6155
        %v6208 = vmax.f32 %v6130, %v6156
        %v6209 = vmax.f32 %v6131, %v6157
        %v6210 = vmax.f32 %v6158, %v6184
        %v6211 = vmax.f32 %v6159, %v6185
        %v6212 = vmax.f32 %v6160, %v6186
        %v6213 = vmax.f32 %v6161, %v6187
        %v6214 = vmax.f32 %v6162, %v6188
        %v6215 = vmax.f32 %v6163, %v6189
        %v6216 = vmax.f32 %v6164, %v6190
        %v6217 = vmax.f32 %v6165, %v6191
        %v6218 = vmax.f32 %v6166, %v6192
        %v6219 = vmax.f32 %v6167, %v6193
        %v6220 = vmax.f32 %v6168, %v6194
        %v6221 = vmax.f32 %v6169, %v6195
        %v6222 = vmax.f32 %v6170, %v6196
        %v6223 = vmax.f32 %v6171, %v6197
        %v6224 = vmax.f32 %v6172, %v6198
        %v6225 = vmax.f32 %v6173, %v6199
        %v6226 = vmax.f32 %v6174, %v6200
        %v6227 = vmax.f32 %v6175, %v6201
        %v6228 = vmax.f32 %v6176, %v6202
        %v6229 = vmax.f32 %v6177, %v6203
        %v6230 = vmax.f32 %v6178, %v6204
        %v6231 = vmax.f32 %v6179, %v6205
        %v6232 = vmax.f32 %v6180, %v6206
        %v6233 = vmax.f32 %v6181, %v6207
        %v6234 = vmax.f32 %v6182, %v6208
        %v6235 = vmax.f32 %v6183, %v6209
        %v6236 = vpack.c.bf16 %v6210, %v6210
        %v6237 = vpack.c.bf16 %v6211, %v6211
        %v6238 = vpack.c.bf16 %v6212, %v6212
        %v6239 = vpack.c.bf16 %v6213, %v6213
        %v6240 = vpack.c.bf16 %v6214, %v6214
        %v6241 = vpack.c.bf16 %v6215, %v6215
        %v6242 = vpack.c.bf16 %v6216, %v6216
        %v6243 = vpack.c.bf16 %v6217, %v6217
        %v6244 = vpack.c.bf16 %v6218, %v6218
        %v6245 = vpack.c.bf16 %v6219, %v6219
        %v6246 = vpack.c.bf16 %v6220, %v6220
        %v6247 = vpack.c.bf16 %v6221, %v6221
        %v6248 = vpack.c.bf16 %v6222, %v6222
        %v6249 = vpack.c.bf16 %v6223, %v6223
        %v6250 = vpack.c.bf16 %v6224, %v6224
        %v6251 = vpack.c.bf16 %v6225, %v6225
        %v6252 = vpack.c.bf16 %v6226, %v6226
        %v6253 = vpack.c.bf16 %v6227, %v6227
        %v6254 = vpack.c.bf16 %v6228, %v6228
        %v6255 = vpack.c.bf16 %v6229, %v6229
        %v6256 = vpack.c.bf16 %v6230, %v6230
        %v6257 = vpack.c.bf16 %v6231, %v6231
        %v6258 = vpack.c.bf16 %v6232, %v6232
        %v6259 = vpack.c.bf16 %v6233, %v6233
        %v6260 = vpack.c.bf16 %v6234, %v6234
        %v6261 = vpack.c.bf16 %v6235, %v6235
        %vm6262 = vcmask 125952
        %6263 = vst.msk [vmem:[%s620] sm:$0xf] %vm6262, %v6236
        %6264 = vst.msk [vmem:[%s620 + $0x4] sm:$0xf] %vm6262, %v6237
        %6265 = vst.msk [vmem:[%s620 + $0x8] sm:$0xf] %vm6262, %v6238
        %6266 = vst.msk [vmem:[%s620 + $0xc] sm:$0xf] %vm6262, %v6239
        %6267 = vst.msk [vmem:[%s620 + $0x10] sm:$0xf] %vm6262, %v6240
        %6268 = vst.msk [vmem:[%s620 + $0x14] sm:$0xf] %vm6262, %v6241
        %6269 = vst.msk [vmem:[%s620 + $0x18] sm:$0xf] %vm6262, %v6242
        %6270 = vst.msk [vmem:[%s620 + $0x1c] sm:$0xf] %vm6262, %v6243
        %6271 = vst.msk [vmem:[%s620 + $0x20] sm:$0xf] %vm6262, %v6244
        %6272 = vst.msk [vmem:[%s620 + $0x24] sm:$0xf] %vm6262, %v6245
        %6273 = vst.msk [vmem:[%s620 + $0x28] sm:$0xf] %vm6262, %v6246
        %6274 = vst.msk [vmem:[%s620 + $0x2c] sm:$0xf] %vm6262, %v6247
        %6275 = vst.msk [vmem:[%s620 + $0x30] sm:$0xf] %vm6262, %v6248
        %6276 = vst.msk [vmem:[%s620 + $0x34] sm:$0xf] %vm6262, %v6249
        %6277 = vst.msk [vmem:[%s620 + $0x38] sm:$0xf] %vm6262, %v6250
        %6278 = vst.msk [vmem:[%s620 + $0x3c] sm:$0xf] %vm6262, %v6251
        %6279 = vst.msk [vmem:[%s620 + $0x40] sm:$0xf] %vm6262, %v6252
        %6280 = vst.msk [vmem:[%s620 + $0x44] sm:$0xf] %vm6262, %v6253
        %6281 = vst.msk [vmem:[%s620 + $0x48] sm:$0xf] %vm6262, %v6254
        %6282 = vst.msk [vmem:[%s620 + $0x4c] sm:$0xf] %vm6262, %v6255
        %6283 = vst.msk [vmem:[%s620 + $0x50] sm:$0xf] %vm6262, %v6256
        %6284 = vst.msk [vmem:[%s620 + $0x54] sm:$0xf] %vm6262, %v6257
        %6285 = vst.msk [vmem:[%s620 + $0x58] sm:$0xf] %vm6262, %v6258
        %6286 = vst.msk [vmem:[%s620 + $0x5c] sm:$0xf] %vm6262, %v6259
        %6287 = vst.msk [vmem:[%s620 + $0x60] sm:$0xf] %vm6262, %v6260
        %6288 = vst.msk [vmem:[%s620 + $0x64] sm:$0xf] %vm6262, %v6261
        %s6289 = smul.u32 26, %s14
        %p6290 = scmp.lt.s32.totalorder %s6289, 103
        %s6291 = scalar_select %p6290, %s6289, 103
        %s6292 = smul.addr %s6291, 4
        %s6293 = scalar_lea.vmem %s3, %s6292
        // Predicated region
        $region71: #{basic_cnn_forward.2} parent=65 // pred_check
          %p6294 = pneg %p100
        $region72: #{basic_cnn_forward.2} parent=65 // pred_check_branch
          %6296 = sbr.rel (%p6294) target = $region74
        $region73: #{basic_cnn_forward.2} parent=65 // pred_region
          %s6297 = smul.u32 26, %s14
        $region74: #{basic_cnn_forward.2} parent=65 // pred_fallthru
          _
      $region66: #{basic_cnn_forward.2} parent=5 // pred_fallthru
        _
      %p6298 = scmp.le.s32.totalorder 2, %s9
      // Predicated region
      $region75: #{basic_cnn_forward.2} parent=5 // pred_check
        %p6299 = pneg %p6298
      $region76: #{basic_cnn_forward.2} parent=5 // pred_check_branch
        %6301 = sbr.rel (%p6299) target = $region78
      $region77: #{basic_cnn_forward.2} parent=5 // pred_region
        %s6302 = ssub.s32 %s9, 2
        // Predicated region
        $region79: #{basic_cnn_forward.2} parent=77 // pred_check
          %p6303 = pneg %p106
        $region80: #{basic_cnn_forward.2} parent=77 // pred_check_branch
          %6305 = sbr.rel (%p6303) target = $region82
        $region81: #{basic_cnn_forward.2} parent=77 // pred_region
          %s6306 = smul.u32 26, %s15
          %p6307 = scmp.lt.s32.totalorder %s6306, 103
          %s6308 = scalar_select %p6307, %s6306, 103
          %s6309 = smul.addr %s6308, 4
          %s6310 = scalar_lea.vmem %s3, %s6309
        $region82: #{basic_cnn_forward.2} parent=77 // pred_fallthru
          _
      $region78: #{basic_cnn_forward.2} parent=5 // pred_fallthru
        _
    $region6: #{basic_cnn_forward.2} parent=1 // loop_footer
      %s13 = sadd.s32 1, %s9
    $region7: #{basic_cnn_forward.2} parent=1 // loop_footer_branch
      %8 = sbr.rel target = $region3
    $region8: #{basic_cnn_forward.2} parent=1 // loop_exit
      _

// kernel: basic_cnn_forward.3
$region0: #{basic_cnn_forward.3}
  #allocation0 [shape = 'u32[]', space=smem, size = 0x4, offset = 0x4, fixed_abs, tag = 'smem constant byte address 0x4 - core index']
  #allocation1 [shape = 'u32[72,128]{1,0:T(1,128)}', space=vmem, size = 0x9000, scoped, tag = 'internal scratch']
  %s0 = inlined_call_operand.vmem [shape: bf16[4,9,16,400], index: 0, kind: input, shape index: {}]
  %s1 = inlined_call_operand.vmem [shape: bf16[400,32], index: 1, kind: input, shape index: {}]
  %s2 = inlined_call_operand.vmem [shape: f32[1,32], index: 2, kind: input, shape index: {}]
  %s3 = inlined_call_operand.vmem [shape: f32[288,2], index: 3, kind: input, shape index: {}]
  %s4 = inlined_call_operand.vmem [shape: f32[1,2], index: 4, kind: input, shape index: {}]
  %s5 = inlined_call_operand.vmem [shape: f32[16,2], index: 5, kind: output, shape index: {}]
  %s6 = sld [smem:[#allocation0]]
  $region30: #{basic_cnn_forward.3} parent=0
    _
  %s8 = ssub.s32 1, %s6
  %s9 = scalar_select 0, %s8, %s6
  // Predicated region
  $region2: #{basic_cnn_forward.3} parent=0 // pred_check
    _
  $region3: #{basic_cnn_forward.3} parent=0 // pred_check_branch
    %11 = sbr.rel (0) target = $region5
  $region4: #{basic_cnn_forward.3} parent=0 // pred_region
    _
  $region5: #{basic_cnn_forward.3} parent=0 // pred_fallthru
    _
  // Predicated region
  $region6: #{basic_cnn_forward.3} parent=0 // pred_check
    _
  $region7: #{basic_cnn_forward.3} parent=0 // pred_check_branch
    %13 = sbr.rel (0) target = $region9
  $region8: #{basic_cnn_forward.3} parent=0 // pred_region
    _
  $region9: #{basic_cnn_forward.3} parent=0 // pred_fallthru
    _
  // Predicated region
  $region10: #{basic_cnn_forward.3} parent=0 // pred_check
    _
  $region11: #{basic_cnn_forward.3} parent=0 // pred_check_branch
    %15 = sbr.rel (0) target = $region13
  $region12: #{basic_cnn_forward.3} parent=0 // pred_region
    _
  $region13: #{basic_cnn_forward.3} parent=0 // pred_fallthru
    _
  // Predicated region
  $region14: #{basic_cnn_forward.3} parent=0 // pred_check
    _
  $region15: #{basic_cnn_forward.3} parent=0 // pred_check_branch
    %17 = sbr.rel (0) target = $region17
  $region16: #{basic_cnn_forward.3} parent=0 // pred_region
    _
  $region17: #{basic_cnn_forward.3} parent=0 // pred_fallthru
    _
  // Predicated region
  $region18: #{basic_cnn_forward.3} parent=0 // pred_check
    _
  $region19: #{basic_cnn_forward.3} parent=0 // pred_check_branch
    %19 = sbr.rel (0) target = $region21
  $region20: #{basic_cnn_forward.3} parent=0 // pred_region
    _
  $region21: #{basic_cnn_forward.3} parent=0 // pred_fallthru
    _
  %v21 = vld [vmem:[%s0] sm:$0xff]
  %v22 = vld [vmem:[%s0 + $0x8] sm:$0xff]
  %v23 = vld [vmem:[%s0 + $0x10] sm:$0xff]
  %v24 = vld [vmem:[%s0 + $0x18] sm:$0xff]
  %v25 = vld [vmem:[%s0 + $0x20] sm:$0xff]
  %v26 = vld [vmem:[%s0 + $0x28] sm:$0xff]
  %v27 = vld [vmem:[%s0 + $0x30] sm:$0xff]
  %v28 = vld [vmem:[%s0 + $0x38] sm:$0xff]
  %v29 = vld [vmem:[%s0 + $0x40] sm:$0xff]
  %v30 = vld [vmem:[%s0 + $0x48] sm:$0xff]
  %v31 = vld [vmem:[%s0 + $0x50] sm:$0xff]
  %v32 = vld [vmem:[%s0 + $0x58] sm:$0xff]
  %v33 = vld [vmem:[%s0 + $0x60] sm:$0xff]
  %v34 = vld [vmem:[%s0 + $0x68] sm:$0xff]
  %v35 = vld [vmem:[%s0 + $0x70] sm:$0xff]
  %v36 = vld [vmem:[%s0 + $0x78] sm:$0xff]
  %v37 = vld [vmem:[%s0 + $0x80] sm:$0xff]
  %v38 = vld [vmem:[%s0 + $0x88] sm:$0xff]
  %v39 = vld [vmem:[%s0 + $0x90] sm:$0xff]
  %v40 = vld [vmem:[%s0 + $0x98] sm:$0xff]
  %v41 = vld [vmem:[%s0 + $0xa0] sm:$0xff]
  %v42 = vld [vmem:[%s0 + $0xa8] sm:$0xff]
  %v43 = vld [vmem:[%s0 + $0xb0] sm:$0xff]
  %v44 = vld [vmem:[%s0 + $0xb8] sm:$0xff]
  %v45 = vld [vmem:[%s0 + $0xc0] sm:$0xff]
  %v46 = vld [vmem:[%s0 + $0xc8] sm:$0xff]
  %v47 = vld [vmem:[%s0 + $0xd0] sm:$0xff]
  %v48 = vld [vmem:[%s0 + $0xd8] sm:$0xff]
  %v49 = vld [vmem:[%s0 + $0xe0] sm:$0xff]
  %v50 = vld [vmem:[%s0 + $0xe8] sm:$0xff]
  %v51 = vld [vmem:[%s0 + $0xf0] sm:$0xff]
  %v52 = vld [vmem:[%s0 + $0xf8] sm:$0xff]
  %v53 = vld [vmem:[%s0 + $0x100] sm:$0xff]
  %v54 = vld [vmem:[%s0 + $0x108] sm:$0xff]
  %v55 = vld [vmem:[%s0 + $0x110] sm:$0xff]
  %v56 = vld [vmem:[%s0 + $0x118] sm:$0xff]
  %v57 = vld [vmem:[%s0 + $0x120] sm:$0xff]
  %v58 = vld [vmem:[%s0 + $0x128] sm:$0xff]
  %v59 = vld [vmem:[%s0 + $0x130] sm:$0xff]
  %v60 = vld [vmem:[%s0 + $0x138] sm:$0xff]
  %v61 = vld [vmem:[%s0 + $0x140] sm:$0xff]
  %v62 = vld [vmem:[%s0 + $0x148] sm:$0xff]
  %v63 = vld [vmem:[%s0 + $0x150] sm:$0xff]
  %v64 = vld [vmem:[%s0 + $0x158] sm:$0xff]
  %v65 = vld [vmem:[%s0 + $0x160] sm:$0xff]
  %v66 = vld [vmem:[%s0 + $0x168] sm:$0xff]
  %v67 = vld [vmem:[%s0 + $0x170] sm:$0xff]
  %v68 = vld [vmem:[%s0 + $0x178] sm:$0xff]
  %v69 = vld [vmem:[%s0 + $0x180] sm:$0xff]
  %v70 = vld [vmem:[%s0 + $0x188] sm:$0xff]
  %v71 = vld [vmem:[%s0 + $0x190] sm:$0xff]
  %v72 = vld [vmem:[%s0 + $0x198] sm:$0xff]
  %v73 = vld [vmem:[%s0 + $0x1a0] sm:$0xff]
  %v74 = vld [vmem:[%s0 + $0x1a8] sm:$0xff]
  %v75 = vld [vmem:[%s0 + $0x1b0] sm:$0xff]
  %v76 = vld [vmem:[%s0 + $0x1b8] sm:$0xff]
  %v77 = vld [vmem:[%s0 + $0x1c0] sm:$0xff]
  %v78 = vld [vmem:[%s0 + $0x1c8] sm:$0xff]
  %v79 = vld [vmem:[%s0 + $0x1d0] sm:$0xff]
  %v80 = vld [vmem:[%s0 + $0x1d8] sm:$0xff]
  %v81 = vld [vmem:[%s0 + $0x1e0] sm:$0xff]
  %v82 = vld [vmem:[%s0 + $0x1e8] sm:$0xff]
  %v83 = vld [vmem:[%s0 + $0x1f0] sm:$0xff]
  %v84 = vld [vmem:[%s0 + $0x1f8] sm:$0xff]
  %v85 = vld [vmem:[%s0 + $0x200] sm:$0xff]
  %v86 = vld [vmem:[%s0 + $0x208] sm:$0xff]
  %v87 = vld [vmem:[%s0 + $0x210] sm:$0xff]
  %v88 = vld [vmem:[%s0 + $0x218] sm:$0xff]
  %v89 = vld [vmem:[%s0 + $0x220] sm:$0xff]
  %v90 = vld [vmem:[%s0 + $0x228] sm:$0xff]
  %v91 = vld [vmem:[%s0 + $0x230] sm:$0xff]
  %v92 = vld [vmem:[%s0 + $0x238] sm:$0xff]
  %v93 = vld [vmem:[%s0 + $0x240] sm:$0xff]
  %v94 = vld [vmem:[%s0 + $0x248] sm:$0xff]
  %v95 = vld [vmem:[%s0 + $0x250] sm:$0xff]
  %v96 = vld [vmem:[%s0 + $0x258] sm:$0xff]
  %v97 = vld [vmem:[%s0 + $0x260] sm:$0xff]
  %v98 = vld [vmem:[%s0 + $0x268] sm:$0xff]
  %v99 = vld [vmem:[%s0 + $0x270] sm:$0xff]
  %v100 = vld [vmem:[%s0 + $0x278] sm:$0xff]
  %v101 = vld [vmem:[%s0 + $0x280] sm:$0xff]
  %v102 = vld [vmem:[%s0 + $0x288] sm:$0xff]
  %v103 = vld [vmem:[%s0 + $0x290] sm:$0xff]
  %v104 = vld [vmem:[%s0 + $0x298] sm:$0xff]
  %v105 = vld [vmem:[%s0 + $0x2a0] sm:$0xff]
  %v106 = vld [vmem:[%s0 + $0x2a8] sm:$0xff]
  %v107 = vld [vmem:[%s0 + $0x2b0] sm:$0xff]
  %v108 = vld [vmem:[%s0 + $0x2b8] sm:$0xff]
  %v109 = vld [vmem:[%s0 + $0x2c0] sm:$0xff]
  %v110 = vld [vmem:[%s0 + $0x2c8] sm:$0xff]
  %v111 = vld [vmem:[%s0 + $0x2d0] sm:$0xff]
  %v112 = vld [vmem:[%s0 + $0x2d8] sm:$0xff]
  %v113 = vld [vmem:[%s0 + $0x2e0] sm:$0xff]
  %v114 = vld [vmem:[%s0 + $0x2e8] sm:$0xff]
  %v115 = vld [vmem:[%s0 + $0x2f0] sm:$0xff]
  %v116 = vld [vmem:[%s0 + $0x2f8] sm:$0xff]
  %v117 = vld [vmem:[%s0 + $0x300] sm:$0xff]
  %v118 = vld [vmem:[%s0 + $0x308] sm:$0xff]
  %v119 = vld [vmem:[%s0 + $0x310] sm:$0xff]
  %v120 = vld [vmem:[%s0 + $0x318] sm:$0xff]
  %v121 = vld [vmem:[%s0 + $0x320] sm:$0xff]
  %v122 = vld [vmem:[%s0 + $0x328] sm:$0xff]
  %v123 = vld [vmem:[%s0 + $0x330] sm:$0xff]
  %v124 = vld [vmem:[%s0 + $0x338] sm:$0xff]
  %v125 = vld [vmem:[%s0 + $0x340] sm:$0xff]
  %v126 = vld [vmem:[%s0 + $0x348] sm:$0xff]
  %v127 = vld [vmem:[%s0 + $0x350] sm:$0xff]
  %v128 = vld [vmem:[%s0 + $0x358] sm:$0xff]
  %v129 = vld [vmem:[%s0 + $0x360] sm:$0xff]
  %v130 = vld [vmem:[%s0 + $0x368] sm:$0xff]
  %v131 = vld [vmem:[%s0 + $0x370] sm:$0xff]
  %v132 = vld [vmem:[%s0 + $0x378] sm:$0xff]
  %v133 = vld [vmem:[%s0 + $0x380] sm:$0xff]
  %v134 = vld [vmem:[%s0 + $0x388] sm:$0xff]
  %v135 = vld [vmem:[%s0 + $0x390] sm:$0xff]
  %v136 = vld [vmem:[%s0 + $0x398] sm:$0xff]
  %v137 = vld [vmem:[%s0 + $0x3a0] sm:$0xff]
  %v138 = vld [vmem:[%s0 + $0x3a8] sm:$0xff]
  %v139 = vld [vmem:[%s0 + $0x3b0] sm:$0xff]
  %v140 = vld [vmem:[%s0 + $0x3b8] sm:$0xff]
  %v141 = vld [vmem:[%s0 + $0x3c0] sm:$0xff]
  %v142 = vld [vmem:[%s0 + $0x3c8] sm:$0xff]
  %v143 = vld [vmem:[%s0 + $0x3d0] sm:$0xff]
  %v144 = vld [vmem:[%s0 + $0x3d8] sm:$0xff]
  %v145 = vld [vmem:[%s0 + $0x3e0] sm:$0xff]
  %v146 = vld [vmem:[%s0 + $0x3e8] sm:$0xff]
  %v147 = vld [vmem:[%s0 + $0x3f0] sm:$0xff]
  %v148 = vld [vmem:[%s0 + $0x3f8] sm:$0xff]
  %v149 = vld [vmem:[%s0 + $0x400] sm:$0xff]
  %v150 = vld [vmem:[%s0 + $0x408] sm:$0xff]
  %v151 = vld [vmem:[%s0 + $0x410] sm:$0xff]
  %v152 = vld [vmem:[%s0 + $0x418] sm:$0xff]
  %v153 = vld [vmem:[%s0 + $0x420] sm:$0xff]
  %v154 = vld [vmem:[%s0 + $0x428] sm:$0xff]
  %v155 = vld [vmem:[%s0 + $0x430] sm:$0xff]
  %v156 = vld [vmem:[%s0 + $0x438] sm:$0xff]
  %v157 = vld [vmem:[%s0 + $0x440] sm:$0xff]
  %v158 = vld [vmem:[%s0 + $0x448] sm:$0xff]
  %v159 = vld [vmem:[%s0 + $0x450] sm:$0xff]
  %v160 = vld [vmem:[%s0 + $0x458] sm:$0xff]
  %v161 = vld [vmem:[%s0 + $0x460] sm:$0xff]
  %v162 = vld [vmem:[%s0 + $0x468] sm:$0xff]
  %v163 = vld [vmem:[%s0 + $0x470] sm:$0xff]
  %v164 = vld [vmem:[%s0 + $0x478] sm:$0xff]
  %v165 = vld [vmem:[%s1] sm:$0xf]
  %v166 = vld [vmem:[%s1 + $0x4] sm:$0xf]
  %v167 = vld [vmem:[%s1 + $0x8] sm:$0xf]
  %v168 = vld [vmem:[%s1 + $0xc] sm:$0xf]
  %v169 = vld [vmem:[%s1 + $0x10] sm:$0xf]
  %v170 = vld [vmem:[%s1 + $0x14] sm:$0xf]
  %v171 = vld [vmem:[%s1 + $0x18] sm:$0xf]
  %v172 = vld [vmem:[%s1 + $0x1c] sm:$0xf]
  %v173 = vld [vmem:[%s1 + $0x20] sm:$0xf]
  %v174 = vld [vmem:[%s1 + $0x24] sm:$0xf]
  %v175 = vld [vmem:[%s1 + $0x28] sm:$0xf]
  %v176 = vld [vmem:[%s1 + $0x2c] sm:$0xf]
  %v177 = vld [vmem:[%s1 + $0x30] sm:$0xf]
  %v178 = vld [vmem:[%s1 + $0x34] sm:$0xf]
  %v179 = vld [vmem:[%s1 + $0x38] sm:$0xf]
  %v180 = vld [vmem:[%s1 + $0x3c] sm:$0xf]
  %v181 = vld [vmem:[%s1 + $0x40] sm:$0xf]
  %v182 = vld [vmem:[%s1 + $0x44] sm:$0xf]
  %v183 = vld [vmem:[%s1 + $0x48] sm:$0xf]
  %v184 = vld [vmem:[%s1 + $0x4c] sm:$0xf]
  %v185 = vld [vmem:[%s1 + $0x50] sm:$0xf]
  %v186 = vld [vmem:[%s1 + $0x54] sm:$0xf]
  %v187 = vld [vmem:[%s1 + $0x58] sm:$0xf]
  %v188 = vld [vmem:[%s1 + $0x5c] sm:$0xf]
  %v189 = vld [vmem:[%s1 + $0x60] sm:$0xf]
  %v190 = vld [vmem:[%s1 + $0x64] sm:$0xf]
  %v191 = vld [vmem:[%s1 + $0x68] sm:$0xf]
  %v192 = vld [vmem:[%s1 + $0x6c] sm:$0xf]
  %v193 = vld [vmem:[%s1 + $0x70] sm:$0xf]
  %v194 = vld [vmem:[%s1 + $0x74] sm:$0xf]
  %v195 = vld [vmem:[%s1 + $0x78] sm:$0xf]
  %v196 = vld [vmem:[%s1 + $0x7c] sm:$0xf]
  %v197 = vld [vmem:[%s1 + $0x80] sm:$0xf]
  %v198 = vld [vmem:[%s1 + $0x84] sm:$0xf]
  %v199 = vld [vmem:[%s1 + $0x88] sm:$0xf]
  %v200 = vld [vmem:[%s1 + $0x8c] sm:$0xf]
  %v201 = vld [vmem:[%s1 + $0x90] sm:$0xf]
  %v202 = vld [vmem:[%s1 + $0x94] sm:$0xf]
  %v203 = vld [vmem:[%s1 + $0x98] sm:$0xf]
  %v204 = vld [vmem:[%s1 + $0x9c] sm:$0xf]
  %v205 = vld [vmem:[%s1 + $0xa0] sm:$0xf]
  %v206 = vld [vmem:[%s1 + $0xa4] sm:$0xf]
  %v207 = vld [vmem:[%s1 + $0xa8] sm:$0xf]
  %v208 = vld [vmem:[%s1 + $0xac] sm:$0xf]
  %v209 = vld [vmem:[%s1 + $0xb0] sm:$0xf]
  %v210 = vld [vmem:[%s1 + $0xb4] sm:$0xf]
  %v211 = vld [vmem:[%s1 + $0xb8] sm:$0xf]
  %v212 = vld [vmem:[%s1 + $0xbc] sm:$0xf]
  %v213 = vld [vmem:[%s1 + $0xc0] sm:$0xf]
  %v214 = vld [vmem:[%s1 + $0xc4] sm:$0xf]
  %v215 = vld [vmem:[%s2] sm:$0x1]
  %v217 = vperm.slane %v215, 0
  %v363 = vunpack.c.l.b16 %v21
  %v364 = vunpack.c.h.b16 %v21
  %v365 = vunpack.c.l.b16 %v22
  %v366 = vunpack.c.h.b16 %v22
  %v367 = vunpack.c.l.b16 %v23
  %v368 = vunpack.c.h.b16 %v23
  %v369 = vunpack.c.l.b16 %v24
  %v370 = vunpack.c.h.b16 %v24
  %v371 = vunpack.c.l.b16 %v25
  %v372 = vunpack.c.h.b16 %v25
  %v373 = vunpack.c.l.b16 %v26
  %v374 = vunpack.c.h.b16 %v26
  %v375 = vunpack.c.l.b16 %v27
  %v376 = vunpack.c.h.b16 %v27
  %v377 = vunpack.c.l.b16 %v28
  %v378 = vunpack.c.h.b16 %v28
  %v379 = vunpack.c.l.b16 %v29
  %v380 = vunpack.c.h.b16 %v29
  %v381 = vunpack.c.l.b16 %v30
  %v382 = vunpack.c.h.b16 %v30
  %v383 = vunpack.c.l.b16 %v31
  %v384 = vunpack.c.h.b16 %v31
  %v385 = vunpack.c.l.b16 %v32
  %v386 = vunpack.c.h.b16 %v32
  %v387 = vunpack.c.l.b16 %v33
  %v388 = vunpack.c.h.b16 %v33
  %v389 = vunpack.c.l.b16 %v34
  %v390 = vunpack.c.h.b16 %v34
  %v391 = vunpack.c.l.b16 %v35
  %v392 = vunpack.c.h.b16 %v35
  %v393 = vunpack.c.l.b16 %v36
  %v394 = vunpack.c.h.b16 %v36
  %v395 = vunpack.c.l.b16 %v37
  %v396 = vunpack.c.h.b16 %v37
  %v397 = vunpack.c.l.b16 %v38
  %v398 = vunpack.c.h.b16 %v38
  %v399 = vunpack.c.l.b16 %v39
  %v400 = vunpack.c.h.b16 %v39
  %v401 = vunpack.c.l.b16 %v40
  %v402 = vunpack.c.h.b16 %v40
  %v403 = vunpack.c.l.b16 %v41
  %v404 = vunpack.c.h.b16 %v41
  %v405 = vunpack.c.l.b16 %v42
  %v406 = vunpack.c.h.b16 %v42
  %v407 = vunpack.c.l.b16 %v43
  %v408 = vunpack.c.h.b16 %v43
  %v409 = vunpack.c.l.b16 %v44
  %v410 = vunpack.c.h.b16 %v44
  %v411 = vunpack.c.l.b16 %v45
  %v412 = vunpack.c.h.b16 %v45
  %v413 = vunpack.c.l.b16 %v46
  %v414 = vunpack.c.h.b16 %v46
  %v415 = vunpack.c.l.b16 %v47
  %v416 = vunpack.c.h.b16 %v47
  %v417 = vunpack.c.l.b16 %v48
  %v418 = vunpack.c.h.b16 %v48
  %v419 = vunpack.c.l.b16 %v49
  %v420 = vunpack.c.h.b16 %v49
  %v421 = vunpack.c.l.b16 %v50
  %v422 = vunpack.c.h.b16 %v50
  %v423 = vunpack.c.l.b16 %v51
  %v424 = vunpack.c.h.b16 %v51
  %v425 = vunpack.c.l.b16 %v52
  %v426 = vunpack.c.h.b16 %v52
  %v427 = vunpack.c.l.b16 %v53
  %v428 = vunpack.c.h.b16 %v53
  %v429 = vunpack.c.l.b16 %v54
  %v430 = vunpack.c.h.b16 %v54
  %v431 = vunpack.c.l.b16 %v55
  %v432 = vunpack.c.h.b16 %v55
  %v433 = vunpack.c.l.b16 %v56
  %v434 = vunpack.c.h.b16 %v56
  %v435 = vunpack.c.l.b16 %v57
  %v436 = vunpack.c.h.b16 %v57
  %v437 = vunpack.c.l.b16 %v58
  %v438 = vunpack.c.h.b16 %v58
  %v439 = vunpack.c.l.b16 %v59
  %v440 = vunpack.c.h.b16 %v59
  %v441 = vunpack.c.l.b16 %v60
  %v442 = vunpack.c.h.b16 %v60
  %v443 = vunpack.c.l.b16 %v61
  %v444 = vunpack.c.h.b16 %v61
  %v445 = vunpack.c.l.b16 %v62
  %v446 = vunpack.c.h.b16 %v62
  %v447 = vunpack.c.l.b16 %v63
  %v448 = vunpack.c.h.b16 %v63
  %v449 = vunpack.c.l.b16 %v64
  %v450 = vunpack.c.h.b16 %v64
  %v451 = vunpack.c.l.b16 %v65
  %v452 = vunpack.c.h.b16 %v65
  %v453 = vunpack.c.l.b16 %v66
  %v454 = vunpack.c.h.b16 %v66
  %v455 = vunpack.c.l.b16 %v67
  %v456 = vunpack.c.h.b16 %v67
  %v457 = vunpack.c.l.b16 %v68
  %v458 = vunpack.c.h.b16 %v68
  %v459 = vunpack.c.l.b16 %v69
  %v460 = vunpack.c.h.b16 %v69
  %v461 = vunpack.c.l.b16 %v70
  %v462 = vunpack.c.h.b16 %v70
  %v463 = vunpack.c.l.b16 %v71
  %v464 = vunpack.c.h.b16 %v71
  %v465 = vunpack.c.l.b16 %v72
  %v466 = vunpack.c.h.b16 %v72
  %v467 = vunpack.c.l.b16 %v73
  %v468 = vunpack.c.h.b16 %v73
  %v469 = vunpack.c.l.b16 %v74
  %v470 = vunpack.c.h.b16 %v74
  %v471 = vunpack.c.l.b16 %v75
  %v472 = vunpack.c.h.b16 %v75
  %v473 = vunpack.c.l.b16 %v76
  %v474 = vunpack.c.h.b16 %v76
  %v475 = vunpack.c.l.b16 %v77
  %v476 = vunpack.c.h.b16 %v77
  %v477 = vunpack.c.l.b16 %v78
  %v478 = vunpack.c.h.b16 %v78
  %v479 = vunpack.c.l.b16 %v79
  %v480 = vunpack.c.h.b16 %v79
  %v481 = vunpack.c.l.b16 %v80
  %v482 = vunpack.c.h.b16 %v80
  %v483 = vunpack.c.l.b16 %v81
  %v484 = vunpack.c.h.b16 %v81
  %v485 = vunpack.c.l.b16 %v82
  %v486 = vunpack.c.h.b16 %v82
  %v487 = vunpack.c.l.b16 %v83
  %v488 = vunpack.c.h.b16 %v83
  %v489 = vunpack.c.l.b16 %v84
  %v490 = vunpack.c.h.b16 %v84
  %v491 = vunpack.c.l.b16 %v85
  %v492 = vunpack.c.h.b16 %v85
  %v493 = vunpack.c.l.b16 %v86
  %v494 = vunpack.c.h.b16 %v86
  %v495 = vunpack.c.l.b16 %v87
  %v496 = vunpack.c.h.b16 %v87
  %v497 = vunpack.c.l.b16 %v88
  %v498 = vunpack.c.h.b16 %v88
  %v499 = vunpack.c.l.b16 %v89
  %v500 = vunpack.c.h.b16 %v89
  %v501 = vunpack.c.l.b16 %v90
  %v502 = vunpack.c.h.b16 %v90
  %v503 = vunpack.c.l.b16 %v91
  %v504 = vunpack.c.h.b16 %v91
  %v505 = vunpack.c.l.b16 %v92
  %v506 = vunpack.c.h.b16 %v92
  %v507 = vunpack.c.l.b16 %v93
  %v508 = vunpack.c.h.b16 %v93
  %v509 = vunpack.c.l.b16 %v94
  %v510 = vunpack.c.h.b16 %v94
  %v511 = vunpack.c.l.b16 %v95
  %v512 = vunpack.c.h.b16 %v95
  %v513 = vunpack.c.l.b16 %v96
  %v514 = vunpack.c.h.b16 %v96
  %v515 = vunpack.c.l.b16 %v97
  %v516 = vunpack.c.h.b16 %v97
  %v517 = vunpack.c.l.b16 %v98
  %v518 = vunpack.c.h.b16 %v98
  %v519 = vunpack.c.l.b16 %v99
  %v520 = vunpack.c.h.b16 %v99
  %v521 = vunpack.c.l.b16 %v100
  %v522 = vunpack.c.h.b16 %v100
  %v523 = vunpack.c.l.b16 %v101
  %v524 = vunpack.c.h.b16 %v101
  %v525 = vunpack.c.l.b16 %v102
  %v526 = vunpack.c.h.b16 %v102
  %v527 = vunpack.c.l.b16 %v103
  %v528 = vunpack.c.h.b16 %v103
  %v529 = vunpack.c.l.b16 %v104
  %v530 = vunpack.c.h.b16 %v104
  %v531 = vunpack.c.l.b16 %v105
  %v532 = vunpack.c.h.b16 %v105
  %v533 = vunpack.c.l.b16 %v106
  %v534 = vunpack.c.h.b16 %v106
  %v535 = vunpack.c.l.b16 %v107
  %v536 = vunpack.c.h.b16 %v107
  %v537 = vunpack.c.l.b16 %v108
  %v538 = vunpack.c.h.b16 %v108
  %v539 = vunpack.c.l.b16 %v109
  %v540 = vunpack.c.h.b16 %v109
  %v541 = vunpack.c.l.b16 %v110
  %v542 = vunpack.c.h.b16 %v110
  %v543 = vunpack.c.l.b16 %v111
  %v544 = vunpack.c.h.b16 %v111
  %v545 = vunpack.c.l.b16 %v112
  %v546 = vunpack.c.h.b16 %v112
  %v547 = vunpack.c.l.b16 %v113
  %v548 = vunpack.c.h.b16 %v113
  %v549 = vunpack.c.l.b16 %v114
  %v550 = vunpack.c.h.b16 %v114
  %v551 = vunpack.c.l.b16 %v115
  %v552 = vunpack.c.h.b16 %v115
  %v553 = vunpack.c.l.b16 %v116
  %v554 = vunpack.c.h.b16 %v116
  %v555 = vunpack.c.l.b16 %v117
  %v556 = vunpack.c.h.b16 %v117
  %v557 = vunpack.c.l.b16 %v118
  %v558 = vunpack.c.h.b16 %v118
  %v559 = vunpack.c.l.b16 %v119
  %v560 = vunpack.c.h.b16 %v119
  %v561 = vunpack.c.l.b16 %v120
  %v562 = vunpack.c.h.b16 %v120
  %v563 = vunpack.c.l.b16 %v121
  %v564 = vunpack.c.h.b16 %v121
  %v565 = vunpack.c.l.b16 %v122
  %v566 = vunpack.c.h.b16 %v122
  %v567 = vunpack.c.l.b16 %v123
  %v568 = vunpack.c.h.b16 %v123
  %v569 = vunpack.c.l.b16 %v124
  %v570 = vunpack.c.h.b16 %v124
  %v571 = vunpack.c.l.b16 %v125
  %v572 = vunpack.c.h.b16 %v125
  %v573 = vunpack.c.l.b16 %v126
  %v574 = vunpack.c.h.b16 %v126
  %v575 = vunpack.c.l.b16 %v127
  %v576 = vunpack.c.h.b16 %v127
  %v577 = vunpack.c.l.b16 %v128
  %v578 = vunpack.c.h.b16 %v128
  %v579 = vunpack.c.l.b16 %v129
  %v580 = vunpack.c.h.b16 %v129
  %v581 = vunpack.c.l.b16 %v130
  %v582 = vunpack.c.h.b16 %v130
  %v583 = vunpack.c.l.b16 %v131
  %v584 = vunpack.c.h.b16 %v131
  %v585 = vunpack.c.l.b16 %v132
  %v586 = vunpack.c.h.b16 %v132
  %v587 = vunpack.c.l.b16 %v133
  %v588 = vunpack.c.h.b16 %v133
  %v589 = vunpack.c.l.b16 %v134
  %v590 = vunpack.c.h.b16 %v134
  %v591 = vunpack.c.l.b16 %v135
  %v592 = vunpack.c.h.b16 %v135
  %v593 = vunpack.c.l.b16 %v136
  %v594 = vunpack.c.h.b16 %v136
  %v595 = vunpack.c.l.b16 %v137
  %v596 = vunpack.c.h.b16 %v137
  %v597 = vunpack.c.l.b16 %v138
  %v598 = vunpack.c.h.b16 %v138
  %v599 = vunpack.c.l.b16 %v139
  %v600 = vunpack.c.h.b16 %v139
  %v601 = vunpack.c.l.b16 %v140
  %v602 = vunpack.c.h.b16 %v140
  %v603 = vunpack.c.l.b16 %v141
  %v604 = vunpack.c.h.b16 %v141
  %v605 = vunpack.c.l.b16 %v142
  %v606 = vunpack.c.h.b16 %v142
  %v607 = vunpack.c.l.b16 %v143
  %v608 = vunpack.c.h.b16 %v143
  %v609 = vunpack.c.l.b16 %v144
  %v610 = vunpack.c.h.b16 %v144
  %v611 = vunpack.c.l.b16 %v145
  %v612 = vunpack.c.h.b16 %v145
  %v613 = vunpack.c.l.b16 %v146
  %v614 = vunpack.c.h.b16 %v146
  %v615 = vunpack.c.l.b16 %v147
  %v616 = vunpack.c.h.b16 %v147
  %v617 = vunpack.c.l.b16 %v148
  %v618 = vunpack.c.h.b16 %v148
  %v619 = vunpack.c.l.b16 %v149
  %v620 = vunpack.c.h.b16 %v149
  %v621 = vunpack.c.l.b16 %v150
  %v622 = vunpack.c.h.b16 %v150
  %v623 = vunpack.c.l.b16 %v151
  %v624 = vunpack.c.h.b16 %v151
  %v625 = vunpack.c.l.b16 %v152
  %v626 = vunpack.c.h.b16 %v152
  %v627 = vunpack.c.l.b16 %v153
  %v628 = vunpack.c.h.b16 %v153
  %v629 = vunpack.c.l.b16 %v154
  %v630 = vunpack.c.h.b16 %v154
  %v631 = vunpack.c.l.b16 %v155
  %v632 = vunpack.c.h.b16 %v155
  %v633 = vunpack.c.l.b16 %v156
  %v634 = vunpack.c.h.b16 %v156
  %v635 = vunpack.c.l.b16 %v157
  %v636 = vunpack.c.h.b16 %v157
  %v637 = vunpack.c.l.b16 %v158
  %v638 = vunpack.c.h.b16 %v158
  %v639 = vunpack.c.l.b16 %v159
  %v640 = vunpack.c.h.b16 %v159
  %v641 = vunpack.c.l.b16 %v160
  %v642 = vunpack.c.h.b16 %v160
  %v643 = vunpack.c.l.b16 %v161
  %v644 = vunpack.c.h.b16 %v161
  %v645 = vunpack.c.l.b16 %v162
  %v646 = vunpack.c.h.b16 %v162
  %v647 = vunpack.c.l.b16 %v163
  %v648 = vunpack.c.h.b16 %v163
  %v649 = vunpack.c.l.b16 %v164
  %v650 = vunpack.c.h.b16 %v164
  %v651 = vpack.c.b16 %v367, %v363
  %v652 = vpack.c.b16 %v368, %v364
  %v653 = vpack.c.b16 %v369, %v365
  %v654 = vpack.c.b16 %v370, %v366
  %v655 = vpack.c.b16 %v375, %v371
  %v656 = vpack.c.b16 %v376, %v372
  %v657 = vpack.c.b16 %v377, %v373
  %v658 = vpack.c.b16 %v378, %v374
  %v659 = vpack.c.b16 %v383, %v379
  %v660 = vpack.c.b16 %v384, %v380
  %v661 = vpack.c.b16 %v385, %v381
  %v662 = vpack.c.b16 %v386, %v382
  %v663 = vpack.c.b16 %v391, %v387
  %v664 = vpack.c.b16 %v392, %v388
  %v665 = vpack.c.b16 %v393, %v389
  %v666 = vpack.c.b16 %v394, %v390
  %v667 = vpack.c.b16 %v399, %v395
  %v668 = vpack.c.b16 %v400, %v396
  %v669 = vpack.c.b16 %v401, %v397
  %v670 = vpack.c.b16 %v402, %v398
  %v671 = vpack.c.b16 %v407, %v403
  %v672 = vpack.c.b16 %v408, %v404
  %v673 = vpack.c.b16 %v409, %v405
  %v674 = vpack.c.b16 %v410, %v406
  %v675 = vpack.c.b16 %v415, %v411
  %v676 = vpack.c.b16 %v416, %v412
  %v677 = vpack.c.b16 %v417, %v413
  %v678 = vpack.c.b16 %v418, %v414
  %v679 = vpack.c.b16 %v423, %v419
  %v680 = vpack.c.b16 %v424, %v420
  %v681 = vpack.c.b16 %v425, %v421
  %v682 = vpack.c.b16 %v426, %v422
  %v683 = vpack.c.b16 %v431, %v427
  %v684 = vpack.c.b16 %v432, %v428
  %v685 = vpack.c.b16 %v433, %v429
  %v686 = vpack.c.b16 %v434, %v430
  %v687 = vpack.c.b16 %v439, %v435
  %v688 = vpack.c.b16 %v440, %v436
  %v689 = vpack.c.b16 %v441, %v437
  %v690 = vpack.c.b16 %v442, %v438
  %v691 = vpack.c.b16 %v447, %v443
  %v692 = vpack.c.b16 %v448, %v444
  %v693 = vpack.c.b16 %v449, %v445
  %v694 = vpack.c.b16 %v450, %v446
  %v695 = vpack.c.b16 %v455, %v451
  %v696 = vpack.c.b16 %v456, %v452
  %v697 = vpack.c.b16 %v457, %v453
  %v698 = vpack.c.b16 %v458, %v454
  %v699 = vpack.c.b16 %v463, %v459
  %v700 = vpack.c.b16 %v464, %v460
  %v701 = vpack.c.b16 %v465, %v461
  %v702 = vpack.c.b16 %v466, %v462
  %v703 = vpack.c.b16 %v471, %v467
  %v704 = vpack.c.b16 %v472, %v468
  %v705 = vpack.c.b16 %v473, %v469
  %v706 = vpack.c.b16 %v474, %v470
  %v707 = vpack.c.b16 %v479, %v475
  %v708 = vpack.c.b16 %v480, %v476
  %v709 = vpack.c.b16 %v481, %v477
  %v710 = vpack.c.b16 %v482, %v478
  %v711 = vpack.c.b16 %v487, %v483
  %v712 = vpack.c.b16 %v488, %v484
  %v713 = vpack.c.b16 %v489, %v485
  %v714 = vpack.c.b16 %v490, %v486
  %v715 = vpack.c.b16 %v495, %v491
  %v716 = vpack.c.b16 %v496, %v492
  %v717 = vpack.c.b16 %v497, %v493
  %v718 = vpack.c.b16 %v498, %v494
  %v719 = vpack.c.b16 %v503, %v499
  %v720 = vpack.c.b16 %v504, %v500
  %v721 = vpack.c.b16 %v505, %v501
  %v722 = vpack.c.b16 %v506, %v502
  %v723 = vpack.c.b16 %v511, %v507
  %v724 = vpack.c.b16 %v512, %v508
  %v725 = vpack.c.b16 %v513, %v509
  %v726 = vpack.c.b16 %v514, %v510
  %v727 = vpack.c.b16 %v519, %v515
  %v728 = vpack.c.b16 %v520, %v516
  %v729 = vpack.c.b16 %v521, %v517
  %v730 = vpack.c.b16 %v522, %v518
  %v731 = vpack.c.b16 %v527, %v523
  %v732 = vpack.c.b16 %v528, %v524
  %v733 = vpack.c.b16 %v529, %v525
  %v734 = vpack.c.b16 %v530, %v526
  %v735 = vpack.c.b16 %v535, %v531
  %v736 = vpack.c.b16 %v536, %v532
  %v737 = vpack.c.b16 %v537, %v533
  %v738 = vpack.c.b16 %v538, %v534
  %v739 = vpack.c.b16 %v543, %v539
  %v740 = vpack.c.b16 %v544, %v540
  %v741 = vpack.c.b16 %v545, %v541
  %v742 = vpack.c.b16 %v546, %v542
  %v743 = vpack.c.b16 %v551, %v547
  %v744 = vpack.c.b16 %v552, %v548
  %v745 = vpack.c.b16 %v553, %v549
  %v746 = vpack.c.b16 %v554, %v550
  %v747 = vpack.c.b16 %v559, %v555
  %v748 = vpack.c.b16 %v560, %v556
  %v749 = vpack.c.b16 %v561, %v557
  %v750 = vpack.c.b16 %v562, %v558
  %v751 = vpack.c.b16 %v567, %v563
  %v752 = vpack.c.b16 %v568, %v564
  %v753 = vpack.c.b16 %v569, %v565
  %v754 = vpack.c.b16 %v570, %v566
  %v755 = vpack.c.b16 %v575, %v571
  %v756 = vpack.c.b16 %v576, %v572
  %v757 = vpack.c.b16 %v577, %v573
  %v758 = vpack.c.b16 %v578, %v574
  %v759 = vpack.c.b16 %v583, %v579
  %v760 = vpack.c.b16 %v584, %v580
  %v761 = vpack.c.b16 %v585, %v581
  %v762 = vpack.c.b16 %v586, %v582
  %v763 = vpack.c.b16 %v591, %v587
  %v764 = vpack.c.b16 %v592, %v588
  %v765 = vpack.c.b16 %v593, %v589
  %v766 = vpack.c.b16 %v594, %v590
  %v767 = vpack.c.b16 %v599, %v595
  %v768 = vpack.c.b16 %v600, %v596
  %v769 = vpack.c.b16 %v601, %v597
  %v770 = vpack.c.b16 %v602, %v598
  %v771 = vpack.c.b16 %v607, %v603
  %v772 = vpack.c.b16 %v608, %v604
  %v773 = vpack.c.b16 %v609, %v605
  %v774 = vpack.c.b16 %v610, %v606
  %v775 = vpack.c.b16 %v615, %v611
  %v776 = vpack.c.b16 %v616, %v612
  %v777 = vpack.c.b16 %v617, %v613
  %v778 = vpack.c.b16 %v618, %v614
  %v779 = vpack.c.b16 %v623, %v619
  %v780 = vpack.c.b16 %v624, %v620
  %v781 = vpack.c.b16 %v625, %v621
  %v782 = vpack.c.b16 %v626, %v622
  %v783 = vpack.c.b16 %v631, %v627
  %v784 = vpack.c.b16 %v632, %v628
  %v785 = vpack.c.b16 %v633, %v629
  %v786 = vpack.c.b16 %v634, %v630
  %v787 = vpack.c.b16 %v639, %v635
  %v788 = vpack.c.b16 %v640, %v636
  %v789 = vpack.c.b16 %v641, %v637
  %v790 = vpack.c.b16 %v642, %v638
  %v791 = vpack.c.b16 %v647, %v643
  %v792 = vpack.c.b16 %v648, %v644
  %v793 = vpack.c.b16 %v649, %v645
  %v794 = vpack.c.b16 %v650, %v646
  %v953 = vunpack.c.l.b16 %v165
  %v954 = vunpack.c.l.b16 %v166
  %v955 = vunpack.c.l.b16 %v167
  %v956 = vunpack.c.l.b16 %v168
  %v957 = vunpack.c.l.b16 %v169
  %v958 = vunpack.c.l.b16 %v170
  %v959 = vunpack.c.l.b16 %v171
  %v960 = vunpack.c.l.b16 %v172
  %v961 = vunpack.c.l.b16 %v173
  %v962 = vunpack.c.l.b16 %v174
  %v963 = vunpack.c.l.b16 %v175
  %v964 = vunpack.c.l.b16 %v176
  %v965 = vunpack.c.l.b16 %v177
  %v966 = vunpack.c.l.b16 %v178
  %v967 = vunpack.c.l.b16 %v179
  %v968 = vunpack.c.l.b16 %v180
  %v969 = vunpack.c.l.b16 %v181
  %v970 = vunpack.c.l.b16 %v182
  %v971 = vunpack.c.l.b16 %v183
  %v972 = vunpack.c.l.b16 %v184
  %v973 = vunpack.c.l.b16 %v185
  %v974 = vunpack.c.l.b16 %v186
  %v975 = vunpack.c.l.b16 %v187
  %v976 = vunpack.c.l.b16 %v188
  %v977 = vunpack.c.l.b16 %v189
  %v978 = vunpack.c.l.b16 %v190
  %v979 = vunpack.c.l.b16 %v191
  %v980 = vunpack.c.l.b16 %v192
  %v981 = vunpack.c.l.b16 %v193
  %v982 = vunpack.c.l.b16 %v194
  %v983 = vunpack.c.l.b16 %v195
  %v984 = vunpack.c.l.b16 %v196
  %v985 = vunpack.c.l.b16 %v197
  %v986 = vunpack.c.l.b16 %v198
  %v987 = vunpack.c.l.b16 %v199
  %v988 = vunpack.c.l.b16 %v200
  %v989 = vunpack.c.l.b16 %v201
  %v990 = vunpack.c.l.b16 %v202
  %v991 = vunpack.c.l.b16 %v203
  %v992 = vunpack.c.l.b16 %v204
  %v993 = vunpack.c.l.b16 %v205
  %v994 = vunpack.c.l.b16 %v206
  %v995 = vunpack.c.l.b16 %v207
  %v996 = vunpack.c.l.b16 %v208
  %v997 = vunpack.c.l.b16 %v209
  %v998 = vunpack.c.l.b16 %v210
  %v999 = vunpack.c.l.b16 %v211
  %v1000 = vunpack.c.l.b16 %v212
  %v1001 = vunpack.c.l.b16 %v213
  %v1002 = vunpack.c.l.b16 %v214
  %v1003 = vpack.c.b16 %v954, %v953
  %v1004 = vpack.c.b16 %v956, %v955
  %v1005 = vpack.c.b16 %v958, %v957
  %v1006 = vpack.c.b16 %v960, %v959
  %v1007 = vpack.c.b16 %v962, %v961
  %v1008 = vpack.c.b16 %v964, %v963
  %v1009 = vpack.c.b16 %v966, %v965
  %v1010 = vpack.c.b16 %v968, %v967
  %v1011 = vpack.c.b16 %v970, %v969
  %v1012 = vpack.c.b16 %v972, %v971
  %v1013 = vpack.c.b16 %v974, %v973
  %v1014 = vpack.c.b16 %v976, %v975
  %v1015 = vpack.c.b16 %v978, %v977
  %v1016 = vpack.c.b16 %v980, %v979
  %v1017 = vpack.c.b16 %v982, %v981
  %v1018 = vpack.c.b16 %v984, %v983
  %v1019 = vpack.c.b16 %v986, %v985
  %v1020 = vpack.c.b16 %v988, %v987
  %v1021 = vpack.c.b16 %v990, %v989
  %v1022 = vpack.c.b16 %v992, %v991
  %v1023 = vpack.c.b16 %v994, %v993
  %v1024 = vpack.c.b16 %v996, %v995
  %v1025 = vpack.c.b16 %v998, %v997
  %v1026 = vpack.c.b16 %v1000, %v999
  %v1027 = vpack.c.b16 %v1002, %v1001
  %vm1053 = vcmask 130048
  %v1055 = vsel %vm1053, %v654, 0
  %v1058 = vsel %vm1053, %v658, 0
  %v1061 = vsel %vm1053, %v662, 0
  %v1064 = vsel %vm1053, %v666, 0
  %v1067 = vsel %vm1053, %v670, 0
  %v1070 = vsel %vm1053, %v674, 0
  %v1073 = vsel %vm1053, %v678, 0
  %v1076 = vsel %vm1053, %v682, 0
  %v1079 = vsel %vm1053, %v686, 0
  %v1082 = vsel %vm1053, %v690, 0
  %v1085 = vsel %vm1053, %v694, 0
  %v1088 = vsel %vm1053, %v698, 0
  %v1091 = vsel %vm1053, %v702, 0
  %v1094 = vsel %vm1053, %v706, 0
  %v1097 = vsel %vm1053, %v710, 0
  %v1100 = vsel %vm1053, %v714, 0
  %v1103 = vsel %vm1053, %v718, 0
  %v1106 = vsel %vm1053, %v722, 0
  %v1109 = vsel %vm1053, %v726, 0
  %v1112 = vsel %vm1053, %v730, 0
  %v1115 = vsel %vm1053, %v734, 0
  %v1118 = vsel %vm1053, %v738, 0
  %v1121 = vsel %vm1053, %v742, 0
  %v1124 = vsel %vm1053, %v746, 0
  %v1127 = vsel %vm1053, %v750, 0
  %v1130 = vsel %vm1053, %v754, 0
  %v1133 = vsel %vm1053, %v758, 0
  %v1136 = vsel %vm1053, %v762, 0
  %v1139 = vsel %vm1053, %v766, 0
  %v1142 = vsel %vm1053, %v770, 0
  %v1145 = vsel %vm1053, %v774, 0
  %v1148 = vsel %vm1053, %v778, 0
  %v1151 = vsel %vm1053, %v782, 0
  %v1154 = vsel %vm1053, %v786, 0
  %v1157 = vsel %vm1053, %v790, 0
  %v1160 = vsel %vm1053, %v794, 0
  %1162 = vmatpush.bf16.msra.mxu0 %v1010
  %1163 = vmatpush.bf16.msra.mxu0 %v1009
  %1164 = vmatpush.bf16.msra.mxu0 %v1008
  %1165 = vmatpush.bf16.msra.mxu0 %v1007
  %1166 = vmatpush.bf16.msra.mxu0 %v1006
  %1167 = vmatpush.bf16.msra.mxu0 %v1005
  %1168 = vmatpush.bf16.msra.mxu0 %v1004
  %1169 = vmatpush.bf16.msra.mxu0 %v1003
  %1170 = vmatmul.bf16.gmra.mxu0 %v651
  %v1171 = vpop.f32.mrf.mxu0
  %v1172 = vadd.f32 %v217, %v1171
  %v1173 = vpop.f32.mrf.mxu0
  %v1174 = vadd.f32 %v217, %v1173
  %1175 = vmatmul.bf16.gmra.mxu0 %v655
  %v1176 = vpop.f32.mrf.mxu0
  %v1177 = vadd.f32 %v217, %v1176
  %v1178 = vpop.f32.mrf.mxu0
  %v1179 = vadd.f32 %v217, %v1178
  %1180 = vmatmul.bf16.gmra.mxu0 %v659
  %v1181 = vpop.f32.mrf.mxu0
  %v1182 = vadd.f32 %v217, %v1181
  %v1183 = vpop.f32.mrf.mxu0
  %v1184 = vadd.f32 %v217, %v1183
  %1185 = vmatmul.bf16.gmra.mxu0 %v663
  %v1186 = vpop.f32.mrf.mxu0
  %v1187 = vadd.f32 %v217, %v1186
  %v1188 = vpop.f32.mrf.mxu0
  %v1189 = vadd.f32 %v217, %v1188
  %1190 = vmatmul.bf16.gmra.mxu0 %v667
  %v1191 = vpop.f32.mrf.mxu0
  %v1192 = vadd.f32 %v217, %v1191
  %v1193 = vpop.f32.mrf.mxu0
  %v1194 = vadd.f32 %v217, %v1193
  %1195 = vmatmul.bf16.gmra.mxu0 %v671
  %v1196 = vpop.f32.mrf.mxu0
  %v1197 = vadd.f32 %v217, %v1196
  %v1198 = vpop.f32.mrf.mxu0
  %v1199 = vadd.f32 %v217, %v1198
  %1200 = vmatmul.bf16.gmra.mxu0 %v675
  %v1201 = vpop.f32.mrf.mxu0
  %v1202 = vadd.f32 %v217, %v1201
  %v1203 = vpop.f32.mrf.mxu0
  %v1204 = vadd.f32 %v217, %v1203
  %1205 = vmatmul.bf16.gmra.mxu0 %v679
  %v1206 = vpop.f32.mrf.mxu0
  %v1207 = vadd.f32 %v217, %v1206
  %v1208 = vpop.f32.mrf.mxu0
  %v1209 = vadd.f32 %v217, %v1208
  %1210 = vmatmul.bf16.gmra.mxu0 %v683
  %v1211 = vpop.f32.mrf.mxu0
  %v1212 = vadd.f32 %v217, %v1211
  %v1213 = vpop.f32.mrf.mxu0
  %v1214 = vadd.f32 %v217, %v1213
  %1215 = vmatmul.bf16.gmra.mxu0 %v687
  %v1216 = vpop.f32.mrf.mxu0
  %v1217 = vadd.f32 %v217, %v1216
  %v1218 = vpop.f32.mrf.mxu0
  %v1219 = vadd.f32 %v217, %v1218
  %1220 = vmatmul.bf16.gmra.mxu0 %v691
  %v1221 = vpop.f32.mrf.mxu0
  %v1222 = vadd.f32 %v217, %v1221
  %v1223 = vpop.f32.mrf.mxu0
  %v1224 = vadd.f32 %v217, %v1223
  %1225 = vmatmul.bf16.gmra.mxu0 %v695
  %v1226 = vpop.f32.mrf.mxu0
  %v1227 = vadd.f32 %v217, %v1226
  %v1228 = vpop.f32.mrf.mxu0
  %v1229 = vadd.f32 %v217, %v1228
  %1230 = vmatmul.bf16.gmra.mxu0 %v699
  %v1231 = vpop.f32.mrf.mxu0
  %v1232 = vadd.f32 %v217, %v1231
  %v1233 = vpop.f32.mrf.mxu0
  %v1234 = vadd.f32 %v217, %v1233
  %1235 = vmatmul.bf16.gmra.mxu0 %v703
  %v1236 = vpop.f32.mrf.mxu0
  %v1237 = vadd.f32 %v217, %v1236
  %v1238 = vpop.f32.mrf.mxu0
  %v1239 = vadd.f32 %v217, %v1238
  %1240 = vmatmul.bf16.gmra.mxu0 %v707
  %v1241 = vpop.f32.mrf.mxu0
  %v1242 = vadd.f32 %v217, %v1241
  %v1243 = vpop.f32.mrf.mxu0
  %v1244 = vadd.f32 %v217, %v1243
  %1245 = vmatmul.bf16.gmra.mxu0 %v711
  %v1246 = vpop.f32.mrf.mxu0
  %v1247 = vadd.f32 %v217, %v1246
  %v1248 = vpop.f32.mrf.mxu0
  %v1249 = vadd.f32 %v217, %v1248
  %1250 = vmatmul.bf16.gmra.mxu0 %v715
  %v1251 = vpop.f32.mrf.mxu0
  %v1252 = vadd.f32 %v217, %v1251
  %v1253 = vpop.f32.mrf.mxu0
  %v1254 = vadd.f32 %v217, %v1253
  %1255 = vmatmul.bf16.gmra.mxu0 %v719
  %v1256 = vpop.f32.mrf.mxu0
  %v1257 = vadd.f32 %v217, %v1256
  %v1258 = vpop.f32.mrf.mxu0
  %v1259 = vadd.f32 %v217, %v1258
  %1260 = vmatmul.bf16.gmra.mxu0 %v723
  %v1261 = vpop.f32.mrf.mxu0
  %v1262 = vadd.f32 %v217, %v1261
  %v1263 = vpop.f32.mrf.mxu0
  %v1264 = vadd.f32 %v217, %v1263
  %1265 = vmatmul.bf16.gmra.mxu0 %v727
  %v1266 = vpop.f32.mrf.mxu0
  %v1267 = vadd.f32 %v217, %v1266
  %v1268 = vpop.f32.mrf.mxu0
  %v1269 = vadd.f32 %v217, %v1268
  %1270 = vmatmul.bf16.gmra.mxu0 %v731
  %v1271 = vpop.f32.mrf.mxu0
  %v1272 = vadd.f32 %v217, %v1271
  %v1273 = vpop.f32.mrf.mxu0
  %v1274 = vadd.f32 %v217, %v1273
  %1275 = vmatmul.bf16.gmra.mxu0 %v735
  %v1276 = vpop.f32.mrf.mxu0
  %v1277 = vadd.f32 %v217, %v1276
  %v1278 = vpop.f32.mrf.mxu0
  %v1279 = vadd.f32 %v217, %v1278
  %1280 = vmatmul.bf16.gmra.mxu0 %v739
  %v1281 = vpop.f32.mrf.mxu0
  %v1282 = vadd.f32 %v217, %v1281
  %v1283 = vpop.f32.mrf.mxu0
  %v1284 = vadd.f32 %v217, %v1283
  %1285 = vmatmul.bf16.gmra.mxu0 %v743
  %v1286 = vpop.f32.mrf.mxu0
  %v1287 = vadd.f32 %v217, %v1286
  %v1288 = vpop.f32.mrf.mxu0
  %v1289 = vadd.f32 %v217, %v1288
  %1290 = vmatmul.bf16.gmra.mxu0 %v747
  %v1291 = vpop.f32.mrf.mxu0
  %v1292 = vadd.f32 %v217, %v1291
  %v1293 = vpop.f32.mrf.mxu0
  %v1294 = vadd.f32 %v217, %v1293
  %1295 = vmatmul.bf16.gmra.mxu0 %v751
  %v1296 = vpop.f32.mrf.mxu0
  %v1297 = vadd.f32 %v217, %v1296
  %v1298 = vpop.f32.mrf.mxu0
  %v1299 = vadd.f32 %v217, %v1298
  %1300 = vmatmul.bf16.gmra.mxu0 %v755
  %v1301 = vpop.f32.mrf.mxu0
  %v1302 = vadd.f32 %v217, %v1301
  %v1303 = vpop.f32.mrf.mxu0
  %v1304 = vadd.f32 %v217, %v1303
  %1305 = vmatmul.bf16.gmra.mxu0 %v759
  %v1306 = vpop.f32.mrf.mxu0
  %v1307 = vadd.f32 %v217, %v1306
  %v1308 = vpop.f32.mrf.mxu0
  %v1309 = vadd.f32 %v217, %v1308
  %1310 = vmatmul.bf16.gmra.mxu0 %v763
  %v1311 = vpop.f32.mrf.mxu0
  %v1312 = vadd.f32 %v217, %v1311
  %v1313 = vpop.f32.mrf.mxu0
  %v1314 = vadd.f32 %v217, %v1313
  %1315 = vmatmul.bf16.gmra.mxu0 %v767
  %v1316 = vpop.f32.mrf.mxu0
  %v1317 = vadd.f32 %v217, %v1316
  %v1318 = vpop.f32.mrf.mxu0
  %v1319 = vadd.f32 %v217, %v1318
  %1320 = vmatmul.bf16.gmra.mxu0 %v771
  %v1321 = vpop.f32.mrf.mxu0
  %v1322 = vadd.f32 %v217, %v1321
  %v1323 = vpop.f32.mrf.mxu0
  %v1324 = vadd.f32 %v217, %v1323
  %1325 = vmatmul.bf16.gmra.mxu0 %v775
  %v1326 = vpop.f32.mrf.mxu0
  %v1327 = vadd.f32 %v217, %v1326
  %v1328 = vpop.f32.mrf.mxu0
  %v1329 = vadd.f32 %v217, %v1328
  %1330 = vmatmul.bf16.gmra.mxu0 %v779
  %v1331 = vpop.f32.mrf.mxu0
  %v1332 = vadd.f32 %v217, %v1331
  %v1333 = vpop.f32.mrf.mxu0
  %v1334 = vadd.f32 %v217, %v1333
  %1335 = vmatmul.bf16.gmra.mxu0 %v783
  %v1336 = vpop.f32.mrf.mxu0
  %v1337 = vadd.f32 %v217, %v1336
  %v1338 = vpop.f32.mrf.mxu0
  %v1339 = vadd.f32 %v217, %v1338
  %1340 = vmatmul.bf16.gmra.mxu0 %v787
  %v1341 = vpop.f32.mrf.mxu0
  %v1342 = vadd.f32 %v217, %v1341
  %v1343 = vpop.f32.mrf.mxu0
  %v1344 = vadd.f32 %v217, %v1343
  %1345 = vmatmul.bf16.gmra.mxu0 %v791
  %v1346 = vpop.f32.mrf.mxu0
  %v1347 = vadd.f32 %v217, %v1346
  %v1348 = vpop.f32.mrf.mxu0
  %v1349 = vadd.f32 %v217, %v1348
  %1350 = vdwg.mxu0
  %1351 = vmatpush.bf16.msra.mxu0 %v1018
  %1352 = vmatpush.bf16.msra.mxu0 %v1017
  %1353 = vmatpush.bf16.msra.mxu0 %v1016
  %1354 = vmatpush.bf16.msra.mxu0 %v1015
  %1355 = vmatpush.bf16.msra.mxu0 %v1014
  %1356 = vmatpush.bf16.msra.mxu0 %v1013
  %1357 = vmatpush.bf16.msra.mxu0 %v1012
  %1358 = vmatpush.bf16.msra.mxu0 %v1011
  %1359 = vmatmul.bf16.gmra.mxu0 %v652
  %v1360 = vpop.f32.mrf.mxu0
  %v1361 = vadd.f32 %v1172, %v1360
  %v1362 = vpop.f32.mrf.mxu0
  %v1363 = vadd.f32 %v1174, %v1362
  %1364 = vmatmul.bf16.gmra.mxu0 %v656
  %v1365 = vpop.f32.mrf.mxu0
  %v1366 = vadd.f32 %v1177, %v1365
  %v1367 = vpop.f32.mrf.mxu0
  %v1368 = vadd.f32 %v1179, %v1367
  %1369 = vmatmul.bf16.gmra.mxu0 %v660
  %v1370 = vpop.f32.mrf.mxu0
  %v1371 = vadd.f32 %v1182, %v1370
  %v1372 = vpop.f32.mrf.mxu0
  %v1373 = vadd.f32 %v1184, %v1372
  %1374 = vmatmul.bf16.gmra.mxu0 %v664
  %v1375 = vpop.f32.mrf.mxu0
  %v1376 = vadd.f32 %v1187, %v1375
  %v1377 = vpop.f32.mrf.mxu0
  %v1378 = vadd.f32 %v1189, %v1377
  %1379 = vmatmul.bf16.gmra.mxu0 %v668
  %v1380 = vpop.f32.mrf.mxu0
  %v1381 = vadd.f32 %v1192, %v1380
  %v1382 = vpop.f32.mrf.mxu0
  %v1383 = vadd.f32 %v1194, %v1382
  %1384 = vmatmul.bf16.gmra.mxu0 %v672
  %v1385 = vpop.f32.mrf.mxu0
  %v1386 = vadd.f32 %v1197, %v1385
  %v1387 = vpop.f32.mrf.mxu0
  %v1388 = vadd.f32 %v1199, %v1387
  %1389 = vmatmul.bf16.gmra.mxu0 %v676
  %v1390 = vpop.f32.mrf.mxu0
  %v1391 = vadd.f32 %v1202, %v1390
  %v1392 = vpop.f32.mrf.mxu0
  %v1393 = vadd.f32 %v1204, %v1392
  %1394 = vmatmul.bf16.gmra.mxu0 %v680
  %v1395 = vpop.f32.mrf.mxu0
  %v1396 = vadd.f32 %v1207, %v1395
  %v1397 = vpop.f32.mrf.mxu0
  %v1398 = vadd.f32 %v1209, %v1397
  %1399 = vmatmul.bf16.gmra.mxu0 %v684
  %v1400 = vpop.f32.mrf.mxu0
  %v1401 = vadd.f32 %v1212, %v1400
  %v1402 = vpop.f32.mrf.mxu0
  %v1403 = vadd.f32 %v1214, %v1402
  %1404 = vmatmul.bf16.gmra.mxu0 %v688
  %v1405 = vpop.f32.mrf.mxu0
  %v1406 = vadd.f32 %v1217, %v1405
  %v1407 = vpop.f32.mrf.mxu0
  %v1408 = vadd.f32 %v1219, %v1407
  %1409 = vmatmul.bf16.gmra.mxu0 %v692
  %v1410 = vpop.f32.mrf.mxu0
  %v1411 = vadd.f32 %v1222, %v1410
  %v1412 = vpop.f32.mrf.mxu0
  %v1413 = vadd.f32 %v1224, %v1412
  %1414 = vmatmul.bf16.gmra.mxu0 %v696
  %v1415 = vpop.f32.mrf.mxu0
  %v1416 = vadd.f32 %v1227, %v1415
  %v1417 = vpop.f32.mrf.mxu0
  %v1418 = vadd.f32 %v1229, %v1417
  %1419 = vmatmul.bf16.gmra.mxu0 %v700
  %v1420 = vpop.f32.mrf.mxu0
  %v1421 = vadd.f32 %v1232, %v1420
  %v1422 = vpop.f32.mrf.mxu0
  %v1423 = vadd.f32 %v1234, %v1422
  %1424 = vmatmul.bf16.gmra.mxu0 %v704
  %v1425 = vpop.f32.mrf.mxu0
  %v1426 = vadd.f32 %v1237, %v1425
  %v1427 = vpop.f32.mrf.mxu0
  %v1428 = vadd.f32 %v1239, %v1427
  %1429 = vmatmul.bf16.gmra.mxu0 %v708
  %v1430 = vpop.f32.mrf.mxu0
  %v1431 = vadd.f32 %v1242, %v1430
  %v1432 = vpop.f32.mrf.mxu0
  %v1433 = vadd.f32 %v1244, %v1432
  %1434 = vmatmul.bf16.gmra.mxu0 %v712
  %v1435 = vpop.f32.mrf.mxu0
  %v1436 = vadd.f32 %v1247, %v1435
  %v1437 = vpop.f32.mrf.mxu0
  %v1438 = vadd.f32 %v1249, %v1437
  %1439 = vmatmul.bf16.gmra.mxu0 %v716
  %v1440 = vpop.f32.mrf.mxu0
  %v1441 = vadd.f32 %v1252, %v1440
  %v1442 = vpop.f32.mrf.mxu0
  %v1443 = vadd.f32 %v1254, %v1442
  %1444 = vmatmul.bf16.gmra.mxu0 %v720
  %v1445 = vpop.f32.mrf.mxu0
  %v1446 = vadd.f32 %v1257, %v1445
  %v1447 = vpop.f32.mrf.mxu0
  %v1448 = vadd.f32 %v1259, %v1447
  %1449 = vmatmul.bf16.gmra.mxu0 %v724
  %v1450 = vpop.f32.mrf.mxu0
  %v1451 = vadd.f32 %v1262, %v1450
  %v1452 = vpop.f32.mrf.mxu0
  %v1453 = vadd.f32 %v1264, %v1452
  %1454 = vmatmul.bf16.gmra.mxu0 %v728
  %v1455 = vpop.f32.mrf.mxu0
  %v1456 = vadd.f32 %v1267, %v1455
  %v1457 = vpop.f32.mrf.mxu0
  %v1458 = vadd.f32 %v1269, %v1457
  %1459 = vmatmul.bf16.gmra.mxu0 %v732
  %v1460 = vpop.f32.mrf.mxu0
  %v1461 = vadd.f32 %v1272, %v1460
  %v1462 = vpop.f32.mrf.mxu0
  %v1463 = vadd.f32 %v1274, %v1462
  %1464 = vmatmul.bf16.gmra.mxu0 %v736
  %v1465 = vpop.f32.mrf.mxu0
  %v1466 = vadd.f32 %v1277, %v1465
  %v1467 = vpop.f32.mrf.mxu0
  %v1468 = vadd.f32 %v1279, %v1467
  %1469 = vmatmul.bf16.gmra.mxu0 %v740
  %v1470 = vpop.f32.mrf.mxu0
  %v1471 = vadd.f32 %v1282, %v1470
  %v1472 = vpop.f32.mrf.mxu0
  %v1473 = vadd.f32 %v1284, %v1472
  %1474 = vmatmul.bf16.gmra.mxu0 %v744
  %v1475 = vpop.f32.mrf.mxu0
  %v1476 = vadd.f32 %v1287, %v1475
  %v1477 = vpop.f32.mrf.mxu0
  %v1478 = vadd.f32 %v1289, %v1477
  %1479 = vmatmul.bf16.gmra.mxu0 %v748
  %v1480 = vpop.f32.mrf.mxu0
  %v1481 = vadd.f32 %v1292, %v1480
  %v1482 = vpop.f32.mrf.mxu0
  %v1483 = vadd.f32 %v1294, %v1482
  %1484 = vmatmul.bf16.gmra.mxu0 %v752
  %v1485 = vpop.f32.mrf.mxu0
  %v1486 = vadd.f32 %v1297, %v1485
  %v1487 = vpop.f32.mrf.mxu0
  %v1488 = vadd.f32 %v1299, %v1487
  %1489 = vmatmul.bf16.gmra.mxu0 %v756
  %v1490 = vpop.f32.mrf.mxu0
  %v1491 = vadd.f32 %v1302, %v1490
  %v1492 = vpop.f32.mrf.mxu0
  %v1493 = vadd.f32 %v1304, %v1492
  %1494 = vmatmul.bf16.gmra.mxu0 %v760
  %v1495 = vpop.f32.mrf.mxu0
  %v1496 = vadd.f32 %v1307, %v1495
  %v1497 = vpop.f32.mrf.mxu0
  %v1498 = vadd.f32 %v1309, %v1497
  %1499 = vmatmul.bf16.gmra.mxu0 %v764
  %v1500 = vpop.f32.mrf.mxu0
  %v1501 = vadd.f32 %v1312, %v1500
  %v1502 = vpop.f32.mrf.mxu0
  %v1503 = vadd.f32 %v1314, %v1502
  %1504 = vmatmul.bf16.gmra.mxu0 %v768
  %v1505 = vpop.f32.mrf.mxu0
  %v1506 = vadd.f32 %v1317, %v1505
  %v1507 = vpop.f32.mrf.mxu0
  %v1508 = vadd.f32 %v1319, %v1507
  %1509 = vmatmul.bf16.gmra.mxu0 %v772
  %v1510 = vpop.f32.mrf.mxu0
  %v1511 = vadd.f32 %v1322, %v1510
  %v1512 = vpop.f32.mrf.mxu0
  %v1513 = vadd.f32 %v1324, %v1512
  %1514 = vmatmul.bf16.gmra.mxu0 %v776
  %v1515 = vpop.f32.mrf.mxu0
  %v1516 = vadd.f32 %v1327, %v1515
  %v1517 = vpop.f32.mrf.mxu0
  %v1518 = vadd.f32 %v1329, %v1517
  %1519 = vmatmul.bf16.gmra.mxu0 %v780
  %v1520 = vpop.f32.mrf.mxu0
  %v1521 = vadd.f32 %v1332, %v1520
  %v1522 = vpop.f32.mrf.mxu0
  %v1523 = vadd.f32 %v1334, %v1522
  %1524 = vmatmul.bf16.gmra.mxu0 %v784
  %v1525 = vpop.f32.mrf.mxu0
  %v1526 = vadd.f32 %v1337, %v1525
  %v1527 = vpop.f32.mrf.mxu0
  %v1528 = vadd.f32 %v1339, %v1527
  %1529 = vmatmul.bf16.gmra.mxu0 %v788
  %v1530 = vpop.f32.mrf.mxu0
  %v1531 = vadd.f32 %v1342, %v1530
  %v1532 = vpop.f32.mrf.mxu0
  %v1533 = vadd.f32 %v1344, %v1532
  %1534 = vmatmul.bf16.gmra.mxu0 %v792
  %v1535 = vpop.f32.mrf.mxu0
  %v1536 = vadd.f32 %v1347, %v1535
  %v1537 = vpop.f32.mrf.mxu0
  %v1538 = vadd.f32 %v1349, %v1537
  %1539 = vdwg.mxu0
  %1540 = vmatpush.bf16.msra.mxu0 %v1026
  %1541 = vmatpush.bf16.msra.mxu0 %v1025
  %1542 = vmatpush.bf16.msra.mxu0 %v1024
  %1543 = vmatpush.bf16.msra.mxu0 %v1023
  %1544 = vmatpush.bf16.msra.mxu0 %v1022
  %1545 = vmatpush.bf16.msra.mxu0 %v1021
  %1546 = vmatpush.bf16.msra.mxu0 %v1020
  %1547 = vmatpush.bf16.msra.mxu0 %v1019
  %1548 = vmatmul.bf16.gmra.mxu0 %v653
  %v1549 = vpop.f32.mrf.mxu0
  %v1550 = vadd.f32 %v1361, %v1549
  %v1551 = vpop.f32.mrf.mxu0
  %v1552 = vadd.f32 %v1363, %v1551
  %1553 = vmatmul.bf16.gmra.mxu0 %v657
  %v1554 = vpop.f32.mrf.mxu0
  %v1555 = vadd.f32 %v1366, %v1554
  %v1556 = vpop.f32.mrf.mxu0
  %v1557 = vadd.f32 %v1368, %v1556
  %1558 = vmatmul.bf16.gmra.mxu0 %v661
  %v1559 = vpop.f32.mrf.mxu0
  %v1560 = vadd.f32 %v1371, %v1559
  %v1561 = vpop.f32.mrf.mxu0
  %v1562 = vadd.f32 %v1373, %v1561
  %1563 = vmatmul.bf16.gmra.mxu0 %v665
  %v1564 = vpop.f32.mrf.mxu0
  %v1565 = vadd.f32 %v1376, %v1564
  %v1566 = vpop.f32.mrf.mxu0
  %v1567 = vadd.f32 %v1378, %v1566
  %1568 = vmatmul.bf16.gmra.mxu0 %v669
  %v1569 = vpop.f32.mrf.mxu0
  %v1570 = vadd.f32 %v1381, %v1569
  %v1571 = vpop.f32.mrf.mxu0
  %v1572 = vadd.f32 %v1383, %v1571
  %1573 = vmatmul.bf16.gmra.mxu0 %v673
  %v1574 = vpop.f32.mrf.mxu0
  %v1575 = vadd.f32 %v1386, %v1574
  %v1576 = vpop.f32.mrf.mxu0
  %v1577 = vadd.f32 %v1388, %v1576
  %1578 = vmatmul.bf16.gmra.mxu0 %v677
  %v1579 = vpop.f32.mrf.mxu0
  %v1580 = vadd.f32 %v1391, %v1579
  %v1581 = vpop.f32.mrf.mxu0
  %v1582 = vadd.f32 %v1393, %v1581
  %1583 = vmatmul.bf16.gmra.mxu0 %v681
  %v1584 = vpop.f32.mrf.mxu0
  %v1585 = vadd.f32 %v1396, %v1584
  %v1586 = vpop.f32.mrf.mxu0
  %v1587 = vadd.f32 %v1398, %v1586
  %1588 = vmatmul.bf16.gmra.mxu0 %v685
  %v1589 = vpop.f32.mrf.mxu0
  %v1590 = vadd.f32 %v1401, %v1589
  %v1591 = vpop.f32.mrf.mxu0
  %v1592 = vadd.f32 %v1403, %v1591
  %1593 = vmatmul.bf16.gmra.mxu0 %v689
  %v1594 = vpop.f32.mrf.mxu0
  %v1595 = vadd.f32 %v1406, %v1594
  %v1596 = vpop.f32.mrf.mxu0
  %v1597 = vadd.f32 %v1408, %v1596
  %1598 = vmatmul.bf16.gmra.mxu0 %v693
  %v1599 = vpop.f32.mrf.mxu0
  %v1600 = vadd.f32 %v1411, %v1599
  %v1601 = vpop.f32.mrf.mxu0
  %v1602 = vadd.f32 %v1413, %v1601
  %1603 = vmatmul.bf16.gmra.mxu0 %v697
  %v1604 = vpop.f32.mrf.mxu0
  %v1605 = vadd.f32 %v1416, %v1604
  %v1606 = vpop.f32.mrf.mxu0
  %v1607 = vadd.f32 %v1418, %v1606
  %1608 = vmatmul.bf16.gmra.mxu0 %v701
  %v1609 = vpop.f32.mrf.mxu0
  %v1610 = vadd.f32 %v1421, %v1609
  %v1611 = vpop.f32.mrf.mxu0
  %v1612 = vadd.f32 %v1423, %v1611
  %1613 = vmatmul.bf16.gmra.mxu0 %v705
  %v1614 = vpop.f32.mrf.mxu0
  %v1615 = vadd.f32 %v1426, %v1614
  %v1616 = vpop.f32.mrf.mxu0
  %v1617 = vadd.f32 %v1428, %v1616
  %1618 = vmatmul.bf16.gmra.mxu0 %v709
  %v1619 = vpop.f32.mrf.mxu0
  %v1620 = vadd.f32 %v1431, %v1619
  %v1621 = vpop.f32.mrf.mxu0
  %v1622 = vadd.f32 %v1433, %v1621
  %1623 = vmatmul.bf16.gmra.mxu0 %v713
  %v1624 = vpop.f32.mrf.mxu0
  %v1625 = vadd.f32 %v1436, %v1624
  %v1626 = vpop.f32.mrf.mxu0
  %v1627 = vadd.f32 %v1438, %v1626
  %1628 = vmatmul.bf16.gmra.mxu0 %v717
  %v1629 = vpop.f32.mrf.mxu0
  %v1630 = vadd.f32 %v1441, %v1629
  %v1631 = vpop.f32.mrf.mxu0
  %v1632 = vadd.f32 %v1443, %v1631
  %1633 = vmatmul.bf16.gmra.mxu0 %v721
  %v1634 = vpop.f32.mrf.mxu0
  %v1635 = vadd.f32 %v1446, %v1634
  %v1636 = vpop.f32.mrf.mxu0
  %v1637 = vadd.f32 %v1448, %v1636
  %1638 = vmatmul.bf16.gmra.mxu0 %v725
  %v1639 = vpop.f32.mrf.mxu0
  %v1640 = vadd.f32 %v1451, %v1639
  %v1641 = vpop.f32.mrf.mxu0
  %v1642 = vadd.f32 %v1453, %v1641
  %1643 = vmatmul.bf16.gmra.mxu0 %v729
  %v1644 = vpop.f32.mrf.mxu0
  %v1645 = vadd.f32 %v1456, %v1644
  %v1646 = vpop.f32.mrf.mxu0
  %v1647 = vadd.f32 %v1458, %v1646
  %1648 = vmatmul.bf16.gmra.mxu0 %v733
  %v1649 = vpop.f32.mrf.mxu0
  %v1650 = vadd.f32 %v1461, %v1649
  %v1651 = vpop.f32.mrf.mxu0
  %v1652 = vadd.f32 %v1463, %v1651
  %1653 = vmatmul.bf16.gmra.mxu0 %v737
  %v1654 = vpop.f32.mrf.mxu0
  %v1655 = vadd.f32 %v1466, %v1654
  %v1656 = vpop.f32.mrf.mxu0
  %v1657 = vadd.f32 %v1468, %v1656
  %1658 = vmatmul.bf16.gmra.mxu0 %v741
  %v1659 = vpop.f32.mrf.mxu0
  %v1660 = vadd.f32 %v1471, %v1659
  %v1661 = vpop.f32.mrf.mxu0
  %v1662 = vadd.f32 %v1473, %v1661
  %1663 = vmatmul.bf16.gmra.mxu0 %v745
  %v1664 = vpop.f32.mrf.mxu0
  %v1665 = vadd.f32 %v1476, %v1664
  %v1666 = vpop.f32.mrf.mxu0
  %v1667 = vadd.f32 %v1478, %v1666
  %1668 = vmatmul.bf16.gmra.mxu0 %v749
  %v1669 = vpop.f32.mrf.mxu0
  %v1670 = vadd.f32 %v1481, %v1669
  %v1671 = vpop.f32.mrf.mxu0
  %v1672 = vadd.f32 %v1483, %v1671
  %1673 = vmatmul.bf16.gmra.mxu0 %v753
  %v1674 = vpop.f32.mrf.mxu0
  %v1675 = vadd.f32 %v1486, %v1674
  %v1676 = vpop.f32.mrf.mxu0
  %v1677 = vadd.f32 %v1488, %v1676
  %1678 = vmatmul.bf16.gmra.mxu0 %v757
  %v1679 = vpop.f32.mrf.mxu0
  %v1680 = vadd.f32 %v1491, %v1679
  %v1681 = vpop.f32.mrf.mxu0
  %v1682 = vadd.f32 %v1493, %v1681
  %1683 = vmatmul.bf16.gmra.mxu0 %v761
  %v1684 = vpop.f32.mrf.mxu0
  %v1685 = vadd.f32 %v1496, %v1684
  %v1686 = vpop.f32.mrf.mxu0
  %v1687 = vadd.f32 %v1498, %v1686
  %1688 = vmatmul.bf16.gmra.mxu0 %v765
  %v1689 = vpop.f32.mrf.mxu0
  %v1690 = vadd.f32 %v1501, %v1689
  %v1691 = vpop.f32.mrf.mxu0
  %v1692 = vadd.f32 %v1503, %v1691
  %1693 = vmatmul.bf16.gmra.mxu0 %v769
  %v1694 = vpop.f32.mrf.mxu0
  %v1695 = vadd.f32 %v1506, %v1694
  %v1696 = vpop.f32.mrf.mxu0
  %v1697 = vadd.f32 %v1508, %v1696
  %1698 = vmatmul.bf16.gmra.mxu0 %v773
  %v1699 = vpop.f32.mrf.mxu0
  %v1700 = vadd.f32 %v1511, %v1699
  %v1701 = vpop.f32.mrf.mxu0
  %v1702 = vadd.f32 %v1513, %v1701
  %1703 = vmatmul.bf16.gmra.mxu0 %v777
  %v1704 = vpop.f32.mrf.mxu0
  %v1705 = vadd.f32 %v1516, %v1704
  %v1706 = vpop.f32.mrf.mxu0
  %v1707 = vadd.f32 %v1518, %v1706
  %1708 = vmatmul.bf16.gmra.mxu0 %v781
  %v1709 = vpop.f32.mrf.mxu0
  %v1710 = vadd.f32 %v1521, %v1709
  %v1711 = vpop.f32.mrf.mxu0
  %v1712 = vadd.f32 %v1523, %v1711
  %1713 = vmatmul.bf16.gmra.mxu0 %v785
  %v1714 = vpop.f32.mrf.mxu0
  %v1715 = vadd.f32 %v1526, %v1714
  %v1716 = vpop.f32.mrf.mxu0
  %v1717 = vadd.f32 %v1528, %v1716
  %1718 = vmatmul.bf16.gmra.mxu0 %v789
  %v1719 = vpop.f32.mrf.mxu0
  %v1720 = vadd.f32 %v1531, %v1719
  %v1721 = vpop.f32.mrf.mxu0
  %v1722 = vadd.f32 %v1533, %v1721
  %1723 = vmatmul.bf16.gmra.mxu0 %v793
  %v1724 = vpop.f32.mrf.mxu0
  %v1725 = vadd.f32 %v1536, %v1724
  %v1726 = vpop.f32.mrf.mxu0
  %v1727 = vadd.f32 %v1538, %v1726
  %1728 = vdwg.mxu0
  %1729 = vmatpush.bf16.msra.mxu0 0
  %1730 = vmatpush.bf16.msra.mxu0 0
  %1731 = vmatpush.bf16.msra.mxu0 0
  %1732 = vmatpush.bf16.msra.mxu0 0
  %1733 = vmatpush.bf16.msra.mxu0 0
  %1734 = vmatpush.bf16.msra.mxu0 0
  %1735 = vmatpush.bf16.msra.mxu0 0
  %1736 = vmatpush.bf16.msra.mxu0 %v1027
  %1737 = vmatmul.bf16.gmra.mxu0 %v1055
  %v1738 = vpop.f32.mrf.mxu0
  %v1739 = vadd.f32 %v1550, %v1738
  %v1740 = vpop.f32.mrf.mxu0
  %v1741 = vadd.f32 %v1552, %v1740
  %1742 = vmatmul.bf16.gmra.mxu0 %v1058
  %v1743 = vpop.f32.mrf.mxu0
  %v1744 = vadd.f32 %v1555, %v1743
  %v1745 = vpop.f32.mrf.mxu0
  %v1746 = vadd.f32 %v1557, %v1745
  %1747 = vmatmul.bf16.gmra.mxu0 %v1061
  %v1748 = vpop.f32.mrf.mxu0
  %v1749 = vadd.f32 %v1560, %v1748
  %v1750 = vpop.f32.mrf.mxu0
  %v1751 = vadd.f32 %v1562, %v1750
  %1752 = vmatmul.bf16.gmra.mxu0 %v1064
  %v1753 = vpop.f32.mrf.mxu0
  %v1754 = vadd.f32 %v1565, %v1753
  %v1755 = vpop.f32.mrf.mxu0
  %v1756 = vadd.f32 %v1567, %v1755
  %1757 = vmatmul.bf16.gmra.mxu0 %v1067
  %v1758 = vpop.f32.mrf.mxu0
  %v1759 = vadd.f32 %v1570, %v1758
  %v1760 = vpop.f32.mrf.mxu0
  %v1761 = vadd.f32 %v1572, %v1760
  %1762 = vmatmul.bf16.gmra.mxu0 %v1070
  %v1763 = vpop.f32.mrf.mxu0
  %v1764 = vadd.f32 %v1575, %v1763
  %v1765 = vpop.f32.mrf.mxu0
  %v1766 = vadd.f32 %v1577, %v1765
  %1767 = vmatmul.bf16.gmra.mxu0 %v1073
  %v1768 = vpop.f32.mrf.mxu0
  %v1769 = vadd.f32 %v1580, %v1768
  %v1770 = vpop.f32.mrf.mxu0
  %v1771 = vadd.f32 %v1582, %v1770
  %1772 = vmatmul.bf16.gmra.mxu0 %v1076
  %v1773 = vpop.f32.mrf.mxu0
  %v1774 = vadd.f32 %v1585, %v1773
  %v1775 = vpop.f32.mrf.mxu0
  %v1776 = vadd.f32 %v1587, %v1775
  %1777 = vmatmul.bf16.gmra.mxu0 %v1079
  %v1778 = vpop.f32.mrf.mxu0
  %v1779 = vadd.f32 %v1590, %v1778
  %v1780 = vpop.f32.mrf.mxu0
  %v1781 = vadd.f32 %v1592, %v1780
  %1782 = vmatmul.bf16.gmra.mxu0 %v1082
  %v1783 = vpop.f32.mrf.mxu0
  %v1784 = vadd.f32 %v1595, %v1783
  %v1785 = vpop.f32.mrf.mxu0
  %v1786 = vadd.f32 %v1597, %v1785
  %1787 = vmatmul.bf16.gmra.mxu0 %v1085
  %v1788 = vpop.f32.mrf.mxu0
  %v1789 = vadd.f32 %v1600, %v1788
  %v1790 = vpop.f32.mrf.mxu0
  %v1791 = vadd.f32 %v1602, %v1790
  %1792 = vmatmul.bf16.gmra.mxu0 %v1088
  %v1793 = vpop.f32.mrf.mxu0
  %v1794 = vadd.f32 %v1605, %v1793
  %v1795 = vpop.f32.mrf.mxu0
  %v1796 = vadd.f32 %v1607, %v1795
  %1797 = vmatmul.bf16.gmra.mxu0 %v1091
  %v1798 = vpop.f32.mrf.mxu0
  %v1799 = vadd.f32 %v1610, %v1798
  %v1800 = vpop.f32.mrf.mxu0
  %v1801 = vadd.f32 %v1612, %v1800
  %1802 = vmatmul.bf16.gmra.mxu0 %v1094
  %v1803 = vpop.f32.mrf.mxu0
  %v1804 = vadd.f32 %v1615, %v1803
  %v1805 = vpop.f32.mrf.mxu0
  %v1806 = vadd.f32 %v1617, %v1805
  %1807 = vmatmul.bf16.gmra.mxu0 %v1097
  %v1808 = vpop.f32.mrf.mxu0
  %v1809 = vadd.f32 %v1620, %v1808
  %v1810 = vpop.f32.mrf.mxu0
  %v1811 = vadd.f32 %v1622, %v1810
  %1812 = vmatmul.bf16.gmra.mxu0 %v1100
  %v1813 = vpop.f32.mrf.mxu0
  %v1814 = vadd.f32 %v1625, %v1813
  %v1815 = vpop.f32.mrf.mxu0
  %v1816 = vadd.f32 %v1627, %v1815
  %1817 = vmatmul.bf16.gmra.mxu0 %v1103
  %v1818 = vpop.f32.mrf.mxu0
  %v1819 = vadd.f32 %v1630, %v1818
  %v1820 = vpop.f32.mrf.mxu0
  %v1821 = vadd.f32 %v1632, %v1820
  %1822 = vmatmul.bf16.gmra.mxu0 %v1106
  %v1823 = vpop.f32.mrf.mxu0
  %v1824 = vadd.f32 %v1635, %v1823
  %v1825 = vpop.f32.mrf.mxu0
  %v1826 = vadd.f32 %v1637, %v1825
  %1827 = vmatmul.bf16.gmra.mxu0 %v1109
  %v1828 = vpop.f32.mrf.mxu0
  %v1829 = vadd.f32 %v1640, %v1828
  %v1830 = vpop.f32.mrf.mxu0
  %v1831 = vadd.f32 %v1642, %v1830
  %1832 = vmatmul.bf16.gmra.mxu0 %v1112
  %v1833 = vpop.f32.mrf.mxu0
  %v1834 = vadd.f32 %v1645, %v1833
  %v1835 = vpop.f32.mrf.mxu0
  %v1836 = vadd.f32 %v1647, %v1835
  %1837 = vmatmul.bf16.gmra.mxu0 %v1115
  %v1838 = vpop.f32.mrf.mxu0
  %v1839 = vadd.f32 %v1650, %v1838
  %v1840 = vpop.f32.mrf.mxu0
  %v1841 = vadd.f32 %v1652, %v1840
  %1842 = vmatmul.bf16.gmra.mxu0 %v1118
  %v1843 = vpop.f32.mrf.mxu0
  %v1844 = vadd.f32 %v1655, %v1843
  %v1845 = vpop.f32.mrf.mxu0
  %v1846 = vadd.f32 %v1657, %v1845
  %1847 = vmatmul.bf16.gmra.mxu0 %v1121
  %v1848 = vpop.f32.mrf.mxu0
  %v1849 = vadd.f32 %v1660, %v1848
  %v1850 = vpop.f32.mrf.mxu0
  %v1851 = vadd.f32 %v1662, %v1850
  %1852 = vmatmul.bf16.gmra.mxu0 %v1124
  %v1853 = vpop.f32.mrf.mxu0
  %v1854 = vadd.f32 %v1665, %v1853
  %v1855 = vpop.f32.mrf.mxu0
  %v1856 = vadd.f32 %v1667, %v1855
  %1857 = vmatmul.bf16.gmra.mxu0 %v1127
  %v1858 = vpop.f32.mrf.mxu0
  %v1859 = vadd.f32 %v1670, %v1858
  %v1860 = vpop.f32.mrf.mxu0
  %v1861 = vadd.f32 %v1672, %v1860
  %1862 = vmatmul.bf16.gmra.mxu0 %v1130
  %v1863 = vpop.f32.mrf.mxu0
  %v1864 = vadd.f32 %v1675, %v1863
  %v1865 = vpop.f32.mrf.mxu0
  %v1866 = vadd.f32 %v1677, %v1865
  %1867 = vmatmul.bf16.gmra.mxu0 %v1133
  %v1868 = vpop.f32.mrf.mxu0
  %v1869 = vadd.f32 %v1680, %v1868
  %v1870 = vpop.f32.mrf.mxu0
  %v1871 = vadd.f32 %v1682, %v1870
  %1872 = vmatmul.bf16.gmra.mxu0 %v1136
  %v1873 = vpop.f32.mrf.mxu0
  %v1874 = vadd.f32 %v1685, %v1873
  %v1875 = vpop.f32.mrf.mxu0
  %v1876 = vadd.f32 %v1687, %v1875
  %1877 = vmatmul.bf16.gmra.mxu0 %v1139
  %v1878 = vpop.f32.mrf.mxu0
  %v1879 = vadd.f32 %v1690, %v1878
  %v1880 = vpop.f32.mrf.mxu0
  %v1881 = vadd.f32 %v1692, %v1880
  %1882 = vmatmul.bf16.gmra.mxu0 %v1142
  %v1883 = vpop.f32.mrf.mxu0
  %v1884 = vadd.f32 %v1695, %v1883
  %v1885 = vpop.f32.mrf.mxu0
  %v1886 = vadd.f32 %v1697, %v1885
  %1887 = vmatmul.bf16.gmra.mxu0 %v1145
  %v1888 = vpop.f32.mrf.mxu0
  %v1889 = vadd.f32 %v1700, %v1888
  %v1890 = vpop.f32.mrf.mxu0
  %v1891 = vadd.f32 %v1702, %v1890
  %1892 = vmatmul.bf16.gmra.mxu0 %v1148
  %v1893 = vpop.f32.mrf.mxu0
  %v1894 = vadd.f32 %v1705, %v1893
  %v1895 = vpop.f32.mrf.mxu0
  %v1896 = vadd.f32 %v1707, %v1895
  %1897 = vmatmul.bf16.gmra.mxu0 %v1151
  %v1898 = vpop.f32.mrf.mxu0
  %v1899 = vadd.f32 %v1710, %v1898
  %v1900 = vpop.f32.mrf.mxu0
  %v1901 = vadd.f32 %v1712, %v1900
  %1902 = vmatmul.bf16.gmra.mxu0 %v1154
  %v1903 = vpop.f32.mrf.mxu0
  %v1904 = vadd.f32 %v1715, %v1903
  %v1905 = vpop.f32.mrf.mxu0
  %v1906 = vadd.f32 %v1717, %v1905
  %1907 = vmatmul.bf16.gmra.mxu0 %v1157
  %v1908 = vpop.f32.mrf.mxu0
  %v1909 = vadd.f32 %v1720, %v1908
  %v1910 = vpop.f32.mrf.mxu0
  %v1911 = vadd.f32 %v1722, %v1910
  %1912 = vmatmul.bf16.gmra.mxu0 %v1160
  %v1913 = vpop.f32.mrf.mxu0
  %v1914 = vadd.f32 %v1725, %v1913
  %v1915 = vpop.f32.mrf.mxu0
  %v1916 = vadd.f32 %v1727, %v1915
  %1917 = vdwg.mxu0
  %v1918 = vmul.f32 %v1739, 0.70710677
  %v1919 = vmul.f32 %v1741, 0.70710677
  %v1920 = vmul.f32 %v1744, 0.70710677
  %v1921 = vmul.f32 %v1746, 0.70710677
  %v1922 = vmul.f32 %v1749, 0.70710677
  %v1923 = vmul.f32 %v1751, 0.70710677
  %v1924 = vmul.f32 %v1754, 0.70710677
  %v1925 = vmul.f32 %v1756, 0.70710677
  %v1926 = vmul.f32 %v1759, 0.70710677
  %v1927 = vmul.f32 %v1761, 0.70710677
  %v1928 = vmul.f32 %v1764, 0.70710677
  %v1929 = vmul.f32 %v1766, 0.70710677
  %v1930 = vmul.f32 %v1769, 0.70710677
  %v1931 = vmul.f32 %v1771, 0.70710677
  %v1932 = vmul.f32 %v1774, 0.70710677
  %v1933 = vmul.f32 %v1776, 0.70710677
  %v1934 = vmul.f32 %v1779, 0.70710677
  %v1935 = vmul.f32 %v1781, 0.70710677
  %v1936 = vmul.f32 %v1784, 0.70710677
  %v1937 = vmul.f32 %v1786, 0.70710677
  %v1938 = vmul.f32 %v1789, 0.70710677
  %v1939 = vmul.f32 %v1791, 0.70710677
  %v1940 = vmul.f32 %v1794, 0.70710677
  %v1941 = vmul.f32 %v1796, 0.70710677
  %v1942 = vmul.f32 %v1799, 0.70710677
  %v1943 = vmul.f32 %v1801, 0.70710677
  %v1944 = vmul.f32 %v1804, 0.70710677
  %v1945 = vmul.f32 %v1806, 0.70710677
  %v1946 = vmul.f32 %v1809, 0.70710677
  %v1947 = vmul.f32 %v1811, 0.70710677
  %v1948 = vmul.f32 %v1814, 0.70710677
  %v1949 = vmul.f32 %v1816, 0.70710677
  %v1950 = vmul.f32 %v1819, 0.70710677
  %v1951 = vmul.f32 %v1821, 0.70710677
  %v1952 = vmul.f32 %v1824, 0.70710677
  %v1953 = vmul.f32 %v1826, 0.70710677
  %v1954 = vmul.f32 %v1829, 0.70710677
  %v1955 = vmul.f32 %v1831, 0.70710677
  %v1956 = vmul.f32 %v1834, 0.70710677
  %v1957 = vmul.f32 %v1836, 0.70710677
  %v1958 = vmul.f32 %v1839, 0.70710677
  %v1959 = vmul.f32 %v1841, 0.70710677
  %v1960 = vmul.f32 %v1844, 0.70710677
  %v1961 = vmul.f32 %v1846, 0.70710677
  %v1962 = vmul.f32 %v1849, 0.70710677
  %v1963 = vmul.f32 %v1851, 0.70710677
  %v1964 = vmul.f32 %v1854, 0.70710677
  %v1965 = vmul.f32 %v1856, 0.70710677
  %v1966 = vmul.f32 %v1859, 0.70710677
  %v1967 = vmul.f32 %v1861, 0.70710677
  %v1968 = vmul.f32 %v1864, 0.70710677
  %v1969 = vmul.f32 %v1866, 0.70710677
  %v1970 = vmul.f32 %v1869, 0.70710677
  %v1971 = vmul.f32 %v1871, 0.70710677
  %v1972 = vmul.f32 %v1874, 0.70710677
  %v1973 = vmul.f32 %v1876, 0.70710677
  %v1974 = vmul.f32 %v1879, 0.70710677
  %v1975 = vmul.f32 %v1881, 0.70710677
  %v1976 = vmul.f32 %v1884, 0.70710677
  %v1977 = vmul.f32 %v1886, 0.70710677
  %v1978 = vmul.f32 %v1889, 0.70710677
  %v1979 = vmul.f32 %v1891, 0.70710677
  %v1980 = vmul.f32 %v1894, 0.70710677
  %v1981 = vmul.f32 %v1896, 0.70710677
  %v1982 = vmul.f32 %v1899, 0.70710677
  %v1983 = vmul.f32 %v1901, 0.70710677
  %v1984 = vmul.f32 %v1904, 0.70710677
  %v1985 = vmul.f32 %v1906, 0.70710677
  %v1986 = vmul.f32 %v1909, 0.70710677
  %v1987 = vmul.f32 %v1911, 0.70710677
  %v1988 = vmul.f32 %v1914, 0.70710677
  %v1989 = vmul.f32 %v1916, 0.70710677
  %v1990 = vand.u32 2147483647, %v1918
  %v1991 = vand.u32 2147483647, %v1919
  %v1992 = vand.u32 2147483647, %v1920
  %v1993 = vand.u32 2147483647, %v1921
  %v1994 = vand.u32 2147483647, %v1922
  %v1995 = vand.u32 2147483647, %v1923
  %v1996 = vand.u32 2147483647, %v1924
  %v1997 = vand.u32 2147483647, %v1925
  %v1998 = vand.u32 2147483647, %v1926
  %v1999 = vand.u32 2147483647, %v1927
  %v2000 = vand.u32 2147483647, %v1928
  %v2001 = vand.u32 2147483647, %v1929
  %v2002 = vand.u32 2147483647, %v1930
  %v2003 = vand.u32 2147483647, %v1931
  %v2004 = vand.u32 2147483647, %v1932
  %v2005 = vand.u32 2147483647, %v1933
  %v2006 = vand.u32 2147483647, %v1934
  %v2007 = vand.u32 2147483647, %v1935
  %v2008 = vand.u32 2147483647, %v1936
  %v2009 = vand.u32 2147483647, %v1937
  %v2010 = vand.u32 2147483647, %v1938
  %v2011 = vand.u32 2147483647, %v1939
  %v2012 = vand.u32 2147483647, %v1940
  %v2013 = vand.u32 2147483647, %v1941
  %v2014 = vand.u32 2147483647, %v1942
  %v2015 = vand.u32 2147483647, %v1943
  %v2016 = vand.u32 2147483647, %v1944
  %v2017 = vand.u32 2147483647, %v1945
  %v2018 = vand.u32 2147483647, %v1946
  %v2019 = vand.u32 2147483647, %v1947
  %v2020 = vand.u32 2147483647, %v1948
  %v2021 = vand.u32 2147483647, %v1949
  %v2022 = vand.u32 2147483647, %v1950
  %v2023 = vand.u32 2147483647, %v1951
  %v2024 = vand.u32 2147483647, %v1952
  %v2025 = vand.u32 2147483647, %v1953
  %v2026 = vand.u32 2147483647, %v1954
  %v2027 = vand.u32 2147483647, %v1955
  %v2028 = vand.u32 2147483647, %v1956
  %v2029 = vand.u32 2147483647, %v1957
  %v2030 = vand.u32 2147483647, %v1958
  %v2031 = vand.u32 2147483647, %v1959
  %v2032 = vand.u32 2147483647, %v1960
  %v2033 = vand.u32 2147483647, %v1961
  %v2034 = vand.u32 2147483647, %v1962
  %v2035 = vand.u32 2147483647, %v1963
  %v2036 = vand.u32 2147483647, %v1964
  %v2037 = vand.u32 2147483647, %v1965
  %v2038 = vand.u32 2147483647, %v1966
  %v2039 = vand.u32 2147483647, %v1967
  %v2040 = vand.u32 2147483647, %v1968
  %v2041 = vand.u32 2147483647, %v1969
  %v2042 = vand.u32 2147483647, %v1970
  %v2043 = vand.u32 2147483647, %v1971
  %v2044 = vand.u32 2147483647, %v1972
  %v2045 = vand.u32 2147483647, %v1973
  %v2046 = vand.u32 2147483647, %v1974
  %v2047 = vand.u32 2147483647, %v1975
  %v2048 = vand.u32 2147483647, %v1976
  %v2049 = vand.u32 2147483647, %v1977
  %v2050 = vand.u32 2147483647, %v1978
  %v2051 = vand.u32 2147483647, %v1979
  %v2052 = vand.u32 2147483647, %v1980
  %v2053 = vand.u32 2147483647, %v1981
  %v2054 = vand.u32 2147483647, %v1982
  %v2055 = vand.u32 2147483647, %v1983
  %v2056 = vand.u32 2147483647, %v1984
  %v2057 = vand.u32 2147483647, %v1985
  %v2058 = vand.u32 2147483647, %v1986
  %v2059 = vand.u32 2147483647, %v1987
  %v2060 = vand.u32 2147483647, %v1988
  %v2061 = vand.u32 2147483647, %v1989
  %v2062 = vmul.f32 %v1990, 0.3275911
  %v2063 = vmul.f32 %v1991, 0.3275911
  %v2064 = vmul.f32 %v1992, 0.3275911
  %v2065 = vmul.f32 %v1993, 0.3275911
  %v2066 = vmul.f32 %v1994, 0.3275911
  %v2067 = vmul.f32 %v1995, 0.3275911
  %v2068 = vmul.f32 %v1996, 0.3275911
  %v2069 = vmul.f32 %v1997, 0.3275911
  %v2070 = vmul.f32 %v1998, 0.3275911
  %v2071 = vmul.f32 %v1999, 0.3275911
  %v2072 = vmul.f32 %v2000, 0.3275911
  %v2073 = vmul.f32 %v2001, 0.3275911
  %v2074 = vmul.f32 %v2002, 0.3275911
  %v2075 = vmul.f32 %v2003, 0.3275911
  %v2076 = vmul.f32 %v2004, 0.3275911
  %v2077 = vmul.f32 %v2005, 0.3275911
  %v2078 = vmul.f32 %v2006, 0.3275911
  %v2079 = vmul.f32 %v2007, 0.3275911
  %v2080 = vmul.f32 %v2008, 0.3275911
  %v2081 = vmul.f32 %v2009, 0.3275911
  %v2082 = vmul.f32 %v2010, 0.3275911
  %v2083 = vmul.f32 %v2011, 0.3275911
  %v2084 = vmul.f32 %v2012, 0.3275911
  %v2085 = vmul.f32 %v2013, 0.3275911
  %v2086 = vmul.f32 %v2014, 0.3275911
  %v2087 = vmul.f32 %v2015, 0.3275911
  %v2088 = vmul.f32 %v2016, 0.3275911
  %v2089 = vmul.f32 %v2017, 0.3275911
  %v2090 = vmul.f32 %v2018, 0.3275911
  %v2091 = vmul.f32 %v2019, 0.3275911
  %v2092 = vmul.f32 %v2020, 0.3275911
  %v2093 = vmul.f32 %v2021, 0.3275911
  %v2094 = vmul.f32 %v2022, 0.3275911
  %v2095 = vmul.f32 %v2023, 0.3275911
  %v2096 = vmul.f32 %v2024, 0.3275911
  %v2097 = vmul.f32 %v2025, 0.3275911
  %v2098 = vmul.f32 %v2026, 0.3275911
  %v2099 = vmul.f32 %v2027, 0.3275911
  %v2100 = vmul.f32 %v2028, 0.3275911
  %v2101 = vmul.f32 %v2029, 0.3275911
  %v2102 = vmul.f32 %v2030, 0.3275911
  %v2103 = vmul.f32 %v2031, 0.3275911
  %v2104 = vmul.f32 %v2032, 0.3275911
  %v2105 = vmul.f32 %v2033, 0.3275911
  %v2106 = vmul.f32 %v2034, 0.3275911
  %v2107 = vmul.f32 %v2035, 0.3275911
  %v2108 = vmul.f32 %v2036, 0.3275911
  %v2109 = vmul.f32 %v2037, 0.3275911
  %v2110 = vmul.f32 %v2038, 0.3275911
  %v2111 = vmul.f32 %v2039, 0.3275911
  %v2112 = vmul.f32 %v2040, 0.3275911
  %v2113 = vmul.f32 %v2041, 0.3275911
  %v2114 = vmul.f32 %v2042, 0.3275911
  %v2115 = vmul.f32 %v2043, 0.3275911
  %v2116 = vmul.f32 %v2044, 0.3275911
  %v2117 = vmul.f32 %v2045, 0.3275911
  %v2118 = vmul.f32 %v2046, 0.3275911
  %v2119 = vmul.f32 %v2047, 0.3275911
  %v2120 = vmul.f32 %v2048, 0.3275911
  %v2121 = vmul.f32 %v2049, 0.3275911
  %v2122 = vmul.f32 %v2050, 0.3275911
  %v2123 = vmul.f32 %v2051, 0.3275911
  %v2124 = vmul.f32 %v2052, 0.3275911
  %v2125 = vmul.f32 %v2053, 0.3275911
  %v2126 = vmul.f32 %v2054, 0.3275911
  %v2127 = vmul.f32 %v2055, 0.3275911
  %v2128 = vmul.f32 %v2056, 0.3275911
  %v2129 = vmul.f32 %v2057, 0.3275911
  %v2130 = vmul.f32 %v2058, 0.3275911
  %v2131 = vmul.f32 %v2059, 0.3275911
  %v2132 = vmul.f32 %v2060, 0.3275911
  %v2133 = vmul.f32 %v2061, 0.3275911
  %v2134 = vadd.f32 %v2062, 1.0
  %v2135 = vadd.f32 %v2063, 1.0
  %v2136 = vadd.f32 %v2064, 1.0
  %v2137 = vadd.f32 %v2065, 1.0
  %v2138 = vadd.f32 %v2066, 1.0
  %v2139 = vadd.f32 %v2067, 1.0
  %v2140 = vadd.f32 %v2068, 1.0
  %v2141 = vadd.f32 %v2069, 1.0
  %v2142 = vadd.f32 %v2070, 1.0
  %v2143 = vadd.f32 %v2071, 1.0
  %v2144 = vadd.f32 %v2072, 1.0
  %v2145 = vadd.f32 %v2073, 1.0
  %v2146 = vadd.f32 %v2074, 1.0
  %v2147 = vadd.f32 %v2075, 1.0
  %v2148 = vadd.f32 %v2076, 1.0
  %v2149 = vadd.f32 %v2077, 1.0
  %v2150 = vadd.f32 %v2078, 1.0
  %v2151 = vadd.f32 %v2079, 1.0
  %v2152 = vadd.f32 %v2080, 1.0
  %v2153 = vadd.f32 %v2081, 1.0
  %v2154 = vadd.f32 %v2082, 1.0
  %v2155 = vadd.f32 %v2083, 1.0
  %v2156 = vadd.f32 %v2084, 1.0
  %v2157 = vadd.f32 %v2085, 1.0
  %v2158 = vadd.f32 %v2086, 1.0
  %v2159 = vadd.f32 %v2087, 1.0
  %v2160 = vadd.f32 %v2088, 1.0
  %v2161 = vadd.f32 %v2089, 1.0
  %v2162 = vadd.f32 %v2090, 1.0
  %v2163 = vadd.f32 %v2091, 1.0
  %v2164 = vadd.f32 %v2092, 1.0
  %v2165 = vadd.f32 %v2093, 1.0
  %v2166 = vadd.f32 %v2094, 1.0
  %v2167 = vadd.f32 %v2095, 1.0
  %v2168 = vadd.f32 %v2096, 1.0
  %v2169 = vadd.f32 %v2097, 1.0
  %v2170 = vadd.f32 %v2098, 1.0
  %v2171 = vadd.f32 %v2099, 1.0
  %v2172 = vadd.f32 %v2100, 1.0
  %v2173 = vadd.f32 %v2101, 1.0
  %v2174 = vadd.f32 %v2102, 1.0
  %v2175 = vadd.f32 %v2103, 1.0
  %v2176 = vadd.f32 %v2104, 1.0
  %v2177 = vadd.f32 %v2105, 1.0
  %v2178 = vadd.f32 %v2106, 1.0
  %v2179 = vadd.f32 %v2107, 1.0
  %v2180 = vadd.f32 %v2108, 1.0
  %v2181 = vadd.f32 %v2109, 1.0
  %v2182 = vadd.f32 %v2110, 1.0
  %v2183 = vadd.f32 %v2111, 1.0
  %v2184 = vadd.f32 %v2112, 1.0
  %v2185 = vadd.f32 %v2113, 1.0
  %v2186 = vadd.f32 %v2114, 1.0
  %v2187 = vadd.f32 %v2115, 1.0
  %v2188 = vadd.f32 %v2116, 1.0
  %v2189 = vadd.f32 %v2117, 1.0
  %v2190 = vadd.f32 %v2118, 1.0
  %v2191 = vadd.f32 %v2119, 1.0
  %v2192 = vadd.f32 %v2120, 1.0
  %v2193 = vadd.f32 %v2121, 1.0
  %v2194 = vadd.f32 %v2122, 1.0
  %v2195 = vadd.f32 %v2123, 1.0
  %v2196 = vadd.f32 %v2124, 1.0
  %v2197 = vadd.f32 %v2125, 1.0
  %v2198 = vadd.f32 %v2126, 1.0
  %v2199 = vadd.f32 %v2127, 1.0
  %v2200 = vadd.f32 %v2128, 1.0
  %v2201 = vadd.f32 %v2129, 1.0
  %v2202 = vadd.f32 %v2130, 1.0
  %v2203 = vadd.f32 %v2131, 1.0
  %v2204 = vadd.f32 %v2132, 1.0
  %v2205 = vadd.f32 %v2133, 1.0
  %v2206 = vrcp.pop %v2134
  %v2207 = vmul.f32 %v2134, %v2206
  %v2208 = vsub.f32 1.0, %v2207
  %v2209 = vmul.f32 %v2206, %v2208
  %v2210 = vadd.f32 %v2206, %v2209
  %vm2211 = vweird.f32 %v2134
  %vm2212 = vweird.f32 %v2206
  %vm2213 = vmor %vm2211, %vm2212
  %v2214 = vsel %vm2213, %v2206, %v2210
  %v2215 = vand.u32 2147483647, %v2134
  %vm2216 = vcmp.eq.f32.partialorder %v2215, 8.507059e+37
  %v2217 = vand.u32 %v2134, 2147483648
  %v2218 = vor.u32 1.1754944e-38, %v2217
  %v2219 = vsel %vm2216, %v2218, %v2214
  %v2220 = vmul.f32 1.0, %v2219
  %v2221 = vrcp.pop %v2135
  %v2222 = vmul.f32 %v2135, %v2221
  %v2223 = vsub.f32 1.0, %v2222
  %v2224 = vmul.f32 %v2221, %v2223
  %v2225 = vadd.f32 %v2221, %v2224
  %vm2226 = vweird.f32 %v2135
  %vm2227 = vweird.f32 %v2221
  %vm2228 = vmor %vm2226, %vm2227
  %v2229 = vsel %vm2228, %v2221, %v2225
  %v2230 = vand.u32 2147483647, %v2135
  %vm2231 = vcmp.eq.f32.partialorder %v2230, 8.507059e+37
  %v2232 = vand.u32 %v2135, 2147483648
  %v2233 = vor.u32 1.1754944e-38, %v2232
  %v2234 = vsel %vm2231, %v2233, %v2229
  %v2235 = vmul.f32 1.0, %v2234
  %v2236 = vrcp.pop %v2136
  %v2237 = vmul.f32 %v2136, %v2236
  %v2238 = vsub.f32 1.0, %v2237
  %v2239 = vmul.f32 %v2236, %v2238
  %v2240 = vadd.f32 %v2236, %v2239
  %vm2241 = vweird.f32 %v2136
  %vm2242 = vweird.f32 %v2236
  %vm2243 = vmor %vm2241, %vm2242
  %v2244 = vsel %vm2243, %v2236, %v2240
  %v2245 = vand.u32 2147483647, %v2136
  %vm2246 = vcmp.eq.f32.partialorder %v2245, 8.507059e+37
  %v2247 = vand.u32 %v2136, 2147483648
  %v2248 = vor.u32 1.1754944e-38, %v2247
  %v2249 = vsel %vm2246, %v2248, %v2244
  %v2250 = vmul.f32 1.0, %v2249
  %v2251 = vrcp.pop %v2137
  %v2252 = vmul.f32 %v2137, %v2251
  %v2253 = vsub.f32 1.0, %v2252
  %v2254 = vmul.f32 %v2251, %v2253
  %v2255 = vadd.f32 %v2251, %v2254
  %vm2256 = vweird.f32 %v2137
  %vm2257 = vweird.f32 %v2251
  %vm2258 = vmor %vm2256, %vm2257
  %v2259 = vsel %vm2258, %v2251, %v2255
  %v2260 = vand.u32 2147483647, %v2137
  %vm2261 = vcmp.eq.f32.partialorder %v2260, 8.507059e+37
  %v2262 = vand.u32 %v2137, 2147483648
  %v2263 = vor.u32 1.1754944e-38, %v2262
  %v2264 = vsel %vm2261, %v2263, %v2259
  %v2265 = vmul.f32 1.0, %v2264
  %v2266 = vrcp.pop %v2138
  %v2267 = vmul.f32 %v2138, %v2266
  %v2268 = vsub.f32 1.0, %v2267
  %v2269 = vmul.f32 %v2266, %v2268
  %v2270 = vadd.f32 %v2266, %v2269
  %vm2271 = vweird.f32 %v2138
  %vm2272 = vweird.f32 %v2266
  %vm2273 = vmor %vm2271, %vm2272
  %v2274 = vsel %vm2273, %v2266, %v2270
  %v2275 = vand.u32 2147483647, %v2138
  %vm2276 = vcmp.eq.f32.partialorder %v2275, 8.507059e+37
  %v2277 = vand.u32 %v2138, 2147483648
  %v2278 = vor.u32 1.1754944e-38, %v2277
  %v2279 = vsel %vm2276, %v2278, %v2274
  %v2280 = vmul.f32 1.0, %v2279
  %v2281 = vrcp.pop %v2139
  %v2282 = vmul.f32 %v2139, %v2281
  %v2283 = vsub.f32 1.0, %v2282
  %v2284 = vmul.f32 %v2281, %v2283
  %v2285 = vadd.f32 %v2281, %v2284
  %vm2286 = vweird.f32 %v2139
  %vm2287 = vweird.f32 %v2281
  %vm2288 = vmor %vm2286, %vm2287
  %v2289 = vsel %vm2288, %v2281, %v2285
  %v2290 = vand.u32 2147483647, %v2139
  %vm2291 = vcmp.eq.f32.partialorder %v2290, 8.507059e+37
  %v2292 = vand.u32 %v2139, 2147483648
  %v2293 = vor.u32 1.1754944e-38, %v2292
  %v2294 = vsel %vm2291, %v2293, %v2289
  %v2295 = vmul.f32 1.0, %v2294
  %v2296 = vrcp.pop %v2140
  %v2297 = vmul.f32 %v2140, %v2296
  %v2298 = vsub.f32 1.0, %v2297
  %v2299 = vmul.f32 %v2296, %v2298
  %v2300 = vadd.f32 %v2296, %v2299
  %vm2301 = vweird.f32 %v2140
  %vm2302 = vweird.f32 %v2296
  %vm2303 = vmor %vm2301, %vm2302
  %v2304 = vsel %vm2303, %v2296, %v2300
  %v2305 = vand.u32 2147483647, %v2140
  %vm2306 = vcmp.eq.f32.partialorder %v2305, 8.507059e+37
  %v2307 = vand.u32 %v2140, 2147483648
  %v2308 = vor.u32 1.1754944e-38, %v2307
  %v2309 = vsel %vm2306, %v2308, %v2304
  %v2310 = vmul.f32 1.0, %v2309
  %v2311 = vrcp.pop %v2141
  %v2312 = vmul.f32 %v2141, %v2311
  %v2313 = vsub.f32 1.0, %v2312
  %v2314 = vmul.f32 %v2311, %v2313
  %v2315 = vadd.f32 %v2311, %v2314
  %vm2316 = vweird.f32 %v2141
  %vm2317 = vweird.f32 %v2311
  %vm2318 = vmor %vm2316, %vm2317
  %v2319 = vsel %vm2318, %v2311, %v2315
  %v2320 = vand.u32 2147483647, %v2141
  %vm2321 = vcmp.eq.f32.partialorder %v2320, 8.507059e+37
  %v2322 = vand.u32 %v2141, 2147483648
  %v2323 = vor.u32 1.1754944e-38, %v2322
  %v2324 = vsel %vm2321, %v2323, %v2319
  %v2325 = vmul.f32 1.0, %v2324
  %v2326 = vrcp.pop %v2142
  %v2327 = vmul.f32 %v2142, %v2326
  %v2328 = vsub.f32 1.0, %v2327
  %v2329 = vmul.f32 %v2326, %v2328
  %v2330 = vadd.f32 %v2326, %v2329
  %vm2331 = vweird.f32 %v2142
  %vm2332 = vweird.f32 %v2326
  %vm2333 = vmor %vm2331, %vm2332
  %v2334 = vsel %vm2333, %v2326, %v2330
  %v2335 = vand.u32 2147483647, %v2142
  %vm2336 = vcmp.eq.f32.partialorder %v2335, 8.507059e+37
  %v2337 = vand.u32 %v2142, 2147483648
  %v2338 = vor.u32 1.1754944e-38, %v2337
  %v2339 = vsel %vm2336, %v2338, %v2334
  %v2340 = vmul.f32 1.0, %v2339
  %v2341 = vrcp.pop %v2143
  %v2342 = vmul.f32 %v2143, %v2341
  %v2343 = vsub.f32 1.0, %v2342
  %v2344 = vmul.f32 %v2341, %v2343
  %v2345 = vadd.f32 %v2341, %v2344
  %vm2346 = vweird.f32 %v2143
  %vm2347 = vweird.f32 %v2341
  %vm2348 = vmor %vm2346, %vm2347
  %v2349 = vsel %vm2348, %v2341, %v2345
  %v2350 = vand.u32 2147483647, %v2143
  %vm2351 = vcmp.eq.f32.partialorder %v2350, 8.507059e+37
  %v2352 = vand.u32 %v2143, 2147483648
  %v2353 = vor.u32 1.1754944e-38, %v2352
  %v2354 = vsel %vm2351, %v2353, %v2349
  %v2355 = vmul.f32 1.0, %v2354
  %v2356 = vrcp.pop %v2144
  %v2357 = vmul.f32 %v2144, %v2356
  %v2358 = vsub.f32 1.0, %v2357
  %v2359 = vmul.f32 %v2356, %v2358
  %v2360 = vadd.f32 %v2356, %v2359
  %vm2361 = vweird.f32 %v2144
  %vm2362 = vweird.f32 %v2356
  %vm2363 = vmor %vm2361, %vm2362
  %v2364 = vsel %vm2363, %v2356, %v2360
  %v2365 = vand.u32 2147483647, %v2144
  %vm2366 = vcmp.eq.f32.partialorder %v2365, 8.507059e+37
  %v2367 = vand.u32 %v2144, 2147483648
  %v2368 = vor.u32 1.1754944e-38, %v2367
  %v2369 = vsel %vm2366, %v2368, %v2364
  %v2370 = vmul.f32 1.0, %v2369
  %v2371 = vrcp.pop %v2145
  %v2372 = vmul.f32 %v2145, %v2371
  %v2373 = vsub.f32 1.0, %v2372
  %v2374 = vmul.f32 %v2371, %v2373
  %v2375 = vadd.f32 %v2371, %v2374
  %vm2376 = vweird.f32 %v2145
  %vm2377 = vweird.f32 %v2371
  %vm2378 = vmor %vm2376, %vm2377
  %v2379 = vsel %vm2378, %v2371, %v2375
  %v2380 = vand.u32 2147483647, %v2145
  %vm2381 = vcmp.eq.f32.partialorder %v2380, 8.507059e+37
  %v2382 = vand.u32 %v2145, 2147483648
  %v2383 = vor.u32 1.1754944e-38, %v2382
  %v2384 = vsel %vm2381, %v2383, %v2379
  %v2385 = vmul.f32 1.0, %v2384
  %v2386 = vrcp.pop %v2146
  %v2387 = vmul.f32 %v2146, %v2386
  %v2388 = vsub.f32 1.0, %v2387
  %v2389 = vmul.f32 %v2386, %v2388
  %v2390 = vadd.f32 %v2386, %v2389
  %vm2391 = vweird.f32 %v2146
  %vm2392 = vweird.f32 %v2386
  %vm2393 = vmor %vm2391, %vm2392
  %v2394 = vsel %vm2393, %v2386, %v2390
  %v2395 = vand.u32 2147483647, %v2146
  %vm2396 = vcmp.eq.f32.partialorder %v2395, 8.507059e+37
  %v2397 = vand.u32 %v2146, 2147483648
  %v2398 = vor.u32 1.1754944e-38, %v2397
  %v2399 = vsel %vm2396, %v2398, %v2394
  %v2400 = vmul.f32 1.0, %v2399
  %v2401 = vrcp.pop %v2147
  %v2402 = vmul.f32 %v2147, %v2401
  %v2403 = vsub.f32 1.0, %v2402
  %v2404 = vmul.f32 %v2401, %v2403
  %v2405 = vadd.f32 %v2401, %v2404
  %vm2406 = vweird.f32 %v2147
  %vm2407 = vweird.f32 %v2401
  %vm2408 = vmor %vm2406, %vm2407
  %v2409 = vsel %vm2408, %v2401, %v2405
  %v2410 = vand.u32 2147483647, %v2147
  %vm2411 = vcmp.eq.f32.partialorder %v2410, 8.507059e+37
  %v2412 = vand.u32 %v2147, 2147483648
  %v2413 = vor.u32 1.1754944e-38, %v2412
  %v2414 = vsel %vm2411, %v2413, %v2409
  %v2415 = vmul.f32 1.0, %v2414
  %v2416 = vrcp.pop %v2148
  %v2417 = vmul.f32 %v2148, %v2416
  %v2418 = vsub.f32 1.0, %v2417
  %v2419 = vmul.f32 %v2416, %v2418
  %v2420 = vadd.f32 %v2416, %v2419
  %vm2421 = vweird.f32 %v2148
  %vm2422 = vweird.f32 %v2416
  %vm2423 = vmor %vm2421, %vm2422
  %v2424 = vsel %vm2423, %v2416, %v2420
  %v2425 = vand.u32 2147483647, %v2148
  %vm2426 = vcmp.eq.f32.partialorder %v2425, 8.507059e+37
  %v2427 = vand.u32 %v2148, 2147483648
  %v2428 = vor.u32 1.1754944e-38, %v2427
  %v2429 = vsel %vm2426, %v2428, %v2424
  %v2430 = vmul.f32 1.0, %v2429
  %v2431 = vrcp.pop %v2149
  %v2432 = vmul.f32 %v2149, %v2431
  %v2433 = vsub.f32 1.0, %v2432
  %v2434 = vmul.f32 %v2431, %v2433
  %v2435 = vadd.f32 %v2431, %v2434
  %vm2436 = vweird.f32 %v2149
  %vm2437 = vweird.f32 %v2431
  %vm2438 = vmor %vm2436, %vm2437
  %v2439 = vsel %vm2438, %v2431, %v2435
  %v2440 = vand.u32 2147483647, %v2149
  %vm2441 = vcmp.eq.f32.partialorder %v2440, 8.507059e+37
  %v2442 = vand.u32 %v2149, 2147483648
  %v2443 = vor.u32 1.1754944e-38, %v2442
  %v2444 = vsel %vm2441, %v2443, %v2439
  %v2445 = vmul.f32 1.0, %v2444
  %v2446 = vrcp.pop %v2150
  %v2447 = vmul.f32 %v2150, %v2446
  %v2448 = vsub.f32 1.0, %v2447
  %v2449 = vmul.f32 %v2446, %v2448
  %v2450 = vadd.f32 %v2446, %v2449
  %vm2451 = vweird.f32 %v2150
  %vm2452 = vweird.f32 %v2446
  %vm2453 = vmor %vm2451, %vm2452
  %v2454 = vsel %vm2453, %v2446, %v2450
  %v2455 = vand.u32 2147483647, %v2150
  %vm2456 = vcmp.eq.f32.partialorder %v2455, 8.507059e+37
  %v2457 = vand.u32 %v2150, 2147483648
  %v2458 = vor.u32 1.1754944e-38, %v2457
  %v2459 = vsel %vm2456, %v2458, %v2454
  %v2460 = vmul.f32 1.0, %v2459
  %v2461 = vrcp.pop %v2151
  %v2462 = vmul.f32 %v2151, %v2461
  %v2463 = vsub.f32 1.0, %v2462
  %v2464 = vmul.f32 %v2461, %v2463
  %v2465 = vadd.f32 %v2461, %v2464
  %vm2466 = vweird.f32 %v2151
  %vm2467 = vweird.f32 %v2461
  %vm2468 = vmor %vm2466, %vm2467
  %v2469 = vsel %vm2468, %v2461, %v2465
  %v2470 = vand.u32 2147483647, %v2151
  %vm2471 = vcmp.eq.f32.partialorder %v2470, 8.507059e+37
  %v2472 = vand.u32 %v2151, 2147483648
  %v2473 = vor.u32 1.1754944e-38, %v2472
  %v2474 = vsel %vm2471, %v2473, %v2469
  %v2475 = vmul.f32 1.0, %v2474
  %v2476 = vrcp.pop %v2152
  %v2477 = vmul.f32 %v2152, %v2476
  %v2478 = vsub.f32 1.0, %v2477
  %v2479 = vmul.f32 %v2476, %v2478
  %v2480 = vadd.f32 %v2476, %v2479
  %vm2481 = vweird.f32 %v2152
  %vm2482 = vweird.f32 %v2476
  %vm2483 = vmor %vm2481, %vm2482
  %v2484 = vsel %vm2483, %v2476, %v2480
  %v2485 = vand.u32 2147483647, %v2152
  %vm2486 = vcmp.eq.f32.partialorder %v2485, 8.507059e+37
  %v2487 = vand.u32 %v2152, 2147483648
  %v2488 = vor.u32 1.1754944e-38, %v2487
  %v2489 = vsel %vm2486, %v2488, %v2484
  %v2490 = vmul.f32 1.0, %v2489
  %v2491 = vrcp.pop %v2153
  %v2492 = vmul.f32 %v2153, %v2491
  %v2493 = vsub.f32 1.0, %v2492
  %v2494 = vmul.f32 %v2491, %v2493
  %v2495 = vadd.f32 %v2491, %v2494
  %vm2496 = vweird.f32 %v2153
  %vm2497 = vweird.f32 %v2491
  %vm2498 = vmor %vm2496, %vm2497
  %v2499 = vsel %vm2498, %v2491, %v2495
  %v2500 = vand.u32 2147483647, %v2153
  %vm2501 = vcmp.eq.f32.partialorder %v2500, 8.507059e+37
  %v2502 = vand.u32 %v2153, 2147483648
  %v2503 = vor.u32 1.1754944e-38, %v2502
  %v2504 = vsel %vm2501, %v2503, %v2499
  %v2505 = vmul.f32 1.0, %v2504
  %v2506 = vrcp.pop %v2154
  %v2507 = vmul.f32 %v2154, %v2506
  %v2508 = vsub.f32 1.0, %v2507
  %v2509 = vmul.f32 %v2506, %v2508
  %v2510 = vadd.f32 %v2506, %v2509
  %vm2511 = vweird.f32 %v2154
  %vm2512 = vweird.f32 %v2506
  %vm2513 = vmor %vm2511, %vm2512
  %v2514 = vsel %vm2513, %v2506, %v2510
  %v2515 = vand.u32 2147483647, %v2154
  %vm2516 = vcmp.eq.f32.partialorder %v2515, 8.507059e+37
  %v2517 = vand.u32 %v2154, 2147483648
  %v2518 = vor.u32 1.1754944e-38, %v2517
  %v2519 = vsel %vm2516, %v2518, %v2514
  %v2520 = vmul.f32 1.0, %v2519
  %v2521 = vrcp.pop %v2155
  %v2522 = vmul.f32 %v2155, %v2521
  %v2523 = vsub.f32 1.0, %v2522
  %v2524 = vmul.f32 %v2521, %v2523
  %v2525 = vadd.f32 %v2521, %v2524
  %vm2526 = vweird.f32 %v2155
  %vm2527 = vweird.f32 %v2521
  %vm2528 = vmor %vm2526, %vm2527
  %v2529 = vsel %vm2528, %v2521, %v2525
  %v2530 = vand.u32 2147483647, %v2155
  %vm2531 = vcmp.eq.f32.partialorder %v2530, 8.507059e+37
  %v2532 = vand.u32 %v2155, 2147483648
  %v2533 = vor.u32 1.1754944e-38, %v2532
  %v2534 = vsel %vm2531, %v2533, %v2529
  %v2535 = vmul.f32 1.0, %v2534
  %v2536 = vrcp.pop %v2156
  %v2537 = vmul.f32 %v2156, %v2536
  %v2538 = vsub.f32 1.0, %v2537
  %v2539 = vmul.f32 %v2536, %v2538
  %v2540 = vadd.f32 %v2536, %v2539
  %vm2541 = vweird.f32 %v2156
  %vm2542 = vweird.f32 %v2536
  %vm2543 = vmor %vm2541, %vm2542
  %v2544 = vsel %vm2543, %v2536, %v2540
  %v2545 = vand.u32 2147483647, %v2156
  %vm2546 = vcmp.eq.f32.partialorder %v2545, 8.507059e+37
  %v2547 = vand.u32 %v2156, 2147483648
  %v2548 = vor.u32 1.1754944e-38, %v2547
  %v2549 = vsel %vm2546, %v2548, %v2544
  %v2550 = vmul.f32 1.0, %v2549
  %v2551 = vrcp.pop %v2157
  %v2552 = vmul.f32 %v2157, %v2551
  %v2553 = vsub.f32 1.0, %v2552
  %v2554 = vmul.f32 %v2551, %v2553
  %v2555 = vadd.f32 %v2551, %v2554
  %vm2556 = vweird.f32 %v2157
  %vm2557 = vweird.f32 %v2551
  %vm2558 = vmor %vm2556, %vm2557
  %v2559 = vsel %vm2558, %v2551, %v2555
  %v2560 = vand.u32 2147483647, %v2157
  %vm2561 = vcmp.eq.f32.partialorder %v2560, 8.507059e+37
  %v2562 = vand.u32 %v2157, 2147483648
  %v2563 = vor.u32 1.1754944e-38, %v2562
  %v2564 = vsel %vm2561, %v2563, %v2559
  %v2565 = vmul.f32 1.0, %v2564
  %v2566 = vrcp.pop %v2158
  %v2567 = vmul.f32 %v2158, %v2566
  %v2568 = vsub.f32 1.0, %v2567
  %v2569 = vmul.f32 %v2566, %v2568
  %v2570 = vadd.f32 %v2566, %v2569
  %vm2571 = vweird.f32 %v2158
  %vm2572 = vweird.f32 %v2566
  %vm2573 = vmor %vm2571, %vm2572
  %v2574 = vsel %vm2573, %v2566, %v2570
  %v2575 = vand.u32 2147483647, %v2158
  %vm2576 = vcmp.eq.f32.partialorder %v2575, 8.507059e+37
  %v2577 = vand.u32 %v2158, 2147483648
  %v2578 = vor.u32 1.1754944e-38, %v2577
  %v2579 = vsel %vm2576, %v2578, %v2574
  %v2580 = vmul.f32 1.0, %v2579
  %v2581 = vrcp.pop %v2159
  %v2582 = vmul.f32 %v2159, %v2581
  %v2583 = vsub.f32 1.0, %v2582
  %v2584 = vmul.f32 %v2581, %v2583
  %v2585 = vadd.f32 %v2581, %v2584
  %vm2586 = vweird.f32 %v2159
  %vm2587 = vweird.f32 %v2581
  %vm2588 = vmor %vm2586, %vm2587
  %v2589 = vsel %vm2588, %v2581, %v2585
  %v2590 = vand.u32 2147483647, %v2159
  %vm2591 = vcmp.eq.f32.partialorder %v2590, 8.507059e+37
  %v2592 = vand.u32 %v2159, 2147483648
  %v2593 = vor.u32 1.1754944e-38, %v2592
  %v2594 = vsel %vm2591, %v2593, %v2589
  %v2595 = vmul.f32 1.0, %v2594
  %v2596 = vrcp.pop %v2160
  %v2597 = vmul.f32 %v2160, %v2596
  %v2598 = vsub.f32 1.0, %v2597
  %v2599 = vmul.f32 %v2596, %v2598
  %v2600 = vadd.f32 %v2596, %v2599
  %vm2601 = vweird.f32 %v2160
  %vm2602 = vweird.f32 %v2596
  %vm2603 = vmor %vm2601, %vm2602
  %v2604 = vsel %vm2603, %v2596, %v2600
  %v2605 = vand.u32 2147483647, %v2160
  %vm2606 = vcmp.eq.f32.partialorder %v2605, 8.507059e+37
  %v2607 = vand.u32 %v2160, 2147483648
  %v2608 = vor.u32 1.1754944e-38, %v2607
  %v2609 = vsel %vm2606, %v2608, %v2604
  %v2610 = vmul.f32 1.0, %v2609
  %v2611 = vrcp.pop %v2161
  %v2612 = vmul.f32 %v2161, %v2611
  %v2613 = vsub.f32 1.0, %v2612
  %v2614 = vmul.f32 %v2611, %v2613
  %v2615 = vadd.f32 %v2611, %v2614
  %vm2616 = vweird.f32 %v2161
  %vm2617 = vweird.f32 %v2611
  %vm2618 = vmor %vm2616, %vm2617
  %v2619 = vsel %vm2618, %v2611, %v2615
  %v2620 = vand.u32 2147483647, %v2161
  %vm2621 = vcmp.eq.f32.partialorder %v2620, 8.507059e+37
  %v2622 = vand.u32 %v2161, 2147483648
  %v2623 = vor.u32 1.1754944e-38, %v2622
  %v2624 = vsel %vm2621, %v2623, %v2619
  %v2625 = vmul.f32 1.0, %v2624
  %v2626 = vrcp.pop %v2162
  %v2627 = vmul.f32 %v2162, %v2626
  %v2628 = vsub.f32 1.0, %v2627
  %v2629 = vmul.f32 %v2626, %v2628
  %v2630 = vadd.f32 %v2626, %v2629
  %vm2631 = vweird.f32 %v2162
  %vm2632 = vweird.f32 %v2626
  %vm2633 = vmor %vm2631, %vm2632
  %v2634 = vsel %vm2633, %v2626, %v2630
  %v2635 = vand.u32 2147483647, %v2162
  %vm2636 = vcmp.eq.f32.partialorder %v2635, 8.507059e+37
  %v2637 = vand.u32 %v2162, 2147483648
  %v2638 = vor.u32 1.1754944e-38, %v2637
  %v2639 = vsel %vm2636, %v2638, %v2634
  %v2640 = vmul.f32 1.0, %v2639
  %v2641 = vrcp.pop %v2163
  %v2642 = vmul.f32 %v2163, %v2641
  %v2643 = vsub.f32 1.0, %v2642
  %v2644 = vmul.f32 %v2641, %v2643
  %v2645 = vadd.f32 %v2641, %v2644
  %vm2646 = vweird.f32 %v2163
  %vm2647 = vweird.f32 %v2641
  %vm2648 = vmor %vm2646, %vm2647
  %v2649 = vsel %vm2648, %v2641, %v2645
  %v2650 = vand.u32 2147483647, %v2163
  %vm2651 = vcmp.eq.f32.partialorder %v2650, 8.507059e+37
  %v2652 = vand.u32 %v2163, 2147483648
  %v2653 = vor.u32 1.1754944e-38, %v2652
  %v2654 = vsel %vm2651, %v2653, %v2649
  %v2655 = vmul.f32 1.0, %v2654
  %v2656 = vrcp.pop %v2164
  %v2657 = vmul.f32 %v2164, %v2656
  %v2658 = vsub.f32 1.0, %v2657
  %v2659 = vmul.f32 %v2656, %v2658
  %v2660 = vadd.f32 %v2656, %v2659
  %vm2661 = vweird.f32 %v2164
  %vm2662 = vweird.f32 %v2656
  %vm2663 = vmor %vm2661, %vm2662
  %v2664 = vsel %vm2663, %v2656, %v2660
  %v2665 = vand.u32 2147483647, %v2164
  %vm2666 = vcmp.eq.f32.partialorder %v2665, 8.507059e+37
  %v2667 = vand.u32 %v2164, 2147483648
  %v2668 = vor.u32 1.1754944e-38, %v2667
  %v2669 = vsel %vm2666, %v2668, %v2664
  %v2670 = vmul.f32 1.0, %v2669
  %v2671 = vrcp.pop %v2165
  %v2672 = vmul.f32 %v2165, %v2671
  %v2673 = vsub.f32 1.0, %v2672
  %v2674 = vmul.f32 %v2671, %v2673
  %v2675 = vadd.f32 %v2671, %v2674
  %vm2676 = vweird.f32 %v2165
  %vm2677 = vweird.f32 %v2671
  %vm2678 = vmor %vm2676, %vm2677
  %v2679 = vsel %vm2678, %v2671, %v2675
  %v2680 = vand.u32 2147483647, %v2165
  %vm2681 = vcmp.eq.f32.partialorder %v2680, 8.507059e+37
  %v2682 = vand.u32 %v2165, 2147483648
  %v2683 = vor.u32 1.1754944e-38, %v2682
  %v2684 = vsel %vm2681, %v2683, %v2679
  %v2685 = vmul.f32 1.0, %v2684
  %v2686 = vrcp.pop %v2166
  %v2687 = vmul.f32 %v2166, %v2686
  %v2688 = vsub.f32 1.0, %v2687
  %v2689 = vmul.f32 %v2686, %v2688
  %v2690 = vadd.f32 %v2686, %v2689
  %vm2691 = vweird.f32 %v2166
  %vm2692 = vweird.f32 %v2686
  %vm2693 = vmor %vm2691, %vm2692
  %v2694 = vsel %vm2693, %v2686, %v2690
  %v2695 = vand.u32 2147483647, %v2166
  %vm2696 = vcmp.eq.f32.partialorder %v2695, 8.507059e+37
  %v2697 = vand.u32 %v2166, 2147483648
  %v2698 = vor.u32 1.1754944e-38, %v2697
  %v2699 = vsel %vm2696, %v2698, %v2694
  %v2700 = vmul.f32 1.0, %v2699
  %v2701 = vrcp.pop %v2167
  %v2702 = vmul.f32 %v2167, %v2701
  %v2703 = vsub.f32 1.0, %v2702
  %v2704 = vmul.f32 %v2701, %v2703
  %v2705 = vadd.f32 %v2701, %v2704
  %vm2706 = vweird.f32 %v2167
  %vm2707 = vweird.f32 %v2701
  %vm2708 = vmor %vm2706, %vm2707
  %v2709 = vsel %vm2708, %v2701, %v2705
  %v2710 = vand.u32 2147483647, %v2167
  %vm2711 = vcmp.eq.f32.partialorder %v2710, 8.507059e+37
  %v2712 = vand.u32 %v2167, 2147483648
  %v2713 = vor.u32 1.1754944e-38, %v2712
  %v2714 = vsel %vm2711, %v2713, %v2709
  %v2715 = vmul.f32 1.0, %v2714
  %v2716 = vrcp.pop %v2168
  %v2717 = vmul.f32 %v2168, %v2716
  %v2718 = vsub.f32 1.0, %v2717
  %v2719 = vmul.f32 %v2716, %v2718
  %v2720 = vadd.f32 %v2716, %v2719
  %vm2721 = vweird.f32 %v2168
  %vm2722 = vweird.f32 %v2716
  %vm2723 = vmor %vm2721, %vm2722
  %v2724 = vsel %vm2723, %v2716, %v2720
  %v2725 = vand.u32 2147483647, %v2168
  %vm2726 = vcmp.eq.f32.partialorder %v2725, 8.507059e+37
  %v2727 = vand.u32 %v2168, 2147483648
  %v2728 = vor.u32 1.1754944e-38, %v2727
  %v2729 = vsel %vm2726, %v2728, %v2724
  %v2730 = vmul.f32 1.0, %v2729
  %v2731 = vrcp.pop %v2169
  %v2732 = vmul.f32 %v2169, %v2731
  %v2733 = vsub.f32 1.0, %v2732
  %v2734 = vmul.f32 %v2731, %v2733
  %v2735 = vadd.f32 %v2731, %v2734
  %vm2736 = vweird.f32 %v2169
  %vm2737 = vweird.f32 %v2731
  %vm2738 = vmor %vm2736, %vm2737
  %v2739 = vsel %vm2738, %v2731, %v2735
  %v2740 = vand.u32 2147483647, %v2169
  %vm2741 = vcmp.eq.f32.partialorder %v2740, 8.507059e+37
  %v2742 = vand.u32 %v2169, 2147483648
  %v2743 = vor.u32 1.1754944e-38, %v2742
  %v2744 = vsel %vm2741, %v2743, %v2739
  %v2745 = vmul.f32 1.0, %v2744
  %v2746 = vrcp.pop %v2170
  %v2747 = vmul.f32 %v2170, %v2746
  %v2748 = vsub.f32 1.0, %v2747
  %v2749 = vmul.f32 %v2746, %v2748
  %v2750 = vadd.f32 %v2746, %v2749
  %vm2751 = vweird.f32 %v2170
  %vm2752 = vweird.f32 %v2746
  %vm2753 = vmor %vm2751, %vm2752
  %v2754 = vsel %vm2753, %v2746, %v2750
  %v2755 = vand.u32 2147483647, %v2170
  %vm2756 = vcmp.eq.f32.partialorder %v2755, 8.507059e+37
  %v2757 = vand.u32 %v2170, 2147483648
  %v2758 = vor.u32 1.1754944e-38, %v2757
  %v2759 = vsel %vm2756, %v2758, %v2754
  %v2760 = vmul.f32 1.0, %v2759
  %v2761 = vrcp.pop %v2171
  %v2762 = vmul.f32 %v2171, %v2761
  %v2763 = vsub.f32 1.0, %v2762
  %v2764 = vmul.f32 %v2761, %v2763
  %v2765 = vadd.f32 %v2761, %v2764
  %vm2766 = vweird.f32 %v2171
  %vm2767 = vweird.f32 %v2761
  %vm2768 = vmor %vm2766, %vm2767
  %v2769 = vsel %vm2768, %v2761, %v2765
  %v2770 = vand.u32 2147483647, %v2171
  %vm2771 = vcmp.eq.f32.partialorder %v2770, 8.507059e+37
  %v2772 = vand.u32 %v2171, 2147483648
  %v2773 = vor.u32 1.1754944e-38, %v2772
  %v2774 = vsel %vm2771, %v2773, %v2769
  %v2775 = vmul.f32 1.0, %v2774
  %v2776 = vrcp.pop %v2172
  %v2777 = vmul.f32 %v2172, %v2776
  %v2778 = vsub.f32 1.0, %v2777
  %v2779 = vmul.f32 %v2776, %v2778
  %v2780 = vadd.f32 %v2776, %v2779
  %vm2781 = vweird.f32 %v2172
  %vm2782 = vweird.f32 %v2776
  %vm2783 = vmor %vm2781, %vm2782
  %v2784 = vsel %vm2783, %v2776, %v2780
  %v2785 = vand.u32 2147483647, %v2172
  %vm2786 = vcmp.eq.f32.partialorder %v2785, 8.507059e+37
  %v2787 = vand.u32 %v2172, 2147483648
  %v2788 = vor.u32 1.1754944e-38, %v2787
  %v2789 = vsel %vm2786, %v2788, %v2784
  %v2790 = vmul.f32 1.0, %v2789
  %v2791 = vrcp.pop %v2173
  %v2792 = vmul.f32 %v2173, %v2791
  %v2793 = vsub.f32 1.0, %v2792
  %v2794 = vmul.f32 %v2791, %v2793
  %v2795 = vadd.f32 %v2791, %v2794
  %vm2796 = vweird.f32 %v2173
  %vm2797 = vweird.f32 %v2791
  %vm2798 = vmor %vm2796, %vm2797
  %v2799 = vsel %vm2798, %v2791, %v2795
  %v2800 = vand.u32 2147483647, %v2173
  %vm2801 = vcmp.eq.f32.partialorder %v2800, 8.507059e+37
  %v2802 = vand.u32 %v2173, 2147483648
  %v2803 = vor.u32 1.1754944e-38, %v2802
  %v2804 = vsel %vm2801, %v2803, %v2799
  %v2805 = vmul.f32 1.0, %v2804
  %v2806 = vrcp.pop %v2174
  %v2807 = vmul.f32 %v2174, %v2806
  %v2808 = vsub.f32 1.0, %v2807
  %v2809 = vmul.f32 %v2806, %v2808
  %v2810 = vadd.f32 %v2806, %v2809
  %vm2811 = vweird.f32 %v2174
  %vm2812 = vweird.f32 %v2806
  %vm2813 = vmor %vm2811, %vm2812
  %v2814 = vsel %vm2813, %v2806, %v2810
  %v2815 = vand.u32 2147483647, %v2174
  %vm2816 = vcmp.eq.f32.partialorder %v2815, 8.507059e+37
  %v2817 = vand.u32 %v2174, 2147483648
  %v2818 = vor.u32 1.1754944e-38, %v2817
  %v2819 = vsel %vm2816, %v2818, %v2814
  %v2820 = vmul.f32 1.0, %v2819
  %v2821 = vrcp.pop %v2175
  %v2822 = vmul.f32 %v2175, %v2821
  %v2823 = vsub.f32 1.0, %v2822
  %v2824 = vmul.f32 %v2821, %v2823
  %v2825 = vadd.f32 %v2821, %v2824
  %vm2826 = vweird.f32 %v2175
  %vm2827 = vweird.f32 %v2821
  %vm2828 = vmor %vm2826, %vm2827
  %v2829 = vsel %vm2828, %v2821, %v2825
  %v2830 = vand.u32 2147483647, %v2175
  %vm2831 = vcmp.eq.f32.partialorder %v2830, 8.507059e+37
  %v2832 = vand.u32 %v2175, 2147483648
  %v2833 = vor.u32 1.1754944e-38, %v2832
  %v2834 = vsel %vm2831, %v2833, %v2829
  %v2835 = vmul.f32 1.0, %v2834
  %v2836 = vrcp.pop %v2176
  %v2837 = vmul.f32 %v2176, %v2836
  %v2838 = vsub.f32 1.0, %v2837
  %v2839 = vmul.f32 %v2836, %v2838
  %v2840 = vadd.f32 %v2836, %v2839
  %vm2841 = vweird.f32 %v2176
  %vm2842 = vweird.f32 %v2836
  %vm2843 = vmor %vm2841, %vm2842
  %v2844 = vsel %vm2843, %v2836, %v2840
  %v2845 = vand.u32 2147483647, %v2176
  %vm2846 = vcmp.eq.f32.partialorder %v2845, 8.507059e+37
  %v2847 = vand.u32 %v2176, 2147483648
  %v2848 = vor.u32 1.1754944e-38, %v2847
  %v2849 = vsel %vm2846, %v2848, %v2844
  %v2850 = vmul.f32 1.0, %v2849
  %v2851 = vrcp.pop %v2177
  %v2852 = vmul.f32 %v2177, %v2851
  %v2853 = vsub.f32 1.0, %v2852
  %v2854 = vmul.f32 %v2851, %v2853
  %v2855 = vadd.f32 %v2851, %v2854
  %vm2856 = vweird.f32 %v2177
  %vm2857 = vweird.f32 %v2851
  %vm2858 = vmor %vm2856, %vm2857
  %v2859 = vsel %vm2858, %v2851, %v2855
  %v2860 = vand.u32 2147483647, %v2177
  %vm2861 = vcmp.eq.f32.partialorder %v2860, 8.507059e+37
  %v2862 = vand.u32 %v2177, 2147483648
  %v2863 = vor.u32 1.1754944e-38, %v2862
  %v2864 = vsel %vm2861, %v2863, %v2859
  %v2865 = vmul.f32 1.0, %v2864
  %v2866 = vrcp.pop %v2178
  %v2867 = vmul.f32 %v2178, %v2866
  %v2868 = vsub.f32 1.0, %v2867
  %v2869 = vmul.f32 %v2866, %v2868
  %v2870 = vadd.f32 %v2866, %v2869
  %vm2871 = vweird.f32 %v2178
  %vm2872 = vweird.f32 %v2866
  %vm2873 = vmor %vm2871, %vm2872
  %v2874 = vsel %vm2873, %v2866, %v2870
  %v2875 = vand.u32 2147483647, %v2178
  %vm2876 = vcmp.eq.f32.partialorder %v2875, 8.507059e+37
  %v2877 = vand.u32 %v2178, 2147483648
  %v2878 = vor.u32 1.1754944e-38, %v2877
  %v2879 = vsel %vm2876, %v2878, %v2874
  %v2880 = vmul.f32 1.0, %v2879
  %v2881 = vrcp.pop %v2179
  %v2882 = vmul.f32 %v2179, %v2881
  %v2883 = vsub.f32 1.0, %v2882
  %v2884 = vmul.f32 %v2881, %v2883
  %v2885 = vadd.f32 %v2881, %v2884
  %vm2886 = vweird.f32 %v2179
  %vm2887 = vweird.f32 %v2881
  %vm2888 = vmor %vm2886, %vm2887
  %v2889 = vsel %vm2888, %v2881, %v2885
  %v2890 = vand.u32 2147483647, %v2179
  %vm2891 = vcmp.eq.f32.partialorder %v2890, 8.507059e+37
  %v2892 = vand.u32 %v2179, 2147483648
  %v2893 = vor.u32 1.1754944e-38, %v2892
  %v2894 = vsel %vm2891, %v2893, %v2889
  %v2895 = vmul.f32 1.0, %v2894
  %v2896 = vrcp.pop %v2180
  %v2897 = vmul.f32 %v2180, %v2896
  %v2898 = vsub.f32 1.0, %v2897
  %v2899 = vmul.f32 %v2896, %v2898
  %v2900 = vadd.f32 %v2896, %v2899
  %vm2901 = vweird.f32 %v2180
  %vm2902 = vweird.f32 %v2896
  %vm2903 = vmor %vm2901, %vm2902
  %v2904 = vsel %vm2903, %v2896, %v2900
  %v2905 = vand.u32 2147483647, %v2180
  %vm2906 = vcmp.eq.f32.partialorder %v2905, 8.507059e+37
  %v2907 = vand.u32 %v2180, 2147483648
  %v2908 = vor.u32 1.1754944e-38, %v2907
  %v2909 = vsel %vm2906, %v2908, %v2904
  %v2910 = vmul.f32 1.0, %v2909
  %v2911 = vrcp.pop %v2181
  %v2912 = vmul.f32 %v2181, %v2911
  %v2913 = vsub.f32 1.0, %v2912
  %v2914 = vmul.f32 %v2911, %v2913
  %v2915 = vadd.f32 %v2911, %v2914
  %vm2916 = vweird.f32 %v2181
  %vm2917 = vweird.f32 %v2911
  %vm2918 = vmor %vm2916, %vm2917
  %v2919 = vsel %vm2918, %v2911, %v2915
  %v2920 = vand.u32 2147483647, %v2181
  %vm2921 = vcmp.eq.f32.partialorder %v2920, 8.507059e+37
  %v2922 = vand.u32 %v2181, 2147483648
  %v2923 = vor.u32 1.1754944e-38, %v2922
  %v2924 = vsel %vm2921, %v2923, %v2919
  %v2925 = vmul.f32 1.0, %v2924
  %v2926 = vrcp.pop %v2182
  %v2927 = vmul.f32 %v2182, %v2926
  %v2928 = vsub.f32 1.0, %v2927
  %v2929 = vmul.f32 %v2926, %v2928
  %v2930 = vadd.f32 %v2926, %v2929
  %vm2931 = vweird.f32 %v2182
  %vm2932 = vweird.f32 %v2926
  %vm2933 = vmor %vm2931, %vm2932
  %v2934 = vsel %vm2933, %v2926, %v2930
  %v2935 = vand.u32 2147483647, %v2182
  %vm2936 = vcmp.eq.f32.partialorder %v2935, 8.507059e+37
  %v2937 = vand.u32 %v2182, 2147483648
  %v2938 = vor.u32 1.1754944e-38, %v2937
  %v2939 = vsel %vm2936, %v2938, %v2934
  %v2940 = vmul.f32 1.0, %v2939
  %v2941 = vrcp.pop %v2183
  %v2942 = vmul.f32 %v2183, %v2941
  %v2943 = vsub.f32 1.0, %v2942
  %v2944 = vmul.f32 %v2941, %v2943
  %v2945 = vadd.f32 %v2941, %v2944
  %vm2946 = vweird.f32 %v2183
  %vm2947 = vweird.f32 %v2941
  %vm2948 = vmor %vm2946, %vm2947
  %v2949 = vsel %vm2948, %v2941, %v2945
  %v2950 = vand.u32 2147483647, %v2183
  %vm2951 = vcmp.eq.f32.partialorder %v2950, 8.507059e+37
  %v2952 = vand.u32 %v2183, 2147483648
  %v2953 = vor.u32 1.1754944e-38, %v2952
  %v2954 = vsel %vm2951, %v2953, %v2949
  %v2955 = vmul.f32 1.0, %v2954
  %v2956 = vrcp.pop %v2184
  %v2957 = vmul.f32 %v2184, %v2956
  %v2958 = vsub.f32 1.0, %v2957
  %v2959 = vmul.f32 %v2956, %v2958
  %v2960 = vadd.f32 %v2956, %v2959
  %vm2961 = vweird.f32 %v2184
  %vm2962 = vweird.f32 %v2956
  %vm2963 = vmor %vm2961, %vm2962
  %v2964 = vsel %vm2963, %v2956, %v2960
  %v2965 = vand.u32 2147483647, %v2184
  %vm2966 = vcmp.eq.f32.partialorder %v2965, 8.507059e+37
  %v2967 = vand.u32 %v2184, 2147483648
  %v2968 = vor.u32 1.1754944e-38, %v2967
  %v2969 = vsel %vm2966, %v2968, %v2964
  %v2970 = vmul.f32 1.0, %v2969
  %v2971 = vrcp.pop %v2185
  %v2972 = vmul.f32 %v2185, %v2971
  %v2973 = vsub.f32 1.0, %v2972
  %v2974 = vmul.f32 %v2971, %v2973
  %v2975 = vadd.f32 %v2971, %v2974
  %vm2976 = vweird.f32 %v2185
  %vm2977 = vweird.f32 %v2971
  %vm2978 = vmor %vm2976, %vm2977
  %v2979 = vsel %vm2978, %v2971, %v2975
  %v2980 = vand.u32 2147483647, %v2185
  %vm2981 = vcmp.eq.f32.partialorder %v2980, 8.507059e+37
  %v2982 = vand.u32 %v2185, 2147483648
  %v2983 = vor.u32 1.1754944e-38, %v2982
  %v2984 = vsel %vm2981, %v2983, %v2979
  %v2985 = vmul.f32 1.0, %v2984
  %v2986 = vrcp.pop %v2186
  %v2987 = vmul.f32 %v2186, %v2986
  %v2988 = vsub.f32 1.0, %v2987
  %v2989 = vmul.f32 %v2986, %v2988
  %v2990 = vadd.f32 %v2986, %v2989
  %vm2991 = vweird.f32 %v2186
  %vm2992 = vweird.f32 %v2986
  %vm2993 = vmor %vm2991, %vm2992
  %v2994 = vsel %vm2993, %v2986, %v2990
  %v2995 = vand.u32 2147483647, %v2186
  %vm2996 = vcmp.eq.f32.partialorder %v2995, 8.507059e+37
  %v2997 = vand.u32 %v2186, 2147483648
  %v2998 = vor.u32 1.1754944e-38, %v2997
  %v2999 = vsel %vm2996, %v2998, %v2994
  %v3000 = vmul.f32 1.0, %v2999
  %v3001 = vrcp.pop %v2187
  %v3002 = vmul.f32 %v2187, %v3001
  %v3003 = vsub.f32 1.0, %v3002
  %v3004 = vmul.f32 %v3001, %v3003
  %v3005 = vadd.f32 %v3001, %v3004
  %vm3006 = vweird.f32 %v2187
  %vm3007 = vweird.f32 %v3001
  %vm3008 = vmor %vm3006, %vm3007
  %v3009 = vsel %vm3008, %v3001, %v3005
  %v3010 = vand.u32 2147483647, %v2187
  %vm3011 = vcmp.eq.f32.partialorder %v3010, 8.507059e+37
  %v3012 = vand.u32 %v2187, 2147483648
  %v3013 = vor.u32 1.1754944e-38, %v3012
  %v3014 = vsel %vm3011, %v3013, %v3009
  %v3015 = vmul.f32 1.0, %v3014
  %v3016 = vrcp.pop %v2188
  %v3017 = vmul.f32 %v2188, %v3016
  %v3018 = vsub.f32 1.0, %v3017
  %v3019 = vmul.f32 %v3016, %v3018
  %v3020 = vadd.f32 %v3016, %v3019
  %vm3021 = vweird.f32 %v2188
  %vm3022 = vweird.f32 %v3016
  %vm3023 = vmor %vm3021, %vm3022
  %v3024 = vsel %vm3023, %v3016, %v3020
  %v3025 = vand.u32 2147483647, %v2188
  %vm3026 = vcmp.eq.f32.partialorder %v3025, 8.507059e+37
  %v3027 = vand.u32 %v2188, 2147483648
  %v3028 = vor.u32 1.1754944e-38, %v3027
  %v3029 = vsel %vm3026, %v3028, %v3024
  %v3030 = vmul.f32 1.0, %v3029
  %v3031 = vrcp.pop %v2189
  %v3032 = vmul.f32 %v2189, %v3031
  %v3033 = vsub.f32 1.0, %v3032
  %v3034 = vmul.f32 %v3031, %v3033
  %v3035 = vadd.f32 %v3031, %v3034
  %vm3036 = vweird.f32 %v2189
  %vm3037 = vweird.f32 %v3031
  %vm3038 = vmor %vm3036, %vm3037
  %v3039 = vsel %vm3038, %v3031, %v3035
  %v3040 = vand.u32 2147483647, %v2189
  %vm3041 = vcmp.eq.f32.partialorder %v3040, 8.507059e+37
  %v3042 = vand.u32 %v2189, 2147483648
  %v3043 = vor.u32 1.1754944e-38, %v3042
  %v3044 = vsel %vm3041, %v3043, %v3039
  %v3045 = vmul.f32 1.0, %v3044
  %v3046 = vrcp.pop %v2190
  %v3047 = vmul.f32 %v2190, %v3046
  %v3048 = vsub.f32 1.0, %v3047
  %v3049 = vmul.f32 %v3046, %v3048
  %v3050 = vadd.f32 %v3046, %v3049
  %vm3051 = vweird.f32 %v2190
  %vm3052 = vweird.f32 %v3046
  %vm3053 = vmor %vm3051, %vm3052
  %v3054 = vsel %vm3053, %v3046, %v3050
  %v3055 = vand.u32 2147483647, %v2190
  %vm3056 = vcmp.eq.f32.partialorder %v3055, 8.507059e+37
  %v3057 = vand.u32 %v2190, 2147483648
  %v3058 = vor.u32 1.1754944e-38, %v3057
  %v3059 = vsel %vm3056, %v3058, %v3054
  %v3060 = vmul.f32 1.0, %v3059
  %v3061 = vrcp.pop %v2191
  %v3062 = vmul.f32 %v2191, %v3061
  %v3063 = vsub.f32 1.0, %v3062
  %v3064 = vmul.f32 %v3061, %v3063
  %v3065 = vadd.f32 %v3061, %v3064
  %vm3066 = vweird.f32 %v2191
  %vm3067 = vweird.f32 %v3061
  %vm3068 = vmor %vm3066, %vm3067
  %v3069 = vsel %vm3068, %v3061, %v3065
  %v3070 = vand.u32 2147483647, %v2191
  %vm3071 = vcmp.eq.f32.partialorder %v3070, 8.507059e+37
  %v3072 = vand.u32 %v2191, 2147483648
  %v3073 = vor.u32 1.1754944e-38, %v3072
  %v3074 = vsel %vm3071, %v3073, %v3069
  %v3075 = vmul.f32 1.0, %v3074
  %v3076 = vrcp.pop %v2192
  %v3077 = vmul.f32 %v2192, %v3076
  %v3078 = vsub.f32 1.0, %v3077
  %v3079 = vmul.f32 %v3076, %v3078
  %v3080 = vadd.f32 %v3076, %v3079
  %vm3081 = vweird.f32 %v2192
  %vm3082 = vweird.f32 %v3076
  %vm3083 = vmor %vm3081, %vm3082
  %v3084 = vsel %vm3083, %v3076, %v3080
  %v3085 = vand.u32 2147483647, %v2192
  %vm3086 = vcmp.eq.f32.partialorder %v3085, 8.507059e+37
  %v3087 = vand.u32 %v2192, 2147483648
  %v3088 = vor.u32 1.1754944e-38, %v3087
  %v3089 = vsel %vm3086, %v3088, %v3084
  %v3090 = vmul.f32 1.0, %v3089
  %v3091 = vrcp.pop %v2193
  %v3092 = vmul.f32 %v2193, %v3091
  %v3093 = vsub.f32 1.0, %v3092
  %v3094 = vmul.f32 %v3091, %v3093
  %v3095 = vadd.f32 %v3091, %v3094
  %vm3096 = vweird.f32 %v2193
  %vm3097 = vweird.f32 %v3091
  %vm3098 = vmor %vm3096, %vm3097
  %v3099 = vsel %vm3098, %v3091, %v3095
  %v3100 = vand.u32 2147483647, %v2193
  %vm3101 = vcmp.eq.f32.partialorder %v3100, 8.507059e+37
  %v3102 = vand.u32 %v2193, 2147483648
  %v3103 = vor.u32 1.1754944e-38, %v3102
  %v3104 = vsel %vm3101, %v3103, %v3099
  %v3105 = vmul.f32 1.0, %v3104
  %v3106 = vrcp.pop %v2194
  %v3107 = vmul.f32 %v2194, %v3106
  %v3108 = vsub.f32 1.0, %v3107
  %v3109 = vmul.f32 %v3106, %v3108
  %v3110 = vadd.f32 %v3106, %v3109
  %vm3111 = vweird.f32 %v2194
  %vm3112 = vweird.f32 %v3106
  %vm3113 = vmor %vm3111, %vm3112
  %v3114 = vsel %vm3113, %v3106, %v3110
  %v3115 = vand.u32 2147483647, %v2194
  %vm3116 = vcmp.eq.f32.partialorder %v3115, 8.507059e+37
  %v3117 = vand.u32 %v2194, 2147483648
  %v3118 = vor.u32 1.1754944e-38, %v3117
  %v3119 = vsel %vm3116, %v3118, %v3114
  %v3120 = vmul.f32 1.0, %v3119
  %v3121 = vrcp.pop %v2195
  %v3122 = vmul.f32 %v2195, %v3121
  %v3123 = vsub.f32 1.0, %v3122
  %v3124 = vmul.f32 %v3121, %v3123
  %v3125 = vadd.f32 %v3121, %v3124
  %vm3126 = vweird.f32 %v2195
  %vm3127 = vweird.f32 %v3121
  %vm3128 = vmor %vm3126, %vm3127
  %v3129 = vsel %vm3128, %v3121, %v3125
  %v3130 = vand.u32 2147483647, %v2195
  %vm3131 = vcmp.eq.f32.partialorder %v3130, 8.507059e+37
  %v3132 = vand.u32 %v2195, 2147483648
  %v3133 = vor.u32 1.1754944e-38, %v3132
  %v3134 = vsel %vm3131, %v3133, %v3129
  %v3135 = vmul.f32 1.0, %v3134
  %v3136 = vrcp.pop %v2196
  %v3137 = vmul.f32 %v2196, %v3136
  %v3138 = vsub.f32 1.0, %v3137
  %v3139 = vmul.f32 %v3136, %v3138
  %v3140 = vadd.f32 %v3136, %v3139
  %vm3141 = vweird.f32 %v2196
  %vm3142 = vweird.f32 %v3136
  %vm3143 = vmor %vm3141, %vm3142
  %v3144 = vsel %vm3143, %v3136, %v3140
  %v3145 = vand.u32 2147483647, %v2196
  %vm3146 = vcmp.eq.f32.partialorder %v3145, 8.507059e+37
  %v3147 = vand.u32 %v2196, 2147483648
  %v3148 = vor.u32 1.1754944e-38, %v3147
  %v3149 = vsel %vm3146, %v3148, %v3144
  %v3150 = vmul.f32 1.0, %v3149
  %v3151 = vrcp.pop %v2197
  %v3152 = vmul.f32 %v2197, %v3151
  %v3153 = vsub.f32 1.0, %v3152
  %v3154 = vmul.f32 %v3151, %v3153
  %v3155 = vadd.f32 %v3151, %v3154
  %vm3156 = vweird.f32 %v2197
  %vm3157 = vweird.f32 %v3151
  %vm3158 = vmor %vm3156, %vm3157
  %v3159 = vsel %vm3158, %v3151, %v3155
  %v3160 = vand.u32 2147483647, %v2197
  %vm3161 = vcmp.eq.f32.partialorder %v3160, 8.507059e+37
  %v3162 = vand.u32 %v2197, 2147483648
  %v3163 = vor.u32 1.1754944e-38, %v3162
  %v3164 = vsel %vm3161, %v3163, %v3159
  %v3165 = vmul.f32 1.0, %v3164
  %v3166 = vrcp.pop %v2198
  %v3167 = vmul.f32 %v2198, %v3166
  %v3168 = vsub.f32 1.0, %v3167
  %v3169 = vmul.f32 %v3166, %v3168
  %v3170 = vadd.f32 %v3166, %v3169
  %vm3171 = vweird.f32 %v2198
  %vm3172 = vweird.f32 %v3166
  %vm3173 = vmor %vm3171, %vm3172
  %v3174 = vsel %vm3173, %v3166, %v3170
  %v3175 = vand.u32 2147483647, %v2198
  %vm3176 = vcmp.eq.f32.partialorder %v3175, 8.507059e+37
  %v3177 = vand.u32 %v2198, 2147483648
  %v3178 = vor.u32 1.1754944e-38, %v3177
  %v3179 = vsel %vm3176, %v3178, %v3174
  %v3180 = vmul.f32 1.0, %v3179
  %v3181 = vrcp.pop %v2199
  %v3182 = vmul.f32 %v2199, %v3181
  %v3183 = vsub.f32 1.0, %v3182
  %v3184 = vmul.f32 %v3181, %v3183
  %v3185 = vadd.f32 %v3181, %v3184
  %vm3186 = vweird.f32 %v2199
  %vm3187 = vweird.f32 %v3181
  %vm3188 = vmor %vm3186, %vm3187
  %v3189 = vsel %vm3188, %v3181, %v3185
  %v3190 = vand.u32 2147483647, %v2199
  %vm3191 = vcmp.eq.f32.partialorder %v3190, 8.507059e+37
  %v3192 = vand.u32 %v2199, 2147483648
  %v3193 = vor.u32 1.1754944e-38, %v3192
  %v3194 = vsel %vm3191, %v3193, %v3189
  %v3195 = vmul.f32 1.0, %v3194
  %v3196 = vrcp.pop %v2200
  %v3197 = vmul.f32 %v2200, %v3196
  %v3198 = vsub.f32 1.0, %v3197
  %v3199 = vmul.f32 %v3196, %v3198
  %v3200 = vadd.f32 %v3196, %v3199
  %vm3201 = vweird.f32 %v2200
  %vm3202 = vweird.f32 %v3196
  %vm3203 = vmor %vm3201, %vm3202
  %v3204 = vsel %vm3203, %v3196, %v3200
  %v3205 = vand.u32 2147483647, %v2200
  %vm3206 = vcmp.eq.f32.partialorder %v3205, 8.507059e+37
  %v3207 = vand.u32 %v2200, 2147483648
  %v3208 = vor.u32 1.1754944e-38, %v3207
  %v3209 = vsel %vm3206, %v3208, %v3204
  %v3210 = vmul.f32 1.0, %v3209
  %v3211 = vrcp.pop %v2201
  %v3212 = vmul.f32 %v2201, %v3211
  %v3213 = vsub.f32 1.0, %v3212
  %v3214 = vmul.f32 %v3211, %v3213
  %v3215 = vadd.f32 %v3211, %v3214
  %vm3216 = vweird.f32 %v2201
  %vm3217 = vweird.f32 %v3211
  %vm3218 = vmor %vm3216, %vm3217
  %v3219 = vsel %vm3218, %v3211, %v3215
  %v3220 = vand.u32 2147483647, %v2201
  %vm3221 = vcmp.eq.f32.partialorder %v3220, 8.507059e+37
  %v3222 = vand.u32 %v2201, 2147483648
  %v3223 = vor.u32 1.1754944e-38, %v3222
  %v3224 = vsel %vm3221, %v3223, %v3219
  %v3225 = vmul.f32 1.0, %v3224
  %v3226 = vrcp.pop %v2202
  %v3227 = vmul.f32 %v2202, %v3226
  %v3228 = vsub.f32 1.0, %v3227
  %v3229 = vmul.f32 %v3226, %v3228
  %v3230 = vadd.f32 %v3226, %v3229
  %vm3231 = vweird.f32 %v2202
  %vm3232 = vweird.f32 %v3226
  %vm3233 = vmor %vm3231, %vm3232
  %v3234 = vsel %vm3233, %v3226, %v3230
  %v3235 = vand.u32 2147483647, %v2202
  %vm3236 = vcmp.eq.f32.partialorder %v3235, 8.507059e+37
  %v3237 = vand.u32 %v2202, 2147483648
  %v3238 = vor.u32 1.1754944e-38, %v3237
  %v3239 = vsel %vm3236, %v3238, %v3234
  %v3240 = vmul.f32 1.0, %v3239
  %v3241 = vrcp.pop %v2203
  %v3242 = vmul.f32 %v2203, %v3241
  %v3243 = vsub.f32 1.0, %v3242
  %v3244 = vmul.f32 %v3241, %v3243
  %v3245 = vadd.f32 %v3241, %v3244
  %vm3246 = vweird.f32 %v2203
  %vm3247 = vweird.f32 %v3241
  %vm3248 = vmor %vm3246, %vm3247
  %v3249 = vsel %vm3248, %v3241, %v3245
  %v3250 = vand.u32 2147483647, %v2203
  %vm3251 = vcmp.eq.f32.partialorder %v3250, 8.507059e+37
  %v3252 = vand.u32 %v2203, 2147483648
  %v3253 = vor.u32 1.1754944e-38, %v3252
  %v3254 = vsel %vm3251, %v3253, %v3249
  %v3255 = vmul.f32 1.0, %v3254
  %v3256 = vrcp.pop %v2204
  %v3257 = vmul.f32 %v2204, %v3256
  %v3258 = vsub.f32 1.0, %v3257
  %v3259 = vmul.f32 %v3256, %v3258
  %v3260 = vadd.f32 %v3256, %v3259
  %vm3261 = vweird.f32 %v2204
  %vm3262 = vweird.f32 %v3256
  %vm3263 = vmor %vm3261, %vm3262
  %v3264 = vsel %vm3263, %v3256, %v3260
  %v3265 = vand.u32 2147483647, %v2204
  %vm3266 = vcmp.eq.f32.partialorder %v3265, 8.507059e+37
  %v3267 = vand.u32 %v2204, 2147483648
  %v3268 = vor.u32 1.1754944e-38, %v3267
  %v3269 = vsel %vm3266, %v3268, %v3264
  %v3270 = vmul.f32 1.0, %v3269
  %v3271 = vrcp.pop %v2205
  %v3272 = vmul.f32 %v2205, %v3271
  %v3273 = vsub.f32 1.0, %v3272
  %v3274 = vmul.f32 %v3271, %v3273
  %v3275 = vadd.f32 %v3271, %v3274
  %vm3276 = vweird.f32 %v2205
  %vm3277 = vweird.f32 %v3271
  %vm3278 = vmor %vm3276, %vm3277
  %v3279 = vsel %vm3278, %v3271, %v3275
  %v3280 = vand.u32 2147483647, %v2205
  %vm3281 = vcmp.eq.f32.partialorder %v3280, 8.507059e+37
  %v3282 = vand.u32 %v2205, 2147483648
  %v3283 = vor.u32 1.1754944e-38, %v3282
  %v3284 = vsel %vm3281, %v3283, %v3279
  %v3285 = vmul.f32 1.0, %v3284
  %v3286 = vmul.f32 %v2220, 1.0614054
  %v3287 = vmul.f32 %v2235, 1.0614054
  %v3288 = vmul.f32 %v2250, 1.0614054
  %v3289 = vmul.f32 %v2265, 1.0614054
  %v3290 = vmul.f32 %v2280, 1.0614054
  %v3291 = vmul.f32 %v2295, 1.0614054
  %v3292 = vmul.f32 %v2310, 1.0614054
  %v3293 = vmul.f32 %v2325, 1.0614054
  %v3294 = vmul.f32 %v2340, 1.0614054
  %v3295 = vmul.f32 %v2355, 1.0614054
  %v3296 = vmul.f32 %v2370, 1.0614054
  %v3297 = vmul.f32 %v2385, 1.0614054
  %v3298 = vmul.f32 %v2400, 1.0614054
  %v3299 = vmul.f32 %v2415, 1.0614054
  %v3300 = vmul.f32 %v2430, 1.0614054
  %v3301 = vmul.f32 %v2445, 1.0614054
  %v3302 = vmul.f32 %v2460, 1.0614054
  %v3303 = vmul.f32 %v2475, 1.0614054
  %v3304 = vmul.f32 %v2490, 1.0614054
  %v3305 = vmul.f32 %v2505, 1.0614054
  %v3306 = vmul.f32 %v2520, 1.0614054
  %v3307 = vmul.f32 %v2535, 1.0614054
  %v3308 = vmul.f32 %v2550, 1.0614054
  %v3309 = vmul.f32 %v2565, 1.0614054
  %v3310 = vmul.f32 %v2580, 1.0614054
  %v3311 = vmul.f32 %v2595, 1.0614054
  %v3312 = vmul.f32 %v2610, 1.0614054
  %v3313 = vmul.f32 %v2625, 1.0614054
  %v3314 = vmul.f32 %v2640, 1.0614054
  %v3315 = vmul.f32 %v2655, 1.0614054
  %v3316 = vmul.f32 %v2670, 1.0614054
  %v3317 = vmul.f32 %v2685, 1.0614054
  %v3318 = vmul.f32 %v2700, 1.0614054
  %v3319 = vmul.f32 %v2715, 1.0614054
  %v3320 = vmul.f32 %v2730, 1.0614054
  %v3321 = vmul.f32 %v2745, 1.0614054
  %v3322 = vmul.f32 %v2760, 1.0614054
  %v3323 = vmul.f32 %v2775, 1.0614054
  %v3324 = vmul.f32 %v2790, 1.0614054
  %v3325 = vmul.f32 %v2805, 1.0614054
  %v3326 = vmul.f32 %v2820, 1.0614054
  %v3327 = vmul.f32 %v2835, 1.0614054
  %v3328 = vmul.f32 %v2850, 1.0614054
  %v3329 = vmul.f32 %v2865, 1.0614054
  %v3330 = vmul.f32 %v2880, 1.0614054
  %v3331 = vmul.f32 %v2895, 1.0614054
  %v3332 = vmul.f32 %v2910, 1.0614054
  %v3333 = vmul.f32 %v2925, 1.0614054
  %v3334 = vmul.f32 %v2940, 1.0614054
  %v3335 = vmul.f32 %v2955, 1.0614054
  %v3336 = vmul.f32 %v2970, 1.0614054
  %v3337 = vmul.f32 %v2985, 1.0614054
  %v3338 = vmul.f32 %v3000, 1.0614054
  %v3339 = vmul.f32 %v3015, 1.0614054
  %v3340 = vmul.f32 %v3030, 1.0614054
  %v3341 = vmul.f32 %v3045, 1.0614054
  %v3342 = vmul.f32 %v3060, 1.0614054
  %v3343 = vmul.f32 %v3075, 1.0614054
  %v3344 = vmul.f32 %v3090, 1.0614054
  %v3345 = vmul.f32 %v3105, 1.0614054
  %v3346 = vmul.f32 %v3120, 1.0614054
  %v3347 = vmul.f32 %v3135, 1.0614054
  %v3348 = vmul.f32 %v3150, 1.0614054
  %v3349 = vmul.f32 %v3165, 1.0614054
  %v3350 = vmul.f32 %v3180, 1.0614054
  %v3351 = vmul.f32 %v3195, 1.0614054
  %v3352 = vmul.f32 %v3210, 1.0614054
  %v3353 = vmul.f32 %v3225, 1.0614054
  %v3354 = vmul.f32 %v3240, 1.0614054
  %v3355 = vmul.f32 %v3255, 1.0614054
  %v3356 = vmul.f32 %v3270, 1.0614054
  %v3357 = vmul.f32 %v3285, 1.0614054
  %v3358 = vadd.f32 %v3286, -1.4531521
  %v3359 = vadd.f32 %v3287, -1.4531521
  %v3360 = vadd.f32 %v3288, -1.4531521
  %v3361 = vadd.f32 %v3289, -1.4531521
  %v3362 = vadd.f32 %v3290, -1.4531521
  %v3363 = vadd.f32 %v3291, -1.4531521
  %v3364 = vadd.f32 %v3292, -1.4531521
  %v3365 = vadd.f32 %v3293, -1.4531521
  %v3366 = vadd.f32 %v3294, -1.4531521
  %v3367 = vadd.f32 %v3295, -1.4531521
  %v3368 = vadd.f32 %v3296, -1.4531521
  %v3369 = vadd.f32 %v3297, -1.4531521
  %v3370 = vadd.f32 %v3298, -1.4531521
  %v3371 = vadd.f32 %v3299, -1.4531521
  %v3372 = vadd.f32 %v3300, -1.4531521
  %v3373 = vadd.f32 %v3301, -1.4531521
  %v3374 = vadd.f32 %v3302, -1.4531521
  %v3375 = vadd.f32 %v3303, -1.4531521
  %v3376 = vadd.f32 %v3304, -1.4531521
  %v3377 = vadd.f32 %v3305, -1.4531521
  %v3378 = vadd.f32 %v3306, -1.4531521
  %v3379 = vadd.f32 %v3307, -1.4531521
  %v3380 = vadd.f32 %v3308, -1.4531521
  %v3381 = vadd.f32 %v3309, -1.4531521
  %v3382 = vadd.f32 %v3310, -1.4531521
  %v3383 = vadd.f32 %v3311, -1.4531521
  %v3384 = vadd.f32 %v3312, -1.4531521
  %v3385 = vadd.f32 %v3313, -1.4531521
  %v3386 = vadd.f32 %v3314, -1.4531521
  %v3387 = vadd.f32 %v3315, -1.4531521
  %v3388 = vadd.f32 %v3316, -1.4531521
  %v3389 = vadd.f32 %v3317, -1.4531521
  %v3390 = vadd.f32 %v3318, -1.4531521
  %v3391 = vadd.f32 %v3319, -1.4531521
  %v3392 = vadd.f32 %v3320, -1.4531521
  %v3393 = vadd.f32 %v3321, -1.4531521
  %v3394 = vadd.f32 %v3322, -1.4531521
  %v3395 = vadd.f32 %v3323, -1.4531521
  %v3396 = vadd.f32 %v3324, -1.4531521
  %v3397 = vadd.f32 %v3325, -1.4531521
  %v3398 = vadd.f32 %v3326, -1.4531521
  %v3399 = vadd.f32 %v3327, -1.4531521
  %v3400 = vadd.f32 %v3328, -1.4531521
  %v3401 = vadd.f32 %v3329, -1.4531521
  %v3402 = vadd.f32 %v3330, -1.4531521
  %v3403 = vadd.f32 %v3331, -1.4531521
  %v3404 = vadd.f32 %v3332, -1.4531521
  %v3405 = vadd.f32 %v3333, -1.4531521
  %v3406 = vadd.f32 %v3334, -1.4531521
  %v3407 = vadd.f32 %v3335, -1.4531521
  %v3408 = vadd.f32 %v3336, -1.4531521
  %v3409 = vadd.f32 %v3337, -1.4531521
  %v3410 = vadd.f32 %v3338, -1.4531521
  %v3411 = vadd.f32 %v3339, -1.4531521
  %v3412 = vadd.f32 %v3340, -1.4531521
  %v3413 = vadd.f32 %v3341, -1.4531521
  %v3414 = vadd.f32 %v3342, -1.4531521
  %v3415 = vadd.f32 %v3343, -1.4531521
  %v3416 = vadd.f32 %v3344, -1.4531521
  %v3417 = vadd.f32 %v3345, -1.4531521
  %v3418 = vadd.f32 %v3346, -1.4531521
  %v3419 = vadd.f32 %v3347, -1.4531521
  %v3420 = vadd.f32 %v3348, -1.4531521
  %v3421 = vadd.f32 %v3349, -1.4531521
  %v3422 = vadd.f32 %v3350, -1.4531521
  %v3423 = vadd.f32 %v3351, -1.4531521
  %v3424 = vadd.f32 %v3352, -1.4531521
  %v3425 = vadd.f32 %v3353, -1.4531521
  %v3426 = vadd.f32 %v3354, -1.4531521
  %v3427 = vadd.f32 %v3355, -1.4531521
  %v3428 = vadd.f32 %v3356, -1.4531521
  %v3429 = vadd.f32 %v3357, -1.4531521
  %v3430 = vmul.f32 %v2220, %v3358
  %v3431 = vmul.f32 %v2235, %v3359
  %v3432 = vmul.f32 %v2250, %v3360
  %v3433 = vmul.f32 %v2265, %v3361
  %v3434 = vmul.f32 %v2280, %v3362
  %v3435 = vmul.f32 %v2295, %v3363
  %v3436 = vmul.f32 %v2310, %v3364
  %v3437 = vmul.f32 %v2325, %v3365
  %v3438 = vmul.f32 %v2340, %v3366
  %v3439 = vmul.f32 %v2355, %v3367
  %v3440 = vmul.f32 %v2370, %v3368
  %v3441 = vmul.f32 %v2385, %v3369
  %v3442 = vmul.f32 %v2400, %v3370
  %v3443 = vmul.f32 %v2415, %v3371
  %v3444 = vmul.f32 %v2430, %v3372
  %v3445 = vmul.f32 %v2445, %v3373
  %v3446 = vmul.f32 %v2460, %v3374
  %v3447 = vmul.f32 %v2475, %v3375
  %v3448 = vmul.f32 %v2490, %v3376
  %v3449 = vmul.f32 %v2505, %v3377
  %v3450 = vmul.f32 %v2520, %v3378
  %v3451 = vmul.f32 %v2535, %v3379
  %v3452 = vmul.f32 %v2550, %v3380
  %v3453 = vmul.f32 %v2565, %v3381
  %v3454 = vmul.f32 %v2580, %v3382
  %v3455 = vmul.f32 %v2595, %v3383
  %v3456 = vmul.f32 %v2610, %v3384
  %v3457 = vmul.f32 %v2625, %v3385
  %v3458 = vmul.f32 %v2640, %v3386
  %v3459 = vmul.f32 %v2655, %v3387
  %v3460 = vmul.f32 %v2670, %v3388
  %v3461 = vmul.f32 %v2685, %v3389
  %v3462 = vmul.f32 %v2700, %v3390
  %v3463 = vmul.f32 %v2715, %v3391
  %v3464 = vmul.f32 %v2730, %v3392
  %v3465 = vmul.f32 %v2745, %v3393
  %v3466 = vmul.f32 %v2760, %v3394
  %v3467 = vmul.f32 %v2775, %v3395
  %v3468 = vmul.f32 %v2790, %v3396
  %v3469 = vmul.f32 %v2805, %v3397
  %v3470 = vmul.f32 %v2820, %v3398
  %v3471 = vmul.f32 %v2835, %v3399
  %v3472 = vmul.f32 %v2850, %v3400
  %v3473 = vmul.f32 %v2865, %v3401
  %v3474 = vmul.f32 %v2880, %v3402
  %v3475 = vmul.f32 %v2895, %v3403
  %v3476 = vmul.f32 %v2910, %v3404
  %v3477 = vmul.f32 %v2925, %v3405
  %v3478 = vmul.f32 %v2940, %v3406
  %v3479 = vmul.f32 %v2955, %v3407
  %v3480 = vmul.f32 %v2970, %v3408
  %v3481 = vmul.f32 %v2985, %v3409
  %v3482 = vmul.f32 %v3000, %v3410
  %v3483 = vmul.f32 %v3015, %v3411
  %v3484 = vmul.f32 %v3030, %v3412
  %v3485 = vmul.f32 %v3045, %v3413
  %v3486 = vmul.f32 %v3060, %v3414
  %v3487 = vmul.f32 %v3075, %v3415
  %v3488 = vmul.f32 %v3090, %v3416
  %v3489 = vmul.f32 %v3105, %v3417
  %v3490 = vmul.f32 %v3120, %v3418
  %v3491 = vmul.f32 %v3135, %v3419
  %v3492 = vmul.f32 %v3150, %v3420
  %v3493 = vmul.f32 %v3165, %v3421
  %v3494 = vmul.f32 %v3180, %v3422
  %v3495 = vmul.f32 %v3195, %v3423
  %v3496 = vmul.f32 %v3210, %v3424
  %v3497 = vmul.f32 %v3225, %v3425
  %v3498 = vmul.f32 %v3240, %v3426
  %v3499 = vmul.f32 %v3255, %v3427
  %v3500 = vmul.f32 %v3270, %v3428
  %v3501 = vmul.f32 %v3285, %v3429
  %v3502 = vadd.f32 %v3430, 1.4214138
  %v3503 = vadd.f32 %v3431, 1.4214138
  %v3504 = vadd.f32 %v3432, 1.4214138
  %v3505 = vadd.f32 %v3433, 1.4214138
  %v3506 = vadd.f32 %v3434, 1.4214138
  %v3507 = vadd.f32 %v3435, 1.4214138
  %v3508 = vadd.f32 %v3436, 1.4214138
  %v3509 = vadd.f32 %v3437, 1.4214138
  %v3510 = vadd.f32 %v3438, 1.4214138
  %v3511 = vadd.f32 %v3439, 1.4214138
  %v3512 = vadd.f32 %v3440, 1.4214138
  %v3513 = vadd.f32 %v3441, 1.4214138
  %v3514 = vadd.f32 %v3442, 1.4214138
  %v3515 = vadd.f32 %v3443, 1.4214138
  %v3516 = vadd.f32 %v3444, 1.4214138
  %v3517 = vadd.f32 %v3445, 1.4214138
  %v3518 = vadd.f32 %v3446, 1.4214138
  %v3519 = vadd.f32 %v3447, 1.4214138
  %v3520 = vadd.f32 %v3448, 1.4214138
  %v3521 = vadd.f32 %v3449, 1.4214138
  %v3522 = vadd.f32 %v3450, 1.4214138
  %v3523 = vadd.f32 %v3451, 1.4214138
  %v3524 = vadd.f32 %v3452, 1.4214138
  %v3525 = vadd.f32 %v3453, 1.4214138
  %v3526 = vadd.f32 %v3454, 1.4214138
  %v3527 = vadd.f32 %v3455, 1.4214138
  %v3528 = vadd.f32 %v3456, 1.4214138
  %v3529 = vadd.f32 %v3457, 1.4214138
  %v3530 = vadd.f32 %v3458, 1.4214138
  %v3531 = vadd.f32 %v3459, 1.4214138
  %v3532 = vadd.f32 %v3460, 1.4214138
  %v3533 = vadd.f32 %v3461, 1.4214138
  %v3534 = vadd.f32 %v3462, 1.4214138
  %v3535 = vadd.f32 %v3463, 1.4214138
  %v3536 = vadd.f32 %v3464, 1.4214138
  %v3537 = vadd.f32 %v3465, 1.4214138
  %v3538 = vadd.f32 %v3466, 1.4214138
  %v3539 = vadd.f32 %v3467, 1.4214138
  %v3540 = vadd.f32 %v3468, 1.4214138
  %v3541 = vadd.f32 %v3469, 1.4214138
  %v3542 = vadd.f32 %v3470, 1.4214138
  %v3543 = vadd.f32 %v3471, 1.4214138
  %v3544 = vadd.f32 %v3472, 1.4214138
  %v3545 = vadd.f32 %v3473, 1.4214138
  %v3546 = vadd.f32 %v3474, 1.4214138
  %v3547 = vadd.f32 %v3475, 1.4214138
  %v3548 = vadd.f32 %v3476, 1.4214138
  %v3549 = vadd.f32 %v3477, 1.4214138
  %v3550 = vadd.f32 %v3478, 1.4214138
  %v3551 = vadd.f32 %v3479, 1.4214138
  %v3552 = vadd.f32 %v3480, 1.4214138
  %v3553 = vadd.f32 %v3481, 1.4214138
  %v3554 = vadd.f32 %v3482, 1.4214138
  %v3555 = vadd.f32 %v3483, 1.4214138
  %v3556 = vadd.f32 %v3484, 1.4214138
  %v3557 = vadd.f32 %v3485, 1.4214138
  %v3558 = vadd.f32 %v3486, 1.4214138
  %v3559 = vadd.f32 %v3487, 1.4214138
  %v3560 = vadd.f32 %v3488, 1.4214138
  %v3561 = vadd.f32 %v3489, 1.4214138
  %v3562 = vadd.f32 %v3490, 1.4214138
  %v3563 = vadd.f32 %v3491, 1.4214138
  %v3564 = vadd.f32 %v3492, 1.4214138
  %v3565 = vadd.f32 %v3493, 1.4214138
  %v3566 = vadd.f32 %v3494, 1.4214138
  %v3567 = vadd.f32 %v3495, 1.4214138
  %v3568 = vadd.f32 %v3496, 1.4214138
  %v3569 = vadd.f32 %v3497, 1.4214138
  %v3570 = vadd.f32 %v3498, 1.4214138
  %v3571 = vadd.f32 %v3499, 1.4214138
  %v3572 = vadd.f32 %v3500, 1.4214138
  %v3573 = vadd.f32 %v3501, 1.4214138
  %v3574 = vmul.f32 %v2220, %v3502
  %v3575 = vmul.f32 %v2235, %v3503
  %v3576 = vmul.f32 %v2250, %v3504
  %v3577 = vmul.f32 %v2265, %v3505
  %v3578 = vmul.f32 %v2280, %v3506
  %v3579 = vmul.f32 %v2295, %v3507
  %v3580 = vmul.f32 %v2310, %v3508
  %v3581 = vmul.f32 %v2325, %v3509
  %v3582 = vmul.f32 %v2340, %v3510
  %v3583 = vmul.f32 %v2355, %v3511
  %v3584 = vmul.f32 %v2370, %v3512
  %v3585 = vmul.f32 %v2385, %v3513
  %v3586 = vmul.f32 %v2400, %v3514
  %v3587 = vmul.f32 %v2415, %v3515
  %v3588 = vmul.f32 %v2430, %v3516
  %v3589 = vmul.f32 %v2445, %v3517
  %v3590 = vmul.f32 %v2460, %v3518
  %v3591 = vmul.f32 %v2475, %v3519
  %v3592 = vmul.f32 %v2490, %v3520
  %v3593 = vmul.f32 %v2505, %v3521
  %v3594 = vmul.f32 %v2520, %v3522
  %v3595 = vmul.f32 %v2535, %v3523
  %v3596 = vmul.f32 %v2550, %v3524
  %v3597 = vmul.f32 %v2565, %v3525
  %v3598 = vmul.f32 %v2580, %v3526
  %v3599 = vmul.f32 %v2595, %v3527
  %v3600 = vmul.f32 %v2610, %v3528
  %v3601 = vmul.f32 %v2625, %v3529
  %v3602 = vmul.f32 %v2640, %v3530
  %v3603 = vmul.f32 %v2655, %v3531
  %v3604 = vmul.f32 %v2670, %v3532
  %v3605 = vmul.f32 %v2685, %v3533
  %v3606 = vmul.f32 %v2700, %v3534
  %v3607 = vmul.f32 %v2715, %v3535
  %v3608 = vmul.f32 %v2730, %v3536
  %v3609 = vmul.f32 %v2745, %v3537
  %v3610 = vmul.f32 %v2760, %v3538
  %v3611 = vmul.f32 %v2775, %v3539
  %v3612 = vmul.f32 %v2790, %v3540
  %v3613 = vmul.f32 %v2805, %v3541
  %v3614 = vmul.f32 %v2820, %v3542
  %v3615 = vmul.f32 %v2835, %v3543
  %v3616 = vmul.f32 %v2850, %v3544
  %v3617 = vmul.f32 %v2865, %v3545
  %v3618 = vmul.f32 %v2880, %v3546
  %v3619 = vmul.f32 %v2895, %v3547
  %v3620 = vmul.f32 %v2910, %v3548
  %v3621 = vmul.f32 %v2925, %v3549
  %v3622 = vmul.f32 %v2940, %v3550
  %v3623 = vmul.f32 %v2955, %v3551
  %v3624 = vmul.f32 %v2970, %v3552
  %v3625 = vmul.f32 %v2985, %v3553
  %v3626 = vmul.f32 %v3000, %v3554
  %v3627 = vmul.f32 %v3015, %v3555
  %v3628 = vmul.f32 %v3030, %v3556
  %v3629 = vmul.f32 %v3045, %v3557
  %v3630 = vmul.f32 %v3060, %v3558
  %v3631 = vmul.f32 %v3075, %v3559
  %v3632 = vmul.f32 %v3090, %v3560
  %v3633 = vmul.f32 %v3105, %v3561
  %v3634 = vmul.f32 %v3120, %v3562
  %v3635 = vmul.f32 %v3135, %v3563
  %v3636 = vmul.f32 %v3150, %v3564
  %v3637 = vmul.f32 %v3165, %v3565
  %v3638 = vmul.f32 %v3180, %v3566
  %v3639 = vmul.f32 %v3195, %v3567
  %v3640 = vmul.f32 %v3210, %v3568
  %v3641 = vmul.f32 %v3225, %v3569
  %v3642 = vmul.f32 %v3240, %v3570
  %v3643 = vmul.f32 %v3255, %v3571
  %v3644 = vmul.f32 %v3270, %v3572
  %v3645 = vmul.f32 %v3285, %v3573
  %v3646 = vadd.f32 %v3574, -0.28449672
  %v3647 = vadd.f32 %v3575, -0.28449672
  %v3648 = vadd.f32 %v3576, -0.28449672
  %v3649 = vadd.f32 %v3577, -0.28449672
  %v3650 = vadd.f32 %v3578, -0.28449672
  %v3651 = vadd.f32 %v3579, -0.28449672
  %v3652 = vadd.f32 %v3580, -0.28449672
  %v3653 = vadd.f32 %v3581, -0.28449672
  %v3654 = vadd.f32 %v3582, -0.28449672
  %v3655 = vadd.f32 %v3583, -0.28449672
  %v3656 = vadd.f32 %v3584, -0.28449672
  %v3657 = vadd.f32 %v3585, -0.28449672
  %v3658 = vadd.f32 %v3586, -0.28449672
  %v3659 = vadd.f32 %v3587, -0.28449672
  %v3660 = vadd.f32 %v3588, -0.28449672
  %v3661 = vadd.f32 %v3589, -0.28449672
  %v3662 = vadd.f32 %v3590, -0.28449672
  %v3663 = vadd.f32 %v3591, -0.28449672
  %v3664 = vadd.f32 %v3592, -0.28449672
  %v3665 = vadd.f32 %v3593, -0.28449672
  %v3666 = vadd.f32 %v3594, -0.28449672
  %v3667 = vadd.f32 %v3595, -0.28449672
  %v3668 = vadd.f32 %v3596, -0.28449672
  %v3669 = vadd.f32 %v3597, -0.28449672
  %v3670 = vadd.f32 %v3598, -0.28449672
  %v3671 = vadd.f32 %v3599, -0.28449672
  %v3672 = vadd.f32 %v3600, -0.28449672
  %v3673 = vadd.f32 %v3601, -0.28449672
  %v3674 = vadd.f32 %v3602, -0.28449672
  %v3675 = vadd.f32 %v3603, -0.28449672
  %v3676 = vadd.f32 %v3604, -0.28449672
  %v3677 = vadd.f32 %v3605, -0.28449672
  %v3678 = vadd.f32 %v3606, -0.28449672
  %v3679 = vadd.f32 %v3607, -0.28449672
  %v3680 = vadd.f32 %v3608, -0.28449672
  %v3681 = vadd.f32 %v3609, -0.28449672
  %v3682 = vadd.f32 %v3610, -0.28449672
  %v3683 = vadd.f32 %v3611, -0.28449672
  %v3684 = vadd.f32 %v3612, -0.28449672
  %v3685 = vadd.f32 %v3613, -0.28449672
  %v3686 = vadd.f32 %v3614, -0.28449672
  %v3687 = vadd.f32 %v3615, -0.28449672
  %v3688 = vadd.f32 %v3616, -0.28449672
  %v3689 = vadd.f32 %v3617, -0.28449672
  %v3690 = vadd.f32 %v3618, -0.28449672
  %v3691 = vadd.f32 %v3619, -0.28449672
  %v3692 = vadd.f32 %v3620, -0.28449672
  %v3693 = vadd.f32 %v3621, -0.28449672
  %v3694 = vadd.f32 %v3622, -0.28449672
  %v3695 = vadd.f32 %v3623, -0.28449672
  %v3696 = vadd.f32 %v3624, -0.28449672
  %v3697 = vadd.f32 %v3625, -0.28449672
  %v3698 = vadd.f32 %v3626, -0.28449672
  %v3699 = vadd.f32 %v3627, -0.28449672
  %v3700 = vadd.f32 %v3628, -0.28449672
  %v3701 = vadd.f32 %v3629, -0.28449672
  %v3702 = vadd.f32 %v3630, -0.28449672
  %v3703 = vadd.f32 %v3631, -0.28449672
  %v3704 = vadd.f32 %v3632, -0.28449672
  %v3705 = vadd.f32 %v3633, -0.28449672
  %v3706 = vadd.f32 %v3634, -0.28449672
  %v3707 = vadd.f32 %v3635, -0.28449672
  %v3708 = vadd.f32 %v3636, -0.28449672
  %v3709 = vadd.f32 %v3637, -0.28449672
  %v3710 = vadd.f32 %v3638, -0.28449672
  %v3711 = vadd.f32 %v3639, -0.28449672
  %v3712 = vadd.f32 %v3640, -0.28449672
  %v3713 = vadd.f32 %v3641, -0.28449672
  %v3714 = vadd.f32 %v3642, -0.28449672
  %v3715 = vadd.f32 %v3643, -0.28449672
  %v3716 = vadd.f32 %v3644, -0.28449672
  %v3717 = vadd.f32 %v3645, -0.28449672
  %v3718 = vmul.f32 %v2220, %v3646
  %v3719 = vmul.f32 %v2235, %v3647
  %v3720 = vmul.f32 %v2250, %v3648
  %v3721 = vmul.f32 %v2265, %v3649
  %v3722 = vmul.f32 %v2280, %v3650
  %v3723 = vmul.f32 %v2295, %v3651
  %v3724 = vmul.f32 %v2310, %v3652
  %v3725 = vmul.f32 %v2325, %v3653
  %v3726 = vmul.f32 %v2340, %v3654
  %v3727 = vmul.f32 %v2355, %v3655
  %v3728 = vmul.f32 %v2370, %v3656
  %v3729 = vmul.f32 %v2385, %v3657
  %v3730 = vmul.f32 %v2400, %v3658
  %v3731 = vmul.f32 %v2415, %v3659
  %v3732 = vmul.f32 %v2430, %v3660
  %v3733 = vmul.f32 %v2445, %v3661
  %v3734 = vmul.f32 %v2460, %v3662
  %v3735 = vmul.f32 %v2475, %v3663
  %v3736 = vmul.f32 %v2490, %v3664
  %v3737 = vmul.f32 %v2505, %v3665
  %v3738 = vmul.f32 %v2520, %v3666
  %v3739 = vmul.f32 %v2535, %v3667
  %v3740 = vmul.f32 %v2550, %v3668
  %v3741 = vmul.f32 %v2565, %v3669
  %v3742 = vmul.f32 %v2580, %v3670
  %v3743 = vmul.f32 %v2595, %v3671
  %v3744 = vmul.f32 %v2610, %v3672
  %v3745 = vmul.f32 %v2625, %v3673
  %v3746 = vmul.f32 %v2640, %v3674
  %v3747 = vmul.f32 %v2655, %v3675
  %v3748 = vmul.f32 %v2670, %v3676
  %v3749 = vmul.f32 %v2685, %v3677
  %v3750 = vmul.f32 %v2700, %v3678
  %v3751 = vmul.f32 %v2715, %v3679
  %v3752 = vmul.f32 %v2730, %v3680
  %v3753 = vmul.f32 %v2745, %v3681
  %v3754 = vmul.f32 %v2760, %v3682
  %v3755 = vmul.f32 %v2775, %v3683
  %v3756 = vmul.f32 %v2790, %v3684
  %v3757 = vmul.f32 %v2805, %v3685
  %v3758 = vmul.f32 %v2820, %v3686
  %v3759 = vmul.f32 %v2835, %v3687
  %v3760 = vmul.f32 %v2850, %v3688
  %v3761 = vmul.f32 %v2865, %v3689
  %v3762 = vmul.f32 %v2880, %v3690
  %v3763 = vmul.f32 %v2895, %v3691
  %v3764 = vmul.f32 %v2910, %v3692
  %v3765 = vmul.f32 %v2925, %v3693
  %v3766 = vmul.f32 %v2940, %v3694
  %v3767 = vmul.f32 %v2955, %v3695
  %v3768 = vmul.f32 %v2970, %v3696
  %v3769 = vmul.f32 %v2985, %v3697
  %v3770 = vmul.f32 %v3000, %v3698
  %v3771 = vmul.f32 %v3015, %v3699
  %v3772 = vmul.f32 %v3030, %v3700
  %v3773 = vmul.f32 %v3045, %v3701
  %v3774 = vmul.f32 %v3060, %v3702
  %v3775 = vmul.f32 %v3075, %v3703
  %v3776 = vmul.f32 %v3090, %v3704
  %v3777 = vmul.f32 %v3105, %v3705
  %v3778 = vmul.f32 %v3120, %v3706
  %v3779 = vmul.f32 %v3135, %v3707
  %v3780 = vmul.f32 %v3150, %v3708
  %v3781 = vmul.f32 %v3165, %v3709
  %v3782 = vmul.f32 %v3180, %v3710
  %v3783 = vmul.f32 %v3195, %v3711
  %v3784 = vmul.f32 %v3210, %v3712
  %v3785 = vmul.f32 %v3225, %v3713
  %v3786 = vmul.f32 %v3240, %v3714
  %v3787 = vmul.f32 %v3255, %v3715
  %v3788 = vmul.f32 %v3270, %v3716
  %v3789 = vmul.f32 %v3285, %v3717
  %v3790 = vadd.f32 %v3718, 0.2548296
  %v3791 = vadd.f32 %v3719, 0.2548296
  %v3792 = vadd.f32 %v3720, 0.2548296
  %v3793 = vadd.f32 %v3721, 0.2548296
  %v3794 = vadd.f32 %v3722, 0.2548296
  %v3795 = vadd.f32 %v3723, 0.2548296
  %v3796 = vadd.f32 %v3724, 0.2548296
  %v3797 = vadd.f32 %v3725, 0.2548296
  %v3798 = vadd.f32 %v3726, 0.2548296
  %v3799 = vadd.f32 %v3727, 0.2548296
  %v3800 = vadd.f32 %v3728, 0.2548296
  %v3801 = vadd.f32 %v3729, 0.2548296
  %v3802 = vadd.f32 %v3730, 0.2548296
  %v3803 = vadd.f32 %v3731, 0.2548296
  %v3804 = vadd.f32 %v3732, 0.2548296
  %v3805 = vadd.f32 %v3733, 0.2548296
  %v3806 = vadd.f32 %v3734, 0.2548296
  %v3807 = vadd.f32 %v3735, 0.2548296
  %v3808 = vadd.f32 %v3736, 0.2548296
  %v3809 = vadd.f32 %v3737, 0.2548296
  %v3810 = vadd.f32 %v3738, 0.2548296
  %v3811 = vadd.f32 %v3739, 0.2548296
  %v3812 = vadd.f32 %v3740, 0.2548296
  %v3813 = vadd.f32 %v3741, 0.2548296
  %v3814 = vadd.f32 %v3742, 0.2548296
  %v3815 = vadd.f32 %v3743, 0.2548296
  %v3816 = vadd.f32 %v3744, 0.2548296
  %v3817 = vadd.f32 %v3745, 0.2548296
  %v3818 = vadd.f32 %v3746, 0.2548296
  %v3819 = vadd.f32 %v3747, 0.2548296
  %v3820 = vadd.f32 %v3748, 0.2548296
  %v3821 = vadd.f32 %v3749, 0.2548296
  %v3822 = vadd.f32 %v3750, 0.2548296
  %v3823 = vadd.f32 %v3751, 0.2548296
  %v3824 = vadd.f32 %v3752, 0.2548296
  %v3825 = vadd.f32 %v3753, 0.2548296
  %v3826 = vadd.f32 %v3754, 0.2548296
  %v3827 = vadd.f32 %v3755, 0.2548296
  %v3828 = vadd.f32 %v3756, 0.2548296
  %v3829 = vadd.f32 %v3757, 0.2548296
  %v3830 = vadd.f32 %v3758, 0.2548296
  %v3831 = vadd.f32 %v3759, 0.2548296
  %v3832 = vadd.f32 %v3760, 0.2548296
  %v3833 = vadd.f32 %v3761, 0.2548296
  %v3834 = vadd.f32 %v3762, 0.2548296
  %v3835 = vadd.f32 %v3763, 0.2548296
  %v3836 = vadd.f32 %v3764, 0.2548296
  %v3837 = vadd.f32 %v3765, 0.2548296
  %v3838 = vadd.f32 %v3766, 0.2548296
  %v3839 = vadd.f32 %v3767, 0.2548296
  %v3840 = vadd.f32 %v3768, 0.2548296
  %v3841 = vadd.f32 %v3769, 0.2548296
  %v3842 = vadd.f32 %v3770, 0.2548296
  %v3843 = vadd.f32 %v3771, 0.2548296
  %v3844 = vadd.f32 %v3772, 0.2548296
  %v3845 = vadd.f32 %v3773, 0.2548296
  %v3846 = vadd.f32 %v3774, 0.2548296
  %v3847 = vadd.f32 %v3775, 0.2548296
  %v3848 = vadd.f32 %v3776, 0.2548296
  %v3849 = vadd.f32 %v3777, 0.2548296
  %v3850 = vadd.f32 %v3778, 0.2548296
  %v3851 = vadd.f32 %v3779, 0.2548296
  %v3852 = vadd.f32 %v3780, 0.2548296
  %v3853 = vadd.f32 %v3781, 0.2548296
  %v3854 = vadd.f32 %v3782, 0.2548296
  %v3855 = vadd.f32 %v3783, 0.2548296
  %v3856 = vadd.f32 %v3784, 0.2548296
  %v3857 = vadd.f32 %v3785, 0.2548296
  %v3858 = vadd.f32 %v3786, 0.2548296
  %v3859 = vadd.f32 %v3787, 0.2548296
  %v3860 = vadd.f32 %v3788, 0.2548296
  %v3861 = vadd.f32 %v3789, 0.2548296
  %v3862 = vmul.f32 %v2220, %v3790
  %v3863 = vmul.f32 %v2235, %v3791
  %v3864 = vmul.f32 %v2250, %v3792
  %v3865 = vmul.f32 %v2265, %v3793
  %v3866 = vmul.f32 %v2280, %v3794
  %v3867 = vmul.f32 %v2295, %v3795
  %v3868 = vmul.f32 %v2310, %v3796
  %v3869 = vmul.f32 %v2325, %v3797
  %v3870 = vmul.f32 %v2340, %v3798
  %v3871 = vmul.f32 %v2355, %v3799
  %v3872 = vmul.f32 %v2370, %v3800
  %v3873 = vmul.f32 %v2385, %v3801
  %v3874 = vmul.f32 %v2400, %v3802
  %v3875 = vmul.f32 %v2415, %v3803
  %v3876 = vmul.f32 %v2430, %v3804
  %v3877 = vmul.f32 %v2445, %v3805
  %v3878 = vmul.f32 %v2460, %v3806
  %v3879 = vmul.f32 %v2475, %v3807
  %v3880 = vmul.f32 %v2490, %v3808
  %v3881 = vmul.f32 %v2505, %v3809
  %v3882 = vmul.f32 %v2520, %v3810
  %v3883 = vmul.f32 %v2535, %v3811
  %v3884 = vmul.f32 %v2550, %v3812
  %v3885 = vmul.f32 %v2565, %v3813
  %v3886 = vmul.f32 %v2580, %v3814
  %v3887 = vmul.f32 %v2595, %v3815
  %v3888 = vmul.f32 %v2610, %v3816
  %v3889 = vmul.f32 %v2625, %v3817
  %v3890 = vmul.f32 %v2640, %v3818
  %v3891 = vmul.f32 %v2655, %v3819
  %v3892 = vmul.f32 %v2670, %v3820
  %v3893 = vmul.f32 %v2685, %v3821
  %v3894 = vmul.f32 %v2700, %v3822
  %v3895 = vmul.f32 %v2715, %v3823
  %v3896 = vmul.f32 %v2730, %v3824
  %v3897 = vmul.f32 %v2745, %v3825
  %v3898 = vmul.f32 %v2760, %v3826
  %v3899 = vmul.f32 %v2775, %v3827
  %v3900 = vmul.f32 %v2790, %v3828
  %v3901 = vmul.f32 %v2805, %v3829
  %v3902 = vmul.f32 %v2820, %v3830
  %v3903 = vmul.f32 %v2835, %v3831
  %v3904 = vmul.f32 %v2850, %v3832
  %v3905 = vmul.f32 %v2865, %v3833
  %v3906 = vmul.f32 %v2880, %v3834
  %v3907 = vmul.f32 %v2895, %v3835
  %v3908 = vmul.f32 %v2910, %v3836
  %v3909 = vmul.f32 %v2925, %v3837
  %v3910 = vmul.f32 %v2940, %v3838
  %v3911 = vmul.f32 %v2955, %v3839
  %v3912 = vmul.f32 %v2970, %v3840
  %v3913 = vmul.f32 %v2985, %v3841
  %v3914 = vmul.f32 %v3000, %v3842
  %v3915 = vmul.f32 %v3015, %v3843
  %v3916 = vmul.f32 %v3030, %v3844
  %v3917 = vmul.f32 %v3045, %v3845
  %v3918 = vmul.f32 %v3060, %v3846
  %v3919 = vmul.f32 %v3075, %v3847
  %v3920 = vmul.f32 %v3090, %v3848
  %v3921 = vmul.f32 %v3105, %v3849
  %v3922 = vmul.f32 %v3120, %v3850
  %v3923 = vmul.f32 %v3135, %v3851
  %v3924 = vmul.f32 %v3150, %v3852
  %v3925 = vmul.f32 %v3165, %v3853
  %v3926 = vmul.f32 %v3180, %v3854
  %v3927 = vmul.f32 %v3195, %v3855
  %v3928 = vmul.f32 %v3210, %v3856
  %v3929 = vmul.f32 %v3225, %v3857
  %v3930 = vmul.f32 %v3240, %v3858
  %v3931 = vmul.f32 %v3255, %v3859
  %v3932 = vmul.f32 %v3270, %v3860
  %v3933 = vmul.f32 %v3285, %v3861
  %v3934 = vsub.f32 0.0, %v1990
  %v3935 = vsub.f32 0.0, %v1991
  %v3936 = vsub.f32 0.0, %v1992
  %v3937 = vsub.f32 0.0, %v1993
  %v3938 = vsub.f32 0.0, %v1994
  %v3939 = vsub.f32 0.0, %v1995
  %v3940 = vsub.f32 0.0, %v1996
  %v3941 = vsub.f32 0.0, %v1997
  %v3942 = vsub.f32 0.0, %v1998
  %v3943 = vsub.f32 0.0, %v1999
  %v3944 = vsub.f32 0.0, %v2000
  %v3945 = vsub.f32 0.0, %v2001
  %v3946 = vsub.f32 0.0, %v2002
  %v3947 = vsub.f32 0.0, %v2003
  %v3948 = vsub.f32 0.0, %v2004
  %v3949 = vsub.f32 0.0, %v2005
  %v3950 = vsub.f32 0.0, %v2006
  %v3951 = vsub.f32 0.0, %v2007
  %v3952 = vsub.f32 0.0, %v2008
  %v3953 = vsub.f32 0.0, %v2009
  %v3954 = vsub.f32 0.0, %v2010
  %v3955 = vsub.f32 0.0, %v2011
  %v3956 = vsub.f32 0.0, %v2012
  %v3957 = vsub.f32 0.0, %v2013
  %v3958 = vsub.f32 0.0, %v2014
  %v3959 = vsub.f32 0.0, %v2015
  %v3960 = vsub.f32 0.0, %v2016
  %v3961 = vsub.f32 0.0, %v2017
  %v3962 = vsub.f32 0.0, %v2018
  %v3963 = vsub.f32 0.0, %v2019
  %v3964 = vsub.f32 0.0, %v2020
  %v3965 = vsub.f32 0.0, %v2021
  %v3966 = vsub.f32 0.0, %v2022
  %v3967 = vsub.f32 0.0, %v2023
  %v3968 = vsub.f32 0.0, %v2024
  %v3969 = vsub.f32 0.0, %v2025
  %v3970 = vsub.f32 0.0, %v2026
  %v3971 = vsub.f32 0.0, %v2027
  %v3972 = vsub.f32 0.0, %v2028
  %v3973 = vsub.f32 0.0, %v2029
  %v3974 = vsub.f32 0.0, %v2030
  %v3975 = vsub.f32 0.0, %v2031
  %v3976 = vsub.f32 0.0, %v2032
  %v3977 = vsub.f32 0.0, %v2033
  %v3978 = vsub.f32 0.0, %v2034
  %v3979 = vsub.f32 0.0, %v2035
  %v3980 = vsub.f32 0.0, %v2036
  %v3981 = vsub.f32 0.0, %v2037
  %v3982 = vsub.f32 0.0, %v2038
  %v3983 = vsub.f32 0.0, %v2039
  %v3984 = vsub.f32 0.0, %v2040
  %v3985 = vsub.f32 0.0, %v2041
  %v3986 = vsub.f32 0.0, %v2042
  %v3987 = vsub.f32 0.0, %v2043
  %v3988 = vsub.f32 0.0, %v2044
  %v3989 = vsub.f32 0.0, %v2045
  %v3990 = vsub.f32 0.0, %v2046
  %v3991 = vsub.f32 0.0, %v2047
  %v3992 = vsub.f32 0.0, %v2048
  %v3993 = vsub.f32 0.0, %v2049
  %v3994 = vsub.f32 0.0, %v2050
  %v3995 = vsub.f32 0.0, %v2051
  %v3996 = vsub.f32 0.0, %v2052
  %v3997 = vsub.f32 0.0, %v2053
  %v3998 = vsub.f32 0.0, %v2054
  %v3999 = vsub.f32 0.0, %v2055
  %v4000 = vsub.f32 0.0, %v2056
  %v4001 = vsub.f32 0.0, %v2057
  %v4002 = vsub.f32 0.0, %v2058
  %v4003 = vsub.f32 0.0, %v2059
  %v4004 = vsub.f32 0.0, %v2060
  %v4005 = vsub.f32 0.0, %v2061
  %v4006 = vmul.f32 %v3934, %v1990
  %v4007 = vmul.f32 %v3935, %v1991
  %v4008 = vmul.f32 %v3936, %v1992
  %v4009 = vmul.f32 %v3937, %v1993
  %v4010 = vmul.f32 %v3938, %v1994
  %v4011 = vmul.f32 %v3939, %v1995
  %v4012 = vmul.f32 %v3940, %v1996
  %v4013 = vmul.f32 %v3941, %v1997
  %v4014 = vmul.f32 %v3942, %v1998
  %v4015 = vmul.f32 %v3943, %v1999
  %v4016 = vmul.f32 %v3944, %v2000
  %v4017 = vmul.f32 %v3945, %v2001
  %v4018 = vmul.f32 %v3946, %v2002
  %v4019 = vmul.f32 %v3947, %v2003
  %v4020 = vmul.f32 %v3948, %v2004
  %v4021 = vmul.f32 %v3949, %v2005
  %v4022 = vmul.f32 %v3950, %v2006
  %v4023 = vmul.f32 %v3951, %v2007
  %v4024 = vmul.f32 %v3952, %v2008
  %v4025 = vmul.f32 %v3953, %v2009
  %v4026 = vmul.f32 %v3954, %v2010
  %v4027 = vmul.f32 %v3955, %v2011
  %v4028 = vmul.f32 %v3956, %v2012
  %v4029 = vmul.f32 %v3957, %v2013
  %v4030 = vmul.f32 %v3958, %v2014
  %v4031 = vmul.f32 %v3959, %v2015
  %v4032 = vmul.f32 %v3960, %v2016
  %v4033 = vmul.f32 %v3961, %v2017
  %v4034 = vmul.f32 %v3962, %v2018
  %v4035 = vmul.f32 %v3963, %v2019
  %v4036 = vmul.f32 %v3964, %v2020
  %v4037 = vmul.f32 %v3965, %v2021
  %v4038 = vmul.f32 %v3966, %v2022
  %v4039 = vmul.f32 %v3967, %v2023
  %v4040 = vmul.f32 %v3968, %v2024
  %v4041 = vmul.f32 %v3969, %v2025
  %v4042 = vmul.f32 %v3970, %v2026
  %v4043 = vmul.f32 %v3971, %v2027
  %v4044 = vmul.f32 %v3972, %v2028
  %v4045 = vmul.f32 %v3973, %v2029
  %v4046 = vmul.f32 %v3974, %v2030
  %v4047 = vmul.f32 %v3975, %v2031
  %v4048 = vmul.f32 %v3976, %v2032
  %v4049 = vmul.f32 %v3977, %v2033
  %v4050 = vmul.f32 %v3978, %v2034
  %v4051 = vmul.f32 %v3979, %v2035
  %v4052 = vmul.f32 %v3980, %v2036
  %v4053 = vmul.f32 %v3981, %v2037
  %v4054 = vmul.f32 %v3982, %v2038
  %v4055 = vmul.f32 %v3983, %v2039
  %v4056 = vmul.f32 %v3984, %v2040
  %v4057 = vmul.f32 %v3985, %v2041
  %v4058 = vmul.f32 %v3986, %v2042
  %v4059 = vmul.f32 %v3987, %v2043
  %v4060 = vmul.f32 %v3988, %v2044
  %v4061 = vmul.f32 %v3989, %v2045
  %v4062 = vmul.f32 %v3990, %v2046
  %v4063 = vmul.f32 %v3991, %v2047
  %v4064 = vmul.f32 %v3992, %v2048
  %v4065 = vmul.f32 %v3993, %v2049
  %v4066 = vmul.f32 %v3994, %v2050
  %v4067 = vmul.f32 %v3995, %v2051
  %v4068 = vmul.f32 %v3996, %v2052
  %v4069 = vmul.f32 %v3997, %v2053
  %v4070 = vmul.f32 %v3998, %v2054
  %v4071 = vmul.f32 %v3999, %v2055
  %v4072 = vmul.f32 %v4000, %v2056
  %v4073 = vmul.f32 %v4001, %v2057
  %v4074 = vmul.f32 %v4002, %v2058
  %v4075 = vmul.f32 %v4003, %v2059
  %v4076 = vmul.f32 %v4004, %v2060
  %v4077 = vmul.f32 %v4005, %v2061
  %v4078 = vmul.f32 %v4006, 1.442695
  %v4079 = vpow.pop %v4078
  %v4080 = vmul.f32 %v4007, 1.442695
  %v4081 = vpow.pop %v4080
  %v4082 = vmul.f32 %v4008, 1.442695
  %v4083 = vpow.pop %v4082
  %v4084 = vmul.f32 %v4009, 1.442695
  %v4085 = vpow.pop %v4084
  %v4086 = vmul.f32 %v4010, 1.442695
  %v4087 = vpow.pop %v4086
  %v4088 = vmul.f32 %v4011, 1.442695
  %v4089 = vpow.pop %v4088
  %v4090 = vmul.f32 %v4012, 1.442695
  %v4091 = vpow.pop %v4090
  %v4092 = vmul.f32 %v4013, 1.442695
  %v4093 = vpow.pop %v4092
  %v4094 = vmul.f32 %v4014, 1.442695
  %v4095 = vpow.pop %v4094
  %v4096 = vmul.f32 %v4015, 1.442695
  %v4097 = vpow.pop %v4096
  %v4098 = vmul.f32 %v4016, 1.442695
  %v4099 = vpow.pop %v4098
  %v4100 = vmul.f32 %v4017, 1.442695
  %v4101 = vpow.pop %v4100
  %v4102 = vmul.f32 %v4018, 1.442695
  %v4103 = vpow.pop %v4102
  %v4104 = vmul.f32 %v4019, 1.442695
  %v4105 = vpow.pop %v4104
  %v4106 = vmul.f32 %v4020, 1.442695
  %v4107 = vpow.pop %v4106
  %v4108 = vmul.f32 %v4021, 1.442695
  %v4109 = vpow.pop %v4108
  %v4110 = vmul.f32 %v4022, 1.442695
  %v4111 = vpow.pop %v4110
  %v4112 = vmul.f32 %v4023, 1.442695
  %v4113 = vpow.pop %v4112
  %v4114 = vmul.f32 %v4024, 1.442695
  %v4115 = vpow.pop %v4114
  %v4116 = vmul.f32 %v4025, 1.442695
  %v4117 = vpow.pop %v4116
  %v4118 = vmul.f32 %v4026, 1.442695
  %v4119 = vpow.pop %v4118
  %v4120 = vmul.f32 %v4027, 1.442695
  %v4121 = vpow.pop %v4120
  %v4122 = vmul.f32 %v4028, 1.442695
  %v4123 = vpow.pop %v4122
  %v4124 = vmul.f32 %v4029, 1.442695
  %v4125 = vpow.pop %v4124
  %v4126 = vmul.f32 %v4030, 1.442695
  %v4127 = vpow.pop %v4126
  %v4128 = vmul.f32 %v4031, 1.442695
  %v4129 = vpow.pop %v4128
  %v4130 = vmul.f32 %v4032, 1.442695
  %v4131 = vpow.pop %v4130
  %v4132 = vmul.f32 %v4033, 1.442695
  %v4133 = vpow.pop %v4132
  %v4134 = vmul.f32 %v4034, 1.442695
  %v4135 = vpow.pop %v4134
  %v4136 = vmul.f32 %v4035, 1.442695
  %v4137 = vpow.pop %v4136
  %v4138 = vmul.f32 %v4036, 1.442695
  %v4139 = vpow.pop %v4138
  %v4140 = vmul.f32 %v4037, 1.442695
  %v4141 = vpow.pop %v4140
  %v4142 = vmul.f32 %v4038, 1.442695
  %v4143 = vpow.pop %v4142
  %v4144 = vmul.f32 %v4039, 1.442695
  %v4145 = vpow.pop %v4144
  %v4146 = vmul.f32 %v4040, 1.442695
  %v4147 = vpow.pop %v4146
  %v4148 = vmul.f32 %v4041, 1.442695
  %v4149 = vpow.pop %v4148
  %v4150 = vmul.f32 %v4042, 1.442695
  %v4151 = vpow.pop %v4150
  %v4152 = vmul.f32 %v4043, 1.442695
  %v4153 = vpow.pop %v4152
  %v4154 = vmul.f32 %v4044, 1.442695
  %v4155 = vpow.pop %v4154
  %v4156 = vmul.f32 %v4045, 1.442695
  %v4157 = vpow.pop %v4156
  %v4158 = vmul.f32 %v4046, 1.442695
  %v4159 = vpow.pop %v4158
  %v4160 = vmul.f32 %v4047, 1.442695
  %v4161 = vpow.pop %v4160
  %v4162 = vmul.f32 %v4048, 1.442695
  %v4163 = vpow.pop %v4162
  %v4164 = vmul.f32 %v4049, 1.442695
  %v4165 = vpow.pop %v4164
  %v4166 = vmul.f32 %v4050, 1.442695
  %v4167 = vpow.pop %v4166
  %v4168 = vmul.f32 %v4051, 1.442695
  %v4169 = vpow.pop %v4168
  %v4170 = vmul.f32 %v4052, 1.442695
  %v4171 = vpow.pop %v4170
  %v4172 = vmul.f32 %v4053, 1.442695
  %v4173 = vpow.pop %v4172
  %v4174 = vmul.f32 %v4054, 1.442695
  %v4175 = vpow.pop %v4174
  %v4176 = vmul.f32 %v4055, 1.442695
  %v4177 = vpow.pop %v4176
  %v4178 = vmul.f32 %v4056, 1.442695
  %v4179 = vpow.pop %v4178
  %v4180 = vmul.f32 %v4057, 1.442695
  %v4181 = vpow.pop %v4180
  %v4182 = vmul.f32 %v4058, 1.442695
  %v4183 = vpow.pop %v4182
  %v4184 = vmul.f32 %v4059, 1.442695
  %v4185 = vpow.pop %v4184
  %v4186 = vmul.f32 %v4060, 1.442695
  %v4187 = vpow.pop %v4186
  %v4188 = vmul.f32 %v4061, 1.442695
  %v4189 = vpow.pop %v4188
  %v4190 = vmul.f32 %v4062, 1.442695
  %v4191 = vpow.pop %v4190
  %v4192 = vmul.f32 %v4063, 1.442695
  %v4193 = vpow.pop %v4192
  %v4194 = vmul.f32 %v4064, 1.442695
  %v4195 = vpow.pop %v4194
  %v4196 = vmul.f32 %v4065, 1.442695
  %v4197 = vpow.pop %v4196
  %v4198 = vmul.f32 %v4066, 1.442695
  %v4199 = vpow.pop %v4198
  %v4200 = vmul.f32 %v4067, 1.442695
  %v4201 = vpow.pop %v4200
  %v4202 = vmul.f32 %v4068, 1.442695
  %v4203 = vpow.pop %v4202
  %v4204 = vmul.f32 %v4069, 1.442695
  %v4205 = vpow.pop %v4204
  %v4206 = vmul.f32 %v4070, 1.442695
  %v4207 = vpow.pop %v4206
  %v4208 = vmul.f32 %v4071, 1.442695
  %v4209 = vpow.pop %v4208
  %v4210 = vmul.f32 %v4072, 1.442695
  %v4211 = vpow.pop %v4210
  %v4212 = vmul.f32 %v4073, 1.442695
  %v4213 = vpow.pop %v4212
  %v4214 = vmul.f32 %v4074, 1.442695
  %v4215 = vpow.pop %v4214
  %v4216 = vmul.f32 %v4075, 1.442695
  %v4217 = vpow.pop %v4216
  %v4218 = vmul.f32 %v4076, 1.442695
  %v4219 = vpow.pop %v4218
  %v4220 = vmul.f32 %v4077, 1.442695
  %v4221 = vpow.pop %v4220
  %v4222 = vmul.f32 %v3862, %v4079
  %v4223 = vmul.f32 %v3863, %v4081
  %v4224 = vmul.f32 %v3864, %v4083
  %v4225 = vmul.f32 %v3865, %v4085
  %v4226 = vmul.f32 %v3866, %v4087
  %v4227 = vmul.f32 %v3867, %v4089
  %v4228 = vmul.f32 %v3868, %v4091
  %v4229 = vmul.f32 %v3869, %v4093
  %v4230 = vmul.f32 %v3870, %v4095
  %v4231 = vmul.f32 %v3871, %v4097
  %v4232 = vmul.f32 %v3872, %v4099
  %v4233 = vmul.f32 %v3873, %v4101
  %v4234 = vmul.f32 %v3874, %v4103
  %v4235 = vmul.f32 %v3875, %v4105
  %v4236 = vmul.f32 %v3876, %v4107
  %v4237 = vmul.f32 %v3877, %v4109
  %v4238 = vmul.f32 %v3878, %v4111
  %v4239 = vmul.f32 %v3879, %v4113
  %v4240 = vmul.f32 %v3880, %v4115
  %v4241 = vmul.f32 %v3881, %v4117
  %v4242 = vmul.f32 %v3882, %v4119
  %v4243 = vmul.f32 %v3883, %v4121
  %v4244 = vmul.f32 %v3884, %v4123
  %v4245 = vmul.f32 %v3885, %v4125
  %v4246 = vmul.f32 %v3886, %v4127
  %v4247 = vmul.f32 %v3887, %v4129
  %v4248 = vmul.f32 %v3888, %v4131
  %v4249 = vmul.f32 %v3889, %v4133
  %v4250 = vmul.f32 %v3890, %v4135
  %v4251 = vmul.f32 %v3891, %v4137
  %v4252 = vmul.f32 %v3892, %v4139
  %v4253 = vmul.f32 %v3893, %v4141
  %v4254 = vmul.f32 %v3894, %v4143
  %v4255 = vmul.f32 %v3895, %v4145
  %v4256 = vmul.f32 %v3896, %v4147
  %v4257 = vmul.f32 %v3897, %v4149
  %v4258 = vmul.f32 %v3898, %v4151
  %v4259 = vmul.f32 %v3899, %v4153
  %v4260 = vmul.f32 %v3900, %v4155
  %v4261 = vmul.f32 %v3901, %v4157
  %v4262 = vmul.f32 %v3902, %v4159
  %v4263 = vmul.f32 %v3903, %v4161
  %v4264 = vmul.f32 %v3904, %v4163
  %v4265 = vmul.f32 %v3905, %v4165
  %v4266 = vmul.f32 %v3906, %v4167
  %v4267 = vmul.f32 %v3907, %v4169
  %v4268 = vmul.f32 %v3908, %v4171
  %v4269 = vmul.f32 %v3909, %v4173
  %v4270 = vmul.f32 %v3910, %v4175
  %v4271 = vmul.f32 %v3911, %v4177
  %v4272 = vmul.f32 %v3912, %v4179
  %v4273 = vmul.f32 %v3913, %v4181
  %v4274 = vmul.f32 %v3914, %v4183
  %v4275 = vmul.f32 %v3915, %v4185
  %v4276 = vmul.f32 %v3916, %v4187
  %v4277 = vmul.f32 %v3917, %v4189
  %v4278 = vmul.f32 %v3918, %v4191
  %v4279 = vmul.f32 %v3919, %v4193
  %v4280 = vmul.f32 %v3920, %v4195
  %v4281 = vmul.f32 %v3921, %v4197
  %v4282 = vmul.f32 %v3922, %v4199
  %v4283 = vmul.f32 %v3923, %v4201
  %v4284 = vmul.f32 %v3924, %v4203
  %v4285 = vmul.f32 %v3925, %v4205
  %v4286 = vmul.f32 %v3926, %v4207
  %v4287 = vmul.f32 %v3927, %v4209
  %v4288 = vmul.f32 %v3928, %v4211
  %v4289 = vmul.f32 %v3929, %v4213
  %v4290 = vmul.f32 %v3930, %v4215
  %v4291 = vmul.f32 %v3931, %v4217
  %v4292 = vmul.f32 %v3932, %v4219
  %v4293 = vmul.f32 %v3933, %v4221
  %v4294 = vsub.f32 1.0, %v4222
  %v4295 = vsub.f32 1.0, %v4223
  %v4296 = vsub.f32 1.0, %v4224
  %v4297 = vsub.f32 1.0, %v4225
  %v4298 = vsub.f32 1.0, %v4226
  %v4299 = vsub.f32 1.0, %v4227
  %v4300 = vsub.f32 1.0, %v4228
  %v4301 = vsub.f32 1.0, %v4229
  %v4302 = vsub.f32 1.0, %v4230
  %v4303 = vsub.f32 1.0, %v4231
  %v4304 = vsub.f32 1.0, %v4232
  %v4305 = vsub.f32 1.0, %v4233
  %v4306 = vsub.f32 1.0, %v4234
  %v4307 = vsub.f32 1.0, %v4235
  %v4308 = vsub.f32 1.0, %v4236
  %v4309 = vsub.f32 1.0, %v4237
  %v4310 = vsub.f32 1.0, %v4238
  %v4311 = vsub.f32 1.0, %v4239
  %v4312 = vsub.f32 1.0, %v4240
  %v4313 = vsub.f32 1.0, %v4241
  %v4314 = vsub.f32 1.0, %v4242
  %v4315 = vsub.f32 1.0, %v4243
  %v4316 = vsub.f32 1.0, %v4244
  %v4317 = vsub.f32 1.0, %v4245
  %v4318 = vsub.f32 1.0, %v4246
  %v4319 = vsub.f32 1.0, %v4247
  %v4320 = vsub.f32 1.0, %v4248
  %v4321 = vsub.f32 1.0, %v4249
  %v4322 = vsub.f32 1.0, %v4250
  %v4323 = vsub.f32 1.0, %v4251
  %v4324 = vsub.f32 1.0, %v4252
  %v4325 = vsub.f32 1.0, %v4253
  %v4326 = vsub.f32 1.0, %v4254
  %v4327 = vsub.f32 1.0, %v4255
  %v4328 = vsub.f32 1.0, %v4256
  %v4329 = vsub.f32 1.0, %v4257
  %v4330 = vsub.f32 1.0, %v4258
  %v4331 = vsub.f32 1.0, %v4259
  %v4332 = vsub.f32 1.0, %v4260
  %v4333 = vsub.f32 1.0, %v4261
  %v4334 = vsub.f32 1.0, %v4262
  %v4335 = vsub.f32 1.0, %v4263
  %v4336 = vsub.f32 1.0, %v4264
  %v4337 = vsub.f32 1.0, %v4265
  %v4338 = vsub.f32 1.0, %v4266
  %v4339 = vsub.f32 1.0, %v4267
  %v4340 = vsub.f32 1.0, %v4268
  %v4341 = vsub.f32 1.0, %v4269
  %v4342 = vsub.f32 1.0, %v4270
  %v4343 = vsub.f32 1.0, %v4271
  %v4344 = vsub.f32 1.0, %v4272
  %v4345 = vsub.f32 1.0, %v4273
  %v4346 = vsub.f32 1.0, %v4274
  %v4347 = vsub.f32 1.0, %v4275
  %v4348 = vsub.f32 1.0, %v4276
  %v4349 = vsub.f32 1.0, %v4277
  %v4350 = vsub.f32 1.0, %v4278
  %v4351 = vsub.f32 1.0, %v4279
  %v4352 = vsub.f32 1.0, %v4280
  %v4353 = vsub.f32 1.0, %v4281
  %v4354 = vsub.f32 1.0, %v4282
  %v4355 = vsub.f32 1.0, %v4283
  %v4356 = vsub.f32 1.0, %v4284
  %v4357 = vsub.f32 1.0, %v4285
  %v4358 = vsub.f32 1.0, %v4286
  %v4359 = vsub.f32 1.0, %v4287
  %v4360 = vsub.f32 1.0, %v4288
  %v4361 = vsub.f32 1.0, %v4289
  %v4362 = vsub.f32 1.0, %v4290
  %v4363 = vsub.f32 1.0, %v4291
  %v4364 = vsub.f32 1.0, %v4292
  %v4365 = vsub.f32 1.0, %v4293
  %vm4366 = vcmp.ge.f32.partialorder %v1918, 0.0
  %vm4367 = vcmp.ge.f32.partialorder %v1919, 0.0
  %vm4368 = vcmp.ge.f32.partialorder %v1920, 0.0
  %vm4369 = vcmp.ge.f32.partialorder %v1921, 0.0
  %vm4370 = vcmp.ge.f32.partialorder %v1922, 0.0
  %vm4371 = vcmp.ge.f32.partialorder %v1923, 0.0
  %vm4372 = vcmp.ge.f32.partialorder %v1924, 0.0
  %vm4373 = vcmp.ge.f32.partialorder %v1925, 0.0
  %vm4374 = vcmp.ge.f32.partialorder %v1926, 0.0
  %vm4375 = vcmp.ge.f32.partialorder %v1927, 0.0
  %vm4376 = vcmp.ge.f32.partialorder %v1928, 0.0
  %vm4377 = vcmp.ge.f32.partialorder %v1929, 0.0
  %vm4378 = vcmp.ge.f32.partialorder %v1930, 0.0
  %vm4379 = vcmp.ge.f32.partialorder %v1931, 0.0
  %vm4380 = vcmp.ge.f32.partialorder %v1932, 0.0
  %vm4381 = vcmp.ge.f32.partialorder %v1933, 0.0
  %vm4382 = vcmp.ge.f32.partialorder %v1934, 0.0
  %vm4383 = vcmp.ge.f32.partialorder %v1935, 0.0
  %vm4384 = vcmp.ge.f32.partialorder %v1936, 0.0
  %vm4385 = vcmp.ge.f32.partialorder %v1937, 0.0
  %vm4386 = vcmp.ge.f32.partialorder %v1938, 0.0
  %vm4387 = vcmp.ge.f32.partialorder %v1939, 0.0
  %vm4388 = vcmp.ge.f32.partialorder %v1940, 0.0
  %vm4389 = vcmp.ge.f32.partialorder %v1941, 0.0
  %vm4390 = vcmp.ge.f32.partialorder %v1942, 0.0
  %vm4391 = vcmp.ge.f32.partialorder %v1943, 0.0
  %vm4392 = vcmp.ge.f32.partialorder %v1944, 0.0
  %vm4393 = vcmp.ge.f32.partialorder %v1945, 0.0
  %vm4394 = vcmp.ge.f32.partialorder %v1946, 0.0
  %vm4395 = vcmp.ge.f32.partialorder %v1947, 0.0
  %vm4396 = vcmp.ge.f32.partialorder %v1948, 0.0
  %vm4397 = vcmp.ge.f32.partialorder %v1949, 0.0
  %vm4398 = vcmp.ge.f32.partialorder %v1950, 0.0
  %vm4399 = vcmp.ge.f32.partialorder %v1951, 0.0
  %vm4400 = vcmp.ge.f32.partialorder %v1952, 0.0
  %vm4401 = vcmp.ge.f32.partialorder %v1953, 0.0
  %vm4402 = vcmp.ge.f32.partialorder %v1954, 0.0
  %vm4403 = vcmp.ge.f32.partialorder %v1955, 0.0
  %vm4404 = vcmp.ge.f32.partialorder %v1956, 0.0
  %vm4405 = vcmp.ge.f32.partialorder %v1957, 0.0
  %vm4406 = vcmp.ge.f32.partialorder %v1958, 0.0
  %vm4407 = vcmp.ge.f32.partialorder %v1959, 0.0
  %vm4408 = vcmp.ge.f32.partialorder %v1960, 0.0
  %vm4409 = vcmp.ge.f32.partialorder %v1961, 0.0
  %vm4410 = vcmp.ge.f32.partialorder %v1962, 0.0
  %vm4411 = vcmp.ge.f32.partialorder %v1963, 0.0
  %vm4412 = vcmp.ge.f32.partialorder %v1964, 0.0
  %vm4413 = vcmp.ge.f32.partialorder %v1965, 0.0
  %vm4414 = vcmp.ge.f32.partialorder %v1966, 0.0
  %vm4415 = vcmp.ge.f32.partialorder %v1967, 0.0
  %vm4416 = vcmp.ge.f32.partialorder %v1968, 0.0
  %vm4417 = vcmp.ge.f32.partialorder %v1969, 0.0
  %vm4418 = vcmp.ge.f32.partialorder %v1970, 0.0
  %vm4419 = vcmp.ge.f32.partialorder %v1971, 0.0
  %vm4420 = vcmp.ge.f32.partialorder %v1972, 0.0
  %vm4421 = vcmp.ge.f32.partialorder %v1973, 0.0
  %vm4422 = vcmp.ge.f32.partialorder %v1974, 0.0
  %vm4423 = vcmp.ge.f32.partialorder %v1975, 0.0
  %vm4424 = vcmp.ge.f32.partialorder %v1976, 0.0
  %vm4425 = vcmp.ge.f32.partialorder %v1977, 0.0
  %vm4426 = vcmp.ge.f32.partialorder %v1978, 0.0
  %vm4427 = vcmp.ge.f32.partialorder %v1979, 0.0
  %vm4428 = vcmp.ge.f32.partialorder %v1980, 0.0
  %vm4429 = vcmp.ge.f32.partialorder %v1981, 0.0
  %vm4430 = vcmp.ge.f32.partialorder %v1982, 0.0
  %vm4431 = vcmp.ge.f32.partialorder %v1983, 0.0
  %vm4432 = vcmp.ge.f32.partialorder %v1984, 0.0
  %vm4433 = vcmp.ge.f32.partialorder %v1985, 0.0
  %vm4434 = vcmp.ge.f32.partialorder %v1986, 0.0
  %vm4435 = vcmp.ge.f32.partialorder %v1987, 0.0
  %vm4436 = vcmp.ge.f32.partialorder %v1988, 0.0
  %vm4437 = vcmp.ge.f32.partialorder %v1989, 0.0
  %v4438 = vsub.f32 0.0, %v4294
  %v4439 = vsub.f32 0.0, %v4295
  %v4440 = vsub.f32 0.0, %v4296
  %v4441 = vsub.f32 0.0, %v4297
  %v4442 = vsub.f32 0.0, %v4298
  %v4443 = vsub.f32 0.0, %v4299
  %v4444 = vsub.f32 0.0, %v4300
  %v4445 = vsub.f32 0.0, %v4301
  %v4446 = vsub.f32 0.0, %v4302
  %v4447 = vsub.f32 0.0, %v4303
  %v4448 = vsub.f32 0.0, %v4304
  %v4449 = vsub.f32 0.0, %v4305
  %v4450 = vsub.f32 0.0, %v4306
  %v4451 = vsub.f32 0.0, %v4307
  %v4452 = vsub.f32 0.0, %v4308
  %v4453 = vsub.f32 0.0, %v4309
  %v4454 = vsub.f32 0.0, %v4310
  %v4455 = vsub.f32 0.0, %v4311
  %v4456 = vsub.f32 0.0, %v4312
  %v4457 = vsub.f32 0.0, %v4313
  %v4458 = vsub.f32 0.0, %v4314
  %v4459 = vsub.f32 0.0, %v4315
  %v4460 = vsub.f32 0.0, %v4316
  %v4461 = vsub.f32 0.0, %v4317
  %v4462 = vsub.f32 0.0, %v4318
  %v4463 = vsub.f32 0.0, %v4319
  %v4464 = vsub.f32 0.0, %v4320
  %v4465 = vsub.f32 0.0, %v4321
  %v4466 = vsub.f32 0.0, %v4322
  %v4467 = vsub.f32 0.0, %v4323
  %v4468 = vsub.f32 0.0, %v4324
  %v4469 = vsub.f32 0.0, %v4325
  %v4470 = vsub.f32 0.0, %v4326
  %v4471 = vsub.f32 0.0, %v4327
  %v4472 = vsub.f32 0.0, %v4328
  %v4473 = vsub.f32 0.0, %v4329
  %v4474 = vsub.f32 0.0, %v4330
  %v4475 = vsub.f32 0.0, %v4331
  %v4476 = vsub.f32 0.0, %v4332
  %v4477 = vsub.f32 0.0, %v4333
  %v4478 = vsub.f32 0.0, %v4334
  %v4479 = vsub.f32 0.0, %v4335
  %v4480 = vsub.f32 0.0, %v4336
  %v4481 = vsub.f32 0.0, %v4337
  %v4482 = vsub.f32 0.0, %v4338
  %v4483 = vsub.f32 0.0, %v4339
  %v4484 = vsub.f32 0.0, %v4340
  %v4485 = vsub.f32 0.0, %v4341
  %v4486 = vsub.f32 0.0, %v4342
  %v4487 = vsub.f32 0.0, %v4343
  %v4488 = vsub.f32 0.0, %v4344
  %v4489 = vsub.f32 0.0, %v4345
  %v4490 = vsub.f32 0.0, %v4346
  %v4491 = vsub.f32 0.0, %v4347
  %v4492 = vsub.f32 0.0, %v4348
  %v4493 = vsub.f32 0.0, %v4349
  %v4494 = vsub.f32 0.0, %v4350
  %v4495 = vsub.f32 0.0, %v4351
  %v4496 = vsub.f32 0.0, %v4352
  %v4497 = vsub.f32 0.0, %v4353
  %v4498 = vsub.f32 0.0, %v4354
  %v4499 = vsub.f32 0.0, %v4355
  %v4500 = vsub.f32 0.0, %v4356
  %v4501 = vsub.f32 0.0, %v4357
  %v4502 = vsub.f32 0.0, %v4358
  %v4503 = vsub.f32 0.0, %v4359
  %v4504 = vsub.f32 0.0, %v4360
  %v4505 = vsub.f32 0.0, %v4361
  %v4506 = vsub.f32 0.0, %v4362
  %v4507 = vsub.f32 0.0, %v4363
  %v4508 = vsub.f32 0.0, %v4364
  %v4509 = vsub.f32 0.0, %v4365
  %v4510 = vsel %vm4366, %v4294, %v4438
  %v4511 = vsel %vm4367, %v4295, %v4439
  %v4512 = vsel %vm4368, %v4296, %v4440
  %v4513 = vsel %vm4369, %v4297, %v4441
  %v4514 = vsel %vm4370, %v4298, %v4442
  %v4515 = vsel %vm4371, %v4299, %v4443
  %v4516 = vsel %vm4372, %v4300, %v4444
  %v4517 = vsel %vm4373, %v4301, %v4445
  %v4518 = vsel %vm4374, %v4302, %v4446
  %v4519 = vsel %vm4375, %v4303, %v4447
  %v4520 = vsel %vm4376, %v4304, %v4448
  %v4521 = vsel %vm4377, %v4305, %v4449
  %v4522 = vsel %vm4378, %v4306, %v4450
  %v4523 = vsel %vm4379, %v4307, %v4451
  %v4524 = vsel %vm4380, %v4308, %v4452
  %v4525 = vsel %vm4381, %v4309, %v4453
  %v4526 = vsel %vm4382, %v4310, %v4454
  %v4527 = vsel %vm4383, %v4311, %v4455
  %v4528 = vsel %vm4384, %v4312, %v4456
  %v4529 = vsel %vm4385, %v4313, %v4457
  %v4530 = vsel %vm4386, %v4314, %v4458
  %v4531 = vsel %vm4387, %v4315, %v4459
  %v4532 = vsel %vm4388, %v4316, %v4460
  %v4533 = vsel %vm4389, %v4317, %v4461
  %v4534 = vsel %vm4390, %v4318, %v4462
  %v4535 = vsel %vm4391, %v4319, %v4463
  %v4536 = vsel %vm4392, %v4320, %v4464
  %v4537 = vsel %vm4393, %v4321, %v4465
  %v4538 = vsel %vm4394, %v4322, %v4466
  %v4539 = vsel %vm4395, %v4323, %v4467
  %v4540 = vsel %vm4396, %v4324, %v4468
  %v4541 = vsel %vm4397, %v4325, %v4469
  %v4542 = vsel %vm4398, %v4326, %v4470
  %v4543 = vsel %vm4399, %v4327, %v4471
  %v4544 = vsel %vm4400, %v4328, %v4472
  %v4545 = vsel %vm4401, %v4329, %v4473
  %v4546 = vsel %vm4402, %v4330, %v4474
  %v4547 = vsel %vm4403, %v4331, %v4475
  %v4548 = vsel %vm4404, %v4332, %v4476
  %v4549 = vsel %vm4405, %v4333, %v4477
  %v4550 = vsel %vm4406, %v4334, %v4478
  %v4551 = vsel %vm4407, %v4335, %v4479
  %v4552 = vsel %vm4408, %v4336, %v4480
  %v4553 = vsel %vm4409, %v4337, %v4481
  %v4554 = vsel %vm4410, %v4338, %v4482
  %v4555 = vsel %vm4411, %v4339, %v4483
  %v4556 = vsel %vm4412, %v4340, %v4484
  %v4557 = vsel %vm4413, %v4341, %v4485
  %v4558 = vsel %vm4414, %v4342, %v4486
  %v4559 = vsel %vm4415, %v4343, %v4487
  %v4560 = vsel %vm4416, %v4344, %v4488
  %v4561 = vsel %vm4417, %v4345, %v4489
  %v4562 = vsel %vm4418, %v4346, %v4490
  %v4563 = vsel %vm4419, %v4347, %v4491
  %v4564 = vsel %vm4420, %v4348, %v4492
  %v4565 = vsel %vm4421, %v4349, %v4493
  %v4566 = vsel %vm4422, %v4350, %v4494
  %v4567 = vsel %vm4423, %v4351, %v4495
  %v4568 = vsel %vm4424, %v4352, %v4496
  %v4569 = vsel %vm4425, %v4353, %v4497
  %v4570 = vsel %vm4426, %v4354, %v4498
  %v4571 = vsel %vm4427, %v4355, %v4499
  %v4572 = vsel %vm4428, %v4356, %v4500
  %v4573 = vsel %vm4429, %v4357, %v4501
  %v4574 = vsel %vm4430, %v4358, %v4502
  %v4575 = vsel %vm4431, %v4359, %v4503
  %v4576 = vsel %vm4432, %v4360, %v4504
  %v4577 = vsel %vm4433, %v4361, %v4505
  %v4578 = vsel %vm4434, %v4362, %v4506
  %v4579 = vsel %vm4435, %v4363, %v4507
  %v4580 = vsel %vm4436, %v4364, %v4508
  %v4581 = vsel %vm4437, %v4365, %v4509
  %v4582 = vmul.f32 %v1739, 0.5
  %v4583 = vmul.f32 %v1741, 0.5
  %v4584 = vmul.f32 %v1744, 0.5
  %v4585 = vmul.f32 %v1746, 0.5
  %v4586 = vmul.f32 %v1749, 0.5
  %v4587 = vmul.f32 %v1751, 0.5
  %v4588 = vmul.f32 %v1754, 0.5
  %v4589 = vmul.f32 %v1756, 0.5
  %v4590 = vmul.f32 %v1759, 0.5
  %v4591 = vmul.f32 %v1761, 0.5
  %v4592 = vmul.f32 %v1764, 0.5
  %v4593 = vmul.f32 %v1766, 0.5
  %v4594 = vmul.f32 %v1769, 0.5
  %v4595 = vmul.f32 %v1771, 0.5
  %v4596 = vmul.f32 %v1774, 0.5
  %v4597 = vmul.f32 %v1776, 0.5
  %v4598 = vmul.f32 %v1779, 0.5
  %v4599 = vmul.f32 %v1781, 0.5
  %v4600 = vmul.f32 %v1784, 0.5
  %v4601 = vmul.f32 %v1786, 0.5
  %v4602 = vmul.f32 %v1789, 0.5
  %v4603 = vmul.f32 %v1791, 0.5
  %v4604 = vmul.f32 %v1794, 0.5
  %v4605 = vmul.f32 %v1796, 0.5
  %v4606 = vmul.f32 %v1799, 0.5
  %v4607 = vmul.f32 %v1801, 0.5
  %v4608 = vmul.f32 %v1804, 0.5
  %v4609 = vmul.f32 %v1806, 0.5
  %v4610 = vmul.f32 %v1809, 0.5
  %v4611 = vmul.f32 %v1811, 0.5
  %v4612 = vmul.f32 %v1814, 0.5
  %v4613 = vmul.f32 %v1816, 0.5
  %v4614 = vmul.f32 %v1819, 0.5
  %v4615 = vmul.f32 %v1821, 0.5
  %v4616 = vmul.f32 %v1824, 0.5
  %v4617 = vmul.f32 %v1826, 0.5
  %v4618 = vmul.f32 %v1829, 0.5
  %v4619 = vmul.f32 %v1831, 0.5
  %v4620 = vmul.f32 %v1834, 0.5
  %v4621 = vmul.f32 %v1836, 0.5
  %v4622 = vmul.f32 %v1839, 0.5
  %v4623 = vmul.f32 %v1841, 0.5
  %v4624 = vmul.f32 %v1844, 0.5
  %v4625 = vmul.f32 %v1846, 0.5
  %v4626 = vmul.f32 %v1849, 0.5
  %v4627 = vmul.f32 %v1851, 0.5
  %v4628 = vmul.f32 %v1854, 0.5
  %v4629 = vmul.f32 %v1856, 0.5
  %v4630 = vmul.f32 %v1859, 0.5
  %v4631 = vmul.f32 %v1861, 0.5
  %v4632 = vmul.f32 %v1864, 0.5
  %v4633 = vmul.f32 %v1866, 0.5
  %v4634 = vmul.f32 %v1869, 0.5
  %v4635 = vmul.f32 %v1871, 0.5
  %v4636 = vmul.f32 %v1874, 0.5
  %v4637 = vmul.f32 %v1876, 0.5
  %v4638 = vmul.f32 %v1879, 0.5
  %v4639 = vmul.f32 %v1881, 0.5
  %v4640 = vmul.f32 %v1884, 0.5
  %v4641 = vmul.f32 %v1886, 0.5
  %v4642 = vmul.f32 %v1889, 0.5
  %v4643 = vmul.f32 %v1891, 0.5
  %v4644 = vmul.f32 %v1894, 0.5
  %v4645 = vmul.f32 %v1896, 0.5
  %v4646 = vmul.f32 %v1899, 0.5
  %v4647 = vmul.f32 %v1901, 0.5
  %v4648 = vmul.f32 %v1904, 0.5
  %v4649 = vmul.f32 %v1906, 0.5
  %v4650 = vmul.f32 %v1909, 0.5
  %v4651 = vmul.f32 %v1911, 0.5
  %v4652 = vmul.f32 %v1914, 0.5
  %v4653 = vmul.f32 %v1916, 0.5
  %v4654 = vadd.f32 %v4510, 1.0
  %v4655 = vadd.f32 %v4511, 1.0
  %v4656 = vadd.f32 %v4512, 1.0
  %v4657 = vadd.f32 %v4513, 1.0
  %v4658 = vadd.f32 %v4514, 1.0
  %v4659 = vadd.f32 %v4515, 1.0
  %v4660 = vadd.f32 %v4516, 1.0
  %v4661 = vadd.f32 %v4517, 1.0
  %v4662 = vadd.f32 %v4518, 1.0
  %v4663 = vadd.f32 %v4519, 1.0
  %v4664 = vadd.f32 %v4520, 1.0
  %v4665 = vadd.f32 %v4521, 1.0
  %v4666 = vadd.f32 %v4522, 1.0
  %v4667 = vadd.f32 %v4523, 1.0
  %v4668 = vadd.f32 %v4524, 1.0
  %v4669 = vadd.f32 %v4525, 1.0
  %v4670 = vadd.f32 %v4526, 1.0
  %v4671 = vadd.f32 %v4527, 1.0
  %v4672 = vadd.f32 %v4528, 1.0
  %v4673 = vadd.f32 %v4529, 1.0
  %v4674 = vadd.f32 %v4530, 1.0
  %v4675 = vadd.f32 %v4531, 1.0
  %v4676 = vadd.f32 %v4532, 1.0
  %v4677 = vadd.f32 %v4533, 1.0
  %v4678 = vadd.f32 %v4534, 1.0
  %v4679 = vadd.f32 %v4535, 1.0
  %v4680 = vadd.f32 %v4536, 1.0
  %v4681 = vadd.f32 %v4537, 1.0
  %v4682 = vadd.f32 %v4538, 1.0
  %v4683 = vadd.f32 %v4539, 1.0
  %v4684 = vadd.f32 %v4540, 1.0
  %v4685 = vadd.f32 %v4541, 1.0
  %v4686 = vadd.f32 %v4542, 1.0
  %v4687 = vadd.f32 %v4543, 1.0
  %v4688 = vadd.f32 %v4544, 1.0
  %v4689 = vadd.f32 %v4545, 1.0
  %v4690 = vadd.f32 %v4546, 1.0
  %v4691 = vadd.f32 %v4547, 1.0
  %v4692 = vadd.f32 %v4548, 1.0
  %v4693 = vadd.f32 %v4549, 1.0
  %v4694 = vadd.f32 %v4550, 1.0
  %v4695 = vadd.f32 %v4551, 1.0
  %v4696 = vadd.f32 %v4552, 1.0
  %v4697 = vadd.f32 %v4553, 1.0
  %v4698 = vadd.f32 %v4554, 1.0
  %v4699 = vadd.f32 %v4555, 1.0
  %v4700 = vadd.f32 %v4556, 1.0
  %v4701 = vadd.f32 %v4557, 1.0
  %v4702 = vadd.f32 %v4558, 1.0
  %v4703 = vadd.f32 %v4559, 1.0
  %v4704 = vadd.f32 %v4560, 1.0
  %v4705 = vadd.f32 %v4561, 1.0
  %v4706 = vadd.f32 %v4562, 1.0
  %v4707 = vadd.f32 %v4563, 1.0
  %v4708 = vadd.f32 %v4564, 1.0
  %v4709 = vadd.f32 %v4565, 1.0
  %v4710 = vadd.f32 %v4566, 1.0
  %v4711 = vadd.f32 %v4567, 1.0
  %v4712 = vadd.f32 %v4568, 1.0
  %v4713 = vadd.f32 %v4569, 1.0
  %v4714 = vadd.f32 %v4570, 1.0
  %v4715 = vadd.f32 %v4571, 1.0
  %v4716 = vadd.f32 %v4572, 1.0
  %v4717 = vadd.f32 %v4573, 1.0
  %v4718 = vadd.f32 %v4574, 1.0
  %v4719 = vadd.f32 %v4575, 1.0
  %v4720 = vadd.f32 %v4576, 1.0
  %v4721 = vadd.f32 %v4577, 1.0
  %v4722 = vadd.f32 %v4578, 1.0
  %v4723 = vadd.f32 %v4579, 1.0
  %v4724 = vadd.f32 %v4580, 1.0
  %v4725 = vadd.f32 %v4581, 1.0
  %v4726 = vmul.f32 %v4582, %v4654
  %v4727 = vmul.f32 %v4583, %v4655
  %v4728 = vmul.f32 %v4584, %v4656
  %v4729 = vmul.f32 %v4585, %v4657
  %v4730 = vmul.f32 %v4586, %v4658
  %v4731 = vmul.f32 %v4587, %v4659
  %v4732 = vmul.f32 %v4588, %v4660
  %v4733 = vmul.f32 %v4589, %v4661
  %v4734 = vmul.f32 %v4590, %v4662
  %v4735 = vmul.f32 %v4591, %v4663
  %v4736 = vmul.f32 %v4592, %v4664
  %v4737 = vmul.f32 %v4593, %v4665
  %v4738 = vmul.f32 %v4594, %v4666
  %v4739 = vmul.f32 %v4595, %v4667
  %v4740 = vmul.f32 %v4596, %v4668
  %v4741 = vmul.f32 %v4597, %v4669
  %v4742 = vmul.f32 %v4598, %v4670
  %v4743 = vmul.f32 %v4599, %v4671
  %v4744 = vmul.f32 %v4600, %v4672
  %v4745 = vmul.f32 %v4601, %v4673
  %v4746 = vmul.f32 %v4602, %v4674
  %v4747 = vmul.f32 %v4603, %v4675
  %v4748 = vmul.f32 %v4604, %v4676
  %v4749 = vmul.f32 %v4605, %v4677
  %v4750 = vmul.f32 %v4606, %v4678
  %v4751 = vmul.f32 %v4607, %v4679
  %v4752 = vmul.f32 %v4608, %v4680
  %v4753 = vmul.f32 %v4609, %v4681
  %v4754 = vmul.f32 %v4610, %v4682
  %v4755 = vmul.f32 %v4611, %v4683
  %v4756 = vmul.f32 %v4612, %v4684
  %v4757 = vmul.f32 %v4613, %v4685
  %v4758 = vmul.f32 %v4614, %v4686
  %v4759 = vmul.f32 %v4615, %v4687
  %v4760 = vmul.f32 %v4616, %v4688
  %v4761 = vmul.f32 %v4617, %v4689
  %v4762 = vmul.f32 %v4618, %v4690
  %v4763 = vmul.f32 %v4619, %v4691
  %v4764 = vmul.f32 %v4620, %v4692
  %v4765 = vmul.f32 %v4621, %v4693
  %v4766 = vmul.f32 %v4622, %v4694
  %v4767 = vmul.f32 %v4623, %v4695
  %v4768 = vmul.f32 %v4624, %v4696
  %v4769 = vmul.f32 %v4625, %v4697
  %v4770 = vmul.f32 %v4626, %v4698
  %v4771 = vmul.f32 %v4627, %v4699
  %v4772 = vmul.f32 %v4628, %v4700
  %v4773 = vmul.f32 %v4629, %v4701
  %v4774 = vmul.f32 %v4630, %v4702
  %v4775 = vmul.f32 %v4631, %v4703
  %v4776 = vmul.f32 %v4632, %v4704
  %v4777 = vmul.f32 %v4633, %v4705
  %v4778 = vmul.f32 %v4634, %v4706
  %v4779 = vmul.f32 %v4635, %v4707
  %v4780 = vmul.f32 %v4636, %v4708
  %v4781 = vmul.f32 %v4637, %v4709
  %v4782 = vmul.f32 %v4638, %v4710
  %v4783 = vmul.f32 %v4639, %v4711
  %v4784 = vmul.f32 %v4640, %v4712
  %v4785 = vmul.f32 %v4641, %v4713
  %v4786 = vmul.f32 %v4642, %v4714
  %v4787 = vmul.f32 %v4643, %v4715
  %v4788 = vmul.f32 %v4644, %v4716
  %v4789 = vmul.f32 %v4645, %v4717
  %v4790 = vmul.f32 %v4646, %v4718
  %v4791 = vmul.f32 %v4647, %v4719
  %v4792 = vmul.f32 %v4648, %v4720
  %v4793 = vmul.f32 %v4649, %v4721
  %v4794 = vmul.f32 %v4650, %v4722
  %v4795 = vmul.f32 %v4651, %v4723
  %v4796 = vmul.f32 %v4652, %v4724
  %v4797 = vmul.f32 %v4653, %v4725
  %v4798 = vmax.f32 %v4726, %v4744
  %v4799 = vmax.f32 %v4727, %v4745
  %v4800 = vmax.f32 %v4728, %v4746
  %v4801 = vmax.f32 %v4729, %v4747
  %v4802 = vmax.f32 %v4730, %v4748
  %v4803 = vmax.f32 %v4731, %v4749
  %v4804 = vmax.f32 %v4732, %v4750
  %v4805 = vmax.f32 %v4733, %v4751
  %v4806 = vmax.f32 %v4734, %v4752
  %v4807 = vmax.f32 %v4735, %v4753
  %v4808 = vmax.f32 %v4736, %v4754
  %v4809 = vmax.f32 %v4737, %v4755
  %v4810 = vmax.f32 %v4738, %v4756
  %v4811 = vmax.f32 %v4739, %v4757
  %v4812 = vmax.f32 %v4740, %v4758
  %v4813 = vmax.f32 %v4741, %v4759
  %v4814 = vmax.f32 %v4742, %v4760
  %v4815 = vmax.f32 %v4743, %v4761
  %v4816 = vmax.f32 %v4762, %v4780
  %v4817 = vmax.f32 %v4763, %v4781
  %v4818 = vmax.f32 %v4764, %v4782
  %v4819 = vmax.f32 %v4765, %v4783
  %v4820 = vmax.f32 %v4766, %v4784
  %v4821 = vmax.f32 %v4767, %v4785
  %v4822 = vmax.f32 %v4768, %v4786
  %v4823 = vmax.f32 %v4769, %v4787
  %v4824 = vmax.f32 %v4770, %v4788
  %v4825 = vmax.f32 %v4771, %v4789
  %v4826 = vmax.f32 %v4772, %v4790
  %v4827 = vmax.f32 %v4773, %v4791
  %v4828 = vmax.f32 %v4774, %v4792
  %v4829 = vmax.f32 %v4775, %v4793
  %v4830 = vmax.f32 %v4776, %v4794
  %v4831 = vmax.f32 %v4777, %v4795
  %v4832 = vmax.f32 %v4778, %v4796
  %v4833 = vmax.f32 %v4779, %v4797
  %v4834 = vmax.f32 %v4798, %v4816
  %v4835 = vmax.f32 %v4799, %v4817
  %v4836 = vmax.f32 %v4800, %v4818
  %v4837 = vmax.f32 %v4801, %v4819
  %v4838 = vmax.f32 %v4802, %v4820
  %v4839 = vmax.f32 %v4803, %v4821
  %v4840 = vmax.f32 %v4804, %v4822
  %v4841 = vmax.f32 %v4805, %v4823
  %v4842 = vmax.f32 %v4806, %v4824
  %v4843 = vmax.f32 %v4807, %v4825
  %v4844 = vmax.f32 %v4808, %v4826
  %v4845 = vmax.f32 %v4809, %v4827
  %v4846 = vmax.f32 %v4810, %v4828
  %v4847 = vmax.f32 %v4811, %v4829
  %v4848 = vmax.f32 %v4812, %v4830
  %v4849 = vmax.f32 %v4813, %v4831
  %v4850 = vmax.f32 %v4814, %v4832
  %v4851 = vmax.f32 %v4815, %v4833
  %v4852 = vld [vmem:[%s3] sm:$0xff]
  %v4853 = vld [vmem:[%s3 + $0x8] sm:$0xff]
  %v4854 = vld [vmem:[%s3 + $0x10] sm:$0xff]
  %v4855 = vld [vmem:[%s3 + $0x18] sm:$0xff]
  %v4856 = vld [vmem:[%s3 + $0x20] sm:$0xff]
  %v4857 = vld [vmem:[%s3 + $0x28] sm:$0xff]
  %v4858 = vld [vmem:[%s3 + $0x30] sm:$0xff]
  %v4859 = vld [vmem:[%s3 + $0x38] sm:$0xff]
  %vm4860 = vcmask 261120
  %v4862 = vsel %vm4860, %v4836, 0
  %v4865 = vsel %vm4860, %v4837, 0
  %4867 = vmatpush.msra.mxu0 0.0
  %4868 = vmatpush.msra.mxu0 0.0
  %4869 = vmatpush.msra.mxu0 0.0
  %4870 = vmatpush.msra.mxu0 0.0
  %4871 = vmatpush.msra.mxu0 0.0
  %4872 = vmatpush.msra.mxu0 0.0
  %4873 = vmatpush.msra.mxu0 0.0
  %4874 = vmatpush.msra.mxu0 0.0
  %4875 = vmatpush.msra.mxu0 0.0
  %4876 = vmatpush.msra.mxu0 0.0
  %4877 = vmatpush.msra.mxu0 0.0
  %4878 = vmatpush.msra.mxu0 0.0
  %4879 = vmatpush.msra.mxu0 %v4859
  %4880 = vmatpush.msra.mxu0 %v4858
  %4881 = vmatpush.msra.mxu0 %v4857
  %4882 = vmatpush.msra.mxu0 %v4856
  %4883 = vmatmul.f32.gmra.mxu0 %v4862
  %v4884 = vpop.f32.mrf.mxu0
  %v4885 = vadd.f32 0.0, %v4884
  %4886 = vmatmul.f32.gmra.mxu0 %v4865
  %v4887 = vpop.f32.mrf.mxu0
  %v4888 = vadd.f32 0.0, %v4887
  %4889 = vdwg.mxu0
  %v4891 = vsel %vm4860, %v4834, 0
  %v4894 = vsel %vm4860, %v4835, 0
  %4896 = vmatpush.msra.mxu0 0.0
  %4897 = vmatpush.msra.mxu0 0.0
  %4898 = vmatpush.msra.mxu0 0.0
  %4899 = vmatpush.msra.mxu0 0.0
  %4900 = vmatpush.msra.mxu0 0.0
  %4901 = vmatpush.msra.mxu0 0.0
  %4902 = vmatpush.msra.mxu0 0.0
  %4903 = vmatpush.msra.mxu0 0.0
  %4904 = vmatpush.msra.mxu0 0.0
  %4905 = vmatpush.msra.mxu0 0.0
  %4906 = vmatpush.msra.mxu0 0.0
  %4907 = vmatpush.msra.mxu0 0.0
  %4908 = vmatpush.msra.mxu0 %v4855
  %4909 = vmatpush.msra.mxu0 %v4854
  %4910 = vmatpush.msra.mxu0 %v4853
  %4911 = vmatpush.msra.mxu0 %v4852
  %4912 = vmatmul.f32.gmra.mxu0 %v4891
  %v4913 = vpop.f32.mrf.mxu0
  %v4914 = vadd.f32 %v4885, %v4913
  %4915 = vmatmul.f32.gmra.mxu0 %v4894
  %v4916 = vpop.f32.mrf.mxu0
  %v4917 = vadd.f32 %v4888, %v4916
  %4918 = vdwg.mxu0
  %v4919 = vld [vmem:[%s3 + $0x40] sm:$0xff]
  %v4920 = vld [vmem:[%s3 + $0x48] sm:$0xff]
  %v4921 = vld [vmem:[%s3 + $0x50] sm:$0xff]
  %v4922 = vld [vmem:[%s3 + $0x58] sm:$0xff]
  %v4924 = vsel %vm4860, %v4838, 0
  %v4927 = vsel %vm4860, %v4839, 0
  %4929 = vmatpush.msra.mxu0 0.0
  %4930 = vmatpush.msra.mxu0 0.0
  %4931 = vmatpush.msra.mxu0 0.0
  %4932 = vmatpush.msra.mxu0 0.0
  %4933 = vmatpush.msra.mxu0 0.0
  %4934 = vmatpush.msra.mxu0 0.0
  %4935 = vmatpush.msra.mxu0 0.0
  %4936 = vmatpush.msra.mxu0 0.0
  %4937 = vmatpush.msra.mxu0 0.0
  %4938 = vmatpush.msra.mxu0 0.0
  %4939 = vmatpush.msra.mxu0 0.0
  %4940 = vmatpush.msra.mxu0 0.0
  %4941 = vmatpush.msra.mxu0 %v4922
  %4942 = vmatpush.msra.mxu0 %v4921
  %4943 = vmatpush.msra.mxu0 %v4920
  %4944 = vmatpush.msra.mxu0 %v4919
  %4945 = vmatmul.f32.gmra.mxu0 %v4924
  %v4946 = vpop.f32.mrf.mxu0
  %v4947 = vadd.f32 0.0, %v4946
  %4948 = vmatmul.f32.gmra.mxu0 %v4927
  %v4949 = vpop.f32.mrf.mxu0
  %v4950 = vadd.f32 0.0, %v4949
  %4951 = vdwg.mxu0
  %v4952 = vadd.f32 %v4914, %v4947
  %v4953 = vadd.f32 %v4917, %v4950
  %v4954 = vld [vmem:[%s3 + $0x60] sm:$0xff]
  %v4955 = vld [vmem:[%s3 + $0x68] sm:$0xff]
  %v4956 = vld [vmem:[%s3 + $0x70] sm:$0xff]
  %v4957 = vld [vmem:[%s3 + $0x78] sm:$0xff]
  %v4959 = vsel %vm4860, %v4840, 0
  %v4962 = vsel %vm4860, %v4841, 0
  %4964 = vmatpush.msra.mxu0 0.0
  %4965 = vmatpush.msra.mxu0 0.0
  %4966 = vmatpush.msra.mxu0 0.0
  %4967 = vmatpush.msra.mxu0 0.0
  %4968 = vmatpush.msra.mxu0 0.0
  %4969 = vmatpush.msra.mxu0 0.0
  %4970 = vmatpush.msra.mxu0 0.0
  %4971 = vmatpush.msra.mxu0 0.0
  %4972 = vmatpush.msra.mxu0 0.0
  %4973 = vmatpush.msra.mxu0 0.0
  %4974 = vmatpush.msra.mxu0 0.0
  %4975 = vmatpush.msra.mxu0 0.0
  %4976 = vmatpush.msra.mxu0 %v4957
  %4977 = vmatpush.msra.mxu0 %v4956
  %4978 = vmatpush.msra.mxu0 %v4955
  %4979 = vmatpush.msra.mxu0 %v4954
  %4980 = vmatmul.f32.gmra.mxu0 %v4959
  %v4981 = vpop.f32.mrf.mxu0
  %v4982 = vadd.f32 0.0, %v4981
  %4983 = vmatmul.f32.gmra.mxu0 %v4962
  %v4984 = vpop.f32.mrf.mxu0
  %v4985 = vadd.f32 0.0, %v4984
  %4986 = vdwg.mxu0
  %v4987 = vadd.f32 %v4952, %v4982
  %v4988 = vadd.f32 %v4953, %v4985
  %v4989 = vld [vmem:[%s3 + $0x80] sm:$0xff]
  %v4990 = vld [vmem:[%s3 + $0x88] sm:$0xff]
  %v4991 = vld [vmem:[%s3 + $0x90] sm:$0xff]
  %v4992 = vld [vmem:[%s3 + $0x98] sm:$0xff]
  %v4994 = vsel %vm4860, %v4842, 0
  %v4997 = vsel %vm4860, %v4843, 0
  %4999 = vmatpush.msra.mxu0 0.0
  %5000 = vmatpush.msra.mxu0 0.0
  %5001 = vmatpush.msra.mxu0 0.0
  %5002 = vmatpush.msra.mxu0 0.0
  %5003 = vmatpush.msra.mxu0 0.0
  %5004 = vmatpush.msra.mxu0 0.0
  %5005 = vmatpush.msra.mxu0 0.0
  %5006 = vmatpush.msra.mxu0 0.0
  %5007 = vmatpush.msra.mxu0 0.0
  %5008 = vmatpush.msra.mxu0 0.0
  %5009 = vmatpush.msra.mxu0 0.0
  %5010 = vmatpush.msra.mxu0 0.0
  %5011 = vmatpush.msra.mxu0 %v4992
  %5012 = vmatpush.msra.mxu0 %v4991
  %5013 = vmatpush.msra.mxu0 %v4990
  %5014 = vmatpush.msra.mxu0 %v4989
  %5015 = vmatmul.f32.gmra.mxu0 %v4994
  %v5016 = vpop.f32.mrf.mxu0
  %v5017 = vadd.f32 0.0, %v5016
  %5018 = vmatmul.f32.gmra.mxu0 %v4997
  %v5019 = vpop.f32.mrf.mxu0
  %v5020 = vadd.f32 0.0, %v5019
  %5021 = vdwg.mxu0
  %v5022 = vadd.f32 %v4987, %v5017
  %v5023 = vadd.f32 %v4988, %v5020
  %v5024 = vld [vmem:[%s3 + $0xa0] sm:$0xff]
  %v5025 = vld [vmem:[%s3 + $0xa8] sm:$0xff]
  %v5026 = vld [vmem:[%s3 + $0xb0] sm:$0xff]
  %v5027 = vld [vmem:[%s3 + $0xb8] sm:$0xff]
  %v5029 = vsel %vm4860, %v4844, 0
  %v5032 = vsel %vm4860, %v4845, 0
  %5034 = vmatpush.msra.mxu0 0.0
  %5035 = vmatpush.msra.mxu0 0.0
  %5036 = vmatpush.msra.mxu0 0.0
  %5037 = vmatpush.msra.mxu0 0.0
  %5038 = vmatpush.msra.mxu0 0.0
  %5039 = vmatpush.msra.mxu0 0.0
  %5040 = vmatpush.msra.mxu0 0.0
  %5041 = vmatpush.msra.mxu0 0.0
  %5042 = vmatpush.msra.mxu0 0.0
  %5043 = vmatpush.msra.mxu0 0.0
  %5044 = vmatpush.msra.mxu0 0.0
  %5045 = vmatpush.msra.mxu0 0.0
  %5046 = vmatpush.msra.mxu0 %v5027
  %5047 = vmatpush.msra.mxu0 %v5026
  %5048 = vmatpush.msra.mxu0 %v5025
  %5049 = vmatpush.msra.mxu0 %v5024
  %5050 = vmatmul.f32.gmra.mxu0 %v5029
  %v5051 = vpop.f32.mrf.mxu0
  %v5052 = vadd.f32 0.0, %v5051
  %5053 = vmatmul.f32.gmra.mxu0 %v5032
  %v5054 = vpop.f32.mrf.mxu0
  %v5055 = vadd.f32 0.0, %v5054
  %5056 = vdwg.mxu0
  %v5057 = vadd.f32 %v5022, %v5052
  %v5058 = vadd.f32 %v5023, %v5055
  %v5059 = vld [vmem:[%s3 + $0xc0] sm:$0xff]
  %v5060 = vld [vmem:[%s3 + $0xc8] sm:$0xff]
  %v5061 = vld [vmem:[%s3 + $0xd0] sm:$0xff]
  %v5062 = vld [vmem:[%s3 + $0xd8] sm:$0xff]
  %v5064 = vsel %vm4860, %v4846, 0
  %v5067 = vsel %vm4860, %v4847, 0
  %5069 = vmatpush.msra.mxu0 0.0
  %5070 = vmatpush.msra.mxu0 0.0
  %5071 = vmatpush.msra.mxu0 0.0
  %5072 = vmatpush.msra.mxu0 0.0
  %5073 = vmatpush.msra.mxu0 0.0
  %5074 = vmatpush.msra.mxu0 0.0
  %5075 = vmatpush.msra.mxu0 0.0
  %5076 = vmatpush.msra.mxu0 0.0
  %5077 = vmatpush.msra.mxu0 0.0
  %5078 = vmatpush.msra.mxu0 0.0
  %5079 = vmatpush.msra.mxu0 0.0
  %5080 = vmatpush.msra.mxu0 0.0
  %5081 = vmatpush.msra.mxu0 %v5062
  %5082 = vmatpush.msra.mxu0 %v5061
  %5083 = vmatpush.msra.mxu0 %v5060
  %5084 = vmatpush.msra.mxu0 %v5059
  %5085 = vmatmul.f32.gmra.mxu0 %v5064
  %v5086 = vpop.f32.mrf.mxu0
  %v5087 = vadd.f32 0.0, %v5086
  %5088 = vmatmul.f32.gmra.mxu0 %v5067
  %v5089 = vpop.f32.mrf.mxu0
  %v5090 = vadd.f32 0.0, %v5089
  %5091 = vdwg.mxu0
  %v5092 = vadd.f32 %v5057, %v5087
  %v5093 = vadd.f32 %v5058, %v5090
  %v5094 = vld [vmem:[%s3 + $0xe0] sm:$0xff]
  %v5095 = vld [vmem:[%s3 + $0xe8] sm:$0xff]
  %v5096 = vld [vmem:[%s3 + $0xf0] sm:$0xff]
  %v5097 = vld [vmem:[%s3 + $0xf8] sm:$0xff]
  %v5099 = vsel %vm4860, %v4848, 0
  %v5102 = vsel %vm4860, %v4849, 0
  %5104 = vmatpush.msra.mxu0 0.0
  %5105 = vmatpush.msra.mxu0 0.0
  %5106 = vmatpush.msra.mxu0 0.0
  %5107 = vmatpush.msra.mxu0 0.0
  %5108 = vmatpush.msra.mxu0 0.0
  %5109 = vmatpush.msra.mxu0 0.0
  %5110 = vmatpush.msra.mxu0 0.0
  %5111 = vmatpush.msra.mxu0 0.0
  %5112 = vmatpush.msra.mxu0 0.0
  %5113 = vmatpush.msra.mxu0 0.0
  %5114 = vmatpush.msra.mxu0 0.0
  %5115 = vmatpush.msra.mxu0 0.0
  %5116 = vmatpush.msra.mxu0 %v5097
  %5117 = vmatpush.msra.mxu0 %v5096
  %5118 = vmatpush.msra.mxu0 %v5095
  %5119 = vmatpush.msra.mxu0 %v5094
  %5120 = vmatmul.f32.gmra.mxu0 %v5099
  %v5121 = vpop.f32.mrf.mxu0
  %v5122 = vadd.f32 0.0, %v5121
  %5123 = vmatmul.f32.gmra.mxu0 %v5102
  %v5124 = vpop.f32.mrf.mxu0
  %v5125 = vadd.f32 0.0, %v5124
  %5126 = vdwg.mxu0
  %v5127 = vadd.f32 %v5092, %v5122
  %v5128 = vadd.f32 %v5093, %v5125
  %v5129 = vld [vmem:[%s3 + $0x100] sm:$0xff]
  %v5130 = vld [vmem:[%s3 + $0x108] sm:$0xff]
  %v5131 = vld [vmem:[%s3 + $0x110] sm:$0xff]
  %v5132 = vld [vmem:[%s3 + $0x118] sm:$0xff]
  %v5134 = vsel %vm4860, %v4850, 0
  %v5137 = vsel %vm4860, %v4851, 0
  %5139 = vmatpush.msra.mxu0 0.0
  %5140 = vmatpush.msra.mxu0 0.0
  %5141 = vmatpush.msra.mxu0 0.0
  %5142 = vmatpush.msra.mxu0 0.0
  %5143 = vmatpush.msra.mxu0 0.0
  %5144 = vmatpush.msra.mxu0 0.0
  %5145 = vmatpush.msra.mxu0 0.0
  %5146 = vmatpush.msra.mxu0 0.0
  %5147 = vmatpush.msra.mxu0 0.0
  %5148 = vmatpush.msra.mxu0 0.0
  %5149 = vmatpush.msra.mxu0 0.0
  %5150 = vmatpush.msra.mxu0 0.0
  %5151 = vmatpush.msra.mxu0 %v5132
  %5152 = vmatpush.msra.mxu0 %v5131
  %5153 = vmatpush.msra.mxu0 %v5130
  %5154 = vmatpush.msra.mxu0 %v5129
  %5155 = vmatmul.f32.gmra.mxu0 %v5134
  %v5156 = vpop.f32.mrf.mxu0
  %v5157 = vadd.f32 0.0, %v5156
  %5158 = vmatmul.f32.gmra.mxu0 %v5137
  %v5159 = vpop.f32.mrf.mxu0
  %v5160 = vadd.f32 0.0, %v5159
  %5161 = vdwg.mxu0
  %v5162 = vadd.f32 %v5127, %v5157
  %v5163 = vadd.f32 %v5128, %v5160
  %v5164 = vld [vmem:[%s4] sm:$0x1]
  %v5166 = vperm.slane %v5164, 0
  %v5168 = vadd.f32 %v5162, %v5166
  %v5169 = vadd.f32 %v5163, %v5166
  %vm5170 = vcmask 15360
  %5171 = vst.msk [vmem:[%s5] sm:$0xff] %vm5170, %v5168
  %5172 = vst.msk [vmem:[%s5 + $0x8] sm:$0xff] %vm5170, %v5169
  // Predicated region
  $region22: #{basic_cnn_forward.3} parent=0 // pred_check
    _
  $region23: #{basic_cnn_forward.3} parent=0 // pred_check_branch
    %5174 = sbr.rel (0) target = $region25
  $region24: #{basic_cnn_forward.3} parent=0 // pred_region
    _
  $region25: #{basic_cnn_forward.3} parent=0 // pred_fallthru
    _
  // Predicated region
  $region26: #{basic_cnn_forward.3} parent=0 // pred_check
    _
  $region27: #{basic_cnn_forward.3} parent=0 // pred_check_branch
    %5176 = sbr.rel (0) target = $region29
  $region28: #{basic_cnn_forward.3} parent=0 // pred_region
    _
  $region29: #{basic_cnn_forward.3} parent=0 // pred_fallthru
    _

</llo_original>
